<compile_context>
chip_gen: v6e
topology: v6e:2x2x1
jax: 0.10.0
libtpu: 0.0.40
codegen_flags: <defaults>
</compile_context>

<pallas_src>
import jax
import jax.numpy as jnp
from jax import lax
from jax.experimental import pallas as pl
from jax.experimental.pallas import tpu as pltpu


MATMUL_DTYPE = jnp.bfloat16


def _leaky_relu(v, slope=0.2):
    return jnp.where(v > 0, v, slope * v)


def vae_kernel(x_ref, y_ref, eps_ref,
               w1_ref, b1_ref, w2_ref, b2_ref, w3_ref, b3_ref,
               wmv_ref, bmv_ref,
               xhat_ref, mean_ref, logvar_ref):
    # Each grid step handles a block of TB batch elements, flattened to (TB*S, D)
    # so the MXU sees M >= 128 rows.
    TB, S, D_in = x_ref.shape
    D_out = eps_ref.shape[-1]
    M = TB * S
    md = w1_ref.dtype                       # MXU operand dtype (bf16)

    x3 = x_ref[...]                         # (TB, S, D_in), bf16
    x = x3.reshape(M, D_in)
    y = y_ref[...].reshape(M, D_in)
    eps = eps_ref[...].reshape(M, D_out).astype(jnp.float32)

    # Encoder: 3 x (Linear + LeakyReLU).  bf16 MXU operands, f32 accumulation,
    # f32 elementwise (mandatory on v5e, fine everywhere).
    h = (x + y).astype(md)
    h = _leaky_relu(
        jnp.dot(h, w1_ref[...], preferred_element_type=jnp.float32) + b1_ref[...])
    h = _leaky_relu(
        jnp.dot(h.astype(md), w2_ref[...], preferred_element_type=jnp.float32)
        + b2_ref[...])
    h = _leaky_relu(
        jnp.dot(h.astype(md), w3_ref[...], preferred_element_type=jnp.float32)
        + b3_ref[...])

    # Fused mean / log_var heads: one (M, H) @ (H, 2*D_out) matmul, lane-aligned slice.
    mv = (jnp.dot(h.astype(md), wmv_ref[...], preferred_element_type=jnp.float32)
          + bmv_ref[...])
    mean = mv[:, :D_out]
    log_var = mv[:, D_out:]

    # Reparameterization (f32 on VPU/EUP): z = mean + exp(0.5*log_var) * eps.
    z = mean + jnp.exp(0.5 * log_var) * eps

    mean_ref[...] = mean.reshape(TB, S, D_out).astype(mean_ref.dtype)
    logvar_ref[...] = log_var.reshape(TB, S, D_out).astype(logvar_ref.dtype)

    # Decoder, streamed: x_hat[b] = z[b]^T @ x[b], stored immediately so the peak
    # live intermediate is a single (D_out, D_in) tile and stores overlap the MXU.
    z3 = z.reshape(TB, S, D_out).astype(md)
    for b in range(TB):                     # TB is a compile-time constant
        xh = lax.dot_general(
            z3[b], x3[b],
            dimension_numbers=(((0,), (0,)), ((), ())),   # contract the S dim
            preferred_element_type=jnp.float32)           # (D_out, D_in)
        xhat_ref[b] = xh.astype(xhat_ref.dtype)


def _pick_tb(B, S, target_rows):
    """Batch-block size: aim for ~target_rows MXU rows per grid step, TB | B.
    (No forced >=2-step halving -- that only hurt single-TC v5e/v6e.)"""
    tb = max(1, min(B, target_rows // max(S, 1)))
    while B % tb:
        tb -= 1
    return tb


def prepare_params(params, matmul_dtype=MATMUL_DTYPE):
    """One-time weight prep (casts + mean|var head fusion) outside the per-call path."""
    md = matmul_dtype
    return {
        "w1": params["w1"].astype(md), "b1": params["b1"].astype(jnp.float32),
        "w2": params["w2"].astype(md), "b2": params["b2"].astype(jnp.float32),
        "w3": params["w3"].astype(md), "b3": params["b3"].astype(jnp.float32),
        "wmv": jnp.concatenate([params["wm"], params["wv"]], axis=1).astype(md),
        "bmv": jnp.concatenate([params["bm"], params["bv"]], axis=1).astype(jnp.float32),
    }


def vae_forward(x, y, eps, prep, *, target_rows=256):
    """x, y: (B, S, D_in); eps: (B, S, D_out).
    Returns (x_hat [bf16], mean [f32], log_var [f32])."""
    B, S, D_in = x.shape
    D_out = eps.shape[-1]
    H = prep["w1"].shape[1]
    md = prep["w1"].dtype
    esz = jnp.dtype(md).itemsize

    TB = _pick_tb(B, S, target_rows)
    grid = (B // TB,)

    # bf16 inputs: halves the input DMA bytes; eps is upcast to f32 inside the kernel.
    xb, yb, epsb = x.astype(md), y.astype(md), eps.astype(md)

    const2d = lambda shape: pl.BlockSpec(shape, lambda b: (0, 0))
    batched = lambda d: pl.BlockSpec((TB, S, d), lambda b: (b, 0, 0))

    in_specs = [
        batched(D_in),                                      # x
        batched(D_in),                                      # y
        batched(D_out),                                     # eps
        const2d((D_in, H)), const2d((1, H)),                # FC_input
        const2d((H, H)),    const2d((1, H)),                # FC_input2
        const2d((H, H)),    const2d((1, H)),                # FC_input3
        const2d((H, 2 * D_out)), const2d((1, 2 * D_out)),   # fused FC_mean|FC_var
    ]
    out_specs = [
        pl.BlockSpec((TB, D_out, D_in), lambda b: (b, 0, 0)),  # x_hat
        batched(D_out),                                        # mean
        batched(D_out),                                        # log_var
    ]
    out_shape = [
        jax.ShapeDtypeStruct((B, D_out, D_in), md),            # bf16 x_hat writeback
        jax.ShapeDtypeStruct((B, S, D_out), jnp.float32),
        jax.ShapeDtypeStruct((B, S, D_out), jnp.float32),
    ]

    # Explicit VMEM budget: double-buffered blocks + resident weights + headroom.
    blk_in = (2 * TB * S * D_in + TB * S * D_out) * esz
    blk_out = TB * D_out * D_in * esz + 2 * TB * S * D_out * 4
    w_bytes = (D_in * H + 2 * H * H + H * 2 * D_out) * esz + (3 * H + 2 * D_out) * 4
    live = TB * S * (H + 2 * D_out + D_out) * 4            # rough in-kernel intermediates
    vmem_need = 2 * (blk_in + blk_out + w_bytes) + live
    vmem_limit = int(min(max(vmem_need + (4 << 20), 16 << 20), 64 << 20))

    flops = 2 * B * S * (D_in * H + 2 * H * H + H * 2 * D_out) + 2 * B * S * D_out * D_in
    bytes_accessed = ((xb.size + yb.size + epsb.size) * esz + w_bytes
                      + B * D_out * D_in * esz + 2 * B * S * D_out * 4)
    cost = pl.CostEstimate(flops=flops,
                           transcendentals=B * S * D_out,
                           bytes_accessed=bytes_accessed)

    return pl.pallas_call(
        vae_kernel,
        out_shape=out_shape,
        grid_spec=pltpu.PrefetchScalarGridSpec(
            num_scalar_prefetch=0,
            grid=grid,
            in_specs=in_specs,
            out_specs=out_specs,
        ),
        compiler_params=pltpu.CompilerParams(
            dimension_semantics=("parallel",),
            vmem_limit_bytes=vmem_limit),
        cost_estimate=cost,
    )(xb, yb, epsb,
      prep["w1"], prep["b1"], prep["w2"], prep["b2"], prep["w3"], prep["b3"],
      prep["wmv"], prep["bmv"])


def init_params(key, d_in, hidden, d_out):
    ks = jax.random.split(key, 10)
    scale = lambda fan_in: 1.0 / jnp.sqrt(jnp.float32(fan_in))
    return {
        "w1": jax.random.normal(ks[0], (d_in, hidden), jnp.float32) * scale(d_in),
        "b1": jax.random.normal(ks[1], (1, hidden), jnp.float32) * 0.01,
        "w2": jax.random.normal(ks[2], (hidden, hidden), jnp.float32) * scale(hidden),
        "b2": jax.random.normal(ks[3], (1, hidden), jnp.float32) * 0.01,
        "w3": jax.random.normal(ks[4], (hidden, hidden), jnp.float32) * scale(hidden),
        "b3": jax.random.normal(ks[5], (1, hidden), jnp.float32) * 0.01,
        "wm": jax.random.normal(ks[6], (hidden, d_out), jnp.float32) * scale(hidden),
        "bm": jax.random.normal(ks[7], (1, d_out), jnp.float32) * 0.01,
        "wv": jax.random.normal(ks[8], (hidden, d_out), jnp.float32) * scale(hidden),
        "bv": jax.random.normal(ks[9], (1, d_out), jnp.float32) * 0.01,
    }


def vae_forward_ref(x, y, eps, p, matmul_dtype=MATMUL_DTYPE):
    """Pure-JAX reference mirroring the PyTorch forward with the same bf16 casts."""
    md = matmul_dtype
    xb, yb = x.astype(md), y.astype(md)
    epsf = eps.astype(md).astype(jnp.float32)
    lr = lambda v: jnp.where(v > 0, v, 0.2 * v)
    dot = lambda a, w: jnp.dot(a.astype(md), w.astype(md),
                               preferred_element_type=jnp.float32)
    h = lr(dot(xb + yb, p["w1"]) + p["b1"])
    h = lr(dot(h, p["w2"]) + p["b2"])
    h = lr(dot(h, p["w3"]) + p["b3"])
    mean = dot(h, p["wm"]) + p["bm"]
    log_var = dot(h, p["wv"]) + p["bv"]
    z = mean + jnp.exp(0.5 * log_var) * epsf
    x_hat = jnp.einsum("bso,bsi->boi", z.astype(md), xb,
                       preferred_element_type=jnp.float32)
    return x_hat, mean, log_var


if __name__ == "__main__":
    # Small, TPU-friendly (lane-dense) shapes; the PyTorch defaults were 330/100/330.
    B, S = 64, 8
    D_IN, HIDDEN, D_OUT = 128, 128, 128

    key = jax.random.PRNGKey(0)
    kx, ky, keps, kp = jax.random.split(key, 4)

    x = jax.random.normal(kx, (B, S, D_IN), jnp.float32)
    y = jax.random.normal(ky, (B, S, D_IN), jnp.float32)
    # epsilon for reparameterization (torch.randn_like), drawn deterministically
    eps = jax.random.normal(keps, (B, S, D_OUT), jnp.float32)

    params = init_params(kp, D_IN, HIDDEN, D_OUT)
    prep = prepare_params(params)

    x_hat, mean, log_var = vae_forward(x, y, eps, prep)
    jax.block_until_ready((x_hat, mean, log_var))

    x_hat_r, mean_r, log_var_r = vae_forward_ref(x, y, eps, params)
    assert x_hat.shape == (B, D_OUT, D_IN) and x_hat.dtype == jnp.bfloat16
    assert mean.shape == (B, S, D_OUT) and log_var.shape == (B, S, D_OUT)
    assert jnp.allclose(mean, mean_r, atol=2e-2, rtol=2e-2)
    assert jnp.allclose(log_var, log_var_r, atol=2e-2, rtol=2e-2)
    # x_hat is emitted as bf16 (memory-bound writeback) -> looser tolerance vs f32 ref.
    assert jnp.allclose(x_hat.astype(jnp.float32), x_hat_r, atol=1.5e-1, rtol=5e-2)

    print("KERNEL_OK")
</pallas_src>

<mosaic_0001>
module attributes {stable_mosaic.version = 11 : i64} {
  func.func @vae_kernel(%arg0: i32, %arg1: memref<32x8x128xbf16, #tpu.memory_space<vmem>>, %arg2: memref<32x8x128xbf16, #tpu.memory_space<vmem>>, %arg3: memref<32x8x128xbf16, #tpu.memory_space<vmem>>, %arg4: memref<128x128xbf16, #tpu.memory_space<vmem>>, %arg5: memref<1x128xf32, #tpu.memory_space<vmem>>, %arg6: memref<128x128xbf16, #tpu.memory_space<vmem>>, %arg7: memref<1x128xf32, #tpu.memory_space<vmem>>, %arg8: memref<128x128xbf16, #tpu.memory_space<vmem>>, %arg9: memref<1x128xf32, #tpu.memory_space<vmem>>, %arg10: memref<128x256xbf16, #tpu.memory_space<vmem>>, %arg11: memref<1x256xf32, #tpu.memory_space<vmem>>, %arg12: memref<32x128x128xbf16, #tpu.memory_space<vmem>>, %arg13: memref<32x8x128xf32, #tpu.memory_space<vmem>>, %arg14: memref<32x8x128xf32, #tpu.memory_space<vmem>>) attributes {dimension_semantics = [#tpu.dimension_semantics<parallel>], iteration_bounds = array<i64: 2>, scalar_prefetch = 0 : i64, scratch_operands = 0 : i64, tpu.core_type = #tpu.core_type<tc>, window_params = [{transform_indices = @transform_0, window_bounds = array<i64: 32, 8, 128>}, {transform_indices = @transform_1, window_bounds = array<i64: 32, 8, 128>}, {transform_indices = @transform_2, window_bounds = array<i64: 32, 8, 128>}, {pipeline_mode = #tpu.pipeline_mode<synchronous>, transform_indices = @transform_3, window_bounds = array<i64: 128, 128>}, {pipeline_mode = #tpu.pipeline_mode<synchronous>, transform_indices = @transform_4, window_bounds = array<i64: 1, 128>}, {pipeline_mode = #tpu.pipeline_mode<synchronous>, transform_indices = @transform_5, window_bounds = array<i64: 128, 128>}, {pipeline_mode = #tpu.pipeline_mode<synchronous>, transform_indices = @transform_6, window_bounds = array<i64: 1, 128>}, {pipeline_mode = #tpu.pipeline_mode<synchronous>, transform_indices = @transform_7, window_bounds = array<i64: 128, 128>}, {pipeline_mode = #tpu.pipeline_mode<synchronous>, transform_indices = @transform_8, window_bounds = array<i64: 1, 128>}, {pipeline_mode = #tpu.pipeline_mode<synchronous>, transform_indices = @transform_9, window_bounds = array<i64: 128, 256>}, {pipeline_mode = #tpu.pipeline_mode<synchronous>, transform_indices = @transform_10, window_bounds = array<i64: 1, 256>}, {transform_indices = @transform_11, window_bounds = array<i64: 32, 128, 128>}, {transform_indices = @transform_12, window_bounds = array<i64: 32, 8, 128>}, {transform_indices = @transform_13, window_bounds = array<i64: 32, 8, 128>}]} {
    %c0 = arith.constant 0 : index
    %c0_0 = arith.constant 0 : index
    %c0_1 = arith.constant 0 : index
    %0 = vector.load %arg1[%c0, %c0_0, %c0_1] : memref<32x8x128xbf16, #tpu.memory_space<vmem>>, vector<32x8x128xbf16>
    %1 = vector.shape_cast %0 : vector<32x8x128xbf16> to vector<256x128xbf16>
    %c0_2 = arith.constant 0 : index
    %c0_3 = arith.constant 0 : index
    %c0_4 = arith.constant 0 : index
    %2 = vector.load %arg2[%c0_2, %c0_3, %c0_4] : memref<32x8x128xbf16, #tpu.memory_space<vmem>>, vector<32x8x128xbf16>
    %3 = vector.shape_cast %2 : vector<32x8x128xbf16> to vector<256x128xbf16>
    %c0_5 = arith.constant 0 : index
    %c0_6 = arith.constant 0 : index
    %c0_7 = arith.constant 0 : index
    %4 = vector.load %arg3[%c0_5, %c0_6, %c0_7] : memref<32x8x128xbf16, #tpu.memory_space<vmem>>, vector<32x8x128xbf16>
    %5 = vector.shape_cast %4 : vector<32x8x128xbf16> to vector<256x128xbf16>
    %6 = arith.extf %5 : vector<256x128xbf16> to vector<256x128xf32>
    %7 = arith.addf %1, %3 : vector<256x128xbf16>
    %c0_8 = arith.constant 0 : index
    %c0_9 = arith.constant 0 : index
    %8 = vector.load %arg4[%c0_8, %c0_9] : memref<128x128xbf16, #tpu.memory_space<vmem>>, vector<128x128xbf16>
    %cst = arith.constant dense<0.000000e+00> : vector<256x128xf32>
    %9 = tpu.matmul %7, %8, %cst {dimension_numbers = #tpu.dot_dimension_numbers<[1], [0], [0], [1], [0, 0, 1, 1], [], []>} : vector<256x128xbf16>, vector<128x128xbf16>, vector<256x128xf32> -> vector<256x128xf32>
    %c0_10 = arith.constant 0 : index
    %c0_11 = arith.constant 0 : index
    %10 = vector.load %arg5[%c0_10, %c0_11] : memref<1x128xf32, #tpu.memory_space<vmem>>, vector<1x128xf32>
    %11 = vector.broadcast %10 : vector<1x128xf32> to vector<256x128xf32>
    %12 = arith.addf %9, %11 : vector<256x128xf32>
    %cst_12 = arith.constant 0.000000e+00 : f32
    %13 = vector.broadcast %cst_12 : f32 to vector<256x128xf32>
    %14 = arith.cmpf ogt, %12, %13 : vector<256x128xf32>
    %cst_13 = arith.constant 2.000000e-01 : f32
    %15 = vector.broadcast %cst_13 : f32 to vector<256x128xf32>
    %16 = arith.mulf %15, %12 : vector<256x128xf32>
    %17 = arith.select %14, %12, %16 : vector<256x128xi1>, vector<256x128xf32>
    %18 = arith.truncf %17 : vector<256x128xf32> to vector<256x128xbf16>
    %c0_14 = arith.constant 0 : index
    %c0_15 = arith.constant 0 : index
    %19 = vector.load %arg6[%c0_14, %c0_15] : memref<128x128xbf16, #tpu.memory_space<vmem>>, vector<128x128xbf16>
    %cst_16 = arith.constant dense<0.000000e+00> : vector<256x128xf32>
    %20 = tpu.matmul %18, %19, %cst_16 {dimension_numbers = #tpu.dot_dimension_numbers<[1], [0], [0], [1], [0, 0, 1, 1], [], []>} : vector<256x128xbf16>, vector<128x128xbf16>, vector<256x128xf32> -> vector<256x128xf32>
    %c0_17 = arith.constant 0 : index
    %c0_18 = arith.constant 0 : index
    %21 = vector.load %arg7[%c0_17, %c0_18] : memref<1x128xf32, #tpu.memory_space<vmem>>, vector<1x128xf32>
    %22 = vector.broadcast %21 : vector<1x128xf32> to vector<256x128xf32>
    %23 = arith.addf %20, %22 : vector<256x128xf32>
    %cst_19 = arith.constant 0.000000e+00 : f32
    %24 = vector.broadcast %cst_19 : f32 to vector<256x128xf32>
    %25 = arith.cmpf ogt, %23, %24 : vector<256x128xf32>
    %cst_20 = arith.constant 2.000000e-01 : f32
    %26 = vector.broadcast %cst_20 : f32 to vector<256x128xf32>
    %27 = arith.mulf %26, %23 : vector<256x128xf32>
    %28 = arith.select %25, %23, %27 : vector<256x128xi1>, vector<256x128xf32>
    %29 = arith.truncf %28 : vector<256x128xf32> to vector<256x128xbf16>
    %c0_21 = arith.constant 0 : index
    %c0_22 = arith.constant 0 : index
    %30 = vector.load %arg8[%c0_21, %c0_22] : memref<128x128xbf16, #tpu.memory_space<vmem>>, vector<128x128xbf16>
    %cst_23 = arith.constant dense<0.000000e+00> : vector<256x128xf32>
    %31 = tpu.matmul %29, %30, %cst_23 {dimension_numbers = #tpu.dot_dimension_numbers<[1], [0], [0], [1], [0, 0, 1, 1], [], []>} : vector<256x128xbf16>, vector<128x128xbf16>, vector<256x128xf32> -> vector<256x128xf32>
    %c0_24 = arith.constant 0 : index
    %c0_25 = arith.constant 0 : index
    %32 = vector.load %arg9[%c0_24, %c0_25] : memref<1x128xf32, #tpu.memory_space<vmem>>, vector<1x128xf32>
    %33 = vector.broadcast %32 : vector<1x128xf32> to vector<256x128xf32>
    %34 = arith.addf %31, %33 : vector<256x128xf32>
    %cst_26 = arith.constant 0.000000e+00 : f32
    %35 = vector.broadcast %cst_26 : f32 to vector<256x128xf32>
    %36 = arith.cmpf ogt, %34, %35 : vector<256x128xf32>
    %cst_27 = arith.constant 2.000000e-01 : f32
    %37 = vector.broadcast %cst_27 : f32 to vector<256x128xf32>
    %38 = arith.mulf %37, %34 : vector<256x128xf32>
    %39 = arith.select %36, %34, %38 : vector<256x128xi1>, vector<256x128xf32>
    %40 = arith.truncf %39 : vector<256x128xf32> to vector<256x128xbf16>
    %c0_28 = arith.constant 0 : index
    %c0_29 = arith.constant 0 : index
    %41 = vector.load %arg10[%c0_28, %c0_29] : memref<128x256xbf16, #tpu.memory_space<vmem>>, vector<128x256xbf16>
    %cst_30 = arith.constant dense<0.000000e+00> : vector<256x256xf32>
    %42 = tpu.matmul %40, %41, %cst_30 {dimension_numbers = #tpu.dot_dimension_numbers<[1], [0], [0], [1], [0, 0, 1, 1], [], []>} : vector<256x128xbf16>, vector<128x256xbf16>, vector<256x256xf32> -> vector<256x256xf32>
    %c0_31 = arith.constant 0 : index
    %c0_32 = arith.constant 0 : index
    %43 = vector.load %arg11[%c0_31, %c0_32] : memref<1x256xf32, #tpu.memory_space<vmem>>, vector<1x256xf32>
    %44 = vector.broadcast %43 : vector<1x256xf32> to vector<256x256xf32>
    %45 = arith.addf %42, %44 : vector<256x256xf32>
    %46 = vector.extract_strided_slice %45 {offsets = [0, 0], sizes = [256, 128], strides = [1, 1]} : vector<256x256xf32> to vector<256x128xf32>
    %47 = vector.extract_strided_slice %45 {offsets = [0, 128], sizes = [256, 128], strides = [1, 1]} : vector<256x256xf32> to vector<256x128xf32>
    %cst_33 = arith.constant 5.000000e-01 : f32
    %48 = vector.broadcast %cst_33 : f32 to vector<256x128xf32>
    %49 = arith.mulf %48, %47 : vector<256x128xf32>
    %50 = math.exp %49 : vector<256x128xf32>
    %51 = arith.mulf %50, %6 : vector<256x128xf32>
    %52 = arith.addf %46, %51 : vector<256x128xf32>
    %53 = vector.shape_cast %46 : vector<256x128xf32> to vector<32x8x128xf32>
    %c0_34 = arith.constant 0 : index
    %c0_35 = arith.constant 0 : index
    %c0_36 = arith.constant 0 : index
    %54 = vector.load %arg13[%c0_34, %c0_35, %c0_36] : memref<32x8x128xf32, #tpu.memory_space<vmem>>, vector<32x8x128xf32>
    tpu.vector_store %arg13[%c0_34, %c0_35, %c0_36], %53 {strides = array<i32>} : memref<32x8x128xf32, #tpu.memory_space<vmem>>, vector<32x8x128xf32>,
    %55 = vector.shape_cast %47 : vector<256x128xf32> to vector<32x8x128xf32>
    %c0_37 = arith.constant 0 : index
    %c0_38 = arith.constant 0 : index
    %c0_39 = arith.constant 0 : index
    %56 = vector.load %arg14[%c0_37, %c0_38, %c0_39] : memref<32x8x128xf32, #tpu.memory_space<vmem>>, vector<32x8x128xf32>
    tpu.vector_store %arg14[%c0_37, %c0_38, %c0_39], %55 {strides = array<i32>} : memref<32x8x128xf32, #tpu.memory_space<vmem>>, vector<32x8x128xf32>,
    %57 = vector.shape_cast %52 : vector<256x128xf32> to vector<32x8x128xf32>
    %58 = arith.truncf %57 : vector<32x8x128xf32> to vector<32x8x128xbf16>
    %59 = vector.extract_strided_slice %58 {offsets = [0, 0, 0], sizes = [1, 8, 128], strides = [1, 1, 1]} : vector<32x8x128xbf16> to vector<1x8x128xbf16>
    %60 = vector.shape_cast %59 : vector<1x8x128xbf16> to vector<8x128xbf16>
    %61 = vector.extract_strided_slice %0 {offsets = [0, 0, 0], sizes = [1, 8, 128], strides = [1, 1, 1]} : vector<32x8x128xbf16> to vector<1x8x128xbf16>
    %62 = vector.shape_cast %61 : vector<1x8x128xbf16> to vector<8x128xbf16>
    %cst_40 = arith.constant dense<0.000000e+00> : vector<128x128xf32>
    %63 = tpu.matmul %60, %62, %cst_40 {dimension_numbers = #tpu.dot_dimension_numbers<[0], [0], [1], [1], [0, 1, 1, 1], [], []>} : vector<8x128xbf16>, vector<8x128xbf16>, vector<128x128xf32> -> vector<128x128xf32>
    %64 = arith.truncf %63 : vector<128x128xf32> to vector<128x128xbf16>
    %c0_41 = arith.constant 0 : index
    %c0_42 = arith.constant 0 : index
    %c0_43 = arith.constant 0 : index
    %65 = vector.load %arg12[%c0_41, %c0_42, %c0_43] : memref<32x128x128xbf16, #tpu.memory_space<vmem>>, vector<1x128x128xbf16>
    %66 = vector.shape_cast %65 : vector<1x128x128xbf16> to vector<128x128xbf16>
    %67 = vector.shape_cast %64 : vector<128x128xbf16> to vector<1x128x128xbf16>
    tpu.vector_store %arg12[%c0_41, %c0_42, %c0_43], %67 {strides = array<i32>} : memref<32x128x128xbf16, #tpu.memory_space<vmem>>, vector<1x128x128xbf16>,
    %68 = vector.extract_strided_slice %58 {offsets = [1, 0, 0], sizes = [1, 8, 128], strides = [1, 1, 1]} : vector<32x8x128xbf16> to vector<1x8x128xbf16>
    %69 = vector.shape_cast %68 : vector<1x8x128xbf16> to vector<8x128xbf16>
    %70 = vector.extract_strided_slice %0 {offsets = [1, 0, 0], sizes = [1, 8, 128], strides = [1, 1, 1]} : vector<32x8x128xbf16> to vector<1x8x128xbf16>
    %71 = vector.shape_cast %70 : vector<1x8x128xbf16> to vector<8x128xbf16>
    %cst_44 = arith.constant dense<0.000000e+00> : vector<128x128xf32>
    %72 = tpu.matmul %69, %71, %cst_44 {dimension_numbers = #tpu.dot_dimension_numbers<[0], [0], [1], [1], [0, 1, 1, 1], [], []>} : vector<8x128xbf16>, vector<8x128xbf16>, vector<128x128xf32> -> vector<128x128xf32>
    %73 = arith.truncf %72 : vector<128x128xf32> to vector<128x128xbf16>
    %c1 = arith.constant 1 : index
    %c0_45 = arith.constant 0 : index
    %c0_46 = arith.constant 0 : index
    %74 = vector.load %arg12[%c1, %c0_45, %c0_46] : memref<32x128x128xbf16, #tpu.memory_space<vmem>>, vector<1x128x128xbf16>
    %75 = vector.shape_cast %74 : vector<1x128x128xbf16> to vector<128x128xbf16>
    %76 = vector.shape_cast %73 : vector<128x128xbf16> to vector<1x128x128xbf16>
    tpu.vector_store %arg12[%c1, %c0_45, %c0_46], %76 {strides = array<i32>} : memref<32x128x128xbf16, #tpu.memory_space<vmem>>, vector<1x128x128xbf16>,
    %77 = vector.extract_strided_slice %58 {offsets = [2, 0, 0], sizes = [1, 8, 128], strides = [1, 1, 1]} : vector<32x8x128xbf16> to vector<1x8x128xbf16>
    %78 = vector.shape_cast %77 : vector<1x8x128xbf16> to vector<8x128xbf16>
    %79 = vector.extract_strided_slice %0 {offsets = [2, 0, 0], sizes = [1, 8, 128], strides = [1, 1, 1]} : vector<32x8x128xbf16> to vector<1x8x128xbf16>
    %80 = vector.shape_cast %79 : vector<1x8x128xbf16> to vector<8x128xbf16>
    %cst_47 = arith.constant dense<0.000000e+00> : vector<128x128xf32>
    %81 = tpu.matmul %78, %80, %cst_47 {dimension_numbers = #tpu.dot_dimension_numbers<[0], [0], [1], [1], [0, 1, 1, 1], [], []>} : vector<8x128xbf16>, vector<8x128xbf16>, vector<128x128xf32> -> vector<128x128xf32>
    %82 = arith.truncf %81 : vector<128x128xf32> to vector<128x128xbf16>
    %c2 = arith.constant 2 : index
    %c0_48 = arith.constant 0 : index
    %c0_49 = arith.constant 0 : index
    %83 = vector.load %arg12[%c2, %c0_48, %c0_49] : memref<32x128x128xbf16, #tpu.memory_space<vmem>>, vector<1x128x128xbf16>
    %84 = vector.shape_cast %83 : vector<1x128x128xbf16> to vector<128x128xbf16>
    %85 = vector.shape_cast %82 : vector<128x128xbf16> to vector<1x128x128xbf16>
    tpu.vector_store %arg12[%c2, %c0_48, %c0_49], %85 {strides = array<i32>} : memref<32x128x128xbf16, #tpu.memory_space<vmem>>, vector<1x128x128xbf16>,
    %86 = vector.extract_strided_slice %58 {offsets = [3, 0, 0], sizes = [1, 8, 128], strides = [1, 1, 1]} : vector<32x8x128xbf16> to vector<1x8x128xbf16>
    %87 = vector.shape_cast %86 : vector<1x8x128xbf16> to vector<8x128xbf16>
    %88 = vector.extract_strided_slice %0 {offsets = [3, 0, 0], sizes = [1, 8, 128], strides = [1, 1, 1]} : vector<32x8x128xbf16> to vector<1x8x128xbf16>
    %89 = vector.shape_cast %88 : vector<1x8x128xbf16> to vector<8x128xbf16>
    %cst_50 = arith.constant dense<0.000000e+00> : vector<128x128xf32>
    %90 = tpu.matmul %87, %89, %cst_50 {dimension_numbers = #tpu.dot_dimension_numbers<[0], [0], [1], [1], [0, 1, 1, 1], [], []>} : vector<8x128xbf16>, vector<8x128xbf16>, vector<128x128xf32> -> vector<128x128xf32>
    %91 = arith.truncf %90 : vector<128x128xf32> to vector<128x128xbf16>
    %c3 = arith.constant 3 : index
    %c0_51 = arith.constant 0 : index
    %c0_52 = arith.constant 0 : index
    %92 = vector.load %arg12[%c3, %c0_51, %c0_52] : memref<32x128x128xbf16, #tpu.memory_space<vmem>>, vector<1x128x128xbf16>
    %93 = vector.shape_cast %92 : vector<1x128x128xbf16> to vector<128x128xbf16>
    %94 = vector.shape_cast %91 : vector<128x128xbf16> to vector<1x128x128xbf16>
    tpu.vector_store %arg12[%c3, %c0_51, %c0_52], %94 {strides = array<i32>} : memref<32x128x128xbf16, #tpu.memory_space<vmem>>, vector<1x128x128xbf16>,
    %95 = vector.extract_strided_slice %58 {offsets = [4, 0, 0], sizes = [1, 8, 128], strides = [1, 1, 1]} : vector<32x8x128xbf16> to vector<1x8x128xbf16>
    %96 = vector.shape_cast %95 : vector<1x8x128xbf16> to vector<8x128xbf16>
    %97 = vector.extract_strided_slice %0 {offsets = [4, 0, 0], sizes = [1, 8, 128], strides = [1, 1, 1]} : vector<32x8x128xbf16> to vector<1x8x128xbf16>
    %98 = vector.shape_cast %97 : vector<1x8x128xbf16> to vector<8x128xbf16>
    %cst_53 = arith.constant dense<0.000000e+00> : vector<128x128xf32>
    %99 = tpu.matmul %96, %98, %cst_53 {dimension_numbers = #tpu.dot_dimension_numbers<[0], [0], [1], [1], [0, 1, 1, 1], [], []>} : vector<8x128xbf16>, vector<8x128xbf16>, vector<128x128xf32> -> vector<128x128xf32>
    %100 = arith.truncf %99 : vector<128x128xf32> to vector<128x128xbf16>
    %c4 = arith.constant 4 : index
    %c0_54 = arith.constant 0 : index
    %c0_55 = arith.constant 0 : index
    %101 = vector.load %arg12[%c4, %c0_54, %c0_55] : memref<32x128x128xbf16, #tpu.memory_space<vmem>>, vector<1x128x128xbf16>
    %102 = vector.shape_cast %101 : vector<1x128x128xbf16> to vector<128x128xbf16>
    %103 = vector.shape_cast %100 : vector<128x128xbf16> to vector<1x128x128xbf16>
    tpu.vector_store %arg12[%c4, %c0_54, %c0_55], %103 {strides = array<i32>} : memref<32x128x128xbf16, #tpu.memory_space<vmem>>, vector<1x128x128xbf16>,
    %104 = vector.extract_strided_slice %58 {offsets = [5, 0, 0], sizes = [1, 8, 128], strides = [1, 1, 1]} : vector<32x8x128xbf16> to vector<1x8x128xbf16>
    %105 = vector.shape_cast %104 : vector<1x8x128xbf16> to vector<8x128xbf16>
    %106 = vector.extract_strided_slice %0 {offsets = [5, 0, 0], sizes = [1, 8, 128], strides = [1, 1, 1]} : vector<32x8x128xbf16> to vector<1x8x128xbf16>
    %107 = vector.shape_cast %106 : vector<1x8x128xbf16> to vector<8x128xbf16>
    %cst_56 = arith.constant dense<0.000000e+00> : vector<128x128xf32>
    %108 = tpu.matmul %105, %107, %cst_56 {dimension_numbers = #tpu.dot_dimension_numbers<[0], [0], [1], [1], [0, 1, 1, 1], [], []>} : vector<8x128xbf16>, vector<8x128xbf16>, vector<128x128xf32> -> vector<128x128xf32>
    %109 = arith.truncf %108 : vector<128x128xf32> to vector<128x128xbf16>
    %c5 = arith.constant 5 : index
    %c0_57 = arith.constant 0 : index
    %c0_58 = arith.constant 0 : index
    %110 = vector.load %arg12[%c5, %c0_57, %c0_58] : memref<32x128x128xbf16, #tpu.memory_space<vmem>>, vector<1x128x128xbf16>
    %111 = vector.shape_cast %110 : vector<1x128x128xbf16> to vector<128x128xbf16>
    %112 = vector.shape_cast %109 : vector<128x128xbf16> to vector<1x128x128xbf16>
    tpu.vector_store %arg12[%c5, %c0_57, %c0_58], %112 {strides = array<i32>} : memref<32x128x128xbf16, #tpu.memory_space<vmem>>, vector<1x128x128xbf16>,
    %113 = vector.extract_strided_slice %58 {offsets = [6, 0, 0], sizes = [1, 8, 128], strides = [1, 1, 1]} : vector<32x8x128xbf16> to vector<1x8x128xbf16>
    %114 = vector.shape_cast %113 : vector<1x8x128xbf16> to vector<8x128xbf16>
    %115 = vector.extract_strided_slice %0 {offsets = [6, 0, 0], sizes = [1, 8, 128], strides = [1, 1, 1]} : vector<32x8x128xbf16> to vector<1x8x128xbf16>
    %116 = vector.shape_cast %115 : vector<1x8x128xbf16> to vector<8x128xbf16>
    %cst_59 = arith.constant dense<0.000000e+00> : vector<128x128xf32>
    %117 = tpu.matmul %114, %116, %cst_59 {dimension_numbers = #tpu.dot_dimension_numbers<[0], [0], [1], [1], [0, 1, 1, 1], [], []>} : vector<8x128xbf16>, vector<8x128xbf16>, vector<128x128xf32> -> vector<128x128xf32>
    %118 = arith.truncf %117 : vector<128x128xf32> to vector<128x128xbf16>
    %c6 = arith.constant 6 : index
    %c0_60 = arith.constant 0 : index
    %c0_61 = arith.constant 0 : index
    %119 = vector.load %arg12[%c6, %c0_60, %c0_61] : memref<32x128x128xbf16, #tpu.memory_space<vmem>>, vector<1x128x128xbf16>
    %120 = vector.shape_cast %119 : vector<1x128x128xbf16> to vector<128x128xbf16>
    %121 = vector.shape_cast %118 : vector<128x128xbf16> to vector<1x128x128xbf16>
    tpu.vector_store %arg12[%c6, %c0_60, %c0_61], %121 {strides = array<i32>} : memref<32x128x128xbf16, #tpu.memory_space<vmem>>, vector<1x128x128xbf16>,
    %122 = vector.extract_strided_slice %58 {offsets = [7, 0, 0], sizes = [1, 8, 128], strides = [1, 1, 1]} : vector<32x8x128xbf16> to vector<1x8x128xbf16>
    %123 = vector.shape_cast %122 : vector<1x8x128xbf16> to vector<8x128xbf16>
    %124 = vector.extract_strided_slice %0 {offsets = [7, 0, 0], sizes = [1, 8, 128], strides = [1, 1, 1]} : vector<32x8x128xbf16> to vector<1x8x128xbf16>
    %125 = vector.shape_cast %124 : vector<1x8x128xbf16> to vector<8x128xbf16>
    %cst_62 = arith.constant dense<0.000000e+00> : vector<128x128xf32>
    %126 = tpu.matmul %123, %125, %cst_62 {dimension_numbers = #tpu.dot_dimension_numbers<[0], [0], [1], [1], [0, 1, 1, 1], [], []>} : vector<8x128xbf16>, vector<8x128xbf16>, vector<128x128xf32> -> vector<128x128xf32>
    %127 = arith.truncf %126 : vector<128x128xf32> to vector<128x128xbf16>
    %c7 = arith.constant 7 : index
    %c0_63 = arith.constant 0 : index
    %c0_64 = arith.constant 0 : index
    %128 = vector.load %arg12[%c7, %c0_63, %c0_64] : memref<32x128x128xbf16, #tpu.memory_space<vmem>>, vector<1x128x128xbf16>
    %129 = vector.shape_cast %128 : vector<1x128x128xbf16> to vector<128x128xbf16>
    %130 = vector.shape_cast %127 : vector<128x128xbf16> to vector<1x128x128xbf16>
    tpu.vector_store %arg12[%c7, %c0_63, %c0_64], %130 {strides = array<i32>} : memref<32x128x128xbf16, #tpu.memory_space<vmem>>, vector<1x128x128xbf16>,
    %131 = vector.extract_strided_slice %58 {offsets = [8, 0, 0], sizes = [1, 8, 128], strides = [1, 1, 1]} : vector<32x8x128xbf16> to vector<1x8x128xbf16>
    %132 = vector.shape_cast %131 : vector<1x8x128xbf16> to vector<8x128xbf16>
    %133 = vector.extract_strided_slice %0 {offsets = [8, 0, 0], sizes = [1, 8, 128], strides = [1, 1, 1]} : vector<32x8x128xbf16> to vector<1x8x128xbf16>
    %134 = vector.shape_cast %133 : vector<1x8x128xbf16> to vector<8x128xbf16>
    %cst_65 = arith.constant dense<0.000000e+00> : vector<128x128xf32>
    %135 = tpu.matmul %132, %134, %cst_65 {dimension_numbers = #tpu.dot_dimension_numbers<[0], [0], [1], [1], [0, 1, 1, 1], [], []>} : vector<8x128xbf16>, vector<8x128xbf16>, vector<128x128xf32> -> vector<128x128xf32>
    %136 = arith.truncf %135 : vector<128x128xf32> to vector<128x128xbf16>
    %c8 = arith.constant 8 : index
    %c0_66 = arith.constant 0 : index
    %c0_67 = arith.constant 0 : index
    %137 = vector.load %arg12[%c8, %c0_66, %c0_67] : memref<32x128x128xbf16, #tpu.memory_space<vmem>>, vector<1x128x128xbf16>
    %138 = vector.shape_cast %137 : vector<1x128x128xbf16> to vector<128x128xbf16>
    %139 = vector.shape_cast %136 : vector<128x128xbf16> to vector<1x128x128xbf16>
    tpu.vector_store %arg12[%c8, %c0_66, %c0_67], %139 {strides = array<i32>} : memref<32x128x128xbf16, #tpu.memory_space<vmem>>, vector<1x128x128xbf16>,
    %140 = vector.extract_strided_slice %58 {offsets = [9, 0, 0], sizes = [1, 8, 128], strides = [1, 1, 1]} : vector<32x8x128xbf16> to vector<1x8x128xbf16>
    %141 = vector.shape_cast %140 : vector<1x8x128xbf16> to vector<8x128xbf16>
    %142 = vector.extract_strided_slice %0 {offsets = [9, 0, 0], sizes = [1, 8, 128], strides = [1, 1, 1]} : vector<32x8x128xbf16> to vector<1x8x128xbf16>
    %143 = vector.shape_cast %142 : vector<1x8x128xbf16> to vector<8x128xbf16>
    %cst_68 = arith.constant dense<0.000000e+00> : vector<128x128xf32>
    %144 = tpu.matmul %141, %143, %cst_68 {dimension_numbers = #tpu.dot_dimension_numbers<[0], [0], [1], [1], [0, 1, 1, 1], [], []>} : vector<8x128xbf16>, vector<8x128xbf16>, vector<128x128xf32> -> vector<128x128xf32>
    %145 = arith.truncf %144 : vector<128x128xf32> to vector<128x128xbf16>
    %c9 = arith.constant 9 : index
    %c0_69 = arith.constant 0 : index
    %c0_70 = arith.constant 0 : index
    %146 = vector.load %arg12[%c9, %c0_69, %c0_70] : memref<32x128x128xbf16, #tpu.memory_space<vmem>>, vector<1x128x128xbf16>
    %147 = vector.shape_cast %146 : vector<1x128x128xbf16> to vector<128x128xbf16>
    %148 = vector.shape_cast %145 : vector<128x128xbf16> to vector<1x128x128xbf16>
    tpu.vector_store %arg12[%c9, %c0_69, %c0_70], %148 {strides = array<i32>} : memref<32x128x128xbf16, #tpu.memory_space<vmem>>, vector<1x128x128xbf16>,
    %149 = vector.extract_strided_slice %58 {offsets = [10, 0, 0], sizes = [1, 8, 128], strides = [1, 1, 1]} : vector<32x8x128xbf16> to vector<1x8x128xbf16>
    %150 = vector.shape_cast %149 : vector<1x8x128xbf16> to vector<8x128xbf16>
    %151 = vector.extract_strided_slice %0 {offsets = [10, 0, 0], sizes = [1, 8, 128], strides = [1, 1, 1]} : vector<32x8x128xbf16> to vector<1x8x128xbf16>
    %152 = vector.shape_cast %151 : vector<1x8x128xbf16> to vector<8x128xbf16>
    %cst_71 = arith.constant dense<0.000000e+00> : vector<128x128xf32>
    %153 = tpu.matmul %150, %152, %cst_71 {dimension_numbers = #tpu.dot_dimension_numbers<[0], [0], [1], [1], [0, 1, 1, 1], [], []>} : vector<8x128xbf16>, vector<8x128xbf16>, vector<128x128xf32> -> vector<128x128xf32>
    %154 = arith.truncf %153 : vector<128x128xf32> to vector<128x128xbf16>
    %c10 = arith.constant 10 : index
    %c0_72 = arith.constant 0 : index
    %c0_73 = arith.constant 0 : index
    %155 = vector.load %arg12[%c10, %c0_72, %c0_73] : memref<32x128x128xbf16, #tpu.memory_space<vmem>>, vector<1x128x128xbf16>
    %156 = vector.shape_cast %155 : vector<1x128x128xbf16> to vector<128x128xbf16>
    %157 = vector.shape_cast %154 : vector<128x128xbf16> to vector<1x128x128xbf16>
    tpu.vector_store %arg12[%c10, %c0_72, %c0_73], %157 {strides = array<i32>} : memref<32x128x128xbf16, #tpu.memory_space<vmem>>, vector<1x128x128xbf16>,
    %158 = vector.extract_strided_slice %58 {offsets = [11, 0, 0], sizes = [1, 8, 128], strides = [1, 1, 1]} : vector<32x8x128xbf16> to vector<1x8x128xbf16>
    %159 = vector.shape_cast %158 : vector<1x8x128xbf16> to vector<8x128xbf16>
    %160 = vector.extract_strided_slice %0 {offsets = [11, 0, 0], sizes = [1, 8, 128], strides = [1, 1, 1]} : vector<32x8x128xbf16> to vector<1x8x128xbf16>
    %161 = vector.shape_cast %160 : vector<1x8x128xbf16> to vector<8x128xbf16>
    %cst_74 = arith.constant dense<0.000000e+00> : vector<128x128xf32>
    %162 = tpu.matmul %159, %161, %cst_74 {dimension_numbers = #tpu.dot_dimension_numbers<[0], [0], [1], [1], [0, 1, 1, 1], [], []>} : vector<8x128xbf16>, vector<8x128xbf16>, vector<128x128xf32> -> vector<128x128xf32>
    %163 = arith.truncf %162 : vector<128x128xf32> to vector<128x128xbf16>
    %c11 = arith.constant 11 : index
    %c0_75 = arith.constant 0 : index
    %c0_76 = arith.constant 0 : index
    %164 = vector.load %arg12[%c11, %c0_75, %c0_76] : memref<32x128x128xbf16, #tpu.memory_space<vmem>>, vector<1x128x128xbf16>
    %165 = vector.shape_cast %164 : vector<1x128x128xbf16> to vector<128x128xbf16>
    %166 = vector.shape_cast %163 : vector<128x128xbf16> to vector<1x128x128xbf16>
    tpu.vector_store %arg12[%c11, %c0_75, %c0_76], %166 {strides = array<i32>} : memref<32x128x128xbf16, #tpu.memory_space<vmem>>, vector<1x128x128xbf16>,
    %167 = vector.extract_strided_slice %58 {offsets = [12, 0, 0], sizes = [1, 8, 128], strides = [1, 1, 1]} : vector<32x8x128xbf16> to vector<1x8x128xbf16>
    %168 = vector.shape_cast %167 : vector<1x8x128xbf16> to vector<8x128xbf16>
    %169 = vector.extract_strided_slice %0 {offsets = [12, 0, 0], sizes = [1, 8, 128], strides = [1, 1, 1]} : vector<32x8x128xbf16> to vector<1x8x128xbf16>
    %170 = vector.shape_cast %169 : vector<1x8x128xbf16> to vector<8x128xbf16>
    %cst_77 = arith.constant dense<0.000000e+00> : vector<128x128xf32>
    %171 = tpu.matmul %168, %170, %cst_77 {dimension_numbers = #tpu.dot_dimension_numbers<[0], [0], [1], [1], [0, 1, 1, 1], [], []>} : vector<8x128xbf16>, vector<8x128xbf16>, vector<128x128xf32> -> vector<128x128xf32>
    %172 = arith.truncf %171 : vector<128x128xf32> to vector<128x128xbf16>
    %c12 = arith.constant 12 : index
    %c0_78 = arith.constant 0 : index
    %c0_79 = arith.constant 0 : index
    %173 = vector.load %arg12[%c12, %c0_78, %c0_79] : memref<32x128x128xbf16, #tpu.memory_space<vmem>>, vector<1x128x128xbf16>
    %174 = vector.shape_cast %173 : vector<1x128x128xbf16> to vector<128x128xbf16>
    %175 = vector.shape_cast %172 : vector<128x128xbf16> to vector<1x128x128xbf16>
    tpu.vector_store %arg12[%c12, %c0_78, %c0_79], %175 {strides = array<i32>} : memref<32x128x128xbf16, #tpu.memory_space<vmem>>, vector<1x128x128xbf16>,
    %176 = vector.extract_strided_slice %58 {offsets = [13, 0, 0], sizes = [1, 8, 128], strides = [1, 1, 1]} : vector<32x8x128xbf16> to vector<1x8x128xbf16>
    %177 = vector.shape_cast %176 : vector<1x8x128xbf16> to vector<8x128xbf16>
    %178 = vector.extract_strided_slice %0 {offsets = [13, 0, 0], sizes = [1, 8, 128], strides = [1, 1, 1]} : vector<32x8x128xbf16> to vector<1x8x128xbf16>
    %179 = vector.shape_cast %178 : vector<1x8x128xbf16> to vector<8x128xbf16>
    %cst_80 = arith.constant dense<0.000000e+00> : vector<128x128xf32>
    %180 = tpu.matmul %177, %179, %cst_80 {dimension_numbers = #tpu.dot_dimension_numbers<[0], [0], [1], [1], [0, 1, 1, 1], [], []>} : vector<8x128xbf16>, vector<8x128xbf16>, vector<128x128xf32> -> vector<128x128xf32>
    %181 = arith.truncf %180 : vector<128x128xf32> to vector<128x128xbf16>
    %c13 = arith.constant 13 : index
    %c0_81 = arith.constant 0 : index
    %c0_82 = arith.constant 0 : index
    %182 = vector.load %arg12[%c13, %c0_81, %c0_82] : memref<32x128x128xbf16, #tpu.memory_space<vmem>>, vector<1x128x128xbf16>
    %183 = vector.shape_cast %182 : vector<1x128x128xbf16> to vector<128x128xbf16>
    %184 = vector.shape_cast %181 : vector<128x128xbf16> to vector<1x128x128xbf16>
    tpu.vector_store %arg12[%c13, %c0_81, %c0_82], %184 {strides = array<i32>} : memref<32x128x128xbf16, #tpu.memory_space<vmem>>, vector<1x128x128xbf16>,
    %185 = vector.extract_strided_slice %58 {offsets = [14, 0, 0], sizes = [1, 8, 128], strides = [1, 1, 1]} : vector<32x8x128xbf16> to vector<1x8x128xbf16>
    %186 = vector.shape_cast %185 : vector<1x8x128xbf16> to vector<8x128xbf16>
    %187 = vector.extract_strided_slice %0 {offsets = [14, 0, 0], sizes = [1, 8, 128], strides = [1, 1, 1]} : vector<32x8x128xbf16> to vector<1x8x128xbf16>
    %188 = vector.shape_cast %187 : vector<1x8x128xbf16> to vector<8x128xbf16>
    %cst_83 = arith.constant dense<0.000000e+00> : vector<128x128xf32>
    %189 = tpu.matmul %186, %188, %cst_83 {dimension_numbers = #tpu.dot_dimension_numbers<[0], [0], [1], [1], [0, 1, 1, 1], [], []>} : vector<8x128xbf16>, vector<8x128xbf16>, vector<128x128xf32> -> vector<128x128xf32>
    %190 = arith.truncf %189 : vector<128x128xf32> to vector<128x128xbf16>
    %c14 = arith.constant 14 : index
    %c0_84 = arith.constant 0 : index
    %c0_85 = arith.constant 0 : index
    %191 = vector.load %arg12[%c14, %c0_84, %c0_85] : memref<32x128x128xbf16, #tpu.memory_space<vmem>>, vector<1x128x128xbf16>
    %192 = vector.shape_cast %191 : vector<1x128x128xbf16> to vector<128x128xbf16>
    %193 = vector.shape_cast %190 : vector<128x128xbf16> to vector<1x128x128xbf16>
    tpu.vector_store %arg12[%c14, %c0_84, %c0_85], %193 {strides = array<i32>} : memref<32x128x128xbf16, #tpu.memory_space<vmem>>, vector<1x128x128xbf16>,
    %194 = vector.extract_strided_slice %58 {offsets = [15, 0, 0], sizes = [1, 8, 128], strides = [1, 1, 1]} : vector<32x8x128xbf16> to vector<1x8x128xbf16>
    %195 = vector.shape_cast %194 : vector<1x8x128xbf16> to vector<8x128xbf16>
    %196 = vector.extract_strided_slice %0 {offsets = [15, 0, 0], sizes = [1, 8, 128], strides = [1, 1, 1]} : vector<32x8x128xbf16> to vector<1x8x128xbf16>
    %197 = vector.shape_cast %196 : vector<1x8x128xbf16> to vector<8x128xbf16>
    %cst_86 = arith.constant dense<0.000000e+00> : vector<128x128xf32>
    %198 = tpu.matmul %195, %197, %cst_86 {dimension_numbers = #tpu.dot_dimension_numbers<[0], [0], [1], [1], [0, 1, 1, 1], [], []>} : vector<8x128xbf16>, vector<8x128xbf16>, vector<128x128xf32> -> vector<128x128xf32>
    %199 = arith.truncf %198 : vector<128x128xf32> to vector<128x128xbf16>
    %c15 = arith.constant 15 : index
    %c0_87 = arith.constant 0 : index
    %c0_88 = arith.constant 0 : index
    %200 = vector.load %arg12[%c15, %c0_87, %c0_88] : memref<32x128x128xbf16, #tpu.memory_space<vmem>>, vector<1x128x128xbf16>
    %201 = vector.shape_cast %200 : vector<1x128x128xbf16> to vector<128x128xbf16>
    %202 = vector.shape_cast %199 : vector<128x128xbf16> to vector<1x128x128xbf16>
    tpu.vector_store %arg12[%c15, %c0_87, %c0_88], %202 {strides = array<i32>} : memref<32x128x128xbf16, #tpu.memory_space<vmem>>, vector<1x128x128xbf16>,
    %203 = vector.extract_strided_slice %58 {offsets = [16, 0, 0], sizes = [1, 8, 128], strides = [1, 1, 1]} : vector<32x8x128xbf16> to vector<1x8x128xbf16>
    %204 = vector.shape_cast %203 : vector<1x8x128xbf16> to vector<8x128xbf16>
    %205 = vector.extract_strided_slice %0 {offsets = [16, 0, 0], sizes = [1, 8, 128], strides = [1, 1, 1]} : vector<32x8x128xbf16> to vector<1x8x128xbf16>
    %206 = vector.shape_cast %205 : vector<1x8x128xbf16> to vector<8x128xbf16>
    %cst_89 = arith.constant dense<0.000000e+00> : vector<128x128xf32>
    %207 = tpu.matmul %204, %206, %cst_89 {dimension_numbers = #tpu.dot_dimension_numbers<[0], [0], [1], [1], [0, 1, 1, 1], [], []>} : vector<8x128xbf16>, vector<8x128xbf16>, vector<128x128xf32> -> vector<128x128xf32>
    %208 = arith.truncf %207 : vector<128x128xf32> to vector<128x128xbf16>
    %c16 = arith.constant 16 : index
    %c0_90 = arith.constant 0 : index
    %c0_91 = arith.constant 0 : index
    %209 = vector.load %arg12[%c16, %c0_90, %c0_91] : memref<32x128x128xbf16, #tpu.memory_space<vmem>>, vector<1x128x128xbf16>
    %210 = vector.shape_cast %209 : vector<1x128x128xbf16> to vector<128x128xbf16>
    %211 = vector.shape_cast %208 : vector<128x128xbf16> to vector<1x128x128xbf16>
    tpu.vector_store %arg12[%c16, %c0_90, %c0_91], %211 {strides = array<i32>} : memref<32x128x128xbf16, #tpu.memory_space<vmem>>, vector<1x128x128xbf16>,
    %212 = vector.extract_strided_slice %58 {offsets = [17, 0, 0], sizes = [1, 8, 128], strides = [1, 1, 1]} : vector<32x8x128xbf16> to vector<1x8x128xbf16>
    %213 = vector.shape_cast %212 : vector<1x8x128xbf16> to vector<8x128xbf16>
    %214 = vector.extract_strided_slice %0 {offsets = [17, 0, 0], sizes = [1, 8, 128], strides = [1, 1, 1]} : vector<32x8x128xbf16> to vector<1x8x128xbf16>
    %215 = vector.shape_cast %214 : vector<1x8x128xbf16> to vector<8x128xbf16>
    %cst_92 = arith.constant dense<0.000000e+00> : vector<128x128xf32>
    %216 = tpu.matmul %213, %215, %cst_92 {dimension_numbers = #tpu.dot_dimension_numbers<[0], [0], [1], [1], [0, 1, 1, 1], [], []>} : vector<8x128xbf16>, vector<8x128xbf16>, vector<128x128xf32> -> vector<128x128xf32>
    %217 = arith.truncf %216 : vector<128x128xf32> to vector<128x128xbf16>
    %c17 = arith.constant 17 : index
    %c0_93 = arith.constant 0 : index
    %c0_94 = arith.constant 0 : index
    %218 = vector.load %arg12[%c17, %c0_93, %c0_94] : memref<32x128x128xbf16, #tpu.memory_space<vmem>>, vector<1x128x128xbf16>
    %219 = vector.shape_cast %218 : vector<1x128x128xbf16> to vector<128x128xbf16>
    %220 = vector.shape_cast %217 : vector<128x128xbf16> to vector<1x128x128xbf16>
    tpu.vector_store %arg12[%c17, %c0_93, %c0_94], %220 {strides = array<i32>} : memref<32x128x128xbf16, #tpu.memory_space<vmem>>, vector<1x128x128xbf16>,
    %221 = vector.extract_strided_slice %58 {offsets = [18, 0, 0], sizes = [1, 8, 128], strides = [1, 1, 1]} : vector<32x8x128xbf16> to vector<1x8x128xbf16>
    %222 = vector.shape_cast %221 : vector<1x8x128xbf16> to vector<8x128xbf16>
    %223 = vector.extract_strided_slice %0 {offsets = [18, 0, 0], sizes = [1, 8, 128], strides = [1, 1, 1]} : vector<32x8x128xbf16> to vector<1x8x128xbf16>
    %224 = vector.shape_cast %223 : vector<1x8x128xbf16> to vector<8x128xbf16>
    %cst_95 = arith.constant dense<0.000000e+00> : vector<128x128xf32>
    %225 = tpu.matmul %222, %224, %cst_95 {dimension_numbers = #tpu.dot_dimension_numbers<[0], [0], [1], [1], [0, 1, 1, 1], [], []>} : vector<8x128xbf16>, vector<8x128xbf16>, vector<128x128xf32> -> vector<128x128xf32>
    %226 = arith.truncf %225 : vector<128x128xf32> to vector<128x128xbf16>
    %c18 = arith.constant 18 : index
    %c0_96 = arith.constant 0 : index
    %c0_97 = arith.constant 0 : index
    %227 = vector.load %arg12[%c18, %c0_96, %c0_97] : memref<32x128x128xbf16, #tpu.memory_space<vmem>>, vector<1x128x128xbf16>
    %228 = vector.shape_cast %227 : vector<1x128x128xbf16> to vector<128x128xbf16>
    %229 = vector.shape_cast %226 : vector<128x128xbf16> to vector<1x128x128xbf16>
    tpu.vector_store %arg12[%c18, %c0_96, %c0_97], %229 {strides = array<i32>} : memref<32x128x128xbf16, #tpu.memory_space<vmem>>, vector<1x128x128xbf16>,
    %230 = vector.extract_strided_slice %58 {offsets = [19, 0, 0], sizes = [1, 8, 128], strides = [1, 1, 1]} : vector<32x8x128xbf16> to vector<1x8x128xbf16>
    %231 = vector.shape_cast %230 : vector<1x8x128xbf16> to vector<8x128xbf16>
    %232 = vector.extract_strided_slice %0 {offsets = [19, 0, 0], sizes = [1, 8, 128], strides = [1, 1, 1]} : vector<32x8x128xbf16> to vector<1x8x128xbf16>
    %233 = vector.shape_cast %232 : vector<1x8x128xbf16> to vector<8x128xbf16>
    %cst_98 = arith.constant dense<0.000000e+00> : vector<128x128xf32>
    %234 = tpu.matmul %231, %233, %cst_98 {dimension_numbers = #tpu.dot_dimension_numbers<[0], [0], [1], [1], [0, 1, 1, 1], [], []>} : vector<8x128xbf16>, vector<8x128xbf16>, vector<128x128xf32> -> vector<128x128xf32>
    %235 = arith.truncf %234 : vector<128x128xf32> to vector<128x128xbf16>
    %c19 = arith.constant 19 : index
    %c0_99 = arith.constant 0 : index
    %c0_100 = arith.constant 0 : index
    %236 = vector.load %arg12[%c19, %c0_99, %c0_100] : memref<32x128x128xbf16, #tpu.memory_space<vmem>>, vector<1x128x128xbf16>
    %237 = vector.shape_cast %236 : vector<1x128x128xbf16> to vector<128x128xbf16>
    %238 = vector.shape_cast %235 : vector<128x128xbf16> to vector<1x128x128xbf16>
    tpu.vector_store %arg12[%c19, %c0_99, %c0_100], %238 {strides = array<i32>} : memref<32x128x128xbf16, #tpu.memory_space<vmem>>, vector<1x128x128xbf16>,
    %239 = vector.extract_strided_slice %58 {offsets = [20, 0, 0], sizes = [1, 8, 128], strides = [1, 1, 1]} : vector<32x8x128xbf16> to vector<1x8x128xbf16>
    %240 = vector.shape_cast %239 : vector<1x8x128xbf16> to vector<8x128xbf16>
    %241 = vector.extract_strided_slice %0 {offsets = [20, 0, 0], sizes = [1, 8, 128], strides = [1, 1, 1]} : vector<32x8x128xbf16> to vector<1x8x128xbf16>
    %242 = vector.shape_cast %241 : vector<1x8x128xbf16> to vector<8x128xbf16>
    %cst_101 = arith.constant dense<0.000000e+00> : vector<128x128xf32>
    %243 = tpu.matmul %240, %242, %cst_101 {dimension_numbers = #tpu.dot_dimension_numbers<[0], [0], [1], [1], [0, 1, 1, 1], [], []>} : vector<8x128xbf16>, vector<8x128xbf16>, vector<128x128xf32> -> vector<128x128xf32>
    %244 = arith.truncf %243 : vector<128x128xf32> to vector<128x128xbf16>
    %c20 = arith.constant 20 : index
    %c0_102 = arith.constant 0 : index
    %c0_103 = arith.constant 0 : index
    %245 = vector.load %arg12[%c20, %c0_102, %c0_103] : memref<32x128x128xbf16, #tpu.memory_space<vmem>>, vector<1x128x128xbf16>
    %246 = vector.shape_cast %245 : vector<1x128x128xbf16> to vector<128x128xbf16>
    %247 = vector.shape_cast %244 : vector<128x128xbf16> to vector<1x128x128xbf16>
    tpu.vector_store %arg12[%c20, %c0_102, %c0_103], %247 {strides = array<i32>} : memref<32x128x128xbf16, #tpu.memory_space<vmem>>, vector<1x128x128xbf16>,
    %248 = vector.extract_strided_slice %58 {offsets = [21, 0, 0], sizes = [1, 8, 128], strides = [1, 1, 1]} : vector<32x8x128xbf16> to vector<1x8x128xbf16>
    %249 = vector.shape_cast %248 : vector<1x8x128xbf16> to vector<8x128xbf16>
    %250 = vector.extract_strided_slice %0 {offsets = [21, 0, 0], sizes = [1, 8, 128], strides = [1, 1, 1]} : vector<32x8x128xbf16> to vector<1x8x128xbf16>
    %251 = vector.shape_cast %250 : vector<1x8x128xbf16> to vector<8x128xbf16>
    %cst_104 = arith.constant dense<0.000000e+00> : vector<128x128xf32>
    %252 = tpu.matmul %249, %251, %cst_104 {dimension_numbers = #tpu.dot_dimension_numbers<[0], [0], [1], [1], [0, 1, 1, 1], [], []>} : vector<8x128xbf16>, vector<8x128xbf16>, vector<128x128xf32> -> vector<128x128xf32>
    %253 = arith.truncf %252 : vector<128x128xf32> to vector<128x128xbf16>
    %c21 = arith.constant 21 : index
    %c0_105 = arith.constant 0 : index
    %c0_106 = arith.constant 0 : index
    %254 = vector.load %arg12[%c21, %c0_105, %c0_106] : memref<32x128x128xbf16, #tpu.memory_space<vmem>>, vector<1x128x128xbf16>
    %255 = vector.shape_cast %254 : vector<1x128x128xbf16> to vector<128x128xbf16>
    %256 = vector.shape_cast %253 : vector<128x128xbf16> to vector<1x128x128xbf16>
    tpu.vector_store %arg12[%c21, %c0_105, %c0_106], %256 {strides = array<i32>} : memref<32x128x128xbf16, #tpu.memory_space<vmem>>, vector<1x128x128xbf16>,
    %257 = vector.extract_strided_slice %58 {offsets = [22, 0, 0], sizes = [1, 8, 128], strides = [1, 1, 1]} : vector<32x8x128xbf16> to vector<1x8x128xbf16>
    %258 = vector.shape_cast %257 : vector<1x8x128xbf16> to vector<8x128xbf16>
    %259 = vector.extract_strided_slice %0 {offsets = [22, 0, 0], sizes = [1, 8, 128], strides = [1, 1, 1]} : vector<32x8x128xbf16> to vector<1x8x128xbf16>
    %260 = vector.shape_cast %259 : vector<1x8x128xbf16> to vector<8x128xbf16>
    %cst_107 = arith.constant dense<0.000000e+00> : vector<128x128xf32>
    %261 = tpu.matmul %258, %260, %cst_107 {dimension_numbers = #tpu.dot_dimension_numbers<[0], [0], [1], [1], [0, 1, 1, 1], [], []>} : vector<8x128xbf16>, vector<8x128xbf16>, vector<128x128xf32> -> vector<128x128xf32>
    %262 = arith.truncf %261 : vector<128x128xf32> to vector<128x128xbf16>
    %c22 = arith.constant 22 : index
    %c0_108 = arith.constant 0 : index
    %c0_109 = arith.constant 0 : index
    %263 = vector.load %arg12[%c22, %c0_108, %c0_109] : memref<32x128x128xbf16, #tpu.memory_space<vmem>>, vector<1x128x128xbf16>
    %264 = vector.shape_cast %263 : vector<1x128x128xbf16> to vector<128x128xbf16>
    %265 = vector.shape_cast %262 : vector<128x128xbf16> to vector<1x128x128xbf16>
    tpu.vector_store %arg12[%c22, %c0_108, %c0_109], %265 {strides = array<i32>} : memref<32x128x128xbf16, #tpu.memory_space<vmem>>, vector<1x128x128xbf16>,
    %266 = vector.extract_strided_slice %58 {offsets = [23, 0, 0], sizes = [1, 8, 128], strides = [1, 1, 1]} : vector<32x8x128xbf16> to vector<1x8x128xbf16>
    %267 = vector.shape_cast %266 : vector<1x8x128xbf16> to vector<8x128xbf16>
    %268 = vector.extract_strided_slice %0 {offsets = [23, 0, 0], sizes = [1, 8, 128], strides = [1, 1, 1]} : vector<32x8x128xbf16> to vector<1x8x128xbf16>
    %269 = vector.shape_cast %268 : vector<1x8x128xbf16> to vector<8x128xbf16>
    %cst_110 = arith.constant dense<0.000000e+00> : vector<128x128xf32>
    %270 = tpu.matmul %267, %269, %cst_110 {dimension_numbers = #tpu.dot_dimension_numbers<[0], [0], [1], [1], [0, 1, 1, 1], [], []>} : vector<8x128xbf16>, vector<8x128xbf16>, vector<128x128xf32> -> vector<128x128xf32>
    %271 = arith.truncf %270 : vector<128x128xf32> to vector<128x128xbf16>
    %c23 = arith.constant 23 : index
    %c0_111 = arith.constant 0 : index
    %c0_112 = arith.constant 0 : index
    %272 = vector.load %arg12[%c23, %c0_111, %c0_112] : memref<32x128x128xbf16, #tpu.memory_space<vmem>>, vector<1x128x128xbf16>
    %273 = vector.shape_cast %272 : vector<1x128x128xbf16> to vector<128x128xbf16>
    %274 = vector.shape_cast %271 : vector<128x128xbf16> to vector<1x128x128xbf16>
    tpu.vector_store %arg12[%c23, %c0_111, %c0_112], %274 {strides = array<i32>} : memref<32x128x128xbf16, #tpu.memory_space<vmem>>, vector<1x128x128xbf16>,
    %275 = vector.extract_strided_slice %58 {offsets = [24, 0, 0], sizes = [1, 8, 128], strides = [1, 1, 1]} : vector<32x8x128xbf16> to vector<1x8x128xbf16>
    %276 = vector.shape_cast %275 : vector<1x8x128xbf16> to vector<8x128xbf16>
    %277 = vector.extract_strided_slice %0 {offsets = [24, 0, 0], sizes = [1, 8, 128], strides = [1, 1, 1]} : vector<32x8x128xbf16> to vector<1x8x128xbf16>
    %278 = vector.shape_cast %277 : vector<1x8x128xbf16> to vector<8x128xbf16>
    %cst_113 = arith.constant dense<0.000000e+00> : vector<128x128xf32>
    %279 = tpu.matmul %276, %278, %cst_113 {dimension_numbers = #tpu.dot_dimension_numbers<[0], [0], [1], [1], [0, 1, 1, 1], [], []>} : vector<8x128xbf16>, vector<8x128xbf16>, vector<128x128xf32> -> vector<128x128xf32>
    %280 = arith.truncf %279 : vector<128x128xf32> to vector<128x128xbf16>
    %c24 = arith.constant 24 : index
    %c0_114 = arith.constant 0 : index
    %c0_115 = arith.constant 0 : index
    %281 = vector.load %arg12[%c24, %c0_114, %c0_115] : memref<32x128x128xbf16, #tpu.memory_space<vmem>>, vector<1x128x128xbf16>
    %282 = vector.shape_cast %281 : vector<1x128x128xbf16> to vector<128x128xbf16>
    %283 = vector.shape_cast %280 : vector<128x128xbf16> to vector<1x128x128xbf16>
    tpu.vector_store %arg12[%c24, %c0_114, %c0_115], %283 {strides = array<i32>} : memref<32x128x128xbf16, #tpu.memory_space<vmem>>, vector<1x128x128xbf16>,
    %284 = vector.extract_strided_slice %58 {offsets = [25, 0, 0], sizes = [1, 8, 128], strides = [1, 1, 1]} : vector<32x8x128xbf16> to vector<1x8x128xbf16>
    %285 = vector.shape_cast %284 : vector<1x8x128xbf16> to vector<8x128xbf16>
    %286 = vector.extract_strided_slice %0 {offsets = [25, 0, 0], sizes = [1, 8, 128], strides = [1, 1, 1]} : vector<32x8x128xbf16> to vector<1x8x128xbf16>
    %287 = vector.shape_cast %286 : vector<1x8x128xbf16> to vector<8x128xbf16>
    %cst_116 = arith.constant dense<0.000000e+00> : vector<128x128xf32>
    %288 = tpu.matmul %285, %287, %cst_116 {dimension_numbers = #tpu.dot_dimension_numbers<[0], [0], [1], [1], [0, 1, 1, 1], [], []>} : vector<8x128xbf16>, vector<8x128xbf16>, vector<128x128xf32> -> vector<128x128xf32>
    %289 = arith.truncf %288 : vector<128x128xf32> to vector<128x128xbf16>
    %c25 = arith.constant 25 : index
    %c0_117 = arith.constant 0 : index
    %c0_118 = arith.constant 0 : index
    %290 = vector.load %arg12[%c25, %c0_117, %c0_118] : memref<32x128x128xbf16, #tpu.memory_space<vmem>>, vector<1x128x128xbf16>
    %291 = vector.shape_cast %290 : vector<1x128x128xbf16> to vector<128x128xbf16>
    %292 = vector.shape_cast %289 : vector<128x128xbf16> to vector<1x128x128xbf16>
    tpu.vector_store %arg12[%c25, %c0_117, %c0_118], %292 {strides = array<i32>} : memref<32x128x128xbf16, #tpu.memory_space<vmem>>, vector<1x128x128xbf16>,
    %293 = vector.extract_strided_slice %58 {offsets = [26, 0, 0], sizes = [1, 8, 128], strides = [1, 1, 1]} : vector<32x8x128xbf16> to vector<1x8x128xbf16>
    %294 = vector.shape_cast %293 : vector<1x8x128xbf16> to vector<8x128xbf16>
    %295 = vector.extract_strided_slice %0 {offsets = [26, 0, 0], sizes = [1, 8, 128], strides = [1, 1, 1]} : vector<32x8x128xbf16> to vector<1x8x128xbf16>
    %296 = vector.shape_cast %295 : vector<1x8x128xbf16> to vector<8x128xbf16>
    %cst_119 = arith.constant dense<0.000000e+00> : vector<128x128xf32>
    %297 = tpu.matmul %294, %296, %cst_119 {dimension_numbers = #tpu.dot_dimension_numbers<[0], [0], [1], [1], [0, 1, 1, 1], [], []>} : vector<8x128xbf16>, vector<8x128xbf16>, vector<128x128xf32> -> vector<128x128xf32>
    %298 = arith.truncf %297 : vector<128x128xf32> to vector<128x128xbf16>
    %c26 = arith.constant 26 : index
    %c0_120 = arith.constant 0 : index
    %c0_121 = arith.constant 0 : index
    %299 = vector.load %arg12[%c26, %c0_120, %c0_121] : memref<32x128x128xbf16, #tpu.memory_space<vmem>>, vector<1x128x128xbf16>
    %300 = vector.shape_cast %299 : vector<1x128x128xbf16> to vector<128x128xbf16>
    %301 = vector.shape_cast %298 : vector<128x128xbf16> to vector<1x128x128xbf16>
    tpu.vector_store %arg12[%c26, %c0_120, %c0_121], %301 {strides = array<i32>} : memref<32x128x128xbf16, #tpu.memory_space<vmem>>, vector<1x128x128xbf16>,
    %302 = vector.extract_strided_slice %58 {offsets = [27, 0, 0], sizes = [1, 8, 128], strides = [1, 1, 1]} : vector<32x8x128xbf16> to vector<1x8x128xbf16>
    %303 = vector.shape_cast %302 : vector<1x8x128xbf16> to vector<8x128xbf16>
    %304 = vector.extract_strided_slice %0 {offsets = [27, 0, 0], sizes = [1, 8, 128], strides = [1, 1, 1]} : vector<32x8x128xbf16> to vector<1x8x128xbf16>
    %305 = vector.shape_cast %304 : vector<1x8x128xbf16> to vector<8x128xbf16>
    %cst_122 = arith.constant dense<0.000000e+00> : vector<128x128xf32>
    %306 = tpu.matmul %303, %305, %cst_122 {dimension_numbers = #tpu.dot_dimension_numbers<[0], [0], [1], [1], [0, 1, 1, 1], [], []>} : vector<8x128xbf16>, vector<8x128xbf16>, vector<128x128xf32> -> vector<128x128xf32>
    %307 = arith.truncf %306 : vector<128x128xf32> to vector<128x128xbf16>
    %c27 = arith.constant 27 : index
    %c0_123 = arith.constant 0 : index
    %c0_124 = arith.constant 0 : index
    %308 = vector.load %arg12[%c27, %c0_123, %c0_124] : memref<32x128x128xbf16, #tpu.memory_space<vmem>>, vector<1x128x128xbf16>
    %309 = vector.shape_cast %308 : vector<1x128x128xbf16> to vector<128x128xbf16>
    %310 = vector.shape_cast %307 : vector<128x128xbf16> to vector<1x128x128xbf16>
    tpu.vector_store %arg12[%c27, %c0_123, %c0_124], %310 {strides = array<i32>} : memref<32x128x128xbf16, #tpu.memory_space<vmem>>, vector<1x128x128xbf16>,
    %311 = vector.extract_strided_slice %58 {offsets = [28, 0, 0], sizes = [1, 8, 128], strides = [1, 1, 1]} : vector<32x8x128xbf16> to vector<1x8x128xbf16>
    %312 = vector.shape_cast %311 : vector<1x8x128xbf16> to vector<8x128xbf16>
    %313 = vector.extract_strided_slice %0 {offsets = [28, 0, 0], sizes = [1, 8, 128], strides = [1, 1, 1]} : vector<32x8x128xbf16> to vector<1x8x128xbf16>
    %314 = vector.shape_cast %313 : vector<1x8x128xbf16> to vector<8x128xbf16>
    %cst_125 = arith.constant dense<0.000000e+00> : vector<128x128xf32>
    %315 = tpu.matmul %312, %314, %cst_125 {dimension_numbers = #tpu.dot_dimension_numbers<[0], [0], [1], [1], [0, 1, 1, 1], [], []>} : vector<8x128xbf16>, vector<8x128xbf16>, vector<128x128xf32> -> vector<128x128xf32>
    %316 = arith.truncf %315 : vector<128x128xf32> to vector<128x128xbf16>
    %c28 = arith.constant 28 : index
    %c0_126 = arith.constant 0 : index
    %c0_127 = arith.constant 0 : index
    %317 = vector.load %arg12[%c28, %c0_126, %c0_127] : memref<32x128x128xbf16, #tpu.memory_space<vmem>>, vector<1x128x128xbf16>
    %318 = vector.shape_cast %317 : vector<1x128x128xbf16> to vector<128x128xbf16>
    %319 = vector.shape_cast %316 : vector<128x128xbf16> to vector<1x128x128xbf16>
    tpu.vector_store %arg12[%c28, %c0_126, %c0_127], %319 {strides = array<i32>} : memref<32x128x128xbf16, #tpu.memory_space<vmem>>, vector<1x128x128xbf16>,
    %320 = vector.extract_strided_slice %58 {offsets = [29, 0, 0], sizes = [1, 8, 128], strides = [1, 1, 1]} : vector<32x8x128xbf16> to vector<1x8x128xbf16>
    %321 = vector.shape_cast %320 : vector<1x8x128xbf16> to vector<8x128xbf16>
    %322 = vector.extract_strided_slice %0 {offsets = [29, 0, 0], sizes = [1, 8, 128], strides = [1, 1, 1]} : vector<32x8x128xbf16> to vector<1x8x128xbf16>
    %323 = vector.shape_cast %322 : vector<1x8x128xbf16> to vector<8x128xbf16>
    %cst_128 = arith.constant dense<0.000000e+00> : vector<128x128xf32>
    %324 = tpu.matmul %321, %323, %cst_128 {dimension_numbers = #tpu.dot_dimension_numbers<[0], [0], [1], [1], [0, 1, 1, 1], [], []>} : vector<8x128xbf16>, vector<8x128xbf16>, vector<128x128xf32> -> vector<128x128xf32>
    %325 = arith.truncf %324 : vector<128x128xf32> to vector<128x128xbf16>
    %c29 = arith.constant 29 : index
    %c0_129 = arith.constant 0 : index
    %c0_130 = arith.constant 0 : index
    %326 = vector.load %arg12[%c29, %c0_129, %c0_130] : memref<32x128x128xbf16, #tpu.memory_space<vmem>>, vector<1x128x128xbf16>
    %327 = vector.shape_cast %326 : vector<1x128x128xbf16> to vector<128x128xbf16>
    %328 = vector.shape_cast %325 : vector<128x128xbf16> to vector<1x128x128xbf16>
    tpu.vector_store %arg12[%c29, %c0_129, %c0_130], %328 {strides = array<i32>} : memref<32x128x128xbf16, #tpu.memory_space<vmem>>, vector<1x128x128xbf16>,
    %329 = vector.extract_strided_slice %58 {offsets = [30, 0, 0], sizes = [1, 8, 128], strides = [1, 1, 1]} : vector<32x8x128xbf16> to vector<1x8x128xbf16>
    %330 = vector.shape_cast %329 : vector<1x8x128xbf16> to vector<8x128xbf16>
    %331 = vector.extract_strided_slice %0 {offsets = [30, 0, 0], sizes = [1, 8, 128], strides = [1, 1, 1]} : vector<32x8x128xbf16> to vector<1x8x128xbf16>
    %332 = vector.shape_cast %331 : vector<1x8x128xbf16> to vector<8x128xbf16>
    %cst_131 = arith.constant dense<0.000000e+00> : vector<128x128xf32>
    %333 = tpu.matmul %330, %332, %cst_131 {dimension_numbers = #tpu.dot_dimension_numbers<[0], [0], [1], [1], [0, 1, 1, 1], [], []>} : vector<8x128xbf16>, vector<8x128xbf16>, vector<128x128xf32> -> vector<128x128xf32>
    %334 = arith.truncf %333 : vector<128x128xf32> to vector<128x128xbf16>
    %c30 = arith.constant 30 : index
    %c0_132 = arith.constant 0 : index
    %c0_133 = arith.constant 0 : index
    %335 = vector.load %arg12[%c30, %c0_132, %c0_133] : memref<32x128x128xbf16, #tpu.memory_space<vmem>>, vector<1x128x128xbf16>
    %336 = vector.shape_cast %335 : vector<1x128x128xbf16> to vector<128x128xbf16>
    %337 = vector.shape_cast %334 : vector<128x128xbf16> to vector<1x128x128xbf16>
    tpu.vector_store %arg12[%c30, %c0_132, %c0_133], %337 {strides = array<i32>} : memref<32x128x128xbf16, #tpu.memory_space<vmem>>, vector<1x128x128xbf16>,
    %338 = vector.extract_strided_slice %58 {offsets = [31, 0, 0], sizes = [1, 8, 128], strides = [1, 1, 1]} : vector<32x8x128xbf16> to vector<1x8x128xbf16>
    %339 = vector.shape_cast %338 : vector<1x8x128xbf16> to vector<8x128xbf16>
    %340 = vector.extract_strided_slice %0 {offsets = [31, 0, 0], sizes = [1, 8, 128], strides = [1, 1, 1]} : vector<32x8x128xbf16> to vector<1x8x128xbf16>
    %341 = vector.shape_cast %340 : vector<1x8x128xbf16> to vector<8x128xbf16>
    %cst_134 = arith.constant dense<0.000000e+00> : vector<128x128xf32>
    %342 = tpu.matmul %339, %341, %cst_134 {dimension_numbers = #tpu.dot_dimension_numbers<[0], [0], [1], [1], [0, 1, 1, 1], [], []>} : vector<8x128xbf16>, vector<8x128xbf16>, vector<128x128xf32> -> vector<128x128xf32>
    %343 = arith.truncf %342 : vector<128x128xf32> to vector<128x128xbf16>
    %c31 = arith.constant 31 : index
    %c0_135 = arith.constant 0 : index
    %c0_136 = arith.constant 0 : index
    %344 = vector.load %arg12[%c31, %c0_135, %c0_136] : memref<32x128x128xbf16, #tpu.memory_space<vmem>>, vector<1x128x128xbf16>
    %345 = vector.shape_cast %344 : vector<1x128x128xbf16> to vector<128x128xbf16>
    %346 = vector.shape_cast %343 : vector<128x128xbf16> to vector<1x128x128xbf16>
    tpu.vector_store %arg12[%c31, %c0_135, %c0_136], %346 {strides = array<i32>} : memref<32x128x128xbf16, #tpu.memory_space<vmem>>, vector<1x128x128xbf16>,
    return
  }
  func.func @transform_0(%arg0: i32) -> (i32, i32, i32) {
    %c0_i32 = arith.constant 0 : i32
    %c0_i32_0 = arith.constant 0 : i32
    %c0_i32_1 = arith.constant 0 : i32
    return %arg0, %c0_i32, %c0_i32_0 : i32, i32, i32
  }
  func.func @transform_1(%arg0: i32) -> (i32, i32, i32) {
    %c0_i32 = arith.constant 0 : i32
    %c0_i32_0 = arith.constant 0 : i32
    %c0_i32_1 = arith.constant 0 : i32
    return %arg0, %c0_i32, %c0_i32_0 : i32, i32, i32
  }
  func.func @transform_2(%arg0: i32) -> (i32, i32, i32) {
    %c0_i32 = arith.constant 0 : i32
    %c0_i32_0 = arith.constant 0 : i32
    %c0_i32_1 = arith.constant 0 : i32
    return %arg0, %c0_i32, %c0_i32_0 : i32, i32, i32
  }
  func.func @transform_3(%arg0: i32) -> (i32, i32) {
    %c0_i32 = arith.constant 0 : i32
    %c0_i32_0 = arith.constant 0 : i32
    %c0_i32_1 = arith.constant 0 : i32
    return %c0_i32, %c0_i32_0 : i32, i32
  }
  func.func @transform_4(%arg0: i32) -> (i32, i32) {
    %c0_i32 = arith.constant 0 : i32
    %c0_i32_0 = arith.constant 0 : i32
    %c0_i32_1 = arith.constant 0 : i32
    return %c0_i32, %c0_i32_0 : i32, i32
  }
  func.func @transform_5(%arg0: i32) -> (i32, i32) {
    %c0_i32 = arith.constant 0 : i32
    %c0_i32_0 = arith.constant 0 : i32
    %c0_i32_1 = arith.constant 0 : i32
    return %c0_i32, %c0_i32_0 : i32, i32
  }
  func.func @transform_6(%arg0: i32) -> (i32, i32) {
    %c0_i32 = arith.constant 0 : i32
    %c0_i32_0 = arith.constant 0 : i32
    %c0_i32_1 = arith.constant 0 : i32
    return %c0_i32, %c0_i32_0 : i32, i32
  }
  func.func @transform_7(%arg0: i32) -> (i32, i32) {
    %c0_i32 = arith.constant 0 : i32
    %c0_i32_0 = arith.constant 0 : i32
    %c0_i32_1 = arith.constant 0 : i32
    return %c0_i32, %c0_i32_0 : i32, i32
  }
  func.func @transform_8(%arg0: i32) -> (i32, i32) {
    %c0_i32 = arith.constant 0 : i32
    %c0_i32_0 = arith.constant 0 : i32
    %c0_i32_1 = arith.constant 0 : i32
    return %c0_i32, %c0_i32_0 : i32, i32
  }
  func.func @transform_9(%arg0: i32) -> (i32, i32) {
    %c0_i32 = arith.constant 0 : i32
    %c0_i32_0 = arith.constant 0 : i32
    %c0_i32_1 = arith.constant 0 : i32
    return %c0_i32, %c0_i32_0 : i32, i32
  }
  func.func @transform_10(%arg0: i32) -> (i32, i32) {
    %c0_i32 = arith.constant 0 : i32
    %c0_i32_0 = arith.constant 0 : i32
    %c0_i32_1 = arith.constant 0 : i32
    return %c0_i32, %c0_i32_0 : i32, i32
  }
  func.func @transform_11(%arg0: i32) -> (i32, i32, i32) {
    %c0_i32 = arith.constant 0 : i32
    %c0_i32_0 = arith.constant 0 : i32
    %c0_i32_1 = arith.constant 0 : i32
    return %arg0, %c0_i32, %c0_i32_0 : i32, i32, i32
  }
  func.func @transform_12(%arg0: i32) -> (i32, i32, i32) {
    %c0_i32 = arith.constant 0 : i32
    %c0_i32_0 = arith.constant 0 : i32
    %c0_i32_1 = arith.constant 0 : i32
    return %arg0, %c0_i32, %c0_i32_0 : i32, i32, i32
  }
  func.func @transform_13(%arg0: i32) -> (i32, i32, i32) {
    %c0_i32 = arith.constant 0 : i32
    %c0_i32_0 = arith.constant 0 : i32
    %c0_i32_1 = arith.constant 0 : i32
    return %arg0, %c0_i32, %c0_i32_0 : i32, i32, i32
  }
}

</mosaic_0001>

<llo_original>
// kernel: tpu_custom_call.1
$region0: #{tpu_custom_call.1}
  #allocation0 [shape = 'u32[]', space=smem, size = 0x4, offset = 0x4, fixed_abs, tag = 'smem constant byte address 0x4 - core index']
  #allocation1 [shape = 'u32[144,128]{1,0:T(1,128)}', space=vmem, size = 0x12000, scoped, tag = 'internal scratch']
  %s0 = inlined_call_operand.hbm [shape: bf16[64,8,128], index: 0, kind: input, shape index: {}]
  %s1 = inlined_call_operand.hbm [shape: bf16[64,8,128], index: 1, kind: input, shape index: {}]
  %s2 = inlined_call_operand.hbm [shape: bf16[64,8,128], index: 2, kind: input, shape index: {}]
  %s3 = inlined_call_operand.hbm [shape: bf16[128,128], index: 3, kind: input, shape index: {}]
  %s4 = inlined_call_operand.hbm [shape: f32[1,128], index: 4, kind: input, shape index: {}]
  %s5 = inlined_call_operand.hbm [shape: bf16[128,128], index: 5, kind: input, shape index: {}]
  %s6 = inlined_call_operand.hbm [shape: f32[1,128], index: 6, kind: input, shape index: {}]
  %s7 = inlined_call_operand.hbm [shape: bf16[128,128], index: 7, kind: input, shape index: {}]
  %s8 = inlined_call_operand.hbm [shape: f32[1,128], index: 8, kind: input, shape index: {}]
  %s9 = inlined_call_operand.hbm [shape: bf16[128,256], index: 9, kind: input, shape index: {}]
  %s10 = inlined_call_operand.hbm [shape: f32[1,256], index: 10, kind: input, shape index: {}]
  %s11 = inlined_call_operand.hbm [shape: bf16[64,128,128], index: 11, kind: output, shape index: {0}]
  %s12 = inlined_call_operand.hbm [shape: f32[64,8,128], index: 12, kind: output, shape index: {1}]
  %s13 = inlined_call_operand.hbm [shape: f32[64,8,128], index: 13, kind: output, shape index: {2}]
  %14 = xla_tuple %s11, %s12, %s13
  %s15 = sld [smem:[#allocation0]]
  $region137: #{tpu_custom_call.1} parent=0
    _
  %s17 = ssub.s32 1, %s15
  %s18 = scalar_select 0, %s17, %s15
  $region1: #{tpu_custom_call.1} parent=0
    #allocation2 [shape = 'u8[131072]{0}', space=vmem, size = 0x20000, scoped, tag = 'input window, operand 0']
    #allocation3 [shape = 's32[2]{0}', space=sflag, size = 0x8, scoped, tag = 'scoped memory for tpu_custom_call.1']
    #allocation4 [shape = 's32[2]{0}', space=sflag, size = 0x8, scoped, tag = 'scoped memory for tpu_custom_call.1']
    #allocation5 [shape = 'u8[131072]{0}', space=vmem, size = 0x20000, scoped, tag = 'input window, operand 1']
    #allocation6 [shape = 's32[2]{0}', space=sflag, size = 0x8, scoped, tag = 'scoped memory for tpu_custom_call.1']
    #allocation7 [shape = 'u8[131072]{0}', space=vmem, size = 0x20000, scoped, tag = 'input window, operand 2']
    #allocation8 [shape = 'u8[32768]{0}', space=vmem, size = 0x8000, scoped, tag = 'input window, operand 3, single buffered']
    #allocation9 [shape = 's32[1]{0}', space=sflag, size = 0x4, scoped, tag = 'scoped memory for tpu_custom_call.1']
    #allocation10 [shape = 'u8[512]{0}', space=vmem, size = 0x400, scoped, tag = 'input window, operand 4, single buffered']
    #allocation11 [shape = 'u8[32768]{0}', space=vmem, size = 0x8000, scoped, tag = 'input window, operand 5, single buffered']
    #allocation12 [shape = 's32[1]{0}', space=sflag, size = 0x4, scoped, tag = 'scoped memory for tpu_custom_call.1']
    #allocation13 [shape = 'u8[512]{0}', space=vmem, size = 0x400, scoped, tag = 'input window, operand 6, single buffered']
    #allocation14 [shape = 'u8[32768]{0}', space=vmem, size = 0x8000, scoped, tag = 'input window, operand 7, single buffered']
    #allocation15 [shape = 's32[1]{0}', space=sflag, size = 0x4, scoped, tag = 'scoped memory for tpu_custom_call.1']
    #allocation16 [shape = 'u8[512]{0}', space=vmem, size = 0x400, scoped, tag = 'input window, operand 8, single buffered']
    #allocation17 [shape = 'u8[65536]{0}', space=vmem, size = 0x10000, scoped, tag = 'input window, operand 9, single buffered']
    #allocation18 [shape = 's32[1]{0}', space=sflag, size = 0x4, scoped, tag = 'scoped memory for tpu_custom_call.1']
    #allocation19 [shape = 'u8[1024]{0}', space=vmem, size = 0x400, scoped, tag = 'input window, operand 10, single buffered']
    #allocation20 [shape = 'u8[2097152]{0}', space=vmem, size = 0x200000, scoped, tag = 'output window, operand 0']
    #allocation21 [shape = 'u8[262144]{0}', space=vmem, size = 0x40000, scoped, tag = 'output window, operand 1']
    #allocation22 [shape = 's32[2]{0}', space=sflag, size = 0x8, scoped, tag = 'scoped memory for tpu_custom_call.1']
    #allocation23 [shape = 'u8[262144]{0}', space=vmem, size = 0x40000, scoped, tag = 'output window, operand 2']
    %19 = vsyncpa [#allocation3], 0
    %s20 = scalar_lea.sflag [#allocation3], 1
    %21 = vsyncpa %s20, 0
    %22 = vsyncpa [#allocation6], 0
    %s23 = scalar_lea.sflag [#allocation6], 1
    %24 = vsyncpa %s23, 0
    %25 = vsyncpa [#allocation9], 0
    %26 = vsyncpa [#allocation12], 0
    %27 = vsyncpa [#allocation15], 0
    %28 = vsyncpa [#allocation18], 0
    %29 = vsyncpa [#allocation4], 0
    %s30 = scalar_lea.sflag [#allocation4], 1
    %31 = vsyncpa %s30, 0
    %32 = vsyncpa [#allocation22], 0
    %s33 = scalar_lea.sflag [#allocation22], 1
    %34 = vsyncpa %s33, 0
    loop: start=0, step=1, limit=4
    $region2: #{tpu_custom_call.1} parent=1 // loop_pre_header
      _
    $region3: #{tpu_custom_call.1} parent=1 // loop_header
      %s36 = sphi 0, %s40
      %p37 = scmp.ge.s32.totalorder %s36, 4
      %s46 = sphi 0, %s48
      %s49 = sphi 0, %s46
      %s50 = sphi 0, %s49
      %s66 = sphi 0, %s50
      %s72 = sphi 0, %s74
      %s75 = sphi 0, %s72
      %s76 = sphi 0, %s75
      %s92 = sphi 0, %s76
      %s98 = sphi 0, %s100
      %s101 = sphi 0, %s98
      %s102 = sphi 0, %s101
      %s118 = sphi 0, %s102
      %s122 = sphi 0, %s122
      %s124 = sphi 0, %s122
      %s125 = sphi 0, %s124
      %s139 = sphi 0, %s125
      %s143 = sphi 0, %s143
      %s145 = sphi 0, %s143
      %s146 = sphi 0, %s145
      %s160 = sphi 0, %s146
      %s164 = sphi 0, %s164
      %s166 = sphi 0, %s164
      %s167 = sphi 0, %s166
      %s181 = sphi 0, %s167
      %s185 = sphi 0, %s185
      %s187 = sphi 0, %s185
      %s188 = sphi 0, %s187
      %s202 = sphi 0, %s188
      %s206 = sphi 0, %s206
      %s208 = sphi 0, %s206
      %s209 = sphi 0, %s208
      %s223 = sphi 0, %s209
      %s227 = sphi 0, %s227
      %s229 = sphi 0, %s227
      %s230 = sphi 0, %s229
      %s244 = sphi 0, %s230
      %s248 = sphi 0, %s248
      %s250 = sphi 0, %s248
      %s251 = sphi 0, %s250
      %s265 = sphi 0, %s251
      %s269 = sphi 0, %s269
      %s271 = sphi 0, %s269
      %s272 = sphi 0, %s271
      %s286 = sphi 0, %s272
      %s292 = sphi 0, %s294
      %s295 = sphi 0, %s292
      %s296 = sphi 0, %s295
      %s312 = sphi 0, %s296
      %s318 = sphi 0, %s320
      %s321 = sphi 0, %s318
      %s322 = sphi 0, %s321
      %s338 = sphi 0, %s322
      %s344 = sphi 0, %s346
      %s347 = sphi 0, %s344
      %s348 = sphi 0, %s347
      %s364 = sphi 0, %s348
    $region4: #{tpu_custom_call.1} parent=1 // loop_header_branch
      %39 = sbr.rel (%p37) target = $region8
    $region5: #{tpu_custom_call.1} parent=1 // loop_body
      %s41 = ssub.s32 %s36, 1
      %s42 = ssub.s32 %s36, 2
      %s43 = sadd.s32 %s36, 1
      %s44 = ssub.s32 %s36, %s43
      %p45 = scmp.eq.s32.totalorder %s44, 0
      %s47 = sadd.s32 %s46, 1
      %s48 = scalar_select %p45, %s46, %s47
      %p51 = pneg %p45
      %p52 = scmp.eq.s32.totalorder %s36, 1
      %p53 = por %p51, %p52
      %p54 = scmp.ne.s32.totalorder %s46, %s49
      %p55 = scmp.eq.s32.totalorder %s36, 0
      %p56 = por %p54, %p55
      %p57 = scmp.ne.s32.totalorder %s46, %s49
      %p58 = scmp.eq.s32.totalorder %s41, 1
      %p59 = por %p57, %p58
      %p60 = scmp.ne.s32.totalorder %s49, %s50
      %p61 = scmp.eq.s32.totalorder %s41, 0
      %p62 = por %p60, %p61
      %p63 = scmp.ne.s32.totalorder %s49, %s50
      %p64 = scmp.eq.s32.totalorder %s42, 1
      %p65 = por %p63, %p64
      %p67 = scmp.ne.s32.totalorder %s50, %s66
      %p68 = scmp.eq.s32.totalorder %s42, 0
      %p69 = por %p67, %p68
      %s70 = ssub.s32 %s36, %s43
      %p71 = scmp.eq.s32.totalorder %s70, 0
      %s73 = sadd.s32 %s72, 1
      %s74 = scalar_select %p71, %s72, %s73
      %p77 = pneg %p71
      %p78 = scmp.eq.s32.totalorder %s36, 1
      %p79 = por %p77, %p78
      %p80 = scmp.ne.s32.totalorder %s72, %s75
      %p81 = scmp.eq.s32.totalorder %s36, 0
      %p82 = por %p80, %p81
      %p83 = scmp.ne.s32.totalorder %s72, %s75
      %p84 = scmp.eq.s32.totalorder %s41, 1
      %p85 = por %p83, %p84
      %p86 = scmp.ne.s32.totalorder %s75, %s76
      %p87 = scmp.eq.s32.totalorder %s41, 0
      %p88 = por %p86, %p87
      %p89 = scmp.ne.s32.totalorder %s75, %s76
      %p90 = scmp.eq.s32.totalorder %s42, 1
      %p91 = por %p89, %p90
      %p93 = scmp.ne.s32.totalorder %s76, %s92
      %p94 = scmp.eq.s32.totalorder %s42, 0
      %p95 = por %p93, %p94
      %s96 = ssub.s32 %s36, %s43
      %p97 = scmp.eq.s32.totalorder %s96, 0
      %s99 = sadd.s32 %s98, 1
      %s100 = scalar_select %p97, %s98, %s99
      %p103 = pneg %p97
      %p104 = scmp.eq.s32.totalorder %s36, 1
      %p105 = por %p103, %p104
      %p106 = scmp.ne.s32.totalorder %s98, %s101
      %p107 = scmp.eq.s32.totalorder %s36, 0
      %p108 = por %p106, %p107
      %p109 = scmp.ne.s32.totalorder %s98, %s101
      %p110 = scmp.eq.s32.totalorder %s41, 1
      %p111 = por %p109, %p110
      %p112 = scmp.ne.s32.totalorder %s101, %s102
      %p113 = scmp.eq.s32.totalorder %s41, 0
      %p114 = por %p112, %p113
      %p115 = scmp.ne.s32.totalorder %s101, %s102
      %p116 = scmp.eq.s32.totalorder %s42, 1
      %p117 = por %p115, %p116
      %p119 = scmp.ne.s32.totalorder %s102, %s118
      %p120 = scmp.eq.s32.totalorder %s42, 0
      %p121 = por %p119, %p120
      %s123 = sadd.s32 %s122, 1
      %p126 = scmp.eq.s32.totalorder %s36, 1
      %p127 = scmp.ne.s32.totalorder %s122, %s124
      %p128 = scmp.eq.s32.totalorder %s36, 0
      %p129 = por %p127, %p128
      %p130 = scmp.ne.s32.totalorder %s122, %s124
      %p131 = scmp.eq.s32.totalorder %s41, 1
      %p132 = por %p130, %p131
      %p133 = scmp.ne.s32.totalorder %s124, %s125
      %p134 = scmp.eq.s32.totalorder %s41, 0
      %p135 = por %p133, %p134
      %p136 = scmp.ne.s32.totalorder %s124, %s125
      %p137 = scmp.eq.s32.totalorder %s42, 1
      %p138 = por %p136, %p137
      %p140 = scmp.ne.s32.totalorder %s125, %s139
      %p141 = scmp.eq.s32.totalorder %s42, 0
      %p142 = por %p140, %p141
      %s144 = sadd.s32 %s143, 1
      %p147 = scmp.eq.s32.totalorder %s36, 1
      %p148 = scmp.ne.s32.totalorder %s143, %s145
      %p149 = scmp.eq.s32.totalorder %s36, 0
      %p150 = por %p148, %p149
      %p151 = scmp.ne.s32.totalorder %s143, %s145
      %p152 = scmp.eq.s32.totalorder %s41, 1
      %p153 = por %p151, %p152
      %p154 = scmp.ne.s32.totalorder %s145, %s146
      %p155 = scmp.eq.s32.totalorder %s41, 0
      %p156 = por %p154, %p155
      %p157 = scmp.ne.s32.totalorder %s145, %s146
      %p158 = scmp.eq.s32.totalorder %s42, 1
      %p159 = por %p157, %p158
      %p161 = scmp.ne.s32.totalorder %s146, %s160
      %p162 = scmp.eq.s32.totalorder %s42, 0
      %p163 = por %p161, %p162
      %s165 = sadd.s32 %s164, 1
      %p168 = scmp.eq.s32.totalorder %s36, 1
      %p169 = scmp.ne.s32.totalorder %s164, %s166
      %p170 = scmp.eq.s32.totalorder %s36, 0
      %p171 = por %p169, %p170
      %p172 = scmp.ne.s32.totalorder %s164, %s166
      %p173 = scmp.eq.s32.totalorder %s41, 1
      %p174 = por %p172, %p173
      %p175 = scmp.ne.s32.totalorder %s166, %s167
      %p176 = scmp.eq.s32.totalorder %s41, 0
      %p177 = por %p175, %p176
      %p178 = scmp.ne.s32.totalorder %s166, %s167
      %p179 = scmp.eq.s32.totalorder %s42, 1
      %p180 = por %p178, %p179
      %p182 = scmp.ne.s32.totalorder %s167, %s181
      %p183 = scmp.eq.s32.totalorder %s42, 0
      %p184 = por %p182, %p183
      %s186 = sadd.s32 %s185, 1
      %p189 = scmp.eq.s32.totalorder %s36, 1
      %p190 = scmp.ne.s32.totalorder %s185, %s187
      %p191 = scmp.eq.s32.totalorder %s36, 0
      %p192 = por %p190, %p191
      %p193 = scmp.ne.s32.totalorder %s185, %s187
      %p194 = scmp.eq.s32.totalorder %s41, 1
      %p195 = por %p193, %p194
      %p196 = scmp.ne.s32.totalorder %s187, %s188
      %p197 = scmp.eq.s32.totalorder %s41, 0
      %p198 = por %p196, %p197
      %p199 = scmp.ne.s32.totalorder %s187, %s188
      %p200 = scmp.eq.s32.totalorder %s42, 1
      %p201 = por %p199, %p200
      %p203 = scmp.ne.s32.totalorder %s188, %s202
      %p204 = scmp.eq.s32.totalorder %s42, 0
      %p205 = por %p203, %p204
      %s207 = sadd.s32 %s206, 1
      %p210 = scmp.eq.s32.totalorder %s36, 1
      %p211 = scmp.ne.s32.totalorder %s206, %s208
      %p212 = scmp.eq.s32.totalorder %s36, 0
      %p213 = por %p211, %p212
      %p214 = scmp.ne.s32.totalorder %s206, %s208
      %p215 = scmp.eq.s32.totalorder %s41, 1
      %p216 = por %p214, %p215
      %p217 = scmp.ne.s32.totalorder %s208, %s209
      %p218 = scmp.eq.s32.totalorder %s41, 0
      %p219 = por %p217, %p218
      %p220 = scmp.ne.s32.totalorder %s208, %s209
      %p221 = scmp.eq.s32.totalorder %s42, 1
      %p222 = por %p220, %p221
      %p224 = scmp.ne.s32.totalorder %s209, %s223
      %p225 = scmp.eq.s32.totalorder %s42, 0
      %p226 = por %p224, %p225
      %s228 = sadd.s32 %s227, 1
      %p231 = scmp.eq.s32.totalorder %s36, 1
      %p232 = scmp.ne.s32.totalorder %s227, %s229
      %p233 = scmp.eq.s32.totalorder %s36, 0
      %p234 = por %p232, %p233
      %p235 = scmp.ne.s32.totalorder %s227, %s229
      %p236 = scmp.eq.s32.totalorder %s41, 1
      %p237 = por %p235, %p236
      %p238 = scmp.ne.s32.totalorder %s229, %s230
      %p239 = scmp.eq.s32.totalorder %s41, 0
      %p240 = por %p238, %p239
      %p241 = scmp.ne.s32.totalorder %s229, %s230
      %p242 = scmp.eq.s32.totalorder %s42, 1
      %p243 = por %p241, %p242
      %p245 = scmp.ne.s32.totalorder %s230, %s244
      %p246 = scmp.eq.s32.totalorder %s42, 0
      %p247 = por %p245, %p246
      %s249 = sadd.s32 %s248, 1
      %p252 = scmp.eq.s32.totalorder %s36, 1
      %p253 = scmp.ne.s32.totalorder %s248, %s250
      %p254 = scmp.eq.s32.totalorder %s36, 0
      %p255 = por %p253, %p254
      %p256 = scmp.ne.s32.totalorder %s248, %s250
      %p257 = scmp.eq.s32.totalorder %s41, 1
      %p258 = por %p256, %p257
      %p259 = scmp.ne.s32.totalorder %s250, %s251
      %p260 = scmp.eq.s32.totalorder %s41, 0
      %p261 = por %p259, %p260
      %p262 = scmp.ne.s32.totalorder %s250, %s251
      %p263 = scmp.eq.s32.totalorder %s42, 1
      %p264 = por %p262, %p263
      %p266 = scmp.ne.s32.totalorder %s251, %s265
      %p267 = scmp.eq.s32.totalorder %s42, 0
      %p268 = por %p266, %p267
      %s270 = sadd.s32 %s269, 1
      %p273 = scmp.eq.s32.totalorder %s36, 1
      %p274 = scmp.ne.s32.totalorder %s269, %s271
      %p275 = scmp.eq.s32.totalorder %s36, 0
      %p276 = por %p274, %p275
      %p277 = scmp.ne.s32.totalorder %s269, %s271
      %p278 = scmp.eq.s32.totalorder %s41, 1
      %p279 = por %p277, %p278
      %p280 = scmp.ne.s32.totalorder %s271, %s272
      %p281 = scmp.eq.s32.totalorder %s41, 0
      %p282 = por %p280, %p281
      %p283 = scmp.ne.s32.totalorder %s271, %s272
      %p284 = scmp.eq.s32.totalorder %s42, 1
      %p285 = por %p283, %p284
      %p287 = scmp.ne.s32.totalorder %s272, %s286
      %p288 = scmp.eq.s32.totalorder %s42, 0
      %p289 = por %p287, %p288
      %s290 = ssub.s32 %s36, %s43
      %p291 = scmp.eq.s32.totalorder %s290, 0
      %s293 = sadd.s32 %s292, 1
      %s294 = scalar_select %p291, %s292, %s293
      %p297 = pneg %p291
      %p298 = scmp.eq.s32.totalorder %s36, 1
      %p299 = por %p297, %p298
      %p300 = scmp.ne.s32.totalorder %s292, %s295
      %p301 = scmp.eq.s32.totalorder %s36, 0
      %p302 = por %p300, %p301
      %p303 = scmp.ne.s32.totalorder %s292, %s295
      %p304 = scmp.eq.s32.totalorder %s41, 1
      %p305 = por %p303, %p304
      %p306 = scmp.ne.s32.totalorder %s295, %s296
      %p307 = scmp.eq.s32.totalorder %s41, 0
      %p308 = por %p306, %p307
      %p309 = scmp.ne.s32.totalorder %s295, %s296
      %p310 = scmp.eq.s32.totalorder %s42, 1
      %p311 = por %p309, %p310
      %p313 = scmp.ne.s32.totalorder %s296, %s312
      %p314 = scmp.eq.s32.totalorder %s42, 0
      %p315 = por %p313, %p314
      %s316 = ssub.s32 %s36, %s43
      %p317 = scmp.eq.s32.totalorder %s316, 0
      %s319 = sadd.s32 %s318, 1
      %s320 = scalar_select %p317, %s318, %s319
      %p323 = pneg %p317
      %p324 = scmp.eq.s32.totalorder %s36, 1
      %p325 = por %p323, %p324
      %p326 = scmp.ne.s32.totalorder %s318, %s321
      %p327 = scmp.eq.s32.totalorder %s36, 0
      %p328 = por %p326, %p327
      %p329 = scmp.ne.s32.totalorder %s318, %s321
      %p330 = scmp.eq.s32.totalorder %s41, 1
      %p331 = por %p329, %p330
      %p332 = scmp.ne.s32.totalorder %s321, %s322
      %p333 = scmp.eq.s32.totalorder %s41, 0
      %p334 = por %p332, %p333
      %p335 = scmp.ne.s32.totalorder %s321, %s322
      %p336 = scmp.eq.s32.totalorder %s42, 1
      %p337 = por %p335, %p336
      %p339 = scmp.ne.s32.totalorder %s322, %s338
      %p340 = scmp.eq.s32.totalorder %s42, 0
      %p341 = por %p339, %p340
      %s342 = ssub.s32 %s36, %s43
      %p343 = scmp.eq.s32.totalorder %s342, 0
      %s345 = sadd.s32 %s344, 1
      %s346 = scalar_select %p343, %s344, %s345
      %p349 = pneg %p343
      %p350 = scmp.eq.s32.totalorder %s36, 1
      %p351 = por %p349, %p350
      %p352 = scmp.ne.s32.totalorder %s344, %s347
      %p353 = scmp.eq.s32.totalorder %s36, 0
      %p354 = por %p352, %p353
      %p355 = scmp.ne.s32.totalorder %s344, %s347
      %p356 = scmp.eq.s32.totalorder %s41, 1
      %p357 = por %p355, %p356
      %p358 = scmp.ne.s32.totalorder %s347, %s348
      %p359 = scmp.eq.s32.totalorder %s41, 0
      %p360 = por %p358, %p359
      %p361 = scmp.ne.s32.totalorder %s347, %s348
      %p362 = scmp.eq.s32.totalorder %s42, 1
      %p363 = por %p361, %p362
      %p365 = scmp.ne.s32.totalorder %s348, %s364
      %p366 = scmp.eq.s32.totalorder %s42, 0
      %p367 = por %p365, %p366
      %p368 = scmp.le.s32.totalorder 1, %s36
      %p369 = scmp.lt.s32.totalorder %s36, 3
      %p370 = pnand %p368, %p369
      %p371 = pneg %p370
      // Predicated region
      $region9: #{tpu_custom_call.1} parent=5 // pred_check
        _
      $region10: #{tpu_custom_call.1} parent=5 // pred_check_branch
        %373 = sbr.rel (%p370) target = $region12
      $region11: #{tpu_custom_call.1} parent=5 // pred_region
        %s374 = ssub.s32 %s36, 1
        // Predicated region
        $region13: #{tpu_custom_call.1} parent=11 // pred_check
          %p375 = pneg %p135
        $region14: #{tpu_custom_call.1} parent=11 // pred_check_branch
          %377 = sbr.rel (%p375) target = $region16
        $region15: #{tpu_custom_call.1} parent=11 // pred_region
          %s379 = ssub.s32 1024, 1024
          %380 = vsyncadd [#allocation9], %s379
          %s381 = sshll.u32 [#allocation8], 4
          %s382 = int_to_ptr.vmem [resolvable:$true] %s381
          %387 = dma.hbm_to_vmem [thread:$0]  %s3, 1024, %s382, [#allocation9], 64, 64, 4
        $region16: #{tpu_custom_call.1} parent=11 // pred_fallthru
          _
        // Predicated region
        $region17: #{tpu_custom_call.1} parent=11 // pred_check
          %p388 = pneg %p156
        $region18: #{tpu_custom_call.1} parent=11 // pred_check_branch
          %390 = sbr.rel (%p388) target = $region20
        $region19: #{tpu_custom_call.1} parent=11 // pred_region
          %s392 = ssub.s32 16, 16
          %393 = vsyncadd [#allocation9], %s392
          %s395 = sshll.u32 [#allocation10], 4
          %s396 = int_to_ptr.vmem [resolvable:$true] %s395
          %398 = dma.hbm_to_vmem [thread:$0]  %s4, 16, %s396, [#allocation9]
        $region20: #{tpu_custom_call.1} parent=11 // pred_fallthru
          _
        // Predicated region
        $region21: #{tpu_custom_call.1} parent=11 // pred_check
          %p399 = pneg %p177
        $region22: #{tpu_custom_call.1} parent=11 // pred_check_branch
          %401 = sbr.rel (%p399) target = $region24
        $region23: #{tpu_custom_call.1} parent=11 // pred_region
          %s403 = ssub.s32 1024, 1024
          %404 = vsyncadd [#allocation12], %s403
          %s405 = sshll.u32 [#allocation11], 4
          %s406 = int_to_ptr.vmem [resolvable:$true] %s405
          %411 = dma.hbm_to_vmem [thread:$0]  %s5, 1024, %s406, [#allocation12], 64, 64, 4
        $region24: #{tpu_custom_call.1} parent=11 // pred_fallthru
          _
        // Predicated region
        $region25: #{tpu_custom_call.1} parent=11 // pred_check
          %p412 = pneg %p198
        $region26: #{tpu_custom_call.1} parent=11 // pred_check_branch
          %414 = sbr.rel (%p412) target = $region28
        $region27: #{tpu_custom_call.1} parent=11 // pred_region
          %s416 = ssub.s32 16, 16
          %417 = vsyncadd [#allocation12], %s416
          %s419 = sshll.u32 [#allocation13], 4
          %s420 = int_to_ptr.vmem [resolvable:$true] %s419
          %422 = dma.hbm_to_vmem [thread:$0]  %s6, 16, %s420, [#allocation12]
        $region28: #{tpu_custom_call.1} parent=11 // pred_fallthru
          _
        // Predicated region
        $region29: #{tpu_custom_call.1} parent=11 // pred_check
          %p423 = pneg %p219
        $region30: #{tpu_custom_call.1} parent=11 // pred_check_branch
          %425 = sbr.rel (%p423) target = $region32
        $region31: #{tpu_custom_call.1} parent=11 // pred_region
          %s427 = ssub.s32 1024, 1024
          %428 = vsyncadd [#allocation15], %s427
          %s429 = sshll.u32 [#allocation14], 4
          %s430 = int_to_ptr.vmem [resolvable:$true] %s429
          %435 = dma.hbm_to_vmem [thread:$0]  %s7, 1024, %s430, [#allocation15], 64, 64, 4
        $region32: #{tpu_custom_call.1} parent=11 // pred_fallthru
          _
        // Predicated region
        $region33: #{tpu_custom_call.1} parent=11 // pred_check
          %p436 = pneg %p240
        $region34: #{tpu_custom_call.1} parent=11 // pred_check_branch
          %438 = sbr.rel (%p436) target = $region36
        $region35: #{tpu_custom_call.1} parent=11 // pred_region
          %s440 = ssub.s32 16, 16
          %441 = vsyncadd [#allocation15], %s440
          %s443 = sshll.u32 [#allocation16], 4
          %s444 = int_to_ptr.vmem [resolvable:$true] %s443
          %446 = dma.hbm_to_vmem [thread:$0]  %s8, 16, %s444, [#allocation15]
        $region36: #{tpu_custom_call.1} parent=11 // pred_fallthru
          _
        // Predicated region
        $region37: #{tpu_custom_call.1} parent=11 // pred_check
          %p447 = pneg %p261
        $region38: #{tpu_custom_call.1} parent=11 // pred_check_branch
          %449 = sbr.rel (%p447) target = $region40
        $region39: #{tpu_custom_call.1} parent=11 // pred_region
          %s451 = ssub.s32 2048, 2048
          %452 = vsyncadd [#allocation18], %s451
          %s453 = sshll.u32 [#allocation17], 4
          %s454 = int_to_ptr.vmem [resolvable:$true] %s453
          %459 = dma.hbm_to_vmem [thread:$0]  %s9, 2048, %s454, [#allocation18], 128, 128, 8
        $region40: #{tpu_custom_call.1} parent=11 // pred_fallthru
          _
        // Predicated region
        $region41: #{tpu_custom_call.1} parent=11 // pred_check
          %p460 = pneg %p282
        $region42: #{tpu_custom_call.1} parent=11 // pred_check_branch
          %462 = sbr.rel (%p460) target = $region44
        $region43: #{tpu_custom_call.1} parent=11 // pred_region
          %s464 = ssub.s32 32, 32
          %465 = vsyncadd [#allocation18], %s464
          %s467 = sshll.u32 [#allocation19], 4
          %s468 = int_to_ptr.vmem [resolvable:$true] %s467
          %470 = dma.hbm_to_vmem [thread:$0]  %s10, 32, %s468, [#allocation18]
        $region44: #{tpu_custom_call.1} parent=11 // pred_fallthru
          _
      $region12: #{tpu_custom_call.1} parent=5 // pred_fallthru
        _
      %p471 = scmp.lt.s32.totalorder %s36, 2
      // Predicated region
      $region45: #{tpu_custom_call.1} parent=5 // pred_check
        %p472 = pneg %p471
      $region46: #{tpu_custom_call.1} parent=5 // pred_check_branch
        %474 = sbr.rel (%p472) target = $region48
      $region47: #{tpu_custom_call.1} parent=5 // pred_region
        // Predicated region
        $region49: #{tpu_custom_call.1} parent=47 // pred_check
          %p475 = pneg %p56
        $region50: #{tpu_custom_call.1} parent=47 // pred_check_branch
          %477 = sbr.rel (%p475) target = $region52
        $region51: #{tpu_custom_call.1} parent=47 // pred_region
          %s478 = sand.u32 %s46, 1
          %s479 = scalar_lea.sflag [#allocation3], %s478
          %s480 = sand.u32 %s46, 1
          %s481 = smul.addr %s480, 128
          %s482 = scalar_lea.vmem [#allocation2], %s481
          %s483 = smul.u32 32, %s36
          %s485 = ssub.s32 2048, 2048
          %486 = vsyncadd %s479, %s485
          %s487 = smul.addr %s483, 64
          %s488 = scalar_lea.hbm %s0, %s487
          %s489 = sshll.u32 %s482, 4
          %s490 = int_to_ptr.vmem [resolvable:$true] %s489
          %495 = dma.hbm_to_vmem [thread:$0]  %s488, 2048, %s490, %s479, 64, 64, 4
        $region52: #{tpu_custom_call.1} parent=47 // pred_fallthru
          _
        // Predicated region
        $region53: #{tpu_custom_call.1} parent=47 // pred_check
          %p496 = pneg %p82
        $region54: #{tpu_custom_call.1} parent=47 // pred_check_branch
          %498 = sbr.rel (%p496) target = $region56
        $region55: #{tpu_custom_call.1} parent=47 // pred_region
          %s499 = sand.u32 %s36, 1
          %s500 = scalar_lea.sflag [#allocation6], %s499
          %s501 = sand.u32 %s72, 1
          %s502 = smul.addr %s501, 128
          %s503 = scalar_lea.vmem [#allocation5], %s502
          %s504 = smul.u32 32, %s36
          %s506 = ssub.s32 2048, 2048
          %507 = vsyncadd %s500, %s506
          %s508 = smul.addr %s504, 64
          %s509 = scalar_lea.hbm %s1, %s508
          %s510 = sshll.u32 %s503, 4
          %s511 = int_to_ptr.vmem [resolvable:$true] %s510
          %516 = dma.hbm_to_vmem [thread:$0]  %s509, 2048, %s511, %s500, 64, 64, 4
        $region56: #{tpu_custom_call.1} parent=47 // pred_fallthru
          _
        // Predicated region
        $region57: #{tpu_custom_call.1} parent=47 // pred_check
          %p517 = pneg %p108
        $region58: #{tpu_custom_call.1} parent=47 // pred_check_branch
          %519 = sbr.rel (%p517) target = $region60
        $region59: #{tpu_custom_call.1} parent=47 // pred_region
          %s520 = sand.u32 %s36, 1
          %s521 = scalar_lea.sflag [#allocation6], %s520
          %s522 = sand.u32 %s98, 1
          %s523 = smul.addr %s522, 128
          %s524 = scalar_lea.vmem [#allocation7], %s523
          %s525 = smul.u32 32, %s36
          %s527 = ssub.s32 2048, 2048
          %528 = vsyncadd %s521, %s527
          %s529 = smul.addr %s525, 64
          %s530 = scalar_lea.hbm %s2, %s529
          %s531 = sshll.u32 %s524, 4
          %s532 = int_to_ptr.vmem [resolvable:$true] %s531
          %537 = dma.hbm_to_vmem [thread:$0]  %s530, 2048, %s532, %s521, 64, 64, 4
        $region60: #{tpu_custom_call.1} parent=47 // pred_fallthru
          _
      $region48: #{tpu_custom_call.1} parent=5 // pred_fallthru
        _
      %p538 = scmp.le.s32.totalorder 1, %s36
      %p539 = scmp.lt.s32.totalorder %s36, 3
      %p540 = pnand %p538, %p539
      %p541 = pneg %p540
      // Predicated region
      $region61: #{tpu_custom_call.1} parent=5 // pred_check
        _
      $region62: #{tpu_custom_call.1} parent=5 // pred_check_branch
        %543 = sbr.rel (%p540) target = $region64
      $region63: #{tpu_custom_call.1} parent=5 // pred_region
        %s544 = ssub.s32 %s36, 1
        %s545 = sand.u32 %s49, 1
        %s546 = scalar_lea.sflag [#allocation3], %s545
        %s547 = sand.u32 %s49, 1
        %s548 = smul.addr %s547, 128
        %s549 = scalar_lea.vmem [#allocation2], %s548
        // Predicated region
        $region65: #{tpu_custom_call.1} parent=63 // pred_check
          %p550 = pneg %p62
        $region66: #{tpu_custom_call.1} parent=63 // pred_check_branch
          %552 = sbr.rel (%p550) target = $region68
        $region67: #{tpu_custom_call.1} parent=63 // pred_region
          %553 = dma.done %s546, 2048
        $region68: #{tpu_custom_call.1} parent=63 // pred_fallthru
          _
        %s554 = sand.u32 %s41, 1
        %s555 = scalar_lea.sflag [#allocation6], %s554
        %s556 = sand.u32 %s75, 1
        %s557 = smul.addr %s556, 128
        %s558 = scalar_lea.vmem [#allocation5], %s557
        // Predicated region
        $region69: #{tpu_custom_call.1} parent=63 // pred_check
          %p559 = pneg %p88
        $region70: #{tpu_custom_call.1} parent=63 // pred_check_branch
          %561 = sbr.rel (%p559) target = $region72
        $region71: #{tpu_custom_call.1} parent=63 // pred_region
          %562 = dma.done %s555, 2048
        $region72: #{tpu_custom_call.1} parent=63 // pred_fallthru
          _
        %s563 = sand.u32 %s41, 1
        %s564 = scalar_lea.sflag [#allocation6], %s563
        %s565 = sand.u32 %s101, 1
        %s566 = smul.addr %s565, 128
        %s567 = scalar_lea.vmem [#allocation7], %s566
        // Predicated region
        $region73: #{tpu_custom_call.1} parent=63 // pred_check
          %p568 = pneg %p114
        $region74: #{tpu_custom_call.1} parent=63 // pred_check_branch
          %570 = sbr.rel (%p568) target = $region76
        $region75: #{tpu_custom_call.1} parent=63 // pred_region
          %571 = dma.done %s564, 2048
        $region76: #{tpu_custom_call.1} parent=63 // pred_fallthru
          _
        // Predicated region
        $region77: #{tpu_custom_call.1} parent=63 // pred_check
          %p572 = pneg %p135
        $region78: #{tpu_custom_call.1} parent=63 // pred_check_branch
          %574 = sbr.rel (%p572) target = $region80
        $region79: #{tpu_custom_call.1} parent=63 // pred_region
          %575 = dma.done [#allocation9], 1024
        $region80: #{tpu_custom_call.1} parent=63 // pred_fallthru
          _
        // Predicated region
        $region81: #{tpu_custom_call.1} parent=63 // pred_check
          %p576 = pneg %p156
        $region82: #{tpu_custom_call.1} parent=63 // pred_check_branch
          %578 = sbr.rel (%p576) target = $region84
        $region83: #{tpu_custom_call.1} parent=63 // pred_region
          %579 = dma.done [#allocation9], 16
        $region84: #{tpu_custom_call.1} parent=63 // pred_fallthru
          _
        // Predicated region
        $region85: #{tpu_custom_call.1} parent=63 // pred_check
          %p580 = pneg %p177
        $region86: #{tpu_custom_call.1} parent=63 // pred_check_branch
          %582 = sbr.rel (%p580) target = $region88
        $region87: #{tpu_custom_call.1} parent=63 // pred_region
          %583 = dma.done [#allocation12], 1024
        $region88: #{tpu_custom_call.1} parent=63 // pred_fallthru
          _
        // Predicated region
        $region89: #{tpu_custom_call.1} parent=63 // pred_check
          %p584 = pneg %p198
        $region90: #{tpu_custom_call.1} parent=63 // pred_check_branch
          %586 = sbr.rel (%p584) target = $region92
        $region91: #{tpu_custom_call.1} parent=63 // pred_region
          %587 = dma.done [#allocation12], 16
        $region92: #{tpu_custom_call.1} parent=63 // pred_fallthru
          _
        // Predicated region
        $region93: #{tpu_custom_call.1} parent=63 // pred_check
          %p588 = pneg %p219
        $region94: #{tpu_custom_call.1} parent=63 // pred_check_branch
          %590 = sbr.rel (%p588) target = $region96
        $region95: #{tpu_custom_call.1} parent=63 // pred_region
          %591 = dma.done [#allocation15], 1024
        $region96: #{tpu_custom_call.1} parent=63 // pred_fallthru
          _
        // Predicated region
        $region97: #{tpu_custom_call.1} parent=63 // pred_check
          %p592 = pneg %p240
        $region98: #{tpu_custom_call.1} parent=63 // pred_check_branch
          %594 = sbr.rel (%p592) target = $region100
        $region99: #{tpu_custom_call.1} parent=63 // pred_region
          %595 = dma.done [#allocation15], 16
        $region100: #{tpu_custom_call.1} parent=63 // pred_fallthru
          _
        // Predicated region
        $region101: #{tpu_custom_call.1} parent=63 // pred_check
          %p596 = pneg %p261
        $region102: #{tpu_custom_call.1} parent=63 // pred_check_branch
          %598 = sbr.rel (%p596) target = $region104
        $region103: #{tpu_custom_call.1} parent=63 // pred_region
          %599 = dma.done [#allocation18], 2048
        $region104: #{tpu_custom_call.1} parent=63 // pred_fallthru
          _
        // Predicated region
        $region105: #{tpu_custom_call.1} parent=63 // pred_check
          %p600 = pneg %p282
        $region106: #{tpu_custom_call.1} parent=63 // pred_check_branch
          %602 = sbr.rel (%p600) target = $region108
        $region107: #{tpu_custom_call.1} parent=63 // pred_region
          %603 = dma.done [#allocation18], 32
        $region108: #{tpu_custom_call.1} parent=63 // pred_fallthru
          _
        %s604 = sand.u32 %s49, 1
        %s605 = scalar_lea.sflag [#allocation3], %s604
        %s606 = sand.u32 %s49, 1
        %s607 = smul.addr %s606, 128
        %s608 = scalar_lea.vmem [#allocation2], %s607
        %p609 = pneg %p62
        %p610 = pneg %p59
        %s611 = sand.u32 %s41, 1
        %s612 = scalar_lea.sflag [#allocation6], %s611
        %s613 = sand.u32 %s75, 1
        %s614 = smul.addr %s613, 128
        %s615 = scalar_lea.vmem [#allocation5], %s614
        %p616 = pneg %p88
        %p617 = pneg %p85
        %s618 = sand.u32 %s41, 1
        %s619 = scalar_lea.sflag [#allocation6], %s618
        %s620 = sand.u32 %s101, 1
        %s621 = smul.addr %s620, 128
        %s622 = scalar_lea.vmem [#allocation7], %s621
        %p623 = pneg %p114
        %p624 = pneg %p111
        %p625 = pneg %p135
        %p626 = pneg %p132
        %p627 = pneg %p156
        %p628 = pneg %p153
        %p629 = pneg %p177
        %p630 = pneg %p174
        %p631 = pneg %p198
        %p632 = pneg %p195
        %p633 = pneg %p219
        %p634 = pneg %p216
        %p635 = pneg %p240
        %p636 = pneg %p237
        %p637 = pneg %p261
        %p638 = pneg %p258
        %p639 = pneg %p282
        %p640 = pneg %p279
        %p641 = pneg %p308
        %p642 = pneg %p305
        %s643 = sand.u32 %s295, 1
        %s644 = scalar_lea.sflag [#allocation4], %s643
        %s645 = sand.u32 %s295, 1
        %s646 = smul.addr %s645, 2048
        %s647 = scalar_lea.vmem [#allocation20], %s646
        %p648 = pneg %p334
        %p649 = pneg %p331
        %s650 = sand.u32 %s41, 1
        %s651 = scalar_lea.sflag [#allocation22], %s650
        %s652 = sand.u32 %s321, 1
        %s653 = smul.addr %s652, 256
        %s654 = scalar_lea.vmem [#allocation21], %s653
        %p655 = pneg %p360
        %p656 = pneg %p357
        %s657 = sand.u32 %s41, 1
        %s658 = scalar_lea.sflag [#allocation22], %s657
        %s659 = sand.u32 %s347, 1
        %s660 = smul.addr %s659, 256
        %s661 = scalar_lea.vmem [#allocation23], %s660
        %s662 = smul.u32 32, %s41
        %s663 = smul.u32 32, %s41
        %s664 = smul.u32 32, %s41
        %s665 = smul.u32 32, %s41
        %s666 = smul.u32 32, %s41
        %s667 = smul.u32 32, %s41
        %v669 = vld [vmem:[%s549] sm:$0xf]
        %v670 = vld [vmem:[%s549 + $0x4] sm:$0xf]
        %v671 = vld [vmem:[%s549 + $0x8] sm:$0xf]
        %v672 = vld [vmem:[%s549 + $0xc] sm:$0xf]
        %v673 = vld [vmem:[%s549 + $0x10] sm:$0xf]
        %v674 = vld [vmem:[%s549 + $0x14] sm:$0xf]
        %v675 = vld [vmem:[%s549 + $0x18] sm:$0xf]
        %v676 = vld [vmem:[%s549 + $0x1c] sm:$0xf]
        %v677 = vld [vmem:[%s549 + $0x20] sm:$0xf]
        %v678 = vld [vmem:[%s549 + $0x24] sm:$0xf]
        %v679 = vld [vmem:[%s549 + $0x28] sm:$0xf]
        %v680 = vld [vmem:[%s549 + $0x2c] sm:$0xf]
        %v681 = vld [vmem:[%s549 + $0x30] sm:$0xf]
        %v682 = vld [vmem:[%s549 + $0x34] sm:$0xf]
        %v683 = vld [vmem:[%s549 + $0x38] sm:$0xf]
        %v684 = vld [vmem:[%s549 + $0x3c] sm:$0xf]
        %v685 = vld [vmem:[%s549 + $0x40] sm:$0xf]
        %v686 = vld [vmem:[%s549 + $0x44] sm:$0xf]
        %v687 = vld [vmem:[%s549 + $0x48] sm:$0xf]
        %v688 = vld [vmem:[%s549 + $0x4c] sm:$0xf]
        %v689 = vld [vmem:[%s549 + $0x50] sm:$0xf]
        %v690 = vld [vmem:[%s549 + $0x54] sm:$0xf]
        %v691 = vld [vmem:[%s549 + $0x58] sm:$0xf]
        %v692 = vld [vmem:[%s549 + $0x5c] sm:$0xf]
        %v693 = vld [vmem:[%s549 + $0x60] sm:$0xf]
        %v694 = vld [vmem:[%s549 + $0x64] sm:$0xf]
        %v695 = vld [vmem:[%s549 + $0x68] sm:$0xf]
        %v696 = vld [vmem:[%s549 + $0x6c] sm:$0xf]
        %v697 = vld [vmem:[%s549 + $0x70] sm:$0xf]
        %v698 = vld [vmem:[%s549 + $0x74] sm:$0xf]
        %v699 = vld [vmem:[%s549 + $0x78] sm:$0xf]
        %v700 = vld [vmem:[%s549 + $0x7c] sm:$0xf]
        %v701 = vld [vmem:[%s558] sm:$0xf]
        %v702 = vld [vmem:[%s558 + $0x4] sm:$0xf]
        %v703 = vld [vmem:[%s558 + $0x8] sm:$0xf]
        %v704 = vld [vmem:[%s558 + $0xc] sm:$0xf]
        %v705 = vld [vmem:[%s558 + $0x10] sm:$0xf]
        %v706 = vld [vmem:[%s558 + $0x14] sm:$0xf]
        %v707 = vld [vmem:[%s558 + $0x18] sm:$0xf]
        %v708 = vld [vmem:[%s558 + $0x1c] sm:$0xf]
        %v709 = vld [vmem:[%s558 + $0x20] sm:$0xf]
        %v710 = vld [vmem:[%s558 + $0x24] sm:$0xf]
        %v711 = vld [vmem:[%s558 + $0x28] sm:$0xf]
        %v712 = vld [vmem:[%s558 + $0x2c] sm:$0xf]
        %v713 = vld [vmem:[%s558 + $0x30] sm:$0xf]
        %v714 = vld [vmem:[%s558 + $0x34] sm:$0xf]
        %v715 = vld [vmem:[%s558 + $0x38] sm:$0xf]
        %v716 = vld [vmem:[%s558 + $0x3c] sm:$0xf]
        %v717 = vld [vmem:[%s558 + $0x40] sm:$0xf]
        %v718 = vld [vmem:[%s558 + $0x44] sm:$0xf]
        %v719 = vld [vmem:[%s558 + $0x48] sm:$0xf]
        %v720 = vld [vmem:[%s558 + $0x4c] sm:$0xf]
        %v721 = vld [vmem:[%s558 + $0x50] sm:$0xf]
        %v722 = vld [vmem:[%s558 + $0x54] sm:$0xf]
        %v723 = vld [vmem:[%s558 + $0x58] sm:$0xf]
        %v724 = vld [vmem:[%s558 + $0x5c] sm:$0xf]
        %v725 = vld [vmem:[%s558 + $0x60] sm:$0xf]
        %v726 = vld [vmem:[%s558 + $0x64] sm:$0xf]
        %v727 = vld [vmem:[%s558 + $0x68] sm:$0xf]
        %v728 = vld [vmem:[%s558 + $0x6c] sm:$0xf]
        %v729 = vld [vmem:[%s558 + $0x70] sm:$0xf]
        %v730 = vld [vmem:[%s558 + $0x74] sm:$0xf]
        %v731 = vld [vmem:[%s558 + $0x78] sm:$0xf]
        %v732 = vld [vmem:[%s558 + $0x7c] sm:$0xf]
        %v733 = vld [vmem:[%s567] sm:$0xf]
        %v734 = vld [vmem:[%s567 + $0x4] sm:$0xf]
        %v735 = vld [vmem:[%s567 + $0x8] sm:$0xf]
        %v736 = vld [vmem:[%s567 + $0xc] sm:$0xf]
        %v737 = vld [vmem:[%s567 + $0x10] sm:$0xf]
        %v738 = vld [vmem:[%s567 + $0x14] sm:$0xf]
        %v739 = vld [vmem:[%s567 + $0x18] sm:$0xf]
        %v740 = vld [vmem:[%s567 + $0x1c] sm:$0xf]
        %v741 = vld [vmem:[%s567 + $0x20] sm:$0xf]
        %v742 = vld [vmem:[%s567 + $0x24] sm:$0xf]
        %v743 = vld [vmem:[%s567 + $0x28] sm:$0xf]
        %v744 = vld [vmem:[%s567 + $0x2c] sm:$0xf]
        %v745 = vld [vmem:[%s567 + $0x30] sm:$0xf]
        %v746 = vld [vmem:[%s567 + $0x34] sm:$0xf]
        %v747 = vld [vmem:[%s567 + $0x38] sm:$0xf]
        %v748 = vld [vmem:[%s567 + $0x3c] sm:$0xf]
        %v749 = vld [vmem:[%s567 + $0x40] sm:$0xf]
        %v750 = vld [vmem:[%s567 + $0x44] sm:$0xf]
        %v751 = vld [vmem:[%s567 + $0x48] sm:$0xf]
        %v752 = vld [vmem:[%s567 + $0x4c] sm:$0xf]
        %v753 = vld [vmem:[%s567 + $0x50] sm:$0xf]
        %v754 = vld [vmem:[%s567 + $0x54] sm:$0xf]
        %v755 = vld [vmem:[%s567 + $0x58] sm:$0xf]
        %v756 = vld [vmem:[%s567 + $0x5c] sm:$0xf]
        %v757 = vld [vmem:[%s567 + $0x60] sm:$0xf]
        %v758 = vld [vmem:[%s567 + $0x64] sm:$0xf]
        %v759 = vld [vmem:[%s567 + $0x68] sm:$0xf]
        %v760 = vld [vmem:[%s567 + $0x6c] sm:$0xf]
        %v761 = vld [vmem:[%s567 + $0x70] sm:$0xf]
        %v762 = vld [vmem:[%s567 + $0x74] sm:$0xf]
        %v763 = vld [vmem:[%s567 + $0x78] sm:$0xf]
        %v764 = vld [vmem:[%s567 + $0x7c] sm:$0xf]
        %v765 = vunpack.c.l.bf16 %v733
        %v766 = vunpack.c.l.bf16 %v734
        %v767 = vunpack.c.l.bf16 %v735
        %v768 = vunpack.c.l.bf16 %v736
        %v769 = vunpack.c.l.bf16 %v737
        %v770 = vunpack.c.l.bf16 %v738
        %v771 = vunpack.c.l.bf16 %v739
        %v772 = vunpack.c.l.bf16 %v740
        %v773 = vunpack.c.l.bf16 %v741
        %v774 = vunpack.c.l.bf16 %v742
        %v775 = vunpack.c.l.bf16 %v743
        %v776 = vunpack.c.l.bf16 %v744
        %v777 = vunpack.c.l.bf16 %v745
        %v778 = vunpack.c.l.bf16 %v746
        %v779 = vunpack.c.l.bf16 %v747
        %v780 = vunpack.c.l.bf16 %v748
        %v781 = vunpack.c.l.bf16 %v749
        %v782 = vunpack.c.l.bf16 %v750
        %v783 = vunpack.c.l.bf16 %v751
        %v784 = vunpack.c.l.bf16 %v752
        %v785 = vunpack.c.l.bf16 %v753
        %v786 = vunpack.c.l.bf16 %v754
        %v787 = vunpack.c.l.bf16 %v755
        %v788 = vunpack.c.l.bf16 %v756
        %v789 = vunpack.c.l.bf16 %v757
        %v790 = vunpack.c.l.bf16 %v758
        %v791 = vunpack.c.l.bf16 %v759
        %v792 = vunpack.c.l.bf16 %v760
        %v793 = vunpack.c.l.bf16 %v761
        %v794 = vunpack.c.l.bf16 %v762
        %v795 = vunpack.c.l.bf16 %v763
        %v796 = vunpack.c.l.bf16 %v764
        %v797 = vadd.bf16 %v669, %v701
        %v798 = vadd.bf16 %v670, %v702
        %v799 = vadd.bf16 %v671, %v703
        %v800 = vadd.bf16 %v672, %v704
        %v801 = vadd.bf16 %v673, %v705
        %v802 = vadd.bf16 %v674, %v706
        %v803 = vadd.bf16 %v675, %v707
        %v804 = vadd.bf16 %v676, %v708
        %v805 = vadd.bf16 %v677, %v709
        %v806 = vadd.bf16 %v678, %v710
        %v807 = vadd.bf16 %v679, %v711
        %v808 = vadd.bf16 %v680, %v712
        %v809 = vadd.bf16 %v681, %v713
        %v810 = vadd.bf16 %v682, %v714
        %v811 = vadd.bf16 %v683, %v715
        %v812 = vadd.bf16 %v684, %v716
        %v813 = vadd.bf16 %v685, %v717
        %v814 = vadd.bf16 %v686, %v718
        %v815 = vadd.bf16 %v687, %v719
        %v816 = vadd.bf16 %v688, %v720
        %v817 = vadd.bf16 %v689, %v721
        %v818 = vadd.bf16 %v690, %v722
        %v819 = vadd.bf16 %v691, %v723
        %v820 = vadd.bf16 %v692, %v724
        %v821 = vadd.bf16 %v693, %v725
        %v822 = vadd.bf16 %v694, %v726
        %v823 = vadd.bf16 %v695, %v727
        %v824 = vadd.bf16 %v696, %v728
        %v825 = vadd.bf16 %v697, %v729
        %v826 = vadd.bf16 %v698, %v730
        %v827 = vadd.bf16 %v699, %v731
        %v828 = vadd.bf16 %v700, %v732
        %v829 = vld [vmem:[#allocation8] sm:$0xf]
        %v830 = vld [vmem:[#allocation8 + $0x4] sm:$0xf]
        %v831 = vld [vmem:[#allocation8 + $0x8] sm:$0xf]
        %v832 = vld [vmem:[#allocation8 + $0xc] sm:$0xf]
        %v833 = vld [vmem:[#allocation8 + $0x10] sm:$0xf]
        %v834 = vld [vmem:[#allocation8 + $0x14] sm:$0xf]
        %v835 = vld [vmem:[#allocation8 + $0x18] sm:$0xf]
        %v836 = vld [vmem:[#allocation8 + $0x1c] sm:$0xf]
        %v837 = vld [vmem:[#allocation8 + $0x20] sm:$0xf]
        %v838 = vld [vmem:[#allocation8 + $0x24] sm:$0xf]
        %v839 = vld [vmem:[#allocation8 + $0x28] sm:$0xf]
        %v840 = vld [vmem:[#allocation8 + $0x2c] sm:$0xf]
        %v841 = vld [vmem:[#allocation8 + $0x30] sm:$0xf]
        %v842 = vld [vmem:[#allocation8 + $0x34] sm:$0xf]
        %v843 = vld [vmem:[#allocation8 + $0x38] sm:$0xf]
        %v844 = vld [vmem:[#allocation8 + $0x3c] sm:$0xf]
        %v845 = vld [vmem:[#allocation10] sm:$0x1]
        %v847 = vlaneseq
        %v848 = vshrl.u32 %v847, 7
        %v849 = vsub.s32 0, %v848
        %v850 = vrot.slane %v845, %v849
        %v884 = vunpack.c.l.b16 %v797
        %v885 = vunpack.c.l.b16 %v798
        %v886 = vunpack.c.l.b16 %v799
        %v887 = vunpack.c.l.b16 %v800
        %v888 = vunpack.c.l.b16 %v801
        %v889 = vunpack.c.l.b16 %v802
        %v890 = vunpack.c.l.b16 %v803
        %v891 = vunpack.c.l.b16 %v804
        %v892 = vunpack.c.l.b16 %v805
        %v893 = vunpack.c.l.b16 %v806
        %v894 = vunpack.c.l.b16 %v807
        %v895 = vunpack.c.l.b16 %v808
        %v896 = vunpack.c.l.b16 %v809
        %v897 = vunpack.c.l.b16 %v810
        %v898 = vunpack.c.l.b16 %v811
        %v899 = vunpack.c.l.b16 %v812
        %v900 = vunpack.c.l.b16 %v813
        %v901 = vunpack.c.l.b16 %v814
        %v902 = vunpack.c.l.b16 %v815
        %v903 = vunpack.c.l.b16 %v816
        %v904 = vunpack.c.l.b16 %v817
        %v905 = vunpack.c.l.b16 %v818
        %v906 = vunpack.c.l.b16 %v819
        %v907 = vunpack.c.l.b16 %v820
        %v908 = vunpack.c.l.b16 %v821
        %v909 = vunpack.c.l.b16 %v822
        %v910 = vunpack.c.l.b16 %v823
        %v911 = vunpack.c.l.b16 %v824
        %v912 = vunpack.c.l.b16 %v825
        %v913 = vunpack.c.l.b16 %v826
        %v914 = vunpack.c.l.b16 %v827
        %v915 = vunpack.c.l.b16 %v828
        %v916 = vpack.c.b16 %v885, %v884
        %v917 = vpack.c.b16 %v887, %v886
        %v918 = vpack.c.b16 %v889, %v888
        %v919 = vpack.c.b16 %v891, %v890
        %v920 = vpack.c.b16 %v893, %v892
        %v921 = vpack.c.b16 %v895, %v894
        %v922 = vpack.c.b16 %v897, %v896
        %v923 = vpack.c.b16 %v899, %v898
        %v924 = vpack.c.b16 %v901, %v900
        %v925 = vpack.c.b16 %v903, %v902
        %v926 = vpack.c.b16 %v905, %v904
        %v927 = vpack.c.b16 %v907, %v906
        %v928 = vpack.c.b16 %v909, %v908
        %v929 = vpack.c.b16 %v911, %v910
        %v930 = vpack.c.b16 %v913, %v912
        %v931 = vpack.c.b16 %v915, %v914
        %v964 = vunpack.c.l.b16 %v829
        %v965 = vunpack.c.l.b16 %v830
        %v966 = vunpack.c.l.b16 %v831
        %v967 = vunpack.c.l.b16 %v832
        %v968 = vunpack.c.l.b16 %v833
        %v969 = vunpack.c.l.b16 %v834
        %v970 = vunpack.c.l.b16 %v835
        %v971 = vunpack.c.l.b16 %v836
        %v972 = vunpack.c.l.b16 %v837
        %v973 = vunpack.c.l.b16 %v838
        %v974 = vunpack.c.l.b16 %v839
        %v975 = vunpack.c.l.b16 %v840
        %v976 = vunpack.c.l.b16 %v841
        %v977 = vunpack.c.l.b16 %v842
        %v978 = vunpack.c.l.b16 %v843
        %v979 = vunpack.c.l.b16 %v844
        %v980 = vpack.c.b16 %v965, %v964
        %v981 = vpack.c.b16 %v967, %v966
        %v982 = vpack.c.b16 %v969, %v968
        %v983 = vpack.c.b16 %v971, %v970
        %v984 = vpack.c.b16 %v973, %v972
        %v985 = vpack.c.b16 %v975, %v974
        %v986 = vpack.c.b16 %v977, %v976
        %v987 = vpack.c.b16 %v979, %v978
        %996 = vmatprep.subr.bf16.mxu0 0
        %997 = vmatpush1.bf16.msra.mxu0 %v987
        %998 = vmatprep.subr.bf16.mxu0 0
        %999 = vmatpush1.bf16.msra.mxu0 %v986
        %1000 = vmatprep.subr.bf16.mxu0 0
        %1001 = vmatpush1.bf16.msra.mxu0 %v985
        %1002 = vmatprep.subr.bf16.mxu0 0
        %1003 = vmatpush1.bf16.msra.mxu0 %v984
        %1004 = vmatprep.subr.bf16.mxu0 0
        %1005 = vmatpush1.bf16.msra.mxu0 %v983
        %1006 = vmatprep.subr.bf16.mxu0 0
        %1007 = vmatpush1.bf16.msra.mxu0 %v982
        %1008 = vmatprep.subr.bf16.mxu0 0
        %1009 = vmatpush1.bf16.msra.mxu0 %v981
        %1010 = vmatprep.subr.bf16.mxu0 0
        %1011 = vmatpush1.bf16.msra.mxu0 %v980
        %1012 = vmatprep.subr.bf16.mxu0 0
        %1013 = vmatpush2.bf16.msra.mxu0 0
        %1014 = vmatprep.subr.bf16.mxu0 0
        %1015 = vmatpush2.bf16.msra.mxu0 0
        %1016 = vmatprep.subr.bf16.mxu0 0
        %1017 = vmatpush2.bf16.msra.mxu0 0
        %1018 = vmatprep.subr.bf16.mxu0 0
        %1019 = vmatpush2.bf16.msra.mxu0 0
        %1020 = vmatprep.subr.bf16.mxu0 0
        %1021 = vmatpush2.bf16.msra.mxu0 0
        %1022 = vmatprep.subr.bf16.mxu0 0
        %1023 = vmatpush2.bf16.msra.mxu0 0
        %1024 = vmatprep.subr.bf16.mxu0 0
        %1025 = vmatpush2.bf16.msra.mxu0 0
        %1026 = vmatprep.subr.bf16.mxu0 0
        %1027 = vmatpush2.bf16.msra.mxu0 0
        %1028 = vmatprep.mubr.bf16.mxu0 0
        %1029 = vmatmul.mubr.bf16.gmra.mxu0 %v916
        %v1030 = vpop.f32.mrf.mxu0
        %v1031 = vadd.f32 %v850, %v1030
        %v1032 = vpop.f32.mrf.mxu0
        %v1033 = vpop.f32.mrf.mxu0
        %v1034 = vadd.f32 %v850, %v1033
        %v1035 = vpop.f32.mrf.mxu0
        %1036 = vmatprep.mubr.bf16.mxu0 0
        %1037 = vmatmul.mubr.bf16.gmra.mxu0 %v917
        %v1038 = vpop.f32.mrf.mxu0
        %v1039 = vadd.f32 %v850, %v1038
        %v1040 = vpop.f32.mrf.mxu0
        %v1041 = vpop.f32.mrf.mxu0
        %v1042 = vadd.f32 %v850, %v1041
        %v1043 = vpop.f32.mrf.mxu0
        %1044 = vmatprep.mubr.bf16.mxu0 0
        %1045 = vmatmul.mubr.bf16.gmra.mxu0 %v918
        %v1046 = vpop.f32.mrf.mxu0
        %v1047 = vadd.f32 %v850, %v1046
        %v1048 = vpop.f32.mrf.mxu0
        %v1049 = vpop.f32.mrf.mxu0
        %v1050 = vadd.f32 %v850, %v1049
        %v1051 = vpop.f32.mrf.mxu0
        %1052 = vmatprep.mubr.bf16.mxu0 0
        %1053 = vmatmul.mubr.bf16.gmra.mxu0 %v919
        %v1054 = vpop.f32.mrf.mxu0
        %v1055 = vadd.f32 %v850, %v1054
        %v1056 = vpop.f32.mrf.mxu0
        %v1057 = vpop.f32.mrf.mxu0
        %v1058 = vadd.f32 %v850, %v1057
        %v1059 = vpop.f32.mrf.mxu0
        %1060 = vmatprep.mubr.bf16.mxu0 0
        %1061 = vmatmul.mubr.bf16.gmra.mxu0 %v920
        %v1062 = vpop.f32.mrf.mxu0
        %v1063 = vadd.f32 %v850, %v1062
        %v1064 = vpop.f32.mrf.mxu0
        %v1065 = vpop.f32.mrf.mxu0
        %v1066 = vadd.f32 %v850, %v1065
        %v1067 = vpop.f32.mrf.mxu0
        %1068 = vmatprep.mubr.bf16.mxu0 0
        %1069 = vmatmul.mubr.bf16.gmra.mxu0 %v921
        %v1070 = vpop.f32.mrf.mxu0
        %v1071 = vadd.f32 %v850, %v1070
        %v1072 = vpop.f32.mrf.mxu0
        %v1073 = vpop.f32.mrf.mxu0
        %v1074 = vadd.f32 %v850, %v1073
        %v1075 = vpop.f32.mrf.mxu0
        %1076 = vmatprep.mubr.bf16.mxu0 0
        %1077 = vmatmul.mubr.bf16.gmra.mxu0 %v922
        %v1078 = vpop.f32.mrf.mxu0
        %v1079 = vadd.f32 %v850, %v1078
        %v1080 = vpop.f32.mrf.mxu0
        %v1081 = vpop.f32.mrf.mxu0
        %v1082 = vadd.f32 %v850, %v1081
        %v1083 = vpop.f32.mrf.mxu0
        %1084 = vmatprep.mubr.bf16.mxu0 0
        %1085 = vmatmul.mubr.bf16.gmra.mxu0 %v923
        %v1086 = vpop.f32.mrf.mxu0
        %v1087 = vadd.f32 %v850, %v1086
        %v1088 = vpop.f32.mrf.mxu0
        %v1089 = vpop.f32.mrf.mxu0
        %v1090 = vadd.f32 %v850, %v1089
        %v1091 = vpop.f32.mrf.mxu0
        %1092 = vmatprep.mubr.bf16.mxu0 0
        %1093 = vmatmul.mubr.bf16.gmra.mxu0 %v924
        %v1094 = vpop.f32.mrf.mxu0
        %v1095 = vadd.f32 %v850, %v1094
        %v1096 = vpop.f32.mrf.mxu0
        %v1097 = vpop.f32.mrf.mxu0
        %v1098 = vadd.f32 %v850, %v1097
        %v1099 = vpop.f32.mrf.mxu0
        %1100 = vmatprep.mubr.bf16.mxu0 0
        %1101 = vmatmul.mubr.bf16.gmra.mxu0 %v925
        %v1102 = vpop.f32.mrf.mxu0
        %v1103 = vadd.f32 %v850, %v1102
        %v1104 = vpop.f32.mrf.mxu0
        %v1105 = vpop.f32.mrf.mxu0
        %v1106 = vadd.f32 %v850, %v1105
        %v1107 = vpop.f32.mrf.mxu0
        %1108 = vmatprep.mubr.bf16.mxu0 0
        %1109 = vmatmul.mubr.bf16.gmra.mxu0 %v926
        %v1110 = vpop.f32.mrf.mxu0
        %v1111 = vadd.f32 %v850, %v1110
        %v1112 = vpop.f32.mrf.mxu0
        %v1113 = vpop.f32.mrf.mxu0
        %v1114 = vadd.f32 %v850, %v1113
        %v1115 = vpop.f32.mrf.mxu0
        %1116 = vmatprep.mubr.bf16.mxu0 0
        %1117 = vmatmul.mubr.bf16.gmra.mxu0 %v927
        %v1118 = vpop.f32.mrf.mxu0
        %v1119 = vadd.f32 %v850, %v1118
        %v1120 = vpop.f32.mrf.mxu0
        %v1121 = vpop.f32.mrf.mxu0
        %v1122 = vadd.f32 %v850, %v1121
        %v1123 = vpop.f32.mrf.mxu0
        %1124 = vmatprep.mubr.bf16.mxu0 0
        %1125 = vmatmul.mubr.bf16.gmra.mxu0 %v928
        %v1126 = vpop.f32.mrf.mxu0
        %v1127 = vadd.f32 %v850, %v1126
        %v1128 = vpop.f32.mrf.mxu0
        %v1129 = vpop.f32.mrf.mxu0
        %v1130 = vadd.f32 %v850, %v1129
        %v1131 = vpop.f32.mrf.mxu0
        %1132 = vmatprep.mubr.bf16.mxu0 0
        %1133 = vmatmul.mubr.bf16.gmra.mxu0 %v929
        %v1134 = vpop.f32.mrf.mxu0
        %v1135 = vadd.f32 %v850, %v1134
        %v1136 = vpop.f32.mrf.mxu0
        %v1137 = vpop.f32.mrf.mxu0
        %v1138 = vadd.f32 %v850, %v1137
        %v1139 = vpop.f32.mrf.mxu0
        %1140 = vmatprep.mubr.bf16.mxu0 0
        %1141 = vmatmul.mubr.bf16.gmra.mxu0 %v930
        %v1142 = vpop.f32.mrf.mxu0
        %v1143 = vadd.f32 %v850, %v1142
        %v1144 = vpop.f32.mrf.mxu0
        %v1145 = vpop.f32.mrf.mxu0
        %v1146 = vadd.f32 %v850, %v1145
        %v1147 = vpop.f32.mrf.mxu0
        %1148 = vmatprep.mubr.bf16.mxu0 0
        %1149 = vmatmul.mubr.bf16.gmra.mxu0 %v931
        %v1150 = vpop.f32.mrf.mxu0
        %v1151 = vadd.f32 %v850, %v1150
        %v1152 = vpop.f32.mrf.mxu0
        %v1153 = vpop.f32.mrf.mxu0
        %v1154 = vadd.f32 %v850, %v1153
        %v1155 = vpop.f32.mrf.mxu0
        %1156 = vdwg.mxu0
        %vm1157 = vcmp.gt.f32.partialorder %v1031, 0.0
        %vm1158 = vcmp.gt.f32.partialorder %v1034, 0.0
        %vm1159 = vcmp.gt.f32.partialorder %v1039, 0.0
        %vm1160 = vcmp.gt.f32.partialorder %v1042, 0.0
        %vm1161 = vcmp.gt.f32.partialorder %v1047, 0.0
        %vm1162 = vcmp.gt.f32.partialorder %v1050, 0.0
        %vm1163 = vcmp.gt.f32.partialorder %v1055, 0.0
        %vm1164 = vcmp.gt.f32.partialorder %v1058, 0.0
        %vm1165 = vcmp.gt.f32.partialorder %v1063, 0.0
        %vm1166 = vcmp.gt.f32.partialorder %v1066, 0.0
        %vm1167 = vcmp.gt.f32.partialorder %v1071, 0.0
        %vm1168 = vcmp.gt.f32.partialorder %v1074, 0.0
        %vm1169 = vcmp.gt.f32.partialorder %v1079, 0.0
        %vm1170 = vcmp.gt.f32.partialorder %v1082, 0.0
        %vm1171 = vcmp.gt.f32.partialorder %v1087, 0.0
        %vm1172 = vcmp.gt.f32.partialorder %v1090, 0.0
        %vm1173 = vcmp.gt.f32.partialorder %v1095, 0.0
        %vm1174 = vcmp.gt.f32.partialorder %v1098, 0.0
        %vm1175 = vcmp.gt.f32.partialorder %v1103, 0.0
        %vm1176 = vcmp.gt.f32.partialorder %v1106, 0.0
        %vm1177 = vcmp.gt.f32.partialorder %v1111, 0.0
        %vm1178 = vcmp.gt.f32.partialorder %v1114, 0.0
        %vm1179 = vcmp.gt.f32.partialorder %v1119, 0.0
        %vm1180 = vcmp.gt.f32.partialorder %v1122, 0.0
        %vm1181 = vcmp.gt.f32.partialorder %v1127, 0.0
        %vm1182 = vcmp.gt.f32.partialorder %v1130, 0.0
        %vm1183 = vcmp.gt.f32.partialorder %v1135, 0.0
        %vm1184 = vcmp.gt.f32.partialorder %v1138, 0.0
        %vm1185 = vcmp.gt.f32.partialorder %v1143, 0.0
        %vm1186 = vcmp.gt.f32.partialorder %v1146, 0.0
        %vm1187 = vcmp.gt.f32.partialorder %v1151, 0.0
        %vm1188 = vcmp.gt.f32.partialorder %v1154, 0.0
        %v1189 = vmul.f32 %v1031, 0.2
        %v1190 = vmul.f32 %v1034, 0.2
        %v1191 = vmul.f32 %v1039, 0.2
        %v1192 = vmul.f32 %v1042, 0.2
        %v1193 = vmul.f32 %v1047, 0.2
        %v1194 = vmul.f32 %v1050, 0.2
        %v1195 = vmul.f32 %v1055, 0.2
        %v1196 = vmul.f32 %v1058, 0.2
        %v1197 = vmul.f32 %v1063, 0.2
        %v1198 = vmul.f32 %v1066, 0.2
        %v1199 = vmul.f32 %v1071, 0.2
        %v1200 = vmul.f32 %v1074, 0.2
        %v1201 = vmul.f32 %v1079, 0.2
        %v1202 = vmul.f32 %v1082, 0.2
        %v1203 = vmul.f32 %v1087, 0.2
        %v1204 = vmul.f32 %v1090, 0.2
        %v1205 = vmul.f32 %v1095, 0.2
        %v1206 = vmul.f32 %v1098, 0.2
        %v1207 = vmul.f32 %v1103, 0.2
        %v1208 = vmul.f32 %v1106, 0.2
        %v1209 = vmul.f32 %v1111, 0.2
        %v1210 = vmul.f32 %v1114, 0.2
        %v1211 = vmul.f32 %v1119, 0.2
        %v1212 = vmul.f32 %v1122, 0.2
        %v1213 = vmul.f32 %v1127, 0.2
        %v1214 = vmul.f32 %v1130, 0.2
        %v1215 = vmul.f32 %v1135, 0.2
        %v1216 = vmul.f32 %v1138, 0.2
        %v1217 = vmul.f32 %v1143, 0.2
        %v1218 = vmul.f32 %v1146, 0.2
        %v1219 = vmul.f32 %v1151, 0.2
        %v1220 = vmul.f32 %v1154, 0.2
        %v1221 = vsel %vm1157, %v1031, %v1189
        %v1222 = vsel %vm1158, %v1034, %v1190
        %v1223 = vsel %vm1159, %v1039, %v1191
        %v1224 = vsel %vm1160, %v1042, %v1192
        %v1225 = vsel %vm1161, %v1047, %v1193
        %v1226 = vsel %vm1162, %v1050, %v1194
        %v1227 = vsel %vm1163, %v1055, %v1195
        %v1228 = vsel %vm1164, %v1058, %v1196
        %v1229 = vsel %vm1165, %v1063, %v1197
        %v1230 = vsel %vm1166, %v1066, %v1198
        %v1231 = vsel %vm1167, %v1071, %v1199
        %v1232 = vsel %vm1168, %v1074, %v1200
        %v1233 = vsel %vm1169, %v1079, %v1201
        %v1234 = vsel %vm1170, %v1082, %v1202
        %v1235 = vsel %vm1171, %v1087, %v1203
        %v1236 = vsel %vm1172, %v1090, %v1204
        %v1237 = vsel %vm1173, %v1095, %v1205
        %v1238 = vsel %vm1174, %v1098, %v1206
        %v1239 = vsel %vm1175, %v1103, %v1207
        %v1240 = vsel %vm1176, %v1106, %v1208
        %v1241 = vsel %vm1177, %v1111, %v1209
        %v1242 = vsel %vm1178, %v1114, %v1210
        %v1243 = vsel %vm1179, %v1119, %v1211
        %v1244 = vsel %vm1180, %v1122, %v1212
        %v1245 = vsel %vm1181, %v1127, %v1213
        %v1246 = vsel %vm1182, %v1130, %v1214
        %v1247 = vsel %vm1183, %v1135, %v1215
        %v1248 = vsel %vm1184, %v1138, %v1216
        %v1249 = vsel %vm1185, %v1143, %v1217
        %v1250 = vsel %vm1186, %v1146, %v1218
        %v1251 = vsel %vm1187, %v1151, %v1219
        %v1252 = vsel %vm1188, %v1154, %v1220
        %v1253 = vpack.c.bf16 %v1222, %v1221
        %v1254 = vpack.c.bf16 %v1224, %v1223
        %v1255 = vpack.c.bf16 %v1226, %v1225
        %v1256 = vpack.c.bf16 %v1228, %v1227
        %v1257 = vpack.c.bf16 %v1230, %v1229
        %v1258 = vpack.c.bf16 %v1232, %v1231
        %v1259 = vpack.c.bf16 %v1234, %v1233
        %v1260 = vpack.c.bf16 %v1236, %v1235
        %v1261 = vpack.c.bf16 %v1238, %v1237
        %v1262 = vpack.c.bf16 %v1240, %v1239
        %v1263 = vpack.c.bf16 %v1242, %v1241
        %v1264 = vpack.c.bf16 %v1244, %v1243
        %v1265 = vpack.c.bf16 %v1246, %v1245
        %v1266 = vpack.c.bf16 %v1248, %v1247
        %v1267 = vpack.c.bf16 %v1250, %v1249
        %v1268 = vpack.c.bf16 %v1252, %v1251
        %v1269 = vld [vmem:[#allocation11] sm:$0xf]
        %v1270 = vld [vmem:[#allocation11 + $0x4] sm:$0xf]
        %v1271 = vld [vmem:[#allocation11 + $0x8] sm:$0xf]
        %v1272 = vld [vmem:[#allocation11 + $0xc] sm:$0xf]
        %v1273 = vld [vmem:[#allocation11 + $0x10] sm:$0xf]
        %v1274 = vld [vmem:[#allocation11 + $0x14] sm:$0xf]
        %v1275 = vld [vmem:[#allocation11 + $0x18] sm:$0xf]
        %v1276 = vld [vmem:[#allocation11 + $0x1c] sm:$0xf]
        %v1277 = vld [vmem:[#allocation11 + $0x20] sm:$0xf]
        %v1278 = vld [vmem:[#allocation11 + $0x24] sm:$0xf]
        %v1279 = vld [vmem:[#allocation11 + $0x28] sm:$0xf]
        %v1280 = vld [vmem:[#allocation11 + $0x2c] sm:$0xf]
        %v1281 = vld [vmem:[#allocation11 + $0x30] sm:$0xf]
        %v1282 = vld [vmem:[#allocation11 + $0x34] sm:$0xf]
        %v1283 = vld [vmem:[#allocation11 + $0x38] sm:$0xf]
        %v1284 = vld [vmem:[#allocation11 + $0x3c] sm:$0xf]
        %v1285 = vld [vmem:[#allocation13] sm:$0x1]
        %v1287 = vlaneseq
        %v1288 = vshrl.u32 %v1287, 7
        %v1289 = vsub.s32 0, %v1288
        %v1290 = vrot.slane %v1285, %v1289
        %v1308 = vunpack.c.l.b16 %v1269
        %v1309 = vunpack.c.l.b16 %v1270
        %v1310 = vunpack.c.l.b16 %v1271
        %v1311 = vunpack.c.l.b16 %v1272
        %v1312 = vunpack.c.l.b16 %v1273
        %v1313 = vunpack.c.l.b16 %v1274
        %v1314 = vunpack.c.l.b16 %v1275
        %v1315 = vunpack.c.l.b16 %v1276
        %v1316 = vunpack.c.l.b16 %v1277
        %v1317 = vunpack.c.l.b16 %v1278
        %v1318 = vunpack.c.l.b16 %v1279
        %v1319 = vunpack.c.l.b16 %v1280
        %v1320 = vunpack.c.l.b16 %v1281
        %v1321 = vunpack.c.l.b16 %v1282
        %v1322 = vunpack.c.l.b16 %v1283
        %v1323 = vunpack.c.l.b16 %v1284
        %v1324 = vpack.c.b16 %v1309, %v1308
        %v1325 = vpack.c.b16 %v1311, %v1310
        %v1326 = vpack.c.b16 %v1313, %v1312
        %v1327 = vpack.c.b16 %v1315, %v1314
        %v1328 = vpack.c.b16 %v1317, %v1316
        %v1329 = vpack.c.b16 %v1319, %v1318
        %v1330 = vpack.c.b16 %v1321, %v1320
        %v1331 = vpack.c.b16 %v1323, %v1322
        %1340 = vmatprep.subr.bf16.mxu0 0
        %1341 = vmatpush1.bf16.msra.mxu0 %v1331
        %1342 = vmatprep.subr.bf16.mxu0 0
        %1343 = vmatpush1.bf16.msra.mxu0 %v1330
        %1344 = vmatprep.subr.bf16.mxu0 0
        %1345 = vmatpush1.bf16.msra.mxu0 %v1329
        %1346 = vmatprep.subr.bf16.mxu0 0
        %1347 = vmatpush1.bf16.msra.mxu0 %v1328
        %1348 = vmatprep.subr.bf16.mxu0 0
        %1349 = vmatpush1.bf16.msra.mxu0 %v1327
        %1350 = vmatprep.subr.bf16.mxu0 0
        %1351 = vmatpush1.bf16.msra.mxu0 %v1326
        %1352 = vmatprep.subr.bf16.mxu0 0
        %1353 = vmatpush1.bf16.msra.mxu0 %v1325
        %1354 = vmatprep.subr.bf16.mxu0 0
        %1355 = vmatpush1.bf16.msra.mxu0 %v1324
        %1356 = vmatprep.subr.bf16.mxu0 0
        %1357 = vmatpush2.bf16.msra.mxu0 0
        %1358 = vmatprep.subr.bf16.mxu0 0
        %1359 = vmatpush2.bf16.msra.mxu0 0
        %1360 = vmatprep.subr.bf16.mxu0 0
        %1361 = vmatpush2.bf16.msra.mxu0 0
        %1362 = vmatprep.subr.bf16.mxu0 0
        %1363 = vmatpush2.bf16.msra.mxu0 0
        %1364 = vmatprep.subr.bf16.mxu0 0
        %1365 = vmatpush2.bf16.msra.mxu0 0
        %1366 = vmatprep.subr.bf16.mxu0 0
        %1367 = vmatpush2.bf16.msra.mxu0 0
        %1368 = vmatprep.subr.bf16.mxu0 0
        %1369 = vmatpush2.bf16.msra.mxu0 0
        %1370 = vmatprep.subr.bf16.mxu0 0
        %1371 = vmatpush2.bf16.msra.mxu0 0
        %1372 = vmatprep.mubr.bf16.mxu0 0
        %1373 = vmatmul.mubr.bf16.gmra.mxu0 %v1253
        %v1374 = vpop.f32.mrf.mxu0
        %v1375 = vadd.f32 %v1290, %v1374
        %v1376 = vpop.f32.mrf.mxu0
        %v1377 = vpop.f32.mrf.mxu0
        %v1378 = vadd.f32 %v1290, %v1377
        %v1379 = vpop.f32.mrf.mxu0
        %1380 = vmatprep.mubr.bf16.mxu0 0
        %1381 = vmatmul.mubr.bf16.gmra.mxu0 %v1254
        %v1382 = vpop.f32.mrf.mxu0
        %v1383 = vadd.f32 %v1290, %v1382
        %v1384 = vpop.f32.mrf.mxu0
        %v1385 = vpop.f32.mrf.mxu0
        %v1386 = vadd.f32 %v1290, %v1385
        %v1387 = vpop.f32.mrf.mxu0
        %1388 = vmatprep.mubr.bf16.mxu0 0
        %1389 = vmatmul.mubr.bf16.gmra.mxu0 %v1255
        %v1390 = vpop.f32.mrf.mxu0
        %v1391 = vadd.f32 %v1290, %v1390
        %v1392 = vpop.f32.mrf.mxu0
        %v1393 = vpop.f32.mrf.mxu0
        %v1394 = vadd.f32 %v1290, %v1393
        %v1395 = vpop.f32.mrf.mxu0
        %1396 = vmatprep.mubr.bf16.mxu0 0
        %1397 = vmatmul.mubr.bf16.gmra.mxu0 %v1256
        %v1398 = vpop.f32.mrf.mxu0
        %v1399 = vadd.f32 %v1290, %v1398
        %v1400 = vpop.f32.mrf.mxu0
        %v1401 = vpop.f32.mrf.mxu0
        %v1402 = vadd.f32 %v1290, %v1401
        %v1403 = vpop.f32.mrf.mxu0
        %1404 = vmatprep.mubr.bf16.mxu0 0
        %1405 = vmatmul.mubr.bf16.gmra.mxu0 %v1257
        %v1406 = vpop.f32.mrf.mxu0
        %v1407 = vadd.f32 %v1290, %v1406
        %v1408 = vpop.f32.mrf.mxu0
        %v1409 = vpop.f32.mrf.mxu0
        %v1410 = vadd.f32 %v1290, %v1409
        %v1411 = vpop.f32.mrf.mxu0
        %1412 = vmatprep.mubr.bf16.mxu0 0
        %1413 = vmatmul.mubr.bf16.gmra.mxu0 %v1258
        %v1414 = vpop.f32.mrf.mxu0
        %v1415 = vadd.f32 %v1290, %v1414
        %v1416 = vpop.f32.mrf.mxu0
        %v1417 = vpop.f32.mrf.mxu0
        %v1418 = vadd.f32 %v1290, %v1417
        %v1419 = vpop.f32.mrf.mxu0
        %1420 = vmatprep.mubr.bf16.mxu0 0
        %1421 = vmatmul.mubr.bf16.gmra.mxu0 %v1259
        %v1422 = vpop.f32.mrf.mxu0
        %v1423 = vadd.f32 %v1290, %v1422
        %v1424 = vpop.f32.mrf.mxu0
        %v1425 = vpop.f32.mrf.mxu0
        %v1426 = vadd.f32 %v1290, %v1425
        %v1427 = vpop.f32.mrf.mxu0
        %1428 = vmatprep.mubr.bf16.mxu0 0
        %1429 = vmatmul.mubr.bf16.gmra.mxu0 %v1260
        %v1430 = vpop.f32.mrf.mxu0
        %v1431 = vadd.f32 %v1290, %v1430
        %v1432 = vpop.f32.mrf.mxu0
        %v1433 = vpop.f32.mrf.mxu0
        %v1434 = vadd.f32 %v1290, %v1433
        %v1435 = vpop.f32.mrf.mxu0
        %1436 = vmatprep.mubr.bf16.mxu0 0
        %1437 = vmatmul.mubr.bf16.gmra.mxu0 %v1261
        %v1438 = vpop.f32.mrf.mxu0
        %v1439 = vadd.f32 %v1290, %v1438
        %v1440 = vpop.f32.mrf.mxu0
        %v1441 = vpop.f32.mrf.mxu0
        %v1442 = vadd.f32 %v1290, %v1441
        %v1443 = vpop.f32.mrf.mxu0
        %1444 = vmatprep.mubr.bf16.mxu0 0
        %1445 = vmatmul.mubr.bf16.gmra.mxu0 %v1262
        %v1446 = vpop.f32.mrf.mxu0
        %v1447 = vadd.f32 %v1290, %v1446
        %v1448 = vpop.f32.mrf.mxu0
        %v1449 = vpop.f32.mrf.mxu0
        %v1450 = vadd.f32 %v1290, %v1449
        %v1451 = vpop.f32.mrf.mxu0
        %1452 = vmatprep.mubr.bf16.mxu0 0
        %1453 = vmatmul.mubr.bf16.gmra.mxu0 %v1263
        %v1454 = vpop.f32.mrf.mxu0
        %v1455 = vadd.f32 %v1290, %v1454
        %v1456 = vpop.f32.mrf.mxu0
        %v1457 = vpop.f32.mrf.mxu0
        %v1458 = vadd.f32 %v1290, %v1457
        %v1459 = vpop.f32.mrf.mxu0
        %1460 = vmatprep.mubr.bf16.mxu0 0
        %1461 = vmatmul.mubr.bf16.gmra.mxu0 %v1264
        %v1462 = vpop.f32.mrf.mxu0
        %v1463 = vadd.f32 %v1290, %v1462
        %v1464 = vpop.f32.mrf.mxu0
        %v1465 = vpop.f32.mrf.mxu0
        %v1466 = vadd.f32 %v1290, %v1465
        %v1467 = vpop.f32.mrf.mxu0
        %1468 = vmatprep.mubr.bf16.mxu0 0
        %1469 = vmatmul.mubr.bf16.gmra.mxu0 %v1265
        %v1470 = vpop.f32.mrf.mxu0
        %v1471 = vadd.f32 %v1290, %v1470
        %v1472 = vpop.f32.mrf.mxu0
        %v1473 = vpop.f32.mrf.mxu0
        %v1474 = vadd.f32 %v1290, %v1473
        %v1475 = vpop.f32.mrf.mxu0
        %1476 = vmatprep.mubr.bf16.mxu0 0
        %1477 = vmatmul.mubr.bf16.gmra.mxu0 %v1266
        %v1478 = vpop.f32.mrf.mxu0
        %v1479 = vadd.f32 %v1290, %v1478
        %v1480 = vpop.f32.mrf.mxu0
        %v1481 = vpop.f32.mrf.mxu0
        %v1482 = vadd.f32 %v1290, %v1481
        %v1483 = vpop.f32.mrf.mxu0
        %1484 = vmatprep.mubr.bf16.mxu0 0
        %1485 = vmatmul.mubr.bf16.gmra.mxu0 %v1267
        %v1486 = vpop.f32.mrf.mxu0
        %v1487 = vadd.f32 %v1290, %v1486
        %v1488 = vpop.f32.mrf.mxu0
        %v1489 = vpop.f32.mrf.mxu0
        %v1490 = vadd.f32 %v1290, %v1489
        %v1491 = vpop.f32.mrf.mxu0
        %1492 = vmatprep.mubr.bf16.mxu0 0
        %1493 = vmatmul.mubr.bf16.gmra.mxu0 %v1268
        %v1494 = vpop.f32.mrf.mxu0
        %v1495 = vadd.f32 %v1290, %v1494
        %v1496 = vpop.f32.mrf.mxu0
        %v1497 = vpop.f32.mrf.mxu0
        %v1498 = vadd.f32 %v1290, %v1497
        %v1499 = vpop.f32.mrf.mxu0
        %1500 = vdwg.mxu0
        %vm1501 = vcmp.gt.f32.partialorder %v1375, 0.0
        %vm1502 = vcmp.gt.f32.partialorder %v1378, 0.0
        %vm1503 = vcmp.gt.f32.partialorder %v1383, 0.0
        %vm1504 = vcmp.gt.f32.partialorder %v1386, 0.0
        %vm1505 = vcmp.gt.f32.partialorder %v1391, 0.0
        %vm1506 = vcmp.gt.f32.partialorder %v1394, 0.0
        %vm1507 = vcmp.gt.f32.partialorder %v1399, 0.0
        %vm1508 = vcmp.gt.f32.partialorder %v1402, 0.0
        %vm1509 = vcmp.gt.f32.partialorder %v1407, 0.0
        %vm1510 = vcmp.gt.f32.partialorder %v1410, 0.0
        %vm1511 = vcmp.gt.f32.partialorder %v1415, 0.0
        %vm1512 = vcmp.gt.f32.partialorder %v1418, 0.0
        %vm1513 = vcmp.gt.f32.partialorder %v1423, 0.0
        %vm1514 = vcmp.gt.f32.partialorder %v1426, 0.0
        %vm1515 = vcmp.gt.f32.partialorder %v1431, 0.0
        %vm1516 = vcmp.gt.f32.partialorder %v1434, 0.0
        %vm1517 = vcmp.gt.f32.partialorder %v1439, 0.0
        %vm1518 = vcmp.gt.f32.partialorder %v1442, 0.0
        %vm1519 = vcmp.gt.f32.partialorder %v1447, 0.0
        %vm1520 = vcmp.gt.f32.partialorder %v1450, 0.0
        %vm1521 = vcmp.gt.f32.partialorder %v1455, 0.0
        %vm1522 = vcmp.gt.f32.partialorder %v1458, 0.0
        %vm1523 = vcmp.gt.f32.partialorder %v1463, 0.0
        %vm1524 = vcmp.gt.f32.partialorder %v1466, 0.0
        %vm1525 = vcmp.gt.f32.partialorder %v1471, 0.0
        %vm1526 = vcmp.gt.f32.partialorder %v1474, 0.0
        %vm1527 = vcmp.gt.f32.partialorder %v1479, 0.0
        %vm1528 = vcmp.gt.f32.partialorder %v1482, 0.0
        %vm1529 = vcmp.gt.f32.partialorder %v1487, 0.0
        %vm1530 = vcmp.gt.f32.partialorder %v1490, 0.0
        %vm1531 = vcmp.gt.f32.partialorder %v1495, 0.0
        %vm1532 = vcmp.gt.f32.partialorder %v1498, 0.0
        %v1533 = vmul.f32 %v1375, 0.2
        %v1534 = vmul.f32 %v1378, 0.2
        %v1535 = vmul.f32 %v1383, 0.2
        %v1536 = vmul.f32 %v1386, 0.2
        %v1537 = vmul.f32 %v1391, 0.2
        %v1538 = vmul.f32 %v1394, 0.2
        %v1539 = vmul.f32 %v1399, 0.2
        %v1540 = vmul.f32 %v1402, 0.2
        %v1541 = vmul.f32 %v1407, 0.2
        %v1542 = vmul.f32 %v1410, 0.2
        %v1543 = vmul.f32 %v1415, 0.2
        %v1544 = vmul.f32 %v1418, 0.2
        %v1545 = vmul.f32 %v1423, 0.2
        %v1546 = vmul.f32 %v1426, 0.2
        %v1547 = vmul.f32 %v1431, 0.2
        %v1548 = vmul.f32 %v1434, 0.2
        %v1549 = vmul.f32 %v1439, 0.2
        %v1550 = vmul.f32 %v1442, 0.2
        %v1551 = vmul.f32 %v1447, 0.2
        %v1552 = vmul.f32 %v1450, 0.2
        %v1553 = vmul.f32 %v1455, 0.2
        %v1554 = vmul.f32 %v1458, 0.2
        %v1555 = vmul.f32 %v1463, 0.2
        %v1556 = vmul.f32 %v1466, 0.2
        %v1557 = vmul.f32 %v1471, 0.2
        %v1558 = vmul.f32 %v1474, 0.2
        %v1559 = vmul.f32 %v1479, 0.2
        %v1560 = vmul.f32 %v1482, 0.2
        %v1561 = vmul.f32 %v1487, 0.2
        %v1562 = vmul.f32 %v1490, 0.2
        %v1563 = vmul.f32 %v1495, 0.2
        %v1564 = vmul.f32 %v1498, 0.2
        %v1565 = vsel %vm1501, %v1375, %v1533
        %v1566 = vsel %vm1502, %v1378, %v1534
        %v1567 = vsel %vm1503, %v1383, %v1535
        %v1568 = vsel %vm1504, %v1386, %v1536
        %v1569 = vsel %vm1505, %v1391, %v1537
        %v1570 = vsel %vm1506, %v1394, %v1538
        %v1571 = vsel %vm1507, %v1399, %v1539
        %v1572 = vsel %vm1508, %v1402, %v1540
        %v1573 = vsel %vm1509, %v1407, %v1541
        %v1574 = vsel %vm1510, %v1410, %v1542
        %v1575 = vsel %vm1511, %v1415, %v1543
        %v1576 = vsel %vm1512, %v1418, %v1544
        %v1577 = vsel %vm1513, %v1423, %v1545
        %v1578 = vsel %vm1514, %v1426, %v1546
        %v1579 = vsel %vm1515, %v1431, %v1547
        %v1580 = vsel %vm1516, %v1434, %v1548
        %v1581 = vsel %vm1517, %v1439, %v1549
        %v1582 = vsel %vm1518, %v1442, %v1550
        %v1583 = vsel %vm1519, %v1447, %v1551
        %v1584 = vsel %vm1520, %v1450, %v1552
        %v1585 = vsel %vm1521, %v1455, %v1553
        %v1586 = vsel %vm1522, %v1458, %v1554
        %v1587 = vsel %vm1523, %v1463, %v1555
        %v1588 = vsel %vm1524, %v1466, %v1556
        %v1589 = vsel %vm1525, %v1471, %v1557
        %v1590 = vsel %vm1526, %v1474, %v1558
        %v1591 = vsel %vm1527, %v1479, %v1559
        %v1592 = vsel %vm1528, %v1482, %v1560
        %v1593 = vsel %vm1529, %v1487, %v1561
        %v1594 = vsel %vm1530, %v1490, %v1562
        %v1595 = vsel %vm1531, %v1495, %v1563
        %v1596 = vsel %vm1532, %v1498, %v1564
        %v1597 = vpack.c.bf16 %v1566, %v1565
        %v1598 = vpack.c.bf16 %v1568, %v1567
        %v1599 = vpack.c.bf16 %v1570, %v1569
        %v1600 = vpack.c.bf16 %v1572, %v1571
        %v1601 = vpack.c.bf16 %v1574, %v1573
        %v1602 = vpack.c.bf16 %v1576, %v1575
        %v1603 = vpack.c.bf16 %v1578, %v1577
        %v1604 = vpack.c.bf16 %v1580, %v1579
        %v1605 = vpack.c.bf16 %v1582, %v1581
        %v1606 = vpack.c.bf16 %v1584, %v1583
        %v1607 = vpack.c.bf16 %v1586, %v1585
        %v1608 = vpack.c.bf16 %v1588, %v1587
        %v1609 = vpack.c.bf16 %v1590, %v1589
        %v1610 = vpack.c.bf16 %v1592, %v1591
        %v1611 = vpack.c.bf16 %v1594, %v1593
        %v1612 = vpack.c.bf16 %v1596, %v1595
        %v1613 = vld [vmem:[#allocation14] sm:$0xf]
        %v1614 = vld [vmem:[#allocation14 + $0x4] sm:$0xf]
        %v1615 = vld [vmem:[#allocation14 + $0x8] sm:$0xf]
        %v1616 = vld [vmem:[#allocation14 + $0xc] sm:$0xf]
        %v1617 = vld [vmem:[#allocation14 + $0x10] sm:$0xf]
        %v1618 = vld [vmem:[#allocation14 + $0x14] sm:$0xf]
        %v1619 = vld [vmem:[#allocation14 + $0x18] sm:$0xf]
        %v1620 = vld [vmem:[#allocation14 + $0x1c] sm:$0xf]
        %v1621 = vld [vmem:[#allocation14 + $0x20] sm:$0xf]
        %v1622 = vld [vmem:[#allocation14 + $0x24] sm:$0xf]
        %v1623 = vld [vmem:[#allocation14 + $0x28] sm:$0xf]
        %v1624 = vld [vmem:[#allocation14 + $0x2c] sm:$0xf]
        %v1625 = vld [vmem:[#allocation14 + $0x30] sm:$0xf]
        %v1626 = vld [vmem:[#allocation14 + $0x34] sm:$0xf]
        %v1627 = vld [vmem:[#allocation14 + $0x38] sm:$0xf]
        %v1628 = vld [vmem:[#allocation14 + $0x3c] sm:$0xf]
        %v1629 = vld [vmem:[#allocation16] sm:$0x1]
        %v1631 = vlaneseq
        %v1632 = vshrl.u32 %v1631, 7
        %v1633 = vsub.s32 0, %v1632
        %v1634 = vrot.slane %v1629, %v1633
        %v1652 = vunpack.c.l.b16 %v1613
        %v1653 = vunpack.c.l.b16 %v1614
        %v1654 = vunpack.c.l.b16 %v1615
        %v1655 = vunpack.c.l.b16 %v1616
        %v1656 = vunpack.c.l.b16 %v1617
        %v1657 = vunpack.c.l.b16 %v1618
        %v1658 = vunpack.c.l.b16 %v1619
        %v1659 = vunpack.c.l.b16 %v1620
        %v1660 = vunpack.c.l.b16 %v1621
        %v1661 = vunpack.c.l.b16 %v1622
        %v1662 = vunpack.c.l.b16 %v1623
        %v1663 = vunpack.c.l.b16 %v1624
        %v1664 = vunpack.c.l.b16 %v1625
        %v1665 = vunpack.c.l.b16 %v1626
        %v1666 = vunpack.c.l.b16 %v1627
        %v1667 = vunpack.c.l.b16 %v1628
        %v1668 = vpack.c.b16 %v1653, %v1652
        %v1669 = vpack.c.b16 %v1655, %v1654
        %v1670 = vpack.c.b16 %v1657, %v1656
        %v1671 = vpack.c.b16 %v1659, %v1658
        %v1672 = vpack.c.b16 %v1661, %v1660
        %v1673 = vpack.c.b16 %v1663, %v1662
        %v1674 = vpack.c.b16 %v1665, %v1664
        %v1675 = vpack.c.b16 %v1667, %v1666
        %1684 = vmatprep.subr.bf16.mxu0 0
        %1685 = vmatpush1.bf16.msra.mxu0 %v1675
        %1686 = vmatprep.subr.bf16.mxu0 0
        %1687 = vmatpush1.bf16.msra.mxu0 %v1674
        %1688 = vmatprep.subr.bf16.mxu0 0
        %1689 = vmatpush1.bf16.msra.mxu0 %v1673
        %1690 = vmatprep.subr.bf16.mxu0 0
        %1691 = vmatpush1.bf16.msra.mxu0 %v1672
        %1692 = vmatprep.subr.bf16.mxu0 0
        %1693 = vmatpush1.bf16.msra.mxu0 %v1671
        %1694 = vmatprep.subr.bf16.mxu0 0
        %1695 = vmatpush1.bf16.msra.mxu0 %v1670
        %1696 = vmatprep.subr.bf16.mxu0 0
        %1697 = vmatpush1.bf16.msra.mxu0 %v1669
        %1698 = vmatprep.subr.bf16.mxu0 0
        %1699 = vmatpush1.bf16.msra.mxu0 %v1668
        %1700 = vmatprep.subr.bf16.mxu0 0
        %1701 = vmatpush2.bf16.msra.mxu0 0
        %1702 = vmatprep.subr.bf16.mxu0 0
        %1703 = vmatpush2.bf16.msra.mxu0 0
        %1704 = vmatprep.subr.bf16.mxu0 0
        %1705 = vmatpush2.bf16.msra.mxu0 0
        %1706 = vmatprep.subr.bf16.mxu0 0
        %1707 = vmatpush2.bf16.msra.mxu0 0
        %1708 = vmatprep.subr.bf16.mxu0 0
        %1709 = vmatpush2.bf16.msra.mxu0 0
        %1710 = vmatprep.subr.bf16.mxu0 0
        %1711 = vmatpush2.bf16.msra.mxu0 0
        %1712 = vmatprep.subr.bf16.mxu0 0
        %1713 = vmatpush2.bf16.msra.mxu0 0
        %1714 = vmatprep.subr.bf16.mxu0 0
        %1715 = vmatpush2.bf16.msra.mxu0 0
        %1716 = vmatprep.mubr.bf16.mxu0 0
        %1717 = vmatmul.mubr.bf16.gmra.mxu0 %v1597
        %v1718 = vpop.f32.mrf.mxu0
        %v1719 = vadd.f32 %v1634, %v1718
        %v1720 = vpop.f32.mrf.mxu0
        %v1721 = vpop.f32.mrf.mxu0
        %v1722 = vadd.f32 %v1634, %v1721
        %v1723 = vpop.f32.mrf.mxu0
        %1724 = vmatprep.mubr.bf16.mxu0 0
        %1725 = vmatmul.mubr.bf16.gmra.mxu0 %v1598
        %v1726 = vpop.f32.mrf.mxu0
        %v1727 = vadd.f32 %v1634, %v1726
        %v1728 = vpop.f32.mrf.mxu0
        %v1729 = vpop.f32.mrf.mxu0
        %v1730 = vadd.f32 %v1634, %v1729
        %v1731 = vpop.f32.mrf.mxu0
        %1732 = vmatprep.mubr.bf16.mxu0 0
        %1733 = vmatmul.mubr.bf16.gmra.mxu0 %v1599
        %v1734 = vpop.f32.mrf.mxu0
        %v1735 = vadd.f32 %v1634, %v1734
        %v1736 = vpop.f32.mrf.mxu0
        %v1737 = vpop.f32.mrf.mxu0
        %v1738 = vadd.f32 %v1634, %v1737
        %v1739 = vpop.f32.mrf.mxu0
        %1740 = vmatprep.mubr.bf16.mxu0 0
        %1741 = vmatmul.mubr.bf16.gmra.mxu0 %v1600
        %v1742 = vpop.f32.mrf.mxu0
        %v1743 = vadd.f32 %v1634, %v1742
        %v1744 = vpop.f32.mrf.mxu0
        %v1745 = vpop.f32.mrf.mxu0
        %v1746 = vadd.f32 %v1634, %v1745
        %v1747 = vpop.f32.mrf.mxu0
        %1748 = vmatprep.mubr.bf16.mxu0 0
        %1749 = vmatmul.mubr.bf16.gmra.mxu0 %v1601
        %v1750 = vpop.f32.mrf.mxu0
        %v1751 = vadd.f32 %v1634, %v1750
        %v1752 = vpop.f32.mrf.mxu0
        %v1753 = vpop.f32.mrf.mxu0
        %v1754 = vadd.f32 %v1634, %v1753
        %v1755 = vpop.f32.mrf.mxu0
        %1756 = vmatprep.mubr.bf16.mxu0 0
        %1757 = vmatmul.mubr.bf16.gmra.mxu0 %v1602
        %v1758 = vpop.f32.mrf.mxu0
        %v1759 = vadd.f32 %v1634, %v1758
        %v1760 = vpop.f32.mrf.mxu0
        %v1761 = vpop.f32.mrf.mxu0
        %v1762 = vadd.f32 %v1634, %v1761
        %v1763 = vpop.f32.mrf.mxu0
        %1764 = vmatprep.mubr.bf16.mxu0 0
        %1765 = vmatmul.mubr.bf16.gmra.mxu0 %v1603
        %v1766 = vpop.f32.mrf.mxu0
        %v1767 = vadd.f32 %v1634, %v1766
        %v1768 = vpop.f32.mrf.mxu0
        %v1769 = vpop.f32.mrf.mxu0
        %v1770 = vadd.f32 %v1634, %v1769
        %v1771 = vpop.f32.mrf.mxu0
        %1772 = vmatprep.mubr.bf16.mxu0 0
        %1773 = vmatmul.mubr.bf16.gmra.mxu0 %v1604
        %v1774 = vpop.f32.mrf.mxu0
        %v1775 = vadd.f32 %v1634, %v1774
        %v1776 = vpop.f32.mrf.mxu0
        %v1777 = vpop.f32.mrf.mxu0
        %v1778 = vadd.f32 %v1634, %v1777
        %v1779 = vpop.f32.mrf.mxu0
        %1780 = vmatprep.mubr.bf16.mxu0 0
        %1781 = vmatmul.mubr.bf16.gmra.mxu0 %v1605
        %v1782 = vpop.f32.mrf.mxu0
        %v1783 = vadd.f32 %v1634, %v1782
        %v1784 = vpop.f32.mrf.mxu0
        %v1785 = vpop.f32.mrf.mxu0
        %v1786 = vadd.f32 %v1634, %v1785
        %v1787 = vpop.f32.mrf.mxu0
        %1788 = vmatprep.mubr.bf16.mxu0 0
        %1789 = vmatmul.mubr.bf16.gmra.mxu0 %v1606
        %v1790 = vpop.f32.mrf.mxu0
        %v1791 = vadd.f32 %v1634, %v1790
        %v1792 = vpop.f32.mrf.mxu0
        %v1793 = vpop.f32.mrf.mxu0
        %v1794 = vadd.f32 %v1634, %v1793
        %v1795 = vpop.f32.mrf.mxu0
        %1796 = vmatprep.mubr.bf16.mxu0 0
        %1797 = vmatmul.mubr.bf16.gmra.mxu0 %v1607
        %v1798 = vpop.f32.mrf.mxu0
        %v1799 = vadd.f32 %v1634, %v1798
        %v1800 = vpop.f32.mrf.mxu0
        %v1801 = vpop.f32.mrf.mxu0
        %v1802 = vadd.f32 %v1634, %v1801
        %v1803 = vpop.f32.mrf.mxu0
        %1804 = vmatprep.mubr.bf16.mxu0 0
        %1805 = vmatmul.mubr.bf16.gmra.mxu0 %v1608
        %v1806 = vpop.f32.mrf.mxu0
        %v1807 = vadd.f32 %v1634, %v1806
        %v1808 = vpop.f32.mrf.mxu0
        %v1809 = vpop.f32.mrf.mxu0
        %v1810 = vadd.f32 %v1634, %v1809
        %v1811 = vpop.f32.mrf.mxu0
        %1812 = vmatprep.mubr.bf16.mxu0 0
        %1813 = vmatmul.mubr.bf16.gmra.mxu0 %v1609
        %v1814 = vpop.f32.mrf.mxu0
        %v1815 = vadd.f32 %v1634, %v1814
        %v1816 = vpop.f32.mrf.mxu0
        %v1817 = vpop.f32.mrf.mxu0
        %v1818 = vadd.f32 %v1634, %v1817
        %v1819 = vpop.f32.mrf.mxu0
        %1820 = vmatprep.mubr.bf16.mxu0 0
        %1821 = vmatmul.mubr.bf16.gmra.mxu0 %v1610
        %v1822 = vpop.f32.mrf.mxu0
        %v1823 = vadd.f32 %v1634, %v1822
        %v1824 = vpop.f32.mrf.mxu0
        %v1825 = vpop.f32.mrf.mxu0
        %v1826 = vadd.f32 %v1634, %v1825
        %v1827 = vpop.f32.mrf.mxu0
        %1828 = vmatprep.mubr.bf16.mxu0 0
        %1829 = vmatmul.mubr.bf16.gmra.mxu0 %v1611
        %v1830 = vpop.f32.mrf.mxu0
        %v1831 = vadd.f32 %v1634, %v1830
        %v1832 = vpop.f32.mrf.mxu0
        %v1833 = vpop.f32.mrf.mxu0
        %v1834 = vadd.f32 %v1634, %v1833
        %v1835 = vpop.f32.mrf.mxu0
        %1836 = vmatprep.mubr.bf16.mxu0 0
        %1837 = vmatmul.mubr.bf16.gmra.mxu0 %v1612
        %v1838 = vpop.f32.mrf.mxu0
        %v1839 = vadd.f32 %v1634, %v1838
        %v1840 = vpop.f32.mrf.mxu0
        %v1841 = vpop.f32.mrf.mxu0
        %v1842 = vadd.f32 %v1634, %v1841
        %v1843 = vpop.f32.mrf.mxu0
        %1844 = vdwg.mxu0
        %vm1845 = vcmp.gt.f32.partialorder %v1719, 0.0
        %vm1846 = vcmp.gt.f32.partialorder %v1722, 0.0
        %vm1847 = vcmp.gt.f32.partialorder %v1727, 0.0
        %vm1848 = vcmp.gt.f32.partialorder %v1730, 0.0
        %vm1849 = vcmp.gt.f32.partialorder %v1735, 0.0
        %vm1850 = vcmp.gt.f32.partialorder %v1738, 0.0
        %vm1851 = vcmp.gt.f32.partialorder %v1743, 0.0
        %vm1852 = vcmp.gt.f32.partialorder %v1746, 0.0
        %vm1853 = vcmp.gt.f32.partialorder %v1751, 0.0
        %vm1854 = vcmp.gt.f32.partialorder %v1754, 0.0
        %vm1855 = vcmp.gt.f32.partialorder %v1759, 0.0
        %vm1856 = vcmp.gt.f32.partialorder %v1762, 0.0
        %vm1857 = vcmp.gt.f32.partialorder %v1767, 0.0
        %vm1858 = vcmp.gt.f32.partialorder %v1770, 0.0
        %vm1859 = vcmp.gt.f32.partialorder %v1775, 0.0
        %vm1860 = vcmp.gt.f32.partialorder %v1778, 0.0
        %vm1861 = vcmp.gt.f32.partialorder %v1783, 0.0
        %vm1862 = vcmp.gt.f32.partialorder %v1786, 0.0
        %vm1863 = vcmp.gt.f32.partialorder %v1791, 0.0
        %vm1864 = vcmp.gt.f32.partialorder %v1794, 0.0
        %vm1865 = vcmp.gt.f32.partialorder %v1799, 0.0
        %vm1866 = vcmp.gt.f32.partialorder %v1802, 0.0
        %vm1867 = vcmp.gt.f32.partialorder %v1807, 0.0
        %vm1868 = vcmp.gt.f32.partialorder %v1810, 0.0
        %vm1869 = vcmp.gt.f32.partialorder %v1815, 0.0
        %vm1870 = vcmp.gt.f32.partialorder %v1818, 0.0
        %vm1871 = vcmp.gt.f32.partialorder %v1823, 0.0
        %vm1872 = vcmp.gt.f32.partialorder %v1826, 0.0
        %vm1873 = vcmp.gt.f32.partialorder %v1831, 0.0
        %vm1874 = vcmp.gt.f32.partialorder %v1834, 0.0
        %vm1875 = vcmp.gt.f32.partialorder %v1839, 0.0
        %vm1876 = vcmp.gt.f32.partialorder %v1842, 0.0
        %v1877 = vmul.f32 %v1719, 0.2
        %v1878 = vmul.f32 %v1722, 0.2
        %v1879 = vmul.f32 %v1727, 0.2
        %v1880 = vmul.f32 %v1730, 0.2
        %v1881 = vmul.f32 %v1735, 0.2
        %v1882 = vmul.f32 %v1738, 0.2
        %v1883 = vmul.f32 %v1743, 0.2
        %v1884 = vmul.f32 %v1746, 0.2
        %v1885 = vmul.f32 %v1751, 0.2
        %v1886 = vmul.f32 %v1754, 0.2
        %v1887 = vmul.f32 %v1759, 0.2
        %v1888 = vmul.f32 %v1762, 0.2
        %v1889 = vmul.f32 %v1767, 0.2
        %v1890 = vmul.f32 %v1770, 0.2
        %v1891 = vmul.f32 %v1775, 0.2
        %v1892 = vmul.f32 %v1778, 0.2
        %v1893 = vmul.f32 %v1783, 0.2
        %v1894 = vmul.f32 %v1786, 0.2
        %v1895 = vmul.f32 %v1791, 0.2
        %v1896 = vmul.f32 %v1794, 0.2
        %v1897 = vmul.f32 %v1799, 0.2
        %v1898 = vmul.f32 %v1802, 0.2
        %v1899 = vmul.f32 %v1807, 0.2
        %v1900 = vmul.f32 %v1810, 0.2
        %v1901 = vmul.f32 %v1815, 0.2
        %v1902 = vmul.f32 %v1818, 0.2
        %v1903 = vmul.f32 %v1823, 0.2
        %v1904 = vmul.f32 %v1826, 0.2
        %v1905 = vmul.f32 %v1831, 0.2
        %v1906 = vmul.f32 %v1834, 0.2
        %v1907 = vmul.f32 %v1839, 0.2
        %v1908 = vmul.f32 %v1842, 0.2
        %v1909 = vsel %vm1845, %v1719, %v1877
        %v1910 = vsel %vm1846, %v1722, %v1878
        %v1911 = vsel %vm1847, %v1727, %v1879
        %v1912 = vsel %vm1848, %v1730, %v1880
        %v1913 = vsel %vm1849, %v1735, %v1881
        %v1914 = vsel %vm1850, %v1738, %v1882
        %v1915 = vsel %vm1851, %v1743, %v1883
        %v1916 = vsel %vm1852, %v1746, %v1884
        %v1917 = vsel %vm1853, %v1751, %v1885
        %v1918 = vsel %vm1854, %v1754, %v1886
        %v1919 = vsel %vm1855, %v1759, %v1887
        %v1920 = vsel %vm1856, %v1762, %v1888
        %v1921 = vsel %vm1857, %v1767, %v1889
        %v1922 = vsel %vm1858, %v1770, %v1890
        %v1923 = vsel %vm1859, %v1775, %v1891
        %v1924 = vsel %vm1860, %v1778, %v1892
        %v1925 = vsel %vm1861, %v1783, %v1893
        %v1926 = vsel %vm1862, %v1786, %v1894
        %v1927 = vsel %vm1863, %v1791, %v1895
        %v1928 = vsel %vm1864, %v1794, %v1896
        %v1929 = vsel %vm1865, %v1799, %v1897
        %v1930 = vsel %vm1866, %v1802, %v1898
        %v1931 = vsel %vm1867, %v1807, %v1899
        %v1932 = vsel %vm1868, %v1810, %v1900
        %v1933 = vsel %vm1869, %v1815, %v1901
        %v1934 = vsel %vm1870, %v1818, %v1902
        %v1935 = vsel %vm1871, %v1823, %v1903
        %v1936 = vsel %vm1872, %v1826, %v1904
        %v1937 = vsel %vm1873, %v1831, %v1905
        %v1938 = vsel %vm1874, %v1834, %v1906
        %v1939 = vsel %vm1875, %v1839, %v1907
        %v1940 = vsel %vm1876, %v1842, %v1908
        %v1941 = vpack.c.bf16 %v1910, %v1909
        %v1942 = vpack.c.bf16 %v1912, %v1911
        %v1943 = vpack.c.bf16 %v1914, %v1913
        %v1944 = vpack.c.bf16 %v1916, %v1915
        %v1945 = vpack.c.bf16 %v1918, %v1917
        %v1946 = vpack.c.bf16 %v1920, %v1919
        %v1947 = vpack.c.bf16 %v1922, %v1921
        %v1948 = vpack.c.bf16 %v1924, %v1923
        %v1949 = vpack.c.bf16 %v1926, %v1925
        %v1950 = vpack.c.bf16 %v1928, %v1927
        %v1951 = vpack.c.bf16 %v1930, %v1929
        %v1952 = vpack.c.bf16 %v1932, %v1931
        %v1953 = vpack.c.bf16 %v1934, %v1933
        %v1954 = vpack.c.bf16 %v1936, %v1935
        %v1955 = vpack.c.bf16 %v1938, %v1937
        %v1956 = vpack.c.bf16 %v1940, %v1939
        %v1957 = vld [vmem:[#allocation17] sm:$0xff]
        %v1958 = vld [vmem:[#allocation17 + $0x8] sm:$0xff]
        %v1959 = vld [vmem:[#allocation17 + $0x10] sm:$0xff]
        %v1960 = vld [vmem:[#allocation17 + $0x18] sm:$0xff]
        %v1961 = vld [vmem:[#allocation17 + $0x20] sm:$0xff]
        %v1962 = vld [vmem:[#allocation17 + $0x28] sm:$0xff]
        %v1963 = vld [vmem:[#allocation17 + $0x30] sm:$0xff]
        %v1964 = vld [vmem:[#allocation17 + $0x38] sm:$0xff]
        %v1965 = vld [vmem:[#allocation17 + $0x40] sm:$0xff]
        %v1966 = vld [vmem:[#allocation17 + $0x48] sm:$0xff]
        %v1967 = vld [vmem:[#allocation17 + $0x50] sm:$0xff]
        %v1968 = vld [vmem:[#allocation17 + $0x58] sm:$0xff]
        %v1969 = vld [vmem:[#allocation17 + $0x60] sm:$0xff]
        %v1970 = vld [vmem:[#allocation17 + $0x68] sm:$0xff]
        %v1971 = vld [vmem:[#allocation17 + $0x70] sm:$0xff]
        %v1972 = vld [vmem:[#allocation17 + $0x78] sm:$0xff]
        %v1973 = vld [vmem:[#allocation19] sm:$0x3]
        %v1975 = vlaneseq
        %v1976 = vshrl.u32 %v1975, 7
        %v1977 = vsub.s32 0, %v1976
        %v1978 = vrot.slane %v1973, %v1977
        %v1979 = vlaneseq
        %v1980 = vshrl.u32 %v1979, 7
        %v1981 = vsub.s32 1, %v1980
        %v1982 = vrot.slane %v1973, %v1981
        %v2001 = vunpack.c.l.b16 %v1957
        %v2002 = vunpack.c.h.b16 %v1957
        %v2003 = vunpack.c.l.b16 %v1958
        %v2004 = vunpack.c.h.b16 %v1958
        %v2005 = vunpack.c.l.b16 %v1959
        %v2006 = vunpack.c.h.b16 %v1959
        %v2007 = vunpack.c.l.b16 %v1960
        %v2008 = vunpack.c.h.b16 %v1960
        %v2009 = vunpack.c.l.b16 %v1961
        %v2010 = vunpack.c.h.b16 %v1961
        %v2011 = vunpack.c.l.b16 %v1962
        %v2012 = vunpack.c.h.b16 %v1962
        %v2013 = vunpack.c.l.b16 %v1963
        %v2014 = vunpack.c.h.b16 %v1963
        %v2015 = vunpack.c.l.b16 %v1964
        %v2016 = vunpack.c.h.b16 %v1964
        %v2017 = vunpack.c.l.b16 %v1965
        %v2018 = vunpack.c.h.b16 %v1965
        %v2019 = vunpack.c.l.b16 %v1966
        %v2020 = vunpack.c.h.b16 %v1966
        %v2021 = vunpack.c.l.b16 %v1967
        %v2022 = vunpack.c.h.b16 %v1967
        %v2023 = vunpack.c.l.b16 %v1968
        %v2024 = vunpack.c.h.b16 %v1968
        %v2025 = vunpack.c.l.b16 %v1969
        %v2026 = vunpack.c.h.b16 %v1969
        %v2027 = vunpack.c.l.b16 %v1970
        %v2028 = vunpack.c.h.b16 %v1970
        %v2029 = vunpack.c.l.b16 %v1971
        %v2030 = vunpack.c.h.b16 %v1971
        %v2031 = vunpack.c.l.b16 %v1972
        %v2032 = vunpack.c.h.b16 %v1972
        %v2033 = vpack.c.b16 %v2003, %v2001
        %v2034 = vpack.c.b16 %v2004, %v2002
        %v2035 = vpack.c.b16 %v2007, %v2005
        %v2036 = vpack.c.b16 %v2008, %v2006
        %v2037 = vpack.c.b16 %v2011, %v2009
        %v2038 = vpack.c.b16 %v2012, %v2010
        %v2039 = vpack.c.b16 %v2015, %v2013
        %v2040 = vpack.c.b16 %v2016, %v2014
        %v2041 = vpack.c.b16 %v2019, %v2017
        %v2042 = vpack.c.b16 %v2020, %v2018
        %v2043 = vpack.c.b16 %v2023, %v2021
        %v2044 = vpack.c.b16 %v2024, %v2022
        %v2045 = vpack.c.b16 %v2027, %v2025
        %v2046 = vpack.c.b16 %v2028, %v2026
        %v2047 = vpack.c.b16 %v2031, %v2029
        %v2048 = vpack.c.b16 %v2032, %v2030
        %2065 = vmatprep.subr.bf16.mxu0 %v2048
        %2066 = vmatpush1.bf16.msra.mxu0 %v2047
        %2067 = vmatprep.subr.bf16.mxu0 %v2046
        %2068 = vmatpush1.bf16.msra.mxu0 %v2045
        %2069 = vmatprep.subr.bf16.mxu0 %v2044
        %2070 = vmatpush1.bf16.msra.mxu0 %v2043
        %2071 = vmatprep.subr.bf16.mxu0 %v2042
        %2072 = vmatpush1.bf16.msra.mxu0 %v2041
        %2073 = vmatprep.subr.bf16.mxu0 %v2040
        %2074 = vmatpush1.bf16.msra.mxu0 %v2039
        %2075 = vmatprep.subr.bf16.mxu0 %v2038
        %2076 = vmatpush1.bf16.msra.mxu0 %v2037
        %2077 = vmatprep.subr.bf16.mxu0 %v2036
        %2078 = vmatpush1.bf16.msra.mxu0 %v2035
        %2079 = vmatprep.subr.bf16.mxu0 %v2034
        %2080 = vmatpush1.bf16.msra.mxu0 %v2033
        %2081 = vmatprep.subr.bf16.mxu0 0
        %2082 = vmatpush2.bf16.msra.mxu0 0
        %2083 = vmatprep.subr.bf16.mxu0 0
        %2084 = vmatpush2.bf16.msra.mxu0 0
        %2085 = vmatprep.subr.bf16.mxu0 0
        %2086 = vmatpush2.bf16.msra.mxu0 0
        %2087 = vmatprep.subr.bf16.mxu0 0
        %2088 = vmatpush2.bf16.msra.mxu0 0
        %2089 = vmatprep.subr.bf16.mxu0 0
        %2090 = vmatpush2.bf16.msra.mxu0 0
        %2091 = vmatprep.subr.bf16.mxu0 0
        %2092 = vmatpush2.bf16.msra.mxu0 0
        %2093 = vmatprep.subr.bf16.mxu0 0
        %2094 = vmatpush2.bf16.msra.mxu0 0
        %2095 = vmatprep.subr.bf16.mxu0 0
        %2096 = vmatpush2.bf16.msra.mxu0 0
        %2097 = vmatprep.mubr.bf16.mxu0 0
        %2098 = vmatmul.mubr.bf16.gmra.mxu0 %v1941
        %v2099 = vpop.f32.mrf.mxu0
        %v2100 = vadd.f32 %v1978, %v2099
        %v2101 = vpop.f32.mrf.mxu0
        %v2102 = vadd.f32 %v1982, %v2101
        %v2103 = vpop.f32.mrf.mxu0
        %v2104 = vadd.f32 %v1978, %v2103
        %v2105 = vpop.f32.mrf.mxu0
        %v2106 = vadd.f32 %v1982, %v2105
        %2107 = vmatprep.mubr.bf16.mxu0 0
        %2108 = vmatmul.mubr.bf16.gmra.mxu0 %v1942
        %v2109 = vpop.f32.mrf.mxu0
        %v2110 = vadd.f32 %v1978, %v2109
        %v2111 = vpop.f32.mrf.mxu0
        %v2112 = vadd.f32 %v1982, %v2111
        %v2113 = vpop.f32.mrf.mxu0
        %v2114 = vadd.f32 %v1978, %v2113
        %v2115 = vpop.f32.mrf.mxu0
        %v2116 = vadd.f32 %v1982, %v2115
        %2117 = vmatprep.mubr.bf16.mxu0 0
        %2118 = vmatmul.mubr.bf16.gmra.mxu0 %v1943
        %v2119 = vpop.f32.mrf.mxu0
        %v2120 = vadd.f32 %v1978, %v2119
        %v2121 = vpop.f32.mrf.mxu0
        %v2122 = vadd.f32 %v1982, %v2121
        %v2123 = vpop.f32.mrf.mxu0
        %v2124 = vadd.f32 %v1978, %v2123
        %v2125 = vpop.f32.mrf.mxu0
        %v2126 = vadd.f32 %v1982, %v2125
        %2127 = vmatprep.mubr.bf16.mxu0 0
        %2128 = vmatmul.mubr.bf16.gmra.mxu0 %v1944
        %v2129 = vpop.f32.mrf.mxu0
        %v2130 = vadd.f32 %v1978, %v2129
        %v2131 = vpop.f32.mrf.mxu0
        %v2132 = vadd.f32 %v1982, %v2131
        %v2133 = vpop.f32.mrf.mxu0
        %v2134 = vadd.f32 %v1978, %v2133
        %v2135 = vpop.f32.mrf.mxu0
        %v2136 = vadd.f32 %v1982, %v2135
        %2137 = vmatprep.mubr.bf16.mxu0 0
        %2138 = vmatmul.mubr.bf16.gmra.mxu0 %v1945
        %v2139 = vpop.f32.mrf.mxu0
        %v2140 = vadd.f32 %v1978, %v2139
        %v2141 = vpop.f32.mrf.mxu0
        %v2142 = vadd.f32 %v1982, %v2141
        %v2143 = vpop.f32.mrf.mxu0
        %v2144 = vadd.f32 %v1978, %v2143
        %v2145 = vpop.f32.mrf.mxu0
        %v2146 = vadd.f32 %v1982, %v2145
        %2147 = vmatprep.mubr.bf16.mxu0 0
        %2148 = vmatmul.mubr.bf16.gmra.mxu0 %v1946
        %v2149 = vpop.f32.mrf.mxu0
        %v2150 = vadd.f32 %v1978, %v2149
        %v2151 = vpop.f32.mrf.mxu0
        %v2152 = vadd.f32 %v1982, %v2151
        %v2153 = vpop.f32.mrf.mxu0
        %v2154 = vadd.f32 %v1978, %v2153
        %v2155 = vpop.f32.mrf.mxu0
        %v2156 = vadd.f32 %v1982, %v2155
        %2157 = vmatprep.mubr.bf16.mxu0 0
        %2158 = vmatmul.mubr.bf16.gmra.mxu0 %v1947
        %v2159 = vpop.f32.mrf.mxu0
        %v2160 = vadd.f32 %v1978, %v2159
        %v2161 = vpop.f32.mrf.mxu0
        %v2162 = vadd.f32 %v1982, %v2161
        %v2163 = vpop.f32.mrf.mxu0
        %v2164 = vadd.f32 %v1978, %v2163
        %v2165 = vpop.f32.mrf.mxu0
        %v2166 = vadd.f32 %v1982, %v2165
        %2167 = vmatprep.mubr.bf16.mxu0 0
        %2168 = vmatmul.mubr.bf16.gmra.mxu0 %v1948
        %v2169 = vpop.f32.mrf.mxu0
        %v2170 = vadd.f32 %v1978, %v2169
        %v2171 = vpop.f32.mrf.mxu0
        %v2172 = vadd.f32 %v1982, %v2171
        %v2173 = vpop.f32.mrf.mxu0
        %v2174 = vadd.f32 %v1978, %v2173
        %v2175 = vpop.f32.mrf.mxu0
        %v2176 = vadd.f32 %v1982, %v2175
        %2177 = vmatprep.mubr.bf16.mxu0 0
        %2178 = vmatmul.mubr.bf16.gmra.mxu0 %v1949
        %v2179 = vpop.f32.mrf.mxu0
        %v2180 = vadd.f32 %v1978, %v2179
        %v2181 = vpop.f32.mrf.mxu0
        %v2182 = vadd.f32 %v1982, %v2181
        %v2183 = vpop.f32.mrf.mxu0
        %v2184 = vadd.f32 %v1978, %v2183
        %v2185 = vpop.f32.mrf.mxu0
        %v2186 = vadd.f32 %v1982, %v2185
        %2187 = vmatprep.mubr.bf16.mxu0 0
        %2188 = vmatmul.mubr.bf16.gmra.mxu0 %v1950
        %v2189 = vpop.f32.mrf.mxu0
        %v2190 = vadd.f32 %v1978, %v2189
        %v2191 = vpop.f32.mrf.mxu0
        %v2192 = vadd.f32 %v1982, %v2191
        %v2193 = vpop.f32.mrf.mxu0
        %v2194 = vadd.f32 %v1978, %v2193
        %v2195 = vpop.f32.mrf.mxu0
        %v2196 = vadd.f32 %v1982, %v2195
        %2197 = vmatprep.mubr.bf16.mxu0 0
        %2198 = vmatmul.mubr.bf16.gmra.mxu0 %v1951
        %v2199 = vpop.f32.mrf.mxu0
        %v2200 = vadd.f32 %v1978, %v2199
        %v2201 = vpop.f32.mrf.mxu0
        %v2202 = vadd.f32 %v1982, %v2201
        %v2203 = vpop.f32.mrf.mxu0
        %v2204 = vadd.f32 %v1978, %v2203
        %v2205 = vpop.f32.mrf.mxu0
        %v2206 = vadd.f32 %v1982, %v2205
        %2207 = vmatprep.mubr.bf16.mxu0 0
        %2208 = vmatmul.mubr.bf16.gmra.mxu0 %v1952
        %v2209 = vpop.f32.mrf.mxu0
        %v2210 = vadd.f32 %v1978, %v2209
        %v2211 = vpop.f32.mrf.mxu0
        %v2212 = vadd.f32 %v1982, %v2211
        %v2213 = vpop.f32.mrf.mxu0
        %v2214 = vadd.f32 %v1978, %v2213
        %v2215 = vpop.f32.mrf.mxu0
        %v2216 = vadd.f32 %v1982, %v2215
        %2217 = vmatprep.mubr.bf16.mxu0 0
        %2218 = vmatmul.mubr.bf16.gmra.mxu0 %v1953
        %v2219 = vpop.f32.mrf.mxu0
        %v2220 = vadd.f32 %v1978, %v2219
        %v2221 = vpop.f32.mrf.mxu0
        %v2222 = vadd.f32 %v1982, %v2221
        %v2223 = vpop.f32.mrf.mxu0
        %v2224 = vadd.f32 %v1978, %v2223
        %v2225 = vpop.f32.mrf.mxu0
        %v2226 = vadd.f32 %v1982, %v2225
        %2227 = vmatprep.mubr.bf16.mxu0 0
        %2228 = vmatmul.mubr.bf16.gmra.mxu0 %v1954
        %v2229 = vpop.f32.mrf.mxu0
        %v2230 = vadd.f32 %v1978, %v2229
        %v2231 = vpop.f32.mrf.mxu0
        %v2232 = vadd.f32 %v1982, %v2231
        %v2233 = vpop.f32.mrf.mxu0
        %v2234 = vadd.f32 %v1978, %v2233
        %v2235 = vpop.f32.mrf.mxu0
        %v2236 = vadd.f32 %v1982, %v2235
        %2237 = vmatprep.mubr.bf16.mxu0 0
        %2238 = vmatmul.mubr.bf16.gmra.mxu0 %v1955
        %v2239 = vpop.f32.mrf.mxu0
        %v2240 = vadd.f32 %v1978, %v2239
        %v2241 = vpop.f32.mrf.mxu0
        %v2242 = vadd.f32 %v1982, %v2241
        %v2243 = vpop.f32.mrf.mxu0
        %v2244 = vadd.f32 %v1978, %v2243
        %v2245 = vpop.f32.mrf.mxu0
        %v2246 = vadd.f32 %v1982, %v2245
        %2247 = vmatprep.mubr.bf16.mxu0 0
        %2248 = vmatmul.mubr.bf16.gmra.mxu0 %v1956
        %v2249 = vpop.f32.mrf.mxu0
        %v2250 = vadd.f32 %v1978, %v2249
        %v2251 = vpop.f32.mrf.mxu0
        %v2252 = vadd.f32 %v1982, %v2251
        %v2253 = vpop.f32.mrf.mxu0
        %v2254 = vadd.f32 %v1978, %v2253
        %v2255 = vpop.f32.mrf.mxu0
        %v2256 = vadd.f32 %v1982, %v2255
        %2257 = vdwg.mxu0
        %v2258 = vmul.f32 %v2102, 0.5
        %v2259 = vmul.f32 %v2106, 0.5
        %v2260 = vmul.f32 %v2112, 0.5
        %v2261 = vmul.f32 %v2116, 0.5
        %v2262 = vmul.f32 %v2122, 0.5
        %v2263 = vmul.f32 %v2126, 0.5
        %v2264 = vmul.f32 %v2132, 0.5
        %v2265 = vmul.f32 %v2136, 0.5
        %v2266 = vmul.f32 %v2142, 0.5
        %v2267 = vmul.f32 %v2146, 0.5
        %v2268 = vmul.f32 %v2152, 0.5
        %v2269 = vmul.f32 %v2156, 0.5
        %v2270 = vmul.f32 %v2162, 0.5
        %v2271 = vmul.f32 %v2166, 0.5
        %v2272 = vmul.f32 %v2172, 0.5
        %v2273 = vmul.f32 %v2176, 0.5
        %v2274 = vmul.f32 %v2182, 0.5
        %v2275 = vmul.f32 %v2186, 0.5
        %v2276 = vmul.f32 %v2192, 0.5
        %v2277 = vmul.f32 %v2196, 0.5
        %v2278 = vmul.f32 %v2202, 0.5
        %v2279 = vmul.f32 %v2206, 0.5
        %v2280 = vmul.f32 %v2212, 0.5
        %v2281 = vmul.f32 %v2216, 0.5
        %v2282 = vmul.f32 %v2222, 0.5
        %v2283 = vmul.f32 %v2226, 0.5
        %v2284 = vmul.f32 %v2232, 0.5
        %v2285 = vmul.f32 %v2236, 0.5
        %v2286 = vmul.f32 %v2242, 0.5
        %v2287 = vmul.f32 %v2246, 0.5
        %v2288 = vmul.f32 %v2252, 0.5
        %v2289 = vmul.f32 %v2256, 0.5
        %v2290 = vmul.f32 %v2258, 1.442695
        %v2291 = vpow.pop %v2290
        %v2292 = vmul.f32 %v2259, 1.442695
        %v2293 = vpow.pop %v2292
        %v2294 = vmul.f32 %v2260, 1.442695
        %v2295 = vpow.pop %v2294
        %v2296 = vmul.f32 %v2261, 1.442695
        %v2297 = vpow.pop %v2296
        %v2298 = vmul.f32 %v2262, 1.442695
        %v2299 = vpow.pop %v2298
        %v2300 = vmul.f32 %v2263, 1.442695
        %v2301 = vpow.pop %v2300
        %v2302 = vmul.f32 %v2264, 1.442695
        %v2303 = vpow.pop %v2302
        %v2304 = vmul.f32 %v2265, 1.442695
        %v2305 = vpow.pop %v2304
        %v2306 = vmul.f32 %v2266, 1.442695
        %v2307 = vpow.pop %v2306
        %v2308 = vmul.f32 %v2267, 1.442695
        %v2309 = vpow.pop %v2308
        %v2310 = vmul.f32 %v2268, 1.442695
        %v2311 = vpow.pop %v2310
        %v2312 = vmul.f32 %v2269, 1.442695
        %v2313 = vpow.pop %v2312
        %v2314 = vmul.f32 %v2270, 1.442695
        %v2315 = vpow.pop %v2314
        %v2316 = vmul.f32 %v2271, 1.442695
        %v2317 = vpow.pop %v2316
        %v2318 = vmul.f32 %v2272, 1.442695
        %v2319 = vpow.pop %v2318
        %v2320 = vmul.f32 %v2273, 1.442695
        %v2321 = vpow.pop %v2320
        %v2322 = vmul.f32 %v2274, 1.442695
        %v2323 = vpow.pop %v2322
        %v2324 = vmul.f32 %v2275, 1.442695
        %v2325 = vpow.pop %v2324
        %v2326 = vmul.f32 %v2276, 1.442695
        %v2327 = vpow.pop %v2326
        %v2328 = vmul.f32 %v2277, 1.442695
        %v2329 = vpow.pop %v2328
        %v2330 = vmul.f32 %v2278, 1.442695
        %v2331 = vpow.pop %v2330
        %v2332 = vmul.f32 %v2279, 1.442695
        %v2333 = vpow.pop %v2332
        %v2334 = vmul.f32 %v2280, 1.442695
        %v2335 = vpow.pop %v2334
        %v2336 = vmul.f32 %v2281, 1.442695
        %v2337 = vpow.pop %v2336
        %v2338 = vmul.f32 %v2282, 1.442695
        %v2339 = vpow.pop %v2338
        %v2340 = vmul.f32 %v2283, 1.442695
        %v2341 = vpow.pop %v2340
        %v2342 = vmul.f32 %v2284, 1.442695
        %v2343 = vpow.pop %v2342
        %v2344 = vmul.f32 %v2285, 1.442695
        %v2345 = vpow.pop %v2344
        %v2346 = vmul.f32 %v2286, 1.442695
        %v2347 = vpow.pop %v2346
        %v2348 = vmul.f32 %v2287, 1.442695
        %v2349 = vpow.pop %v2348
        %v2350 = vmul.f32 %v2288, 1.442695
        %v2351 = vpow.pop %v2350
        %v2352 = vmul.f32 %v2289, 1.442695
        %v2353 = vpow.pop %v2352
        %v2354 = vmul.f32 %v2291, %v765
        %v2355 = vmul.f32 %v2293, %v766
        %v2356 = vmul.f32 %v2295, %v767
        %v2357 = vmul.f32 %v2297, %v768
        %v2358 = vmul.f32 %v2299, %v769
        %v2359 = vmul.f32 %v2301, %v770
        %v2360 = vmul.f32 %v2303, %v771
        %v2361 = vmul.f32 %v2305, %v772
        %v2362 = vmul.f32 %v2307, %v773
        %v2363 = vmul.f32 %v2309, %v774
        %v2364 = vmul.f32 %v2311, %v775
        %v2365 = vmul.f32 %v2313, %v776
        %v2366 = vmul.f32 %v2315, %v777
        %v2367 = vmul.f32 %v2317, %v778
        %v2368 = vmul.f32 %v2319, %v779
        %v2369 = vmul.f32 %v2321, %v780
        %v2370 = vmul.f32 %v2323, %v781
        %v2371 = vmul.f32 %v2325, %v782
        %v2372 = vmul.f32 %v2327, %v783
        %v2373 = vmul.f32 %v2329, %v784
        %v2374 = vmul.f32 %v2331, %v785
        %v2375 = vmul.f32 %v2333, %v786
        %v2376 = vmul.f32 %v2335, %v787
        %v2377 = vmul.f32 %v2337, %v788
        %v2378 = vmul.f32 %v2339, %v789
        %v2379 = vmul.f32 %v2341, %v790
        %v2380 = vmul.f32 %v2343, %v791
        %v2381 = vmul.f32 %v2345, %v792
        %v2382 = vmul.f32 %v2347, %v793
        %v2383 = vmul.f32 %v2349, %v794
        %v2384 = vmul.f32 %v2351, %v795
        %v2385 = vmul.f32 %v2353, %v796
        %v2386 = vadd.f32 %v2100, %v2354
        %v2387 = vadd.f32 %v2104, %v2355
        %v2388 = vadd.f32 %v2110, %v2356
        %v2389 = vadd.f32 %v2114, %v2357
        %v2390 = vadd.f32 %v2120, %v2358
        %v2391 = vadd.f32 %v2124, %v2359
        %v2392 = vadd.f32 %v2130, %v2360
        %v2393 = vadd.f32 %v2134, %v2361
        %v2394 = vadd.f32 %v2140, %v2362
        %v2395 = vadd.f32 %v2144, %v2363
        %v2396 = vadd.f32 %v2150, %v2364
        %v2397 = vadd.f32 %v2154, %v2365
        %v2398 = vadd.f32 %v2160, %v2366
        %v2399 = vadd.f32 %v2164, %v2367
        %v2400 = vadd.f32 %v2170, %v2368
        %v2401 = vadd.f32 %v2174, %v2369
        %v2402 = vadd.f32 %v2180, %v2370
        %v2403 = vadd.f32 %v2184, %v2371
        %v2404 = vadd.f32 %v2190, %v2372
        %v2405 = vadd.f32 %v2194, %v2373
        %v2406 = vadd.f32 %v2200, %v2374
        %v2407 = vadd.f32 %v2204, %v2375
        %v2408 = vadd.f32 %v2210, %v2376
        %v2409 = vadd.f32 %v2214, %v2377
        %v2410 = vadd.f32 %v2220, %v2378
        %v2411 = vadd.f32 %v2224, %v2379
        %v2412 = vadd.f32 %v2230, %v2380
        %v2413 = vadd.f32 %v2234, %v2381
        %v2414 = vadd.f32 %v2240, %v2382
        %v2415 = vadd.f32 %v2244, %v2383
        %v2416 = vadd.f32 %v2250, %v2384
        %v2417 = vadd.f32 %v2254, %v2385
        %2418 = vst [vmem:[%s654] sm:$0xff] %v2100
        %2419 = vst [vmem:[%s654 + $0x8] sm:$0xff] %v2104
        %2420 = vst [vmem:[%s654 + $0x10] sm:$0xff] %v2110
        %2421 = vst [vmem:[%s654 + $0x18] sm:$0xff] %v2114
        %2422 = vst [vmem:[%s654 + $0x20] sm:$0xff] %v2120
        %2423 = vst [vmem:[%s654 + $0x28] sm:$0xff] %v2124
        %2424 = vst [vmem:[%s654 + $0x30] sm:$0xff] %v2130
        %2425 = vst [vmem:[%s654 + $0x38] sm:$0xff] %v2134
        %2426 = vst [vmem:[%s654 + $0x40] sm:$0xff] %v2140
        %2427 = vst [vmem:[%s654 + $0x48] sm:$0xff] %v2144
        %2428 = vst [vmem:[%s654 + $0x50] sm:$0xff] %v2150
        %2429 = vst [vmem:[%s654 + $0x58] sm:$0xff] %v2154
        %2430 = vst [vmem:[%s654 + $0x60] sm:$0xff] %v2160
        %2431 = vst [vmem:[%s654 + $0x68] sm:$0xff] %v2164
        %2432 = vst [vmem:[%s654 + $0x70] sm:$0xff] %v2170
        %2433 = vst [vmem:[%s654 + $0x78] sm:$0xff] %v2174
        %2434 = vst [vmem:[%s654 + $0x80] sm:$0xff] %v2180
        %2435 = vst [vmem:[%s654 + $0x88] sm:$0xff] %v2184
        %2436 = vst [vmem:[%s654 + $0x90] sm:$0xff] %v2190
        %2437 = vst [vmem:[%s654 + $0x98] sm:$0xff] %v2194
        %2438 = vst [vmem:[%s654 + $0xa0] sm:$0xff] %v2200
        %2439 = vst [vmem:[%s654 + $0xa8] sm:$0xff] %v2204
        %2440 = vst [vmem:[%s654 + $0xb0] sm:$0xff] %v2210
        %2441 = vst [vmem:[%s654 + $0xb8] sm:$0xff] %v2214
        %2442 = vst [vmem:[%s654 + $0xc0] sm:$0xff] %v2220
        %2443 = vst [vmem:[%s654 + $0xc8] sm:$0xff] %v2224
        %2444 = vst [vmem:[%s654 + $0xd0] sm:$0xff] %v2230
        %2445 = vst [vmem:[%s654 + $0xd8] sm:$0xff] %v2234
        %2446 = vst [vmem:[%s654 + $0xe0] sm:$0xff] %v2240
        %2447 = vst [vmem:[%s654 + $0xe8] sm:$0xff] %v2244
        %2448 = vst [vmem:[%s654 + $0xf0] sm:$0xff] %v2250
        %2449 = vst [vmem:[%s654 + $0xf8] sm:$0xff] %v2254
        %2450 = vst [vmem:[%s661] sm:$0xff] %v2102
        %2451 = vst [vmem:[%s661 + $0x8] sm:$0xff] %v2106
        %2452 = vst [vmem:[%s661 + $0x10] sm:$0xff] %v2112
        %2453 = vst [vmem:[%s661 + $0x18] sm:$0xff] %v2116
        %2454 = vst [vmem:[%s661 + $0x20] sm:$0xff] %v2122
        %2455 = vst [vmem:[%s661 + $0x28] sm:$0xff] %v2126
        %2456 = vst [vmem:[%s661 + $0x30] sm:$0xff] %v2132
        %2457 = vst [vmem:[%s661 + $0x38] sm:$0xff] %v2136
        %2458 = vst [vmem:[%s661 + $0x40] sm:$0xff] %v2142
        %2459 = vst [vmem:[%s661 + $0x48] sm:$0xff] %v2146
        %2460 = vst [vmem:[%s661 + $0x50] sm:$0xff] %v2152
        %2461 = vst [vmem:[%s661 + $0x58] sm:$0xff] %v2156
        %2462 = vst [vmem:[%s661 + $0x60] sm:$0xff] %v2162
        %2463 = vst [vmem:[%s661 + $0x68] sm:$0xff] %v2166
        %2464 = vst [vmem:[%s661 + $0x70] sm:$0xff] %v2172
        %2465 = vst [vmem:[%s661 + $0x78] sm:$0xff] %v2176
        %2466 = vst [vmem:[%s661 + $0x80] sm:$0xff] %v2182
        %2467 = vst [vmem:[%s661 + $0x88] sm:$0xff] %v2186
        %2468 = vst [vmem:[%s661 + $0x90] sm:$0xff] %v2192
        %2469 = vst [vmem:[%s661 + $0x98] sm:$0xff] %v2196
        %2470 = vst [vmem:[%s661 + $0xa0] sm:$0xff] %v2202
        %2471 = vst [vmem:[%s661 + $0xa8] sm:$0xff] %v2206
        %2472 = vst [vmem:[%s661 + $0xb0] sm:$0xff] %v2212
        %2473 = vst [vmem:[%s661 + $0xb8] sm:$0xff] %v2216
        %2474 = vst [vmem:[%s661 + $0xc0] sm:$0xff] %v2222
        %2475 = vst [vmem:[%s661 + $0xc8] sm:$0xff] %v2226
        %2476 = vst [vmem:[%s661 + $0xd0] sm:$0xff] %v2232
        %2477 = vst [vmem:[%s661 + $0xd8] sm:$0xff] %v2236
        %2478 = vst [vmem:[%s661 + $0xe0] sm:$0xff] %v2242
        %2479 = vst [vmem:[%s661 + $0xe8] sm:$0xff] %v2246
        %2480 = vst [vmem:[%s661 + $0xf0] sm:$0xff] %v2252
        %2481 = vst [vmem:[%s661 + $0xf8] sm:$0xff] %v2256
        %v2482 = vpack.c.bf16 %v2386, %v2386
        %v2483 = vpack.c.bf16 %v2387, %v2387
        %v2484 = vpack.c.bf16 %v2388, %v2388
        %v2485 = vpack.c.bf16 %v2389, %v2389
        %v2486 = vpack.c.bf16 %v2390, %v2390
        %v2487 = vpack.c.bf16 %v2391, %v2391
        %v2488 = vpack.c.bf16 %v2392, %v2392
        %v2489 = vpack.c.bf16 %v2393, %v2393
        %v2490 = vpack.c.bf16 %v2394, %v2394
        %v2491 = vpack.c.bf16 %v2395, %v2395
        %v2492 = vpack.c.bf16 %v2396, %v2396
        %v2493 = vpack.c.bf16 %v2397, %v2397
        %v2494 = vpack.c.bf16 %v2398, %v2398
        %v2495 = vpack.c.bf16 %v2399, %v2399
        %v2496 = vpack.c.bf16 %v2400, %v2400
        %v2497 = vpack.c.bf16 %v2401, %v2401
        %v2498 = vpack.c.bf16 %v2402, %v2402
        %v2499 = vpack.c.bf16 %v2403, %v2403
        %v2500 = vpack.c.bf16 %v2404, %v2404
        %v2501 = vpack.c.bf16 %v2405, %v2405
        %v2502 = vpack.c.bf16 %v2406, %v2406
        %v2503 = vpack.c.bf16 %v2407, %v2407
        %v2504 = vpack.c.bf16 %v2408, %v2408
        %v2505 = vpack.c.bf16 %v2409, %v2409
        %v2506 = vpack.c.bf16 %v2410, %v2410
        %v2507 = vpack.c.bf16 %v2411, %v2411
        %v2508 = vpack.c.bf16 %v2412, %v2412
        %v2509 = vpack.c.bf16 %v2413, %v2413
        %v2510 = vpack.c.bf16 %v2414, %v2414
        %v2511 = vpack.c.bf16 %v2415, %v2415
        %v2512 = vpack.c.bf16 %v2416, %v2416
        %v2513 = vpack.c.bf16 %v2417, %v2417
        %2514 = vxpose.xlu0.c.b16.start [1/8] %v2482, 128
        %2515 = vxpose.xlu0.c.b16.cont [2/8] 0, 128
        %2516 = vxpose.xlu0.c.b16.cont [3/8] 0, 128
        %2517 = vxpose.xlu0.c.b16.cont [4/8] 0, 128
        %2518 = vxpose.xlu0.c.b16.cont [5/8] 0, 128
        %2519 = vxpose.xlu0.c.b16.cont [6/8] 0, 128
        %2520 = vxpose.xlu0.c.b16.cont [7/8] 0, 128
        %2521 = vxpose.xlu0.c.b16.end [8/8] 0, 128
        %v2522 = vpop.trf.xlu0
        %v2523 = vpop.trf.xlu0
        %v2524 = vpop.trf.xlu0
        %v2525 = vpop.trf.xlu0
        %v2526 = vpop.trf.xlu0
        %v2527 = vpop.trf.xlu0
        %v2528 = vpop.trf.xlu0
        %v2529 = vpop.trf.xlu0
        %vm2530 = vcmask 64512
        %v2532 = vsel %vm2530, %v2522, 0
        %v2535 = vsel %vm2530, %v2523, 0
        %v2538 = vsel %vm2530, %v2524, 0
        %v2541 = vsel %vm2530, %v2525, 0
        %v2544 = vsel %vm2530, %v2526, 0
        %v2547 = vsel %vm2530, %v2527, 0
        %v2550 = vsel %vm2530, %v2528, 0
        %v2553 = vsel %vm2530, %v2529, 0
        %vm2555 = vcmask 1043456
        %v2557 = vsel %vm2555, %v669, 0
        %2559 = vmatprep.subr.bf16.mxu0 0
        %2560 = vmatpush1.bf16.msra.mxu0 0
        %2561 = vmatprep.subr.bf16.mxu0 0
        %2562 = vmatpush1.bf16.msra.mxu0 0
        %2563 = vmatprep.subr.bf16.mxu0 0
        %2564 = vmatpush1.bf16.msra.mxu0 0
        %2565 = vmatprep.subr.bf16.mxu0 0
        %2566 = vmatpush1.bf16.msra.mxu0 0
        %2567 = vmatprep.subr.bf16.mxu0 0
        %2568 = vmatpush1.bf16.msra.mxu0 0
        %2569 = vmatprep.subr.bf16.mxu0 0
        %2570 = vmatpush1.bf16.msra.mxu0 0
        %2571 = vmatprep.subr.bf16.mxu0 0
        %2572 = vmatpush1.bf16.msra.mxu0 0
        %2573 = vmatprep.subr.bf16.mxu0 0
        %2574 = vmatpush1.bf16.msra.mxu0 %v2557
        %2575 = vmatprep.subr.bf16.mxu0 0
        %2576 = vmatpush2.bf16.msra.mxu0 0
        %2577 = vmatprep.subr.bf16.mxu0 0
        %2578 = vmatpush2.bf16.msra.mxu0 0
        %2579 = vmatprep.subr.bf16.mxu0 0
        %2580 = vmatpush2.bf16.msra.mxu0 0
        %2581 = vmatprep.subr.bf16.mxu0 0
        %2582 = vmatpush2.bf16.msra.mxu0 0
        %2583 = vmatprep.subr.bf16.mxu0 0
        %2584 = vmatpush2.bf16.msra.mxu0 0
        %2585 = vmatprep.subr.bf16.mxu0 0
        %2586 = vmatpush2.bf16.msra.mxu0 0
        %2587 = vmatprep.subr.bf16.mxu0 0
        %2588 = vmatpush2.bf16.msra.mxu0 0
        %2589 = vmatprep.subr.bf16.mxu0 0
        %2590 = vmatpush2.bf16.msra.mxu0 0
        %2591 = vmatprep.mubr.bf16.mxu0 0
        %2592 = vmatmul.mubr.bf16.gmra.mxu0 %v2532
        %v2593 = vpop.f32.mrf.mxu0
        %v2594 = vadd.f32 0.0, %v2593
        %v2595 = vpop.f32.mrf.mxu0
        %v2596 = vpop.f32.mrf.mxu0
        %v2597 = vadd.f32 0.0, %v2596
        %v2598 = vpop.f32.mrf.mxu0
        %2599 = vmatprep.mubr.bf16.mxu0 0
        %2600 = vmatmul.mubr.bf16.gmra.mxu0 %v2535
        %v2601 = vpop.f32.mrf.mxu0
        %v2602 = vadd.f32 0.0, %v2601
        %v2603 = vpop.f32.mrf.mxu0
        %v2604 = vpop.f32.mrf.mxu0
        %v2605 = vadd.f32 0.0, %v2604
        %v2606 = vpop.f32.mrf.mxu0
        %2607 = vmatprep.mubr.bf16.mxu0 0
        %2608 = vmatmul.mubr.bf16.gmra.mxu0 %v2538
        %v2609 = vpop.f32.mrf.mxu0
        %v2610 = vadd.f32 0.0, %v2609
        %v2611 = vpop.f32.mrf.mxu0
        %v2612 = vpop.f32.mrf.mxu0
        %v2613 = vadd.f32 0.0, %v2612
        %v2614 = vpop.f32.mrf.mxu0
        %2615 = vmatprep.mubr.bf16.mxu0 0
        %2616 = vmatmul.mubr.bf16.gmra.mxu0 %v2541
        %v2617 = vpop.f32.mrf.mxu0
        %v2618 = vadd.f32 0.0, %v2617
        %v2619 = vpop.f32.mrf.mxu0
        %v2620 = vpop.f32.mrf.mxu0
        %v2621 = vadd.f32 0.0, %v2620
        %v2622 = vpop.f32.mrf.mxu0
        %2623 = vmatprep.mubr.bf16.mxu0 0
        %2624 = vmatmul.mubr.bf16.gmra.mxu0 %v2544
        %v2625 = vpop.f32.mrf.mxu0
        %v2626 = vadd.f32 0.0, %v2625
        %v2627 = vpop.f32.mrf.mxu0
        %v2628 = vpop.f32.mrf.mxu0
        %v2629 = vadd.f32 0.0, %v2628
        %v2630 = vpop.f32.mrf.mxu0
        %2631 = vmatprep.mubr.bf16.mxu0 0
        %2632 = vmatmul.mubr.bf16.gmra.mxu0 %v2547
        %v2633 = vpop.f32.mrf.mxu0
        %v2634 = vadd.f32 0.0, %v2633
        %v2635 = vpop.f32.mrf.mxu0
        %v2636 = vpop.f32.mrf.mxu0
        %v2637 = vadd.f32 0.0, %v2636
        %v2638 = vpop.f32.mrf.mxu0
        %2639 = vmatprep.mubr.bf16.mxu0 0
        %2640 = vmatmul.mubr.bf16.gmra.mxu0 %v2550
        %v2641 = vpop.f32.mrf.mxu0
        %v2642 = vadd.f32 0.0, %v2641
        %v2643 = vpop.f32.mrf.mxu0
        %v2644 = vpop.f32.mrf.mxu0
        %v2645 = vadd.f32 0.0, %v2644
        %v2646 = vpop.f32.mrf.mxu0
        %2647 = vmatprep.mubr.bf16.mxu0 0
        %2648 = vmatmul.mubr.bf16.gmra.mxu0 %v2553
        %v2649 = vpop.f32.mrf.mxu0
        %v2650 = vadd.f32 0.0, %v2649
        %v2651 = vpop.f32.mrf.mxu0
        %v2652 = vpop.f32.mrf.mxu0
        %v2653 = vadd.f32 0.0, %v2652
        %v2654 = vpop.f32.mrf.mxu0
        %2655 = vdwg.mxu0
        %v2656 = vpack.c.bf16 %v2597, %v2594
        %v2657 = vpack.c.bf16 %v2605, %v2602
        %v2658 = vpack.c.bf16 %v2613, %v2610
        %v2659 = vpack.c.bf16 %v2621, %v2618
        %v2660 = vpack.c.bf16 %v2629, %v2626
        %v2661 = vpack.c.bf16 %v2637, %v2634
        %v2662 = vpack.c.bf16 %v2645, %v2642
        %v2663 = vpack.c.bf16 %v2653, %v2650
        %v2672 = vunpack.c.l.b16 %v2656
        %v2673 = vunpack.c.h.b16 %v2656
        %v2674 = vunpack.c.l.b16 %v2657
        %v2675 = vunpack.c.h.b16 %v2657
        %v2676 = vunpack.c.l.b16 %v2658
        %v2677 = vunpack.c.h.b16 %v2658
        %v2678 = vunpack.c.l.b16 %v2659
        %v2679 = vunpack.c.h.b16 %v2659
        %v2680 = vunpack.c.l.b16 %v2660
        %v2681 = vunpack.c.h.b16 %v2660
        %v2682 = vunpack.c.l.b16 %v2661
        %v2683 = vunpack.c.h.b16 %v2661
        %v2684 = vunpack.c.l.b16 %v2662
        %v2685 = vunpack.c.h.b16 %v2662
        %v2686 = vunpack.c.l.b16 %v2663
        %v2687 = vunpack.c.h.b16 %v2663
        %v2688 = vpack.c.b16 %v2672, %v2672
        %v2689 = vpack.c.b16 %v2673, %v2673
        %v2690 = vpack.c.b16 %v2674, %v2674
        %v2691 = vpack.c.b16 %v2675, %v2675
        %v2692 = vpack.c.b16 %v2676, %v2676
        %v2693 = vpack.c.b16 %v2677, %v2677
        %v2694 = vpack.c.b16 %v2678, %v2678
        %v2695 = vpack.c.b16 %v2679, %v2679
        %v2696 = vpack.c.b16 %v2680, %v2680
        %v2697 = vpack.c.b16 %v2681, %v2681
        %v2698 = vpack.c.b16 %v2682, %v2682
        %v2699 = vpack.c.b16 %v2683, %v2683
        %v2700 = vpack.c.b16 %v2684, %v2684
        %v2701 = vpack.c.b16 %v2685, %v2685
        %v2702 = vpack.c.b16 %v2686, %v2686
        %v2703 = vpack.c.b16 %v2687, %v2687
        %2720 = vst [vmem:[%s647] sm:$0xf] %v2688
        %2721 = vst [vmem:[%s647 + $0x4] sm:$0xf] %v2689
        %2722 = vst [vmem:[%s647 + $0x8] sm:$0xf] %v2690
        %2723 = vst [vmem:[%s647 + $0xc] sm:$0xf] %v2691
        %2724 = vst [vmem:[%s647 + $0x10] sm:$0xf] %v2692
        %2725 = vst [vmem:[%s647 + $0x14] sm:$0xf] %v2693
        %2726 = vst [vmem:[%s647 + $0x18] sm:$0xf] %v2694
        %2727 = vst [vmem:[%s647 + $0x1c] sm:$0xf] %v2695
        %2728 = vst [vmem:[%s647 + $0x20] sm:$0xf] %v2696
        %2729 = vst [vmem:[%s647 + $0x24] sm:$0xf] %v2697
        %2730 = vst [vmem:[%s647 + $0x28] sm:$0xf] %v2698
        %2731 = vst [vmem:[%s647 + $0x2c] sm:$0xf] %v2699
        %2732 = vst [vmem:[%s647 + $0x30] sm:$0xf] %v2700
        %2733 = vst [vmem:[%s647 + $0x34] sm:$0xf] %v2701
        %2734 = vst [vmem:[%s647 + $0x38] sm:$0xf] %v2702
        %2735 = vst [vmem:[%s647 + $0x3c] sm:$0xf] %v2703
        %2736 = vxpose.xlu0.c.b16.start [1/8] %v2483, 128
        %2737 = vxpose.xlu0.c.b16.cont [2/8] 0, 128
        %2738 = vxpose.xlu0.c.b16.cont [3/8] 0, 128
        %2739 = vxpose.xlu0.c.b16.cont [4/8] 0, 128
        %2740 = vxpose.xlu0.c.b16.cont [5/8] 0, 128
        %2741 = vxpose.xlu0.c.b16.cont [6/8] 0, 128
        %2742 = vxpose.xlu0.c.b16.cont [7/8] 0, 128
        %2743 = vxpose.xlu0.c.b16.end [8/8] 0, 128
        %v2744 = vpop.trf.xlu0
        %v2745 = vpop.trf.xlu0
        %v2746 = vpop.trf.xlu0
        %v2747 = vpop.trf.xlu0
        %v2748 = vpop.trf.xlu0
        %v2749 = vpop.trf.xlu0
        %v2750 = vpop.trf.xlu0
        %v2751 = vpop.trf.xlu0
        %v2753 = vsel %vm2530, %v2744, 0
        %v2756 = vsel %vm2530, %v2745, 0
        %v2759 = vsel %vm2530, %v2746, 0
        %v2762 = vsel %vm2530, %v2747, 0
        %v2765 = vsel %vm2530, %v2748, 0
        %v2768 = vsel %vm2530, %v2749, 0
        %v2771 = vsel %vm2530, %v2750, 0
        %v2774 = vsel %vm2530, %v2751, 0
        %v2777 = vsel %vm2555, %v670, 0
        %2779 = vmatprep.subr.bf16.mxu0 0
        %2780 = vmatpush1.bf16.msra.mxu0 0
        %2781 = vmatprep.subr.bf16.mxu0 0
        %2782 = vmatpush1.bf16.msra.mxu0 0
        %2783 = vmatprep.subr.bf16.mxu0 0
        %2784 = vmatpush1.bf16.msra.mxu0 0
        %2785 = vmatprep.subr.bf16.mxu0 0
        %2786 = vmatpush1.bf16.msra.mxu0 0
        %2787 = vmatprep.subr.bf16.mxu0 0
        %2788 = vmatpush1.bf16.msra.mxu0 0
        %2789 = vmatprep.subr.bf16.mxu0 0
        %2790 = vmatpush1.bf16.msra.mxu0 0
        %2791 = vmatprep.subr.bf16.mxu0 0
        %2792 = vmatpush1.bf16.msra.mxu0 0
        %2793 = vmatprep.subr.bf16.mxu0 0
        %2794 = vmatpush1.bf16.msra.mxu0 %v2777
        %2795 = vmatprep.subr.bf16.mxu0 0
        %2796 = vmatpush2.bf16.msra.mxu0 0
        %2797 = vmatprep.subr.bf16.mxu0 0
        %2798 = vmatpush2.bf16.msra.mxu0 0
        %2799 = vmatprep.subr.bf16.mxu0 0
        %2800 = vmatpush2.bf16.msra.mxu0 0
        %2801 = vmatprep.subr.bf16.mxu0 0
        %2802 = vmatpush2.bf16.msra.mxu0 0
        %2803 = vmatprep.subr.bf16.mxu0 0
        %2804 = vmatpush2.bf16.msra.mxu0 0
        %2805 = vmatprep.subr.bf16.mxu0 0
        %2806 = vmatpush2.bf16.msra.mxu0 0
        %2807 = vmatprep.subr.bf16.mxu0 0
        %2808 = vmatpush2.bf16.msra.mxu0 0
        %2809 = vmatprep.subr.bf16.mxu0 0
        %2810 = vmatpush2.bf16.msra.mxu0 0
        %2811 = vmatprep.mubr.bf16.mxu0 0
        %2812 = vmatmul.mubr.bf16.gmra.mxu0 %v2753
        %v2813 = vpop.f32.mrf.mxu0
        %v2814 = vadd.f32 0.0, %v2813
        %v2815 = vpop.f32.mrf.mxu0
        %v2816 = vpop.f32.mrf.mxu0
        %v2817 = vadd.f32 0.0, %v2816
        %v2818 = vpop.f32.mrf.mxu0
        %2819 = vmatprep.mubr.bf16.mxu0 0
        %2820 = vmatmul.mubr.bf16.gmra.mxu0 %v2756
        %v2821 = vpop.f32.mrf.mxu0
        %v2822 = vadd.f32 0.0, %v2821
        %v2823 = vpop.f32.mrf.mxu0
        %v2824 = vpop.f32.mrf.mxu0
        %v2825 = vadd.f32 0.0, %v2824
        %v2826 = vpop.f32.mrf.mxu0
        %2827 = vmatprep.mubr.bf16.mxu0 0
        %2828 = vmatmul.mubr.bf16.gmra.mxu0 %v2759
        %v2829 = vpop.f32.mrf.mxu0
        %v2830 = vadd.f32 0.0, %v2829
        %v2831 = vpop.f32.mrf.mxu0
        %v2832 = vpop.f32.mrf.mxu0
        %v2833 = vadd.f32 0.0, %v2832
        %v2834 = vpop.f32.mrf.mxu0
        %2835 = vmatprep.mubr.bf16.mxu0 0
        %2836 = vmatmul.mubr.bf16.gmra.mxu0 %v2762
        %v2837 = vpop.f32.mrf.mxu0
        %v2838 = vadd.f32 0.0, %v2837
        %v2839 = vpop.f32.mrf.mxu0
        %v2840 = vpop.f32.mrf.mxu0
        %v2841 = vadd.f32 0.0, %v2840
        %v2842 = vpop.f32.mrf.mxu0
        %2843 = vmatprep.mubr.bf16.mxu0 0
        %2844 = vmatmul.mubr.bf16.gmra.mxu0 %v2765
        %v2845 = vpop.f32.mrf.mxu0
        %v2846 = vadd.f32 0.0, %v2845
        %v2847 = vpop.f32.mrf.mxu0
        %v2848 = vpop.f32.mrf.mxu0
        %v2849 = vadd.f32 0.0, %v2848
        %v2850 = vpop.f32.mrf.mxu0
        %2851 = vmatprep.mubr.bf16.mxu0 0
        %2852 = vmatmul.mubr.bf16.gmra.mxu0 %v2768
        %v2853 = vpop.f32.mrf.mxu0
        %v2854 = vadd.f32 0.0, %v2853
        %v2855 = vpop.f32.mrf.mxu0
        %v2856 = vpop.f32.mrf.mxu0
        %v2857 = vadd.f32 0.0, %v2856
        %v2858 = vpop.f32.mrf.mxu0
        %2859 = vmatprep.mubr.bf16.mxu0 0
        %2860 = vmatmul.mubr.bf16.gmra.mxu0 %v2771
        %v2861 = vpop.f32.mrf.mxu0
        %v2862 = vadd.f32 0.0, %v2861
        %v2863 = vpop.f32.mrf.mxu0
        %v2864 = vpop.f32.mrf.mxu0
        %v2865 = vadd.f32 0.0, %v2864
        %v2866 = vpop.f32.mrf.mxu0
        %2867 = vmatprep.mubr.bf16.mxu0 0
        %2868 = vmatmul.mubr.bf16.gmra.mxu0 %v2774
        %v2869 = vpop.f32.mrf.mxu0
        %v2870 = vadd.f32 0.0, %v2869
        %v2871 = vpop.f32.mrf.mxu0
        %v2872 = vpop.f32.mrf.mxu0
        %v2873 = vadd.f32 0.0, %v2872
        %v2874 = vpop.f32.mrf.mxu0
        %2875 = vdwg.mxu0
        %v2876 = vpack.c.bf16 %v2817, %v2814
        %v2877 = vpack.c.bf16 %v2825, %v2822
        %v2878 = vpack.c.bf16 %v2833, %v2830
        %v2879 = vpack.c.bf16 %v2841, %v2838
        %v2880 = vpack.c.bf16 %v2849, %v2846
        %v2881 = vpack.c.bf16 %v2857, %v2854
        %v2882 = vpack.c.bf16 %v2865, %v2862
        %v2883 = vpack.c.bf16 %v2873, %v2870
        %v2892 = vunpack.c.l.b16 %v2876
        %v2893 = vunpack.c.h.b16 %v2876
        %v2894 = vunpack.c.l.b16 %v2877
        %v2895 = vunpack.c.h.b16 %v2877
        %v2896 = vunpack.c.l.b16 %v2878
        %v2897 = vunpack.c.h.b16 %v2878
        %v2898 = vunpack.c.l.b16 %v2879
        %v2899 = vunpack.c.h.b16 %v2879
        %v2900 = vunpack.c.l.b16 %v2880
        %v2901 = vunpack.c.h.b16 %v2880
        %v2902 = vunpack.c.l.b16 %v2881
        %v2903 = vunpack.c.h.b16 %v2881
        %v2904 = vunpack.c.l.b16 %v2882
        %v2905 = vunpack.c.h.b16 %v2882
        %v2906 = vunpack.c.l.b16 %v2883
        %v2907 = vunpack.c.h.b16 %v2883
        %v2908 = vpack.c.b16 %v2892, %v2892
        %v2909 = vpack.c.b16 %v2893, %v2893
        %v2910 = vpack.c.b16 %v2894, %v2894
        %v2911 = vpack.c.b16 %v2895, %v2895
        %v2912 = vpack.c.b16 %v2896, %v2896
        %v2913 = vpack.c.b16 %v2897, %v2897
        %v2914 = vpack.c.b16 %v2898, %v2898
        %v2915 = vpack.c.b16 %v2899, %v2899
        %v2916 = vpack.c.b16 %v2900, %v2900
        %v2917 = vpack.c.b16 %v2901, %v2901
        %v2918 = vpack.c.b16 %v2902, %v2902
        %v2919 = vpack.c.b16 %v2903, %v2903
        %v2920 = vpack.c.b16 %v2904, %v2904
        %v2921 = vpack.c.b16 %v2905, %v2905
        %v2922 = vpack.c.b16 %v2906, %v2906
        %v2923 = vpack.c.b16 %v2907, %v2907
        %s2940 = scalar_lea.vmem %s647, 64 [#allocation20]
        %2941 = vst [vmem:[%s2940] sm:$0xf] %v2908
        %2942 = vst [vmem:[%s2940 + $0x4] sm:$0xf] %v2909
        %2943 = vst [vmem:[%s2940 + $0x8] sm:$0xf] %v2910
        %2944 = vst [vmem:[%s2940 + $0xc] sm:$0xf] %v2911
        %2945 = vst [vmem:[%s2940 + $0x10] sm:$0xf] %v2912
        %2946 = vst [vmem:[%s2940 + $0x14] sm:$0xf] %v2913
        %2947 = vst [vmem:[%s2940 + $0x18] sm:$0xf] %v2914
        %2948 = vst [vmem:[%s2940 + $0x1c] sm:$0xf] %v2915
        %2949 = vst [vmem:[%s2940 + $0x20] sm:$0xf] %v2916
        %2950 = vst [vmem:[%s2940 + $0x24] sm:$0xf] %v2917
        %2951 = vst [vmem:[%s2940 + $0x28] sm:$0xf] %v2918
        %2952 = vst [vmem:[%s2940 + $0x2c] sm:$0xf] %v2919
        %2953 = vst [vmem:[%s2940 + $0x30] sm:$0xf] %v2920
        %2954 = vst [vmem:[%s2940 + $0x34] sm:$0xf] %v2921
        %2955 = vst [vmem:[%s2940 + $0x38] sm:$0xf] %v2922
        %2956 = vst [vmem:[%s2940 + $0x3c] sm:$0xf] %v2923
        %2957 = vxpose.xlu0.c.b16.start [1/8] %v2484, 128
        %2958 = vxpose.xlu0.c.b16.cont [2/8] 0, 128
        %2959 = vxpose.xlu0.c.b16.cont [3/8] 0, 128
        %2960 = vxpose.xlu0.c.b16.cont [4/8] 0, 128
        %2961 = vxpose.xlu0.c.b16.cont [5/8] 0, 128
        %2962 = vxpose.xlu0.c.b16.cont [6/8] 0, 128
        %2963 = vxpose.xlu0.c.b16.cont [7/8] 0, 128
        %2964 = vxpose.xlu0.c.b16.end [8/8] 0, 128
        %v2965 = vpop.trf.xlu0
        %v2966 = vpop.trf.xlu0
        %v2967 = vpop.trf.xlu0
        %v2968 = vpop.trf.xlu0
        %v2969 = vpop.trf.xlu0
        %v2970 = vpop.trf.xlu0
        %v2971 = vpop.trf.xlu0
        %v2972 = vpop.trf.xlu0
        %v2974 = vsel %vm2530, %v2965, 0
        %v2977 = vsel %vm2530, %v2966, 0
        %v2980 = vsel %vm2530, %v2967, 0
        %v2983 = vsel %vm2530, %v2968, 0
        %v2986 = vsel %vm2530, %v2969, 0
        %v2989 = vsel %vm2530, %v2970, 0
        %v2992 = vsel %vm2530, %v2971, 0
        %v2995 = vsel %vm2530, %v2972, 0
        %v2998 = vsel %vm2555, %v671, 0
        %3000 = vmatprep.subr.bf16.mxu0 0
        %3001 = vmatpush1.bf16.msra.mxu0 0
        %3002 = vmatprep.subr.bf16.mxu0 0
        %3003 = vmatpush1.bf16.msra.mxu0 0
        %3004 = vmatprep.subr.bf16.mxu0 0
        %3005 = vmatpush1.bf16.msra.mxu0 0
        %3006 = vmatprep.subr.bf16.mxu0 0
        %3007 = vmatpush1.bf16.msra.mxu0 0
        %3008 = vmatprep.subr.bf16.mxu0 0
        %3009 = vmatpush1.bf16.msra.mxu0 0
        %3010 = vmatprep.subr.bf16.mxu0 0
        %3011 = vmatpush1.bf16.msra.mxu0 0
        %3012 = vmatprep.subr.bf16.mxu0 0
        %3013 = vmatpush1.bf16.msra.mxu0 0
        %3014 = vmatprep.subr.bf16.mxu0 0
        %3015 = vmatpush1.bf16.msra.mxu0 %v2998
        %3016 = vmatprep.subr.bf16.mxu0 0
        %3017 = vmatpush2.bf16.msra.mxu0 0
        %3018 = vmatprep.subr.bf16.mxu0 0
        %3019 = vmatpush2.bf16.msra.mxu0 0
        %3020 = vmatprep.subr.bf16.mxu0 0
        %3021 = vmatpush2.bf16.msra.mxu0 0
        %3022 = vmatprep.subr.bf16.mxu0 0
        %3023 = vmatpush2.bf16.msra.mxu0 0
        %3024 = vmatprep.subr.bf16.mxu0 0
        %3025 = vmatpush2.bf16.msra.mxu0 0
        %3026 = vmatprep.subr.bf16.mxu0 0
        %3027 = vmatpush2.bf16.msra.mxu0 0
        %3028 = vmatprep.subr.bf16.mxu0 0
        %3029 = vmatpush2.bf16.msra.mxu0 0
        %3030 = vmatprep.subr.bf16.mxu0 0
        %3031 = vmatpush2.bf16.msra.mxu0 0
        %3032 = vmatprep.mubr.bf16.mxu0 0
        %3033 = vmatmul.mubr.bf16.gmra.mxu0 %v2974
        %v3034 = vpop.f32.mrf.mxu0
        %v3035 = vadd.f32 0.0, %v3034
        %v3036 = vpop.f32.mrf.mxu0
        %v3037 = vpop.f32.mrf.mxu0
        %v3038 = vadd.f32 0.0, %v3037
        %v3039 = vpop.f32.mrf.mxu0
        %3040 = vmatprep.mubr.bf16.mxu0 0
        %3041 = vmatmul.mubr.bf16.gmra.mxu0 %v2977
        %v3042 = vpop.f32.mrf.mxu0
        %v3043 = vadd.f32 0.0, %v3042
        %v3044 = vpop.f32.mrf.mxu0
        %v3045 = vpop.f32.mrf.mxu0
        %v3046 = vadd.f32 0.0, %v3045
        %v3047 = vpop.f32.mrf.mxu0
        %3048 = vmatprep.mubr.bf16.mxu0 0
        %3049 = vmatmul.mubr.bf16.gmra.mxu0 %v2980
        %v3050 = vpop.f32.mrf.mxu0
        %v3051 = vadd.f32 0.0, %v3050
        %v3052 = vpop.f32.mrf.mxu0
        %v3053 = vpop.f32.mrf.mxu0
        %v3054 = vadd.f32 0.0, %v3053
        %v3055 = vpop.f32.mrf.mxu0
        %3056 = vmatprep.mubr.bf16.mxu0 0
        %3057 = vmatmul.mubr.bf16.gmra.mxu0 %v2983
        %v3058 = vpop.f32.mrf.mxu0
        %v3059 = vadd.f32 0.0, %v3058
        %v3060 = vpop.f32.mrf.mxu0
        %v3061 = vpop.f32.mrf.mxu0
        %v3062 = vadd.f32 0.0, %v3061
        %v3063 = vpop.f32.mrf.mxu0
        %3064 = vmatprep.mubr.bf16.mxu0 0
        %3065 = vmatmul.mubr.bf16.gmra.mxu0 %v2986
        %v3066 = vpop.f32.mrf.mxu0
        %v3067 = vadd.f32 0.0, %v3066
        %v3068 = vpop.f32.mrf.mxu0
        %v3069 = vpop.f32.mrf.mxu0
        %v3070 = vadd.f32 0.0, %v3069
        %v3071 = vpop.f32.mrf.mxu0
        %3072 = vmatprep.mubr.bf16.mxu0 0
        %3073 = vmatmul.mubr.bf16.gmra.mxu0 %v2989
        %v3074 = vpop.f32.mrf.mxu0
        %v3075 = vadd.f32 0.0, %v3074
        %v3076 = vpop.f32.mrf.mxu0
        %v3077 = vpop.f32.mrf.mxu0
        %v3078 = vadd.f32 0.0, %v3077
        %v3079 = vpop.f32.mrf.mxu0
        %3080 = vmatprep.mubr.bf16.mxu0 0
        %3081 = vmatmul.mubr.bf16.gmra.mxu0 %v2992
        %v3082 = vpop.f32.mrf.mxu0
        %v3083 = vadd.f32 0.0, %v3082
        %v3084 = vpop.f32.mrf.mxu0
        %v3085 = vpop.f32.mrf.mxu0
        %v3086 = vadd.f32 0.0, %v3085
        %v3087 = vpop.f32.mrf.mxu0
        %3088 = vmatprep.mubr.bf16.mxu0 0
        %3089 = vmatmul.mubr.bf16.gmra.mxu0 %v2995
        %v3090 = vpop.f32.mrf.mxu0
        %v3091 = vadd.f32 0.0, %v3090
        %v3092 = vpop.f32.mrf.mxu0
        %v3093 = vpop.f32.mrf.mxu0
        %v3094 = vadd.f32 0.0, %v3093
        %v3095 = vpop.f32.mrf.mxu0
        %3096 = vdwg.mxu0
        %v3097 = vpack.c.bf16 %v3038, %v3035
        %v3098 = vpack.c.bf16 %v3046, %v3043
        %v3099 = vpack.c.bf16 %v3054, %v3051
        %v3100 = vpack.c.bf16 %v3062, %v3059
        %v3101 = vpack.c.bf16 %v3070, %v3067
        %v3102 = vpack.c.bf16 %v3078, %v3075
        %v3103 = vpack.c.bf16 %v3086, %v3083
        %v3104 = vpack.c.bf16 %v3094, %v3091
        %v3113 = vunpack.c.l.b16 %v3097
        %v3114 = vunpack.c.h.b16 %v3097
        %v3115 = vunpack.c.l.b16 %v3098
        %v3116 = vunpack.c.h.b16 %v3098
        %v3117 = vunpack.c.l.b16 %v3099
        %v3118 = vunpack.c.h.b16 %v3099
        %v3119 = vunpack.c.l.b16 %v3100
        %v3120 = vunpack.c.h.b16 %v3100
        %v3121 = vunpack.c.l.b16 %v3101
        %v3122 = vunpack.c.h.b16 %v3101
        %v3123 = vunpack.c.l.b16 %v3102
        %v3124 = vunpack.c.h.b16 %v3102
        %v3125 = vunpack.c.l.b16 %v3103
        %v3126 = vunpack.c.h.b16 %v3103
        %v3127 = vunpack.c.l.b16 %v3104
        %v3128 = vunpack.c.h.b16 %v3104
        %v3129 = vpack.c.b16 %v3113, %v3113
        %v3130 = vpack.c.b16 %v3114, %v3114
        %v3131 = vpack.c.b16 %v3115, %v3115
        %v3132 = vpack.c.b16 %v3116, %v3116
        %v3133 = vpack.c.b16 %v3117, %v3117
        %v3134 = vpack.c.b16 %v3118, %v3118
        %v3135 = vpack.c.b16 %v3119, %v3119
        %v3136 = vpack.c.b16 %v3120, %v3120
        %v3137 = vpack.c.b16 %v3121, %v3121
        %v3138 = vpack.c.b16 %v3122, %v3122
        %v3139 = vpack.c.b16 %v3123, %v3123
        %v3140 = vpack.c.b16 %v3124, %v3124
        %v3141 = vpack.c.b16 %v3125, %v3125
        %v3142 = vpack.c.b16 %v3126, %v3126
        %v3143 = vpack.c.b16 %v3127, %v3127
        %v3144 = vpack.c.b16 %v3128, %v3128
        %s3161 = scalar_lea.vmem %s647, 128 [#allocation20]
        %3162 = vst [vmem:[%s3161] sm:$0xf] %v3129
        %3163 = vst [vmem:[%s3161 + $0x4] sm:$0xf] %v3130
        %3164 = vst [vmem:[%s3161 + $0x8] sm:$0xf] %v3131
        %3165 = vst [vmem:[%s3161 + $0xc] sm:$0xf] %v3132
        %3166 = vst [vmem:[%s3161 + $0x10] sm:$0xf] %v3133
        %3167 = vst [vmem:[%s3161 + $0x14] sm:$0xf] %v3134
        %3168 = vst [vmem:[%s3161 + $0x18] sm:$0xf] %v3135
        %3169 = vst [vmem:[%s3161 + $0x1c] sm:$0xf] %v3136
        %3170 = vst [vmem:[%s3161 + $0x20] sm:$0xf] %v3137
        %3171 = vst [vmem:[%s3161 + $0x24] sm:$0xf] %v3138
        %3172 = vst [vmem:[%s3161 + $0x28] sm:$0xf] %v3139
        %3173 = vst [vmem:[%s3161 + $0x2c] sm:$0xf] %v3140
        %3174 = vst [vmem:[%s3161 + $0x30] sm:$0xf] %v3141
        %3175 = vst [vmem:[%s3161 + $0x34] sm:$0xf] %v3142
        %3176 = vst [vmem:[%s3161 + $0x38] sm:$0xf] %v3143
        %3177 = vst [vmem:[%s3161 + $0x3c] sm:$0xf] %v3144
        %3178 = vxpose.xlu0.c.b16.start [1/8] %v2485, 128
        %3179 = vxpose.xlu0.c.b16.cont [2/8] 0, 128
        %3180 = vxpose.xlu0.c.b16.cont [3/8] 0, 128
        %3181 = vxpose.xlu0.c.b16.cont [4/8] 0, 128
        %3182 = vxpose.xlu0.c.b16.cont [5/8] 0, 128
        %3183 = vxpose.xlu0.c.b16.cont [6/8] 0, 128
        %3184 = vxpose.xlu0.c.b16.cont [7/8] 0, 128
        %3185 = vxpose.xlu0.c.b16.end [8/8] 0, 128
        %v3186 = vpop.trf.xlu0
        %v3187 = vpop.trf.xlu0
        %v3188 = vpop.trf.xlu0
        %v3189 = vpop.trf.xlu0
        %v3190 = vpop.trf.xlu0
        %v3191 = vpop.trf.xlu0
        %v3192 = vpop.trf.xlu0
        %v3193 = vpop.trf.xlu0
        %v3195 = vsel %vm2530, %v3186, 0
        %v3198 = vsel %vm2530, %v3187, 0
        %v3201 = vsel %vm2530, %v3188, 0
        %v3204 = vsel %vm2530, %v3189, 0
        %v3207 = vsel %vm2530, %v3190, 0
        %v3210 = vsel %vm2530, %v3191, 0
        %v3213 = vsel %vm2530, %v3192, 0
        %v3216 = vsel %vm2530, %v3193, 0
        %v3219 = vsel %vm2555, %v672, 0
        %3221 = vmatprep.subr.bf16.mxu0 0
        %3222 = vmatpush1.bf16.msra.mxu0 0
        %3223 = vmatprep.subr.bf16.mxu0 0
        %3224 = vmatpush1.bf16.msra.mxu0 0
        %3225 = vmatprep.subr.bf16.mxu0 0
        %3226 = vmatpush1.bf16.msra.mxu0 0
        %3227 = vmatprep.subr.bf16.mxu0 0
        %3228 = vmatpush1.bf16.msra.mxu0 0
        %3229 = vmatprep.subr.bf16.mxu0 0
        %3230 = vmatpush1.bf16.msra.mxu0 0
        %3231 = vmatprep.subr.bf16.mxu0 0
        %3232 = vmatpush1.bf16.msra.mxu0 0
        %3233 = vmatprep.subr.bf16.mxu0 0
        %3234 = vmatpush1.bf16.msra.mxu0 0
        %3235 = vmatprep.subr.bf16.mxu0 0
        %3236 = vmatpush1.bf16.msra.mxu0 %v3219
        %3237 = vmatprep.subr.bf16.mxu0 0
        %3238 = vmatpush2.bf16.msra.mxu0 0
        %3239 = vmatprep.subr.bf16.mxu0 0
        %3240 = vmatpush2.bf16.msra.mxu0 0
        %3241 = vmatprep.subr.bf16.mxu0 0
        %3242 = vmatpush2.bf16.msra.mxu0 0
        %3243 = vmatprep.subr.bf16.mxu0 0
        %3244 = vmatpush2.bf16.msra.mxu0 0
        %3245 = vmatprep.subr.bf16.mxu0 0
        %3246 = vmatpush2.bf16.msra.mxu0 0
        %3247 = vmatprep.subr.bf16.mxu0 0
        %3248 = vmatpush2.bf16.msra.mxu0 0
        %3249 = vmatprep.subr.bf16.mxu0 0
        %3250 = vmatpush2.bf16.msra.mxu0 0
        %3251 = vmatprep.subr.bf16.mxu0 0
        %3252 = vmatpush2.bf16.msra.mxu0 0
        %3253 = vmatprep.mubr.bf16.mxu0 0
        %3254 = vmatmul.mubr.bf16.gmra.mxu0 %v3195
        %v3255 = vpop.f32.mrf.mxu0
        %v3256 = vadd.f32 0.0, %v3255
        %v3257 = vpop.f32.mrf.mxu0
        %v3258 = vpop.f32.mrf.mxu0
        %v3259 = vadd.f32 0.0, %v3258
        %v3260 = vpop.f32.mrf.mxu0
        %3261 = vmatprep.mubr.bf16.mxu0 0
        %3262 = vmatmul.mubr.bf16.gmra.mxu0 %v3198
        %v3263 = vpop.f32.mrf.mxu0
        %v3264 = vadd.f32 0.0, %v3263
        %v3265 = vpop.f32.mrf.mxu0
        %v3266 = vpop.f32.mrf.mxu0
        %v3267 = vadd.f32 0.0, %v3266
        %v3268 = vpop.f32.mrf.mxu0
        %3269 = vmatprep.mubr.bf16.mxu0 0
        %3270 = vmatmul.mubr.bf16.gmra.mxu0 %v3201
        %v3271 = vpop.f32.mrf.mxu0
        %v3272 = vadd.f32 0.0, %v3271
        %v3273 = vpop.f32.mrf.mxu0
        %v3274 = vpop.f32.mrf.mxu0
        %v3275 = vadd.f32 0.0, %v3274
        %v3276 = vpop.f32.mrf.mxu0
        %3277 = vmatprep.mubr.bf16.mxu0 0
        %3278 = vmatmul.mubr.bf16.gmra.mxu0 %v3204
        %v3279 = vpop.f32.mrf.mxu0
        %v3280 = vadd.f32 0.0, %v3279
        %v3281 = vpop.f32.mrf.mxu0
        %v3282 = vpop.f32.mrf.mxu0
        %v3283 = vadd.f32 0.0, %v3282
        %v3284 = vpop.f32.mrf.mxu0
        %3285 = vmatprep.mubr.bf16.mxu0 0
        %3286 = vmatmul.mubr.bf16.gmra.mxu0 %v3207
        %v3287 = vpop.f32.mrf.mxu0
        %v3288 = vadd.f32 0.0, %v3287
        %v3289 = vpop.f32.mrf.mxu0
        %v3290 = vpop.f32.mrf.mxu0
        %v3291 = vadd.f32 0.0, %v3290
        %v3292 = vpop.f32.mrf.mxu0
        %3293 = vmatprep.mubr.bf16.mxu0 0
        %3294 = vmatmul.mubr.bf16.gmra.mxu0 %v3210
        %v3295 = vpop.f32.mrf.mxu0
        %v3296 = vadd.f32 0.0, %v3295
        %v3297 = vpop.f32.mrf.mxu0
        %v3298 = vpop.f32.mrf.mxu0
        %v3299 = vadd.f32 0.0, %v3298
        %v3300 = vpop.f32.mrf.mxu0
        %3301 = vmatprep.mubr.bf16.mxu0 0
        %3302 = vmatmul.mubr.bf16.gmra.mxu0 %v3213
        %v3303 = vpop.f32.mrf.mxu0
        %v3304 = vadd.f32 0.0, %v3303
        %v3305 = vpop.f32.mrf.mxu0
        %v3306 = vpop.f32.mrf.mxu0
        %v3307 = vadd.f32 0.0, %v3306
        %v3308 = vpop.f32.mrf.mxu0
        %3309 = vmatprep.mubr.bf16.mxu0 0
        %3310 = vmatmul.mubr.bf16.gmra.mxu0 %v3216
        %v3311 = vpop.f32.mrf.mxu0
        %v3312 = vadd.f32 0.0, %v3311
        %v3313 = vpop.f32.mrf.mxu0
        %v3314 = vpop.f32.mrf.mxu0
        %v3315 = vadd.f32 0.0, %v3314
        %v3316 = vpop.f32.mrf.mxu0
        %3317 = vdwg.mxu0
        %v3318 = vpack.c.bf16 %v3259, %v3256
        %v3319 = vpack.c.bf16 %v3267, %v3264
        %v3320 = vpack.c.bf16 %v3275, %v3272
        %v3321 = vpack.c.bf16 %v3283, %v3280
        %v3322 = vpack.c.bf16 %v3291, %v3288
        %v3323 = vpack.c.bf16 %v3299, %v3296
        %v3324 = vpack.c.bf16 %v3307, %v3304
        %v3325 = vpack.c.bf16 %v3315, %v3312
        %v3334 = vunpack.c.l.b16 %v3318
        %v3335 = vunpack.c.h.b16 %v3318
        %v3336 = vunpack.c.l.b16 %v3319
        %v3337 = vunpack.c.h.b16 %v3319
        %v3338 = vunpack.c.l.b16 %v3320
        %v3339 = vunpack.c.h.b16 %v3320
        %v3340 = vunpack.c.l.b16 %v3321
        %v3341 = vunpack.c.h.b16 %v3321
        %v3342 = vunpack.c.l.b16 %v3322
        %v3343 = vunpack.c.h.b16 %v3322
        %v3344 = vunpack.c.l.b16 %v3323
        %v3345 = vunpack.c.h.b16 %v3323
        %v3346 = vunpack.c.l.b16 %v3324
        %v3347 = vunpack.c.h.b16 %v3324
        %v3348 = vunpack.c.l.b16 %v3325
        %v3349 = vunpack.c.h.b16 %v3325
        %v3350 = vpack.c.b16 %v3334, %v3334
        %v3351 = vpack.c.b16 %v3335, %v3335
        %v3352 = vpack.c.b16 %v3336, %v3336
        %v3353 = vpack.c.b16 %v3337, %v3337
        %v3354 = vpack.c.b16 %v3338, %v3338
        %v3355 = vpack.c.b16 %v3339, %v3339
        %v3356 = vpack.c.b16 %v3340, %v3340
        %v3357 = vpack.c.b16 %v3341, %v3341
        %v3358 = vpack.c.b16 %v3342, %v3342
        %v3359 = vpack.c.b16 %v3343, %v3343
        %v3360 = vpack.c.b16 %v3344, %v3344
        %v3361 = vpack.c.b16 %v3345, %v3345
        %v3362 = vpack.c.b16 %v3346, %v3346
        %v3363 = vpack.c.b16 %v3347, %v3347
        %v3364 = vpack.c.b16 %v3348, %v3348
        %v3365 = vpack.c.b16 %v3349, %v3349
        %s3382 = scalar_lea.vmem %s647, 192 [#allocation20]
        %3383 = vst [vmem:[%s3382] sm:$0xf] %v3350
        %3384 = vst [vmem:[%s3382 + $0x4] sm:$0xf] %v3351
        %3385 = vst [vmem:[%s3382 + $0x8] sm:$0xf] %v3352
        %3386 = vst [vmem:[%s3382 + $0xc] sm:$0xf] %v3353
        %3387 = vst [vmem:[%s3382 + $0x10] sm:$0xf] %v3354
        %3388 = vst [vmem:[%s3382 + $0x14] sm:$0xf] %v3355
        %3389 = vst [vmem:[%s3382 + $0x18] sm:$0xf] %v3356
        %3390 = vst [vmem:[%s3382 + $0x1c] sm:$0xf] %v3357
        %3391 = vst [vmem:[%s3382 + $0x20] sm:$0xf] %v3358
        %3392 = vst [vmem:[%s3382 + $0x24] sm:$0xf] %v3359
        %3393 = vst [vmem:[%s3382 + $0x28] sm:$0xf] %v3360
        %3394 = vst [vmem:[%s3382 + $0x2c] sm:$0xf] %v3361
        %3395 = vst [vmem:[%s3382 + $0x30] sm:$0xf] %v3362
        %3396 = vst [vmem:[%s3382 + $0x34] sm:$0xf] %v3363
        %3397 = vst [vmem:[%s3382 + $0x38] sm:$0xf] %v3364
        %3398 = vst [vmem:[%s3382 + $0x3c] sm:$0xf] %v3365
        %3399 = vxpose.xlu0.c.b16.start [1/8] %v2486, 128
        %3400 = vxpose.xlu0.c.b16.cont [2/8] 0, 128
        %3401 = vxpose.xlu0.c.b16.cont [3/8] 0, 128
        %3402 = vxpose.xlu0.c.b16.cont [4/8] 0, 128
        %3403 = vxpose.xlu0.c.b16.cont [5/8] 0, 128
        %3404 = vxpose.xlu0.c.b16.cont [6/8] 0, 128
        %3405 = vxpose.xlu0.c.b16.cont [7/8] 0, 128
        %3406 = vxpose.xlu0.c.b16.end [8/8] 0, 128
        %v3407 = vpop.trf.xlu0
        %v3408 = vpop.trf.xlu0
        %v3409 = vpop.trf.xlu0
        %v3410 = vpop.trf.xlu0
        %v3411 = vpop.trf.xlu0
        %v3412 = vpop.trf.xlu0
        %v3413 = vpop.trf.xlu0
        %v3414 = vpop.trf.xlu0
        %v3416 = vsel %vm2530, %v3407, 0
        %v3419 = vsel %vm2530, %v3408, 0
        %v3422 = vsel %vm2530, %v3409, 0
        %v3425 = vsel %vm2530, %v3410, 0
        %v3428 = vsel %vm2530, %v3411, 0
        %v3431 = vsel %vm2530, %v3412, 0
        %v3434 = vsel %vm2530, %v3413, 0
        %v3437 = vsel %vm2530, %v3414, 0
        %v3440 = vsel %vm2555, %v673, 0
        %3442 = vmatprep.subr.bf16.mxu0 0
        %3443 = vmatpush1.bf16.msra.mxu0 0
        %3444 = vmatprep.subr.bf16.mxu0 0
        %3445 = vmatpush1.bf16.msra.mxu0 0
        %3446 = vmatprep.subr.bf16.mxu0 0
        %3447 = vmatpush1.bf16.msra.mxu0 0
        %3448 = vmatprep.subr.bf16.mxu0 0
        %3449 = vmatpush1.bf16.msra.mxu0 0
        %3450 = vmatprep.subr.bf16.mxu0 0
        %3451 = vmatpush1.bf16.msra.mxu0 0
        %3452 = vmatprep.subr.bf16.mxu0 0
        %3453 = vmatpush1.bf16.msra.mxu0 0
        %3454 = vmatprep.subr.bf16.mxu0 0
        %3455 = vmatpush1.bf16.msra.mxu0 0
        %3456 = vmatprep.subr.bf16.mxu0 0
        %3457 = vmatpush1.bf16.msra.mxu0 %v3440
        %3458 = vmatprep.subr.bf16.mxu0 0
        %3459 = vmatpush2.bf16.msra.mxu0 0
        %3460 = vmatprep.subr.bf16.mxu0 0
        %3461 = vmatpush2.bf16.msra.mxu0 0
        %3462 = vmatprep.subr.bf16.mxu0 0
        %3463 = vmatpush2.bf16.msra.mxu0 0
        %3464 = vmatprep.subr.bf16.mxu0 0
        %3465 = vmatpush2.bf16.msra.mxu0 0
        %3466 = vmatprep.subr.bf16.mxu0 0
        %3467 = vmatpush2.bf16.msra.mxu0 0
        %3468 = vmatprep.subr.bf16.mxu0 0
        %3469 = vmatpush2.bf16.msra.mxu0 0
        %3470 = vmatprep.subr.bf16.mxu0 0
        %3471 = vmatpush2.bf16.msra.mxu0 0
        %3472 = vmatprep.subr.bf16.mxu0 0
        %3473 = vmatpush2.bf16.msra.mxu0 0
        %3474 = vmatprep.mubr.bf16.mxu0 0
        %3475 = vmatmul.mubr.bf16.gmra.mxu0 %v3416
        %v3476 = vpop.f32.mrf.mxu0
        %v3477 = vadd.f32 0.0, %v3476
        %v3478 = vpop.f32.mrf.mxu0
        %v3479 = vpop.f32.mrf.mxu0
        %v3480 = vadd.f32 0.0, %v3479
        %v3481 = vpop.f32.mrf.mxu0
        %3482 = vmatprep.mubr.bf16.mxu0 0
        %3483 = vmatmul.mubr.bf16.gmra.mxu0 %v3419
        %v3484 = vpop.f32.mrf.mxu0
        %v3485 = vadd.f32 0.0, %v3484
        %v3486 = vpop.f32.mrf.mxu0
        %v3487 = vpop.f32.mrf.mxu0
        %v3488 = vadd.f32 0.0, %v3487
        %v3489 = vpop.f32.mrf.mxu0
        %3490 = vmatprep.mubr.bf16.mxu0 0
        %3491 = vmatmul.mubr.bf16.gmra.mxu0 %v3422
        %v3492 = vpop.f32.mrf.mxu0
        %v3493 = vadd.f32 0.0, %v3492
        %v3494 = vpop.f32.mrf.mxu0
        %v3495 = vpop.f32.mrf.mxu0
        %v3496 = vadd.f32 0.0, %v3495
        %v3497 = vpop.f32.mrf.mxu0
        %3498 = vmatprep.mubr.bf16.mxu0 0
        %3499 = vmatmul.mubr.bf16.gmra.mxu0 %v3425
        %v3500 = vpop.f32.mrf.mxu0
        %v3501 = vadd.f32 0.0, %v3500
        %v3502 = vpop.f32.mrf.mxu0
        %v3503 = vpop.f32.mrf.mxu0
        %v3504 = vadd.f32 0.0, %v3503
        %v3505 = vpop.f32.mrf.mxu0
        %3506 = vmatprep.mubr.bf16.mxu0 0
        %3507 = vmatmul.mubr.bf16.gmra.mxu0 %v3428
        %v3508 = vpop.f32.mrf.mxu0
        %v3509 = vadd.f32 0.0, %v3508
        %v3510 = vpop.f32.mrf.mxu0
        %v3511 = vpop.f32.mrf.mxu0
        %v3512 = vadd.f32 0.0, %v3511
        %v3513 = vpop.f32.mrf.mxu0
        %3514 = vmatprep.mubr.bf16.mxu0 0
        %3515 = vmatmul.mubr.bf16.gmra.mxu0 %v3431
        %v3516 = vpop.f32.mrf.mxu0
        %v3517 = vadd.f32 0.0, %v3516
        %v3518 = vpop.f32.mrf.mxu0
        %v3519 = vpop.f32.mrf.mxu0
        %v3520 = vadd.f32 0.0, %v3519
        %v3521 = vpop.f32.mrf.mxu0
        %3522 = vmatprep.mubr.bf16.mxu0 0
        %3523 = vmatmul.mubr.bf16.gmra.mxu0 %v3434
        %v3524 = vpop.f32.mrf.mxu0
        %v3525 = vadd.f32 0.0, %v3524
        %v3526 = vpop.f32.mrf.mxu0
        %v3527 = vpop.f32.mrf.mxu0
        %v3528 = vadd.f32 0.0, %v3527
        %v3529 = vpop.f32.mrf.mxu0
        %3530 = vmatprep.mubr.bf16.mxu0 0
        %3531 = vmatmul.mubr.bf16.gmra.mxu0 %v3437
        %v3532 = vpop.f32.mrf.mxu0
        %v3533 = vadd.f32 0.0, %v3532
        %v3534 = vpop.f32.mrf.mxu0
        %v3535 = vpop.f32.mrf.mxu0
        %v3536 = vadd.f32 0.0, %v3535
        %v3537 = vpop.f32.mrf.mxu0
        %3538 = vdwg.mxu0
        %v3539 = vpack.c.bf16 %v3480, %v3477
        %v3540 = vpack.c.bf16 %v3488, %v3485
        %v3541 = vpack.c.bf16 %v3496, %v3493
        %v3542 = vpack.c.bf16 %v3504, %v3501
        %v3543 = vpack.c.bf16 %v3512, %v3509
        %v3544 = vpack.c.bf16 %v3520, %v3517
        %v3545 = vpack.c.bf16 %v3528, %v3525
        %v3546 = vpack.c.bf16 %v3536, %v3533
        %v3555 = vunpack.c.l.b16 %v3539
        %v3556 = vunpack.c.h.b16 %v3539
        %v3557 = vunpack.c.l.b16 %v3540
        %v3558 = vunpack.c.h.b16 %v3540
        %v3559 = vunpack.c.l.b16 %v3541
        %v3560 = vunpack.c.h.b16 %v3541
        %v3561 = vunpack.c.l.b16 %v3542
        %v3562 = vunpack.c.h.b16 %v3542
        %v3563 = vunpack.c.l.b16 %v3543
        %v3564 = vunpack.c.h.b16 %v3543
        %v3565 = vunpack.c.l.b16 %v3544
        %v3566 = vunpack.c.h.b16 %v3544
        %v3567 = vunpack.c.l.b16 %v3545
        %v3568 = vunpack.c.h.b16 %v3545
        %v3569 = vunpack.c.l.b16 %v3546
        %v3570 = vunpack.c.h.b16 %v3546
        %v3571 = vpack.c.b16 %v3555, %v3555
        %v3572 = vpack.c.b16 %v3556, %v3556
        %v3573 = vpack.c.b16 %v3557, %v3557
        %v3574 = vpack.c.b16 %v3558, %v3558
        %v3575 = vpack.c.b16 %v3559, %v3559
        %v3576 = vpack.c.b16 %v3560, %v3560
        %v3577 = vpack.c.b16 %v3561, %v3561
        %v3578 = vpack.c.b16 %v3562, %v3562
        %v3579 = vpack.c.b16 %v3563, %v3563
        %v3580 = vpack.c.b16 %v3564, %v3564
        %v3581 = vpack.c.b16 %v3565, %v3565
        %v3582 = vpack.c.b16 %v3566, %v3566
        %v3583 = vpack.c.b16 %v3567, %v3567
        %v3584 = vpack.c.b16 %v3568, %v3568
        %v3585 = vpack.c.b16 %v3569, %v3569
        %v3586 = vpack.c.b16 %v3570, %v3570
        %s3603 = scalar_lea.vmem %s647, 256 [#allocation20]
        %3604 = vst [vmem:[%s3603] sm:$0xf] %v3571
        %3605 = vst [vmem:[%s3603 + $0x4] sm:$0xf] %v3572
        %3606 = vst [vmem:[%s3603 + $0x8] sm:$0xf] %v3573
        %3607 = vst [vmem:[%s3603 + $0xc] sm:$0xf] %v3574
        %3608 = vst [vmem:[%s3603 + $0x10] sm:$0xf] %v3575
        %3609 = vst [vmem:[%s3603 + $0x14] sm:$0xf] %v3576
        %3610 = vst [vmem:[%s3603 + $0x18] sm:$0xf] %v3577
        %3611 = vst [vmem:[%s3603 + $0x1c] sm:$0xf] %v3578
        %3612 = vst [vmem:[%s3603 + $0x20] sm:$0xf] %v3579
        %3613 = vst [vmem:[%s3603 + $0x24] sm:$0xf] %v3580
        %3614 = vst [vmem:[%s3603 + $0x28] sm:$0xf] %v3581
        %3615 = vst [vmem:[%s3603 + $0x2c] sm:$0xf] %v3582
        %3616 = vst [vmem:[%s3603 + $0x30] sm:$0xf] %v3583
        %3617 = vst [vmem:[%s3603 + $0x34] sm:$0xf] %v3584
        %3618 = vst [vmem:[%s3603 + $0x38] sm:$0xf] %v3585
        %3619 = vst [vmem:[%s3603 + $0x3c] sm:$0xf] %v3586
        %3620 = vxpose.xlu0.c.b16.start [1/8] %v2487, 128
        %3621 = vxpose.xlu0.c.b16.cont [2/8] 0, 128
        %3622 = vxpose.xlu0.c.b16.cont [3/8] 0, 128
        %3623 = vxpose.xlu0.c.b16.cont [4/8] 0, 128
        %3624 = vxpose.xlu0.c.b16.cont [5/8] 0, 128
        %3625 = vxpose.xlu0.c.b16.cont [6/8] 0, 128
        %3626 = vxpose.xlu0.c.b16.cont [7/8] 0, 128
        %3627 = vxpose.xlu0.c.b16.end [8/8] 0, 128
        %v3628 = vpop.trf.xlu0
        %v3629 = vpop.trf.xlu0
        %v3630 = vpop.trf.xlu0
        %v3631 = vpop.trf.xlu0
        %v3632 = vpop.trf.xlu0
        %v3633 = vpop.trf.xlu0
        %v3634 = vpop.trf.xlu0
        %v3635 = vpop.trf.xlu0
        %v3637 = vsel %vm2530, %v3628, 0
        %v3640 = vsel %vm2530, %v3629, 0
        %v3643 = vsel %vm2530, %v3630, 0
        %v3646 = vsel %vm2530, %v3631, 0
        %v3649 = vsel %vm2530, %v3632, 0
        %v3652 = vsel %vm2530, %v3633, 0
        %v3655 = vsel %vm2530, %v3634, 0
        %v3658 = vsel %vm2530, %v3635, 0
        %v3661 = vsel %vm2555, %v674, 0
        %3663 = vmatprep.subr.bf16.mxu0 0
        %3664 = vmatpush1.bf16.msra.mxu0 0
        %3665 = vmatprep.subr.bf16.mxu0 0
        %3666 = vmatpush1.bf16.msra.mxu0 0
        %3667 = vmatprep.subr.bf16.mxu0 0
        %3668 = vmatpush1.bf16.msra.mxu0 0
        %3669 = vmatprep.subr.bf16.mxu0 0
        %3670 = vmatpush1.bf16.msra.mxu0 0
        %3671 = vmatprep.subr.bf16.mxu0 0
        %3672 = vmatpush1.bf16.msra.mxu0 0
        %3673 = vmatprep.subr.bf16.mxu0 0
        %3674 = vmatpush1.bf16.msra.mxu0 0
        %3675 = vmatprep.subr.bf16.mxu0 0
        %3676 = vmatpush1.bf16.msra.mxu0 0
        %3677 = vmatprep.subr.bf16.mxu0 0
        %3678 = vmatpush1.bf16.msra.mxu0 %v3661
        %3679 = vmatprep.subr.bf16.mxu0 0
        %3680 = vmatpush2.bf16.msra.mxu0 0
        %3681 = vmatprep.subr.bf16.mxu0 0
        %3682 = vmatpush2.bf16.msra.mxu0 0
        %3683 = vmatprep.subr.bf16.mxu0 0
        %3684 = vmatpush2.bf16.msra.mxu0 0
        %3685 = vmatprep.subr.bf16.mxu0 0
        %3686 = vmatpush2.bf16.msra.mxu0 0
        %3687 = vmatprep.subr.bf16.mxu0 0
        %3688 = vmatpush2.bf16.msra.mxu0 0
        %3689 = vmatprep.subr.bf16.mxu0 0
        %3690 = vmatpush2.bf16.msra.mxu0 0
        %3691 = vmatprep.subr.bf16.mxu0 0
        %3692 = vmatpush2.bf16.msra.mxu0 0
        %3693 = vmatprep.subr.bf16.mxu0 0
        %3694 = vmatpush2.bf16.msra.mxu0 0
        %3695 = vmatprep.mubr.bf16.mxu0 0
        %3696 = vmatmul.mubr.bf16.gmra.mxu0 %v3637
        %v3697 = vpop.f32.mrf.mxu0
        %v3698 = vadd.f32 0.0, %v3697
        %v3699 = vpop.f32.mrf.mxu0
        %v3700 = vpop.f32.mrf.mxu0
        %v3701 = vadd.f32 0.0, %v3700
        %v3702 = vpop.f32.mrf.mxu0
        %3703 = vmatprep.mubr.bf16.mxu0 0
        %3704 = vmatmul.mubr.bf16.gmra.mxu0 %v3640
        %v3705 = vpop.f32.mrf.mxu0
        %v3706 = vadd.f32 0.0, %v3705
        %v3707 = vpop.f32.mrf.mxu0
        %v3708 = vpop.f32.mrf.mxu0
        %v3709 = vadd.f32 0.0, %v3708
        %v3710 = vpop.f32.mrf.mxu0
        %3711 = vmatprep.mubr.bf16.mxu0 0
        %3712 = vmatmul.mubr.bf16.gmra.mxu0 %v3643
        %v3713 = vpop.f32.mrf.mxu0
        %v3714 = vadd.f32 0.0, %v3713
        %v3715 = vpop.f32.mrf.mxu0
        %v3716 = vpop.f32.mrf.mxu0
        %v3717 = vadd.f32 0.0, %v3716
        %v3718 = vpop.f32.mrf.mxu0
        %3719 = vmatprep.mubr.bf16.mxu0 0
        %3720 = vmatmul.mubr.bf16.gmra.mxu0 %v3646
        %v3721 = vpop.f32.mrf.mxu0
        %v3722 = vadd.f32 0.0, %v3721
        %v3723 = vpop.f32.mrf.mxu0
        %v3724 = vpop.f32.mrf.mxu0
        %v3725 = vadd.f32 0.0, %v3724
        %v3726 = vpop.f32.mrf.mxu0
        %3727 = vmatprep.mubr.bf16.mxu0 0
        %3728 = vmatmul.mubr.bf16.gmra.mxu0 %v3649
        %v3729 = vpop.f32.mrf.mxu0
        %v3730 = vadd.f32 0.0, %v3729
        %v3731 = vpop.f32.mrf.mxu0
        %v3732 = vpop.f32.mrf.mxu0
        %v3733 = vadd.f32 0.0, %v3732
        %v3734 = vpop.f32.mrf.mxu0
        %3735 = vmatprep.mubr.bf16.mxu0 0
        %3736 = vmatmul.mubr.bf16.gmra.mxu0 %v3652
        %v3737 = vpop.f32.mrf.mxu0
        %v3738 = vadd.f32 0.0, %v3737
        %v3739 = vpop.f32.mrf.mxu0
        %v3740 = vpop.f32.mrf.mxu0
        %v3741 = vadd.f32 0.0, %v3740
        %v3742 = vpop.f32.mrf.mxu0
        %3743 = vmatprep.mubr.bf16.mxu0 0
        %3744 = vmatmul.mubr.bf16.gmra.mxu0 %v3655
        %v3745 = vpop.f32.mrf.mxu0
        %v3746 = vadd.f32 0.0, %v3745
        %v3747 = vpop.f32.mrf.mxu0
        %v3748 = vpop.f32.mrf.mxu0
        %v3749 = vadd.f32 0.0, %v3748
        %v3750 = vpop.f32.mrf.mxu0
        %3751 = vmatprep.mubr.bf16.mxu0 0
        %3752 = vmatmul.mubr.bf16.gmra.mxu0 %v3658
        %v3753 = vpop.f32.mrf.mxu0
        %v3754 = vadd.f32 0.0, %v3753
        %v3755 = vpop.f32.mrf.mxu0
        %v3756 = vpop.f32.mrf.mxu0
        %v3757 = vadd.f32 0.0, %v3756
        %v3758 = vpop.f32.mrf.mxu0
        %3759 = vdwg.mxu0
        %v3760 = vpack.c.bf16 %v3701, %v3698
        %v3761 = vpack.c.bf16 %v3709, %v3706
        %v3762 = vpack.c.bf16 %v3717, %v3714
        %v3763 = vpack.c.bf16 %v3725, %v3722
        %v3764 = vpack.c.bf16 %v3733, %v3730
        %v3765 = vpack.c.bf16 %v3741, %v3738
        %v3766 = vpack.c.bf16 %v3749, %v3746
        %v3767 = vpack.c.bf16 %v3757, %v3754
        %v3776 = vunpack.c.l.b16 %v3760
        %v3777 = vunpack.c.h.b16 %v3760
        %v3778 = vunpack.c.l.b16 %v3761
        %v3779 = vunpack.c.h.b16 %v3761
        %v3780 = vunpack.c.l.b16 %v3762
        %v3781 = vunpack.c.h.b16 %v3762
        %v3782 = vunpack.c.l.b16 %v3763
        %v3783 = vunpack.c.h.b16 %v3763
        %v3784 = vunpack.c.l.b16 %v3764
        %v3785 = vunpack.c.h.b16 %v3764
        %v3786 = vunpack.c.l.b16 %v3765
        %v3787 = vunpack.c.h.b16 %v3765
        %v3788 = vunpack.c.l.b16 %v3766
        %v3789 = vunpack.c.h.b16 %v3766
        %v3790 = vunpack.c.l.b16 %v3767
        %v3791 = vunpack.c.h.b16 %v3767
        %v3792 = vpack.c.b16 %v3776, %v3776
        %v3793 = vpack.c.b16 %v3777, %v3777
        %v3794 = vpack.c.b16 %v3778, %v3778
        %v3795 = vpack.c.b16 %v3779, %v3779
        %v3796 = vpack.c.b16 %v3780, %v3780
        %v3797 = vpack.c.b16 %v3781, %v3781
        %v3798 = vpack.c.b16 %v3782, %v3782
        %v3799 = vpack.c.b16 %v3783, %v3783
        %v3800 = vpack.c.b16 %v3784, %v3784
        %v3801 = vpack.c.b16 %v3785, %v3785
        %v3802 = vpack.c.b16 %v3786, %v3786
        %v3803 = vpack.c.b16 %v3787, %v3787
        %v3804 = vpack.c.b16 %v3788, %v3788
        %v3805 = vpack.c.b16 %v3789, %v3789
        %v3806 = vpack.c.b16 %v3790, %v3790
        %v3807 = vpack.c.b16 %v3791, %v3791
        %s3824 = scalar_lea.vmem %s647, 320 [#allocation20]
        %3825 = vst [vmem:[%s3824] sm:$0xf] %v3792
        %3826 = vst [vmem:[%s3824 + $0x4] sm:$0xf] %v3793
        %3827 = vst [vmem:[%s3824 + $0x8] sm:$0xf] %v3794
        %3828 = vst [vmem:[%s3824 + $0xc] sm:$0xf] %v3795
        %3829 = vst [vmem:[%s3824 + $0x10] sm:$0xf] %v3796
        %3830 = vst [vmem:[%s3824 + $0x14] sm:$0xf] %v3797
        %3831 = vst [vmem:[%s3824 + $0x18] sm:$0xf] %v3798
        %3832 = vst [vmem:[%s3824 + $0x1c] sm:$0xf] %v3799
        %3833 = vst [vmem:[%s3824 + $0x20] sm:$0xf] %v3800
        %3834 = vst [vmem:[%s3824 + $0x24] sm:$0xf] %v3801
        %3835 = vst [vmem:[%s3824 + $0x28] sm:$0xf] %v3802
        %3836 = vst [vmem:[%s3824 + $0x2c] sm:$0xf] %v3803
        %3837 = vst [vmem:[%s3824 + $0x30] sm:$0xf] %v3804
        %3838 = vst [vmem:[%s3824 + $0x34] sm:$0xf] %v3805
        %3839 = vst [vmem:[%s3824 + $0x38] sm:$0xf] %v3806
        %3840 = vst [vmem:[%s3824 + $0x3c] sm:$0xf] %v3807
        %3841 = vxpose.xlu0.c.b16.start [1/8] %v2488, 128
        %3842 = vxpose.xlu0.c.b16.cont [2/8] 0, 128
        %3843 = vxpose.xlu0.c.b16.cont [3/8] 0, 128
        %3844 = vxpose.xlu0.c.b16.cont [4/8] 0, 128
        %3845 = vxpose.xlu0.c.b16.cont [5/8] 0, 128
        %3846 = vxpose.xlu0.c.b16.cont [6/8] 0, 128
        %3847 = vxpose.xlu0.c.b16.cont [7/8] 0, 128
        %3848 = vxpose.xlu0.c.b16.end [8/8] 0, 128
        %v3849 = vpop.trf.xlu0
        %v3850 = vpop.trf.xlu0
        %v3851 = vpop.trf.xlu0
        %v3852 = vpop.trf.xlu0
        %v3853 = vpop.trf.xlu0
        %v3854 = vpop.trf.xlu0
        %v3855 = vpop.trf.xlu0
        %v3856 = vpop.trf.xlu0
        %v3858 = vsel %vm2530, %v3849, 0
        %v3861 = vsel %vm2530, %v3850, 0
        %v3864 = vsel %vm2530, %v3851, 0
        %v3867 = vsel %vm2530, %v3852, 0
        %v3870 = vsel %vm2530, %v3853, 0
        %v3873 = vsel %vm2530, %v3854, 0
        %v3876 = vsel %vm2530, %v3855, 0
        %v3879 = vsel %vm2530, %v3856, 0
        %v3882 = vsel %vm2555, %v675, 0
        %3884 = vmatprep.subr.bf16.mxu0 0
        %3885 = vmatpush1.bf16.msra.mxu0 0
        %3886 = vmatprep.subr.bf16.mxu0 0
        %3887 = vmatpush1.bf16.msra.mxu0 0
        %3888 = vmatprep.subr.bf16.mxu0 0
        %3889 = vmatpush1.bf16.msra.mxu0 0
        %3890 = vmatprep.subr.bf16.mxu0 0
        %3891 = vmatpush1.bf16.msra.mxu0 0
        %3892 = vmatprep.subr.bf16.mxu0 0
        %3893 = vmatpush1.bf16.msra.mxu0 0
        %3894 = vmatprep.subr.bf16.mxu0 0
        %3895 = vmatpush1.bf16.msra.mxu0 0
        %3896 = vmatprep.subr.bf16.mxu0 0
        %3897 = vmatpush1.bf16.msra.mxu0 0
        %3898 = vmatprep.subr.bf16.mxu0 0
        %3899 = vmatpush1.bf16.msra.mxu0 %v3882
        %3900 = vmatprep.subr.bf16.mxu0 0
        %3901 = vmatpush2.bf16.msra.mxu0 0
        %3902 = vmatprep.subr.bf16.mxu0 0
        %3903 = vmatpush2.bf16.msra.mxu0 0
        %3904 = vmatprep.subr.bf16.mxu0 0
        %3905 = vmatpush2.bf16.msra.mxu0 0
        %3906 = vmatprep.subr.bf16.mxu0 0
        %3907 = vmatpush2.bf16.msra.mxu0 0
        %3908 = vmatprep.subr.bf16.mxu0 0
        %3909 = vmatpush2.bf16.msra.mxu0 0
        %3910 = vmatprep.subr.bf16.mxu0 0
        %3911 = vmatpush2.bf16.msra.mxu0 0
        %3912 = vmatprep.subr.bf16.mxu0 0
        %3913 = vmatpush2.bf16.msra.mxu0 0
        %3914 = vmatprep.subr.bf16.mxu0 0
        %3915 = vmatpush2.bf16.msra.mxu0 0
        %3916 = vmatprep.mubr.bf16.mxu0 0
        %3917 = vmatmul.mubr.bf16.gmra.mxu0 %v3858
        %v3918 = vpop.f32.mrf.mxu0
        %v3919 = vadd.f32 0.0, %v3918
        %v3920 = vpop.f32.mrf.mxu0
        %v3921 = vpop.f32.mrf.mxu0
        %v3922 = vadd.f32 0.0, %v3921
        %v3923 = vpop.f32.mrf.mxu0
        %3924 = vmatprep.mubr.bf16.mxu0 0
        %3925 = vmatmul.mubr.bf16.gmra.mxu0 %v3861
        %v3926 = vpop.f32.mrf.mxu0
        %v3927 = vadd.f32 0.0, %v3926
        %v3928 = vpop.f32.mrf.mxu0
        %v3929 = vpop.f32.mrf.mxu0
        %v3930 = vadd.f32 0.0, %v3929
        %v3931 = vpop.f32.mrf.mxu0
        %3932 = vmatprep.mubr.bf16.mxu0 0
        %3933 = vmatmul.mubr.bf16.gmra.mxu0 %v3864
        %v3934 = vpop.f32.mrf.mxu0
        %v3935 = vadd.f32 0.0, %v3934
        %v3936 = vpop.f32.mrf.mxu0
        %v3937 = vpop.f32.mrf.mxu0
        %v3938 = vadd.f32 0.0, %v3937
        %v3939 = vpop.f32.mrf.mxu0
        %3940 = vmatprep.mubr.bf16.mxu0 0
        %3941 = vmatmul.mubr.bf16.gmra.mxu0 %v3867
        %v3942 = vpop.f32.mrf.mxu0
        %v3943 = vadd.f32 0.0, %v3942
        %v3944 = vpop.f32.mrf.mxu0
        %v3945 = vpop.f32.mrf.mxu0
        %v3946 = vadd.f32 0.0, %v3945
        %v3947 = vpop.f32.mrf.mxu0
        %3948 = vmatprep.mubr.bf16.mxu0 0
        %3949 = vmatmul.mubr.bf16.gmra.mxu0 %v3870
        %v3950 = vpop.f32.mrf.mxu0
        %v3951 = vadd.f32 0.0, %v3950
        %v3952 = vpop.f32.mrf.mxu0
        %v3953 = vpop.f32.mrf.mxu0
        %v3954 = vadd.f32 0.0, %v3953
        %v3955 = vpop.f32.mrf.mxu0
        %3956 = vmatprep.mubr.bf16.mxu0 0
        %3957 = vmatmul.mubr.bf16.gmra.mxu0 %v3873
        %v3958 = vpop.f32.mrf.mxu0
        %v3959 = vadd.f32 0.0, %v3958
        %v3960 = vpop.f32.mrf.mxu0
        %v3961 = vpop.f32.mrf.mxu0
        %v3962 = vadd.f32 0.0, %v3961
        %v3963 = vpop.f32.mrf.mxu0
        %3964 = vmatprep.mubr.bf16.mxu0 0
        %3965 = vmatmul.mubr.bf16.gmra.mxu0 %v3876
        %v3966 = vpop.f32.mrf.mxu0
        %v3967 = vadd.f32 0.0, %v3966
        %v3968 = vpop.f32.mrf.mxu0
        %v3969 = vpop.f32.mrf.mxu0
        %v3970 = vadd.f32 0.0, %v3969
        %v3971 = vpop.f32.mrf.mxu0
        %3972 = vmatprep.mubr.bf16.mxu0 0
        %3973 = vmatmul.mubr.bf16.gmra.mxu0 %v3879
        %v3974 = vpop.f32.mrf.mxu0
        %v3975 = vadd.f32 0.0, %v3974
        %v3976 = vpop.f32.mrf.mxu0
        %v3977 = vpop.f32.mrf.mxu0
        %v3978 = vadd.f32 0.0, %v3977
        %v3979 = vpop.f32.mrf.mxu0
        %3980 = vdwg.mxu0
        %v3981 = vpack.c.bf16 %v3922, %v3919
        %v3982 = vpack.c.bf16 %v3930, %v3927
        %v3983 = vpack.c.bf16 %v3938, %v3935
        %v3984 = vpack.c.bf16 %v3946, %v3943
        %v3985 = vpack.c.bf16 %v3954, %v3951
        %v3986 = vpack.c.bf16 %v3962, %v3959
        %v3987 = vpack.c.bf16 %v3970, %v3967
        %v3988 = vpack.c.bf16 %v3978, %v3975
        %v3997 = vunpack.c.l.b16 %v3981
        %v3998 = vunpack.c.h.b16 %v3981
        %v3999 = vunpack.c.l.b16 %v3982
        %v4000 = vunpack.c.h.b16 %v3982
        %v4001 = vunpack.c.l.b16 %v3983
        %v4002 = vunpack.c.h.b16 %v3983
        %v4003 = vunpack.c.l.b16 %v3984
        %v4004 = vunpack.c.h.b16 %v3984
        %v4005 = vunpack.c.l.b16 %v3985
        %v4006 = vunpack.c.h.b16 %v3985
        %v4007 = vunpack.c.l.b16 %v3986
        %v4008 = vunpack.c.h.b16 %v3986
        %v4009 = vunpack.c.l.b16 %v3987
        %v4010 = vunpack.c.h.b16 %v3987
        %v4011 = vunpack.c.l.b16 %v3988
        %v4012 = vunpack.c.h.b16 %v3988
        %v4013 = vpack.c.b16 %v3997, %v3997
        %v4014 = vpack.c.b16 %v3998, %v3998
        %v4015 = vpack.c.b16 %v3999, %v3999
        %v4016 = vpack.c.b16 %v4000, %v4000
        %v4017 = vpack.c.b16 %v4001, %v4001
        %v4018 = vpack.c.b16 %v4002, %v4002
        %v4019 = vpack.c.b16 %v4003, %v4003
        %v4020 = vpack.c.b16 %v4004, %v4004
        %v4021 = vpack.c.b16 %v4005, %v4005
        %v4022 = vpack.c.b16 %v4006, %v4006
        %v4023 = vpack.c.b16 %v4007, %v4007
        %v4024 = vpack.c.b16 %v4008, %v4008
        %v4025 = vpack.c.b16 %v4009, %v4009
        %v4026 = vpack.c.b16 %v4010, %v4010
        %v4027 = vpack.c.b16 %v4011, %v4011
        %v4028 = vpack.c.b16 %v4012, %v4012
        %s4045 = scalar_lea.vmem %s647, 384 [#allocation20]
        %4046 = vst [vmem:[%s4045] sm:$0xf] %v4013
        %4047 = vst [vmem:[%s4045 + $0x4] sm:$0xf] %v4014
        %4048 = vst [vmem:[%s4045 + $0x8] sm:$0xf] %v4015
        %4049 = vst [vmem:[%s4045 + $0xc] sm:$0xf] %v4016
        %4050 = vst [vmem:[%s4045 + $0x10] sm:$0xf] %v4017
        %4051 = vst [vmem:[%s4045 + $0x14] sm:$0xf] %v4018
        %4052 = vst [vmem:[%s4045 + $0x18] sm:$0xf] %v4019
        %4053 = vst [vmem:[%s4045 + $0x1c] sm:$0xf] %v4020
        %4054 = vst [vmem:[%s4045 + $0x20] sm:$0xf] %v4021
        %4055 = vst [vmem:[%s4045 + $0x24] sm:$0xf] %v4022
        %4056 = vst [vmem:[%s4045 + $0x28] sm:$0xf] %v4023
        %4057 = vst [vmem:[%s4045 + $0x2c] sm:$0xf] %v4024
        %4058 = vst [vmem:[%s4045 + $0x30] sm:$0xf] %v4025
        %4059 = vst [vmem:[%s4045 + $0x34] sm:$0xf] %v4026
        %4060 = vst [vmem:[%s4045 + $0x38] sm:$0xf] %v4027
        %4061 = vst [vmem:[%s4045 + $0x3c] sm:$0xf] %v4028
        %4062 = vxpose.xlu0.c.b16.start [1/8] %v2489, 128
        %4063 = vxpose.xlu0.c.b16.cont [2/8] 0, 128
        %4064 = vxpose.xlu0.c.b16.cont [3/8] 0, 128
        %4065 = vxpose.xlu0.c.b16.cont [4/8] 0, 128
        %4066 = vxpose.xlu0.c.b16.cont [5/8] 0, 128
        %4067 = vxpose.xlu0.c.b16.cont [6/8] 0, 128
        %4068 = vxpose.xlu0.c.b16.cont [7/8] 0, 128
        %4069 = vxpose.xlu0.c.b16.end [8/8] 0, 128
        %v4070 = vpop.trf.xlu0
        %v4071 = vpop.trf.xlu0
        %v4072 = vpop.trf.xlu0
        %v4073 = vpop.trf.xlu0
        %v4074 = vpop.trf.xlu0
        %v4075 = vpop.trf.xlu0
        %v4076 = vpop.trf.xlu0
        %v4077 = vpop.trf.xlu0
        %v4079 = vsel %vm2530, %v4070, 0
        %v4082 = vsel %vm2530, %v4071, 0
        %v4085 = vsel %vm2530, %v4072, 0
        %v4088 = vsel %vm2530, %v4073, 0
        %v4091 = vsel %vm2530, %v4074, 0
        %v4094 = vsel %vm2530, %v4075, 0
        %v4097 = vsel %vm2530, %v4076, 0
        %v4100 = vsel %vm2530, %v4077, 0
        %v4103 = vsel %vm2555, %v676, 0
        %4105 = vmatprep.subr.bf16.mxu0 0
        %4106 = vmatpush1.bf16.msra.mxu0 0
        %4107 = vmatprep.subr.bf16.mxu0 0
        %4108 = vmatpush1.bf16.msra.mxu0 0
        %4109 = vmatprep.subr.bf16.mxu0 0
        %4110 = vmatpush1.bf16.msra.mxu0 0
        %4111 = vmatprep.subr.bf16.mxu0 0
        %4112 = vmatpush1.bf16.msra.mxu0 0
        %4113 = vmatprep.subr.bf16.mxu0 0
        %4114 = vmatpush1.bf16.msra.mxu0 0
        %4115 = vmatprep.subr.bf16.mxu0 0
        %4116 = vmatpush1.bf16.msra.mxu0 0
        %4117 = vmatprep.subr.bf16.mxu0 0
        %4118 = vmatpush1.bf16.msra.mxu0 0
        %4119 = vmatprep.subr.bf16.mxu0 0
        %4120 = vmatpush1.bf16.msra.mxu0 %v4103
        %4121 = vmatprep.subr.bf16.mxu0 0
        %4122 = vmatpush2.bf16.msra.mxu0 0
        %4123 = vmatprep.subr.bf16.mxu0 0
        %4124 = vmatpush2.bf16.msra.mxu0 0
        %4125 = vmatprep.subr.bf16.mxu0 0
        %4126 = vmatpush2.bf16.msra.mxu0 0
        %4127 = vmatprep.subr.bf16.mxu0 0
        %4128 = vmatpush2.bf16.msra.mxu0 0
        %4129 = vmatprep.subr.bf16.mxu0 0
        %4130 = vmatpush2.bf16.msra.mxu0 0
        %4131 = vmatprep.subr.bf16.mxu0 0
        %4132 = vmatpush2.bf16.msra.mxu0 0
        %4133 = vmatprep.subr.bf16.mxu0 0
        %4134 = vmatpush2.bf16.msra.mxu0 0
        %4135 = vmatprep.subr.bf16.mxu0 0
        %4136 = vmatpush2.bf16.msra.mxu0 0
        %4137 = vmatprep.mubr.bf16.mxu0 0
        %4138 = vmatmul.mubr.bf16.gmra.mxu0 %v4079
        %v4139 = vpop.f32.mrf.mxu0
        %v4140 = vadd.f32 0.0, %v4139
        %v4141 = vpop.f32.mrf.mxu0
        %v4142 = vpop.f32.mrf.mxu0
        %v4143 = vadd.f32 0.0, %v4142
        %v4144 = vpop.f32.mrf.mxu0
        %4145 = vmatprep.mubr.bf16.mxu0 0
        %4146 = vmatmul.mubr.bf16.gmra.mxu0 %v4082
        %v4147 = vpop.f32.mrf.mxu0
        %v4148 = vadd.f32 0.0, %v4147
        %v4149 = vpop.f32.mrf.mxu0
        %v4150 = vpop.f32.mrf.mxu0
        %v4151 = vadd.f32 0.0, %v4150
        %v4152 = vpop.f32.mrf.mxu0
        %4153 = vmatprep.mubr.bf16.mxu0 0
        %4154 = vmatmul.mubr.bf16.gmra.mxu0 %v4085
        %v4155 = vpop.f32.mrf.mxu0
        %v4156 = vadd.f32 0.0, %v4155
        %v4157 = vpop.f32.mrf.mxu0
        %v4158 = vpop.f32.mrf.mxu0
        %v4159 = vadd.f32 0.0, %v4158
        %v4160 = vpop.f32.mrf.mxu0
        %4161 = vmatprep.mubr.bf16.mxu0 0
        %4162 = vmatmul.mubr.bf16.gmra.mxu0 %v4088
        %v4163 = vpop.f32.mrf.mxu0
        %v4164 = vadd.f32 0.0, %v4163
        %v4165 = vpop.f32.mrf.mxu0
        %v4166 = vpop.f32.mrf.mxu0
        %v4167 = vadd.f32 0.0, %v4166
        %v4168 = vpop.f32.mrf.mxu0
        %4169 = vmatprep.mubr.bf16.mxu0 0
        %4170 = vmatmul.mubr.bf16.gmra.mxu0 %v4091
        %v4171 = vpop.f32.mrf.mxu0
        %v4172 = vadd.f32 0.0, %v4171
        %v4173 = vpop.f32.mrf.mxu0
        %v4174 = vpop.f32.mrf.mxu0
        %v4175 = vadd.f32 0.0, %v4174
        %v4176 = vpop.f32.mrf.mxu0
        %4177 = vmatprep.mubr.bf16.mxu0 0
        %4178 = vmatmul.mubr.bf16.gmra.mxu0 %v4094
        %v4179 = vpop.f32.mrf.mxu0
        %v4180 = vadd.f32 0.0, %v4179
        %v4181 = vpop.f32.mrf.mxu0
        %v4182 = vpop.f32.mrf.mxu0
        %v4183 = vadd.f32 0.0, %v4182
        %v4184 = vpop.f32.mrf.mxu0
        %4185 = vmatprep.mubr.bf16.mxu0 0
        %4186 = vmatmul.mubr.bf16.gmra.mxu0 %v4097
        %v4187 = vpop.f32.mrf.mxu0
        %v4188 = vadd.f32 0.0, %v4187
        %v4189 = vpop.f32.mrf.mxu0
        %v4190 = vpop.f32.mrf.mxu0
        %v4191 = vadd.f32 0.0, %v4190
        %v4192 = vpop.f32.mrf.mxu0
        %4193 = vmatprep.mubr.bf16.mxu0 0
        %4194 = vmatmul.mubr.bf16.gmra.mxu0 %v4100
        %v4195 = vpop.f32.mrf.mxu0
        %v4196 = vadd.f32 0.0, %v4195
        %v4197 = vpop.f32.mrf.mxu0
        %v4198 = vpop.f32.mrf.mxu0
        %v4199 = vadd.f32 0.0, %v4198
        %v4200 = vpop.f32.mrf.mxu0
        %4201 = vdwg.mxu0
        %v4202 = vpack.c.bf16 %v4143, %v4140
        %v4203 = vpack.c.bf16 %v4151, %v4148
        %v4204 = vpack.c.bf16 %v4159, %v4156
        %v4205 = vpack.c.bf16 %v4167, %v4164
        %v4206 = vpack.c.bf16 %v4175, %v4172
        %v4207 = vpack.c.bf16 %v4183, %v4180
        %v4208 = vpack.c.bf16 %v4191, %v4188
        %v4209 = vpack.c.bf16 %v4199, %v4196
        %v4218 = vunpack.c.l.b16 %v4202
        %v4219 = vunpack.c.h.b16 %v4202
        %v4220 = vunpack.c.l.b16 %v4203
        %v4221 = vunpack.c.h.b16 %v4203
        %v4222 = vunpack.c.l.b16 %v4204
        %v4223 = vunpack.c.h.b16 %v4204
        %v4224 = vunpack.c.l.b16 %v4205
        %v4225 = vunpack.c.h.b16 %v4205
        %v4226 = vunpack.c.l.b16 %v4206
        %v4227 = vunpack.c.h.b16 %v4206
        %v4228 = vunpack.c.l.b16 %v4207
        %v4229 = vunpack.c.h.b16 %v4207
        %v4230 = vunpack.c.l.b16 %v4208
        %v4231 = vunpack.c.h.b16 %v4208
        %v4232 = vunpack.c.l.b16 %v4209
        %v4233 = vunpack.c.h.b16 %v4209
        %v4234 = vpack.c.b16 %v4218, %v4218
        %v4235 = vpack.c.b16 %v4219, %v4219
        %v4236 = vpack.c.b16 %v4220, %v4220
        %v4237 = vpack.c.b16 %v4221, %v4221
        %v4238 = vpack.c.b16 %v4222, %v4222
        %v4239 = vpack.c.b16 %v4223, %v4223
        %v4240 = vpack.c.b16 %v4224, %v4224
        %v4241 = vpack.c.b16 %v4225, %v4225
        %v4242 = vpack.c.b16 %v4226, %v4226
        %v4243 = vpack.c.b16 %v4227, %v4227
        %v4244 = vpack.c.b16 %v4228, %v4228
        %v4245 = vpack.c.b16 %v4229, %v4229
        %v4246 = vpack.c.b16 %v4230, %v4230
        %v4247 = vpack.c.b16 %v4231, %v4231
        %v4248 = vpack.c.b16 %v4232, %v4232
        %v4249 = vpack.c.b16 %v4233, %v4233
        %s4266 = scalar_lea.vmem %s647, 448 [#allocation20]
        %4267 = vst [vmem:[%s4266] sm:$0xf] %v4234
        %4268 = vst [vmem:[%s4266 + $0x4] sm:$0xf] %v4235
        %4269 = vst [vmem:[%s4266 + $0x8] sm:$0xf] %v4236
        %4270 = vst [vmem:[%s4266 + $0xc] sm:$0xf] %v4237
        %4271 = vst [vmem:[%s4266 + $0x10] sm:$0xf] %v4238
        %4272 = vst [vmem:[%s4266 + $0x14] sm:$0xf] %v4239
        %4273 = vst [vmem:[%s4266 + $0x18] sm:$0xf] %v4240
        %4274 = vst [vmem:[%s4266 + $0x1c] sm:$0xf] %v4241
        %4275 = vst [vmem:[%s4266 + $0x20] sm:$0xf] %v4242
        %4276 = vst [vmem:[%s4266 + $0x24] sm:$0xf] %v4243
        %4277 = vst [vmem:[%s4266 + $0x28] sm:$0xf] %v4244
        %4278 = vst [vmem:[%s4266 + $0x2c] sm:$0xf] %v4245
        %4279 = vst [vmem:[%s4266 + $0x30] sm:$0xf] %v4246
        %4280 = vst [vmem:[%s4266 + $0x34] sm:$0xf] %v4247
        %4281 = vst [vmem:[%s4266 + $0x38] sm:$0xf] %v4248
        %4282 = vst [vmem:[%s4266 + $0x3c] sm:$0xf] %v4249
        %4283 = vxpose.xlu0.c.b16.start [1/8] %v2490, 128
        %4284 = vxpose.xlu0.c.b16.cont [2/8] 0, 128
        %4285 = vxpose.xlu0.c.b16.cont [3/8] 0, 128
        %4286 = vxpose.xlu0.c.b16.cont [4/8] 0, 128
        %4287 = vxpose.xlu0.c.b16.cont [5/8] 0, 128
        %4288 = vxpose.xlu0.c.b16.cont [6/8] 0, 128
        %4289 = vxpose.xlu0.c.b16.cont [7/8] 0, 128
        %4290 = vxpose.xlu0.c.b16.end [8/8] 0, 128
        %v4291 = vpop.trf.xlu0
        %v4292 = vpop.trf.xlu0
        %v4293 = vpop.trf.xlu0
        %v4294 = vpop.trf.xlu0
        %v4295 = vpop.trf.xlu0
        %v4296 = vpop.trf.xlu0
        %v4297 = vpop.trf.xlu0
        %v4298 = vpop.trf.xlu0
        %v4300 = vsel %vm2530, %v4291, 0
        %v4303 = vsel %vm2530, %v4292, 0
        %v4306 = vsel %vm2530, %v4293, 0
        %v4309 = vsel %vm2530, %v4294, 0
        %v4312 = vsel %vm2530, %v4295, 0
        %v4315 = vsel %vm2530, %v4296, 0
        %v4318 = vsel %vm2530, %v4297, 0
        %v4321 = vsel %vm2530, %v4298, 0
        %v4324 = vsel %vm2555, %v677, 0
        %4326 = vmatprep.subr.bf16.mxu0 0
        %4327 = vmatpush1.bf16.msra.mxu0 0
        %4328 = vmatprep.subr.bf16.mxu0 0
        %4329 = vmatpush1.bf16.msra.mxu0 0
        %4330 = vmatprep.subr.bf16.mxu0 0
        %4331 = vmatpush1.bf16.msra.mxu0 0
        %4332 = vmatprep.subr.bf16.mxu0 0
        %4333 = vmatpush1.bf16.msra.mxu0 0
        %4334 = vmatprep.subr.bf16.mxu0 0
        %4335 = vmatpush1.bf16.msra.mxu0 0
        %4336 = vmatprep.subr.bf16.mxu0 0
        %4337 = vmatpush1.bf16.msra.mxu0 0
        %4338 = vmatprep.subr.bf16.mxu0 0
        %4339 = vmatpush1.bf16.msra.mxu0 0
        %4340 = vmatprep.subr.bf16.mxu0 0
        %4341 = vmatpush1.bf16.msra.mxu0 %v4324
        %4342 = vmatprep.subr.bf16.mxu0 0
        %4343 = vmatpush2.bf16.msra.mxu0 0
        %4344 = vmatprep.subr.bf16.mxu0 0
        %4345 = vmatpush2.bf16.msra.mxu0 0
        %4346 = vmatprep.subr.bf16.mxu0 0
        %4347 = vmatpush2.bf16.msra.mxu0 0
        %4348 = vmatprep.subr.bf16.mxu0 0
        %4349 = vmatpush2.bf16.msra.mxu0 0
        %4350 = vmatprep.subr.bf16.mxu0 0
        %4351 = vmatpush2.bf16.msra.mxu0 0
        %4352 = vmatprep.subr.bf16.mxu0 0
        %4353 = vmatpush2.bf16.msra.mxu0 0
        %4354 = vmatprep.subr.bf16.mxu0 0
        %4355 = vmatpush2.bf16.msra.mxu0 0
        %4356 = vmatprep.subr.bf16.mxu0 0
        %4357 = vmatpush2.bf16.msra.mxu0 0
        %4358 = vmatprep.mubr.bf16.mxu0 0
        %4359 = vmatmul.mubr.bf16.gmra.mxu0 %v4300
        %v4360 = vpop.f32.mrf.mxu0
        %v4361 = vadd.f32 0.0, %v4360
        %v4362 = vpop.f32.mrf.mxu0
        %v4363 = vpop.f32.mrf.mxu0
        %v4364 = vadd.f32 0.0, %v4363
        %v4365 = vpop.f32.mrf.mxu0
        %4366 = vmatprep.mubr.bf16.mxu0 0
        %4367 = vmatmul.mubr.bf16.gmra.mxu0 %v4303
        %v4368 = vpop.f32.mrf.mxu0
        %v4369 = vadd.f32 0.0, %v4368
        %v4370 = vpop.f32.mrf.mxu0
        %v4371 = vpop.f32.mrf.mxu0
        %v4372 = vadd.f32 0.0, %v4371
        %v4373 = vpop.f32.mrf.mxu0
        %4374 = vmatprep.mubr.bf16.mxu0 0
        %4375 = vmatmul.mubr.bf16.gmra.mxu0 %v4306
        %v4376 = vpop.f32.mrf.mxu0
        %v4377 = vadd.f32 0.0, %v4376
        %v4378 = vpop.f32.mrf.mxu0
        %v4379 = vpop.f32.mrf.mxu0
        %v4380 = vadd.f32 0.0, %v4379
        %v4381 = vpop.f32.mrf.mxu0
        %4382 = vmatprep.mubr.bf16.mxu0 0
        %4383 = vmatmul.mubr.bf16.gmra.mxu0 %v4309
        %v4384 = vpop.f32.mrf.mxu0
        %v4385 = vadd.f32 0.0, %v4384
        %v4386 = vpop.f32.mrf.mxu0
        %v4387 = vpop.f32.mrf.mxu0
        %v4388 = vadd.f32 0.0, %v4387
        %v4389 = vpop.f32.mrf.mxu0
        %4390 = vmatprep.mubr.bf16.mxu0 0
        %4391 = vmatmul.mubr.bf16.gmra.mxu0 %v4312
        %v4392 = vpop.f32.mrf.mxu0
        %v4393 = vadd.f32 0.0, %v4392
        %v4394 = vpop.f32.mrf.mxu0
        %v4395 = vpop.f32.mrf.mxu0
        %v4396 = vadd.f32 0.0, %v4395
        %v4397 = vpop.f32.mrf.mxu0
        %4398 = vmatprep.mubr.bf16.mxu0 0
        %4399 = vmatmul.mubr.bf16.gmra.mxu0 %v4315
        %v4400 = vpop.f32.mrf.mxu0
        %v4401 = vadd.f32 0.0, %v4400
        %v4402 = vpop.f32.mrf.mxu0
        %v4403 = vpop.f32.mrf.mxu0
        %v4404 = vadd.f32 0.0, %v4403
        %v4405 = vpop.f32.mrf.mxu0
        %4406 = vmatprep.mubr.bf16.mxu0 0
        %4407 = vmatmul.mubr.bf16.gmra.mxu0 %v4318
        %v4408 = vpop.f32.mrf.mxu0
        %v4409 = vadd.f32 0.0, %v4408
        %v4410 = vpop.f32.mrf.mxu0
        %v4411 = vpop.f32.mrf.mxu0
        %v4412 = vadd.f32 0.0, %v4411
        %v4413 = vpop.f32.mrf.mxu0
        %4414 = vmatprep.mubr.bf16.mxu0 0
        %4415 = vmatmul.mubr.bf16.gmra.mxu0 %v4321
        %v4416 = vpop.f32.mrf.mxu0
        %v4417 = vadd.f32 0.0, %v4416
        %v4418 = vpop.f32.mrf.mxu0
        %v4419 = vpop.f32.mrf.mxu0
        %v4420 = vadd.f32 0.0, %v4419
        %v4421 = vpop.f32.mrf.mxu0
        %4422 = vdwg.mxu0
        %v4423 = vpack.c.bf16 %v4364, %v4361
        %v4424 = vpack.c.bf16 %v4372, %v4369
        %v4425 = vpack.c.bf16 %v4380, %v4377
        %v4426 = vpack.c.bf16 %v4388, %v4385
        %v4427 = vpack.c.bf16 %v4396, %v4393
        %v4428 = vpack.c.bf16 %v4404, %v4401
        %v4429 = vpack.c.bf16 %v4412, %v4409
        %v4430 = vpack.c.bf16 %v4420, %v4417
        %v4439 = vunpack.c.l.b16 %v4423
        %v4440 = vunpack.c.h.b16 %v4423
        %v4441 = vunpack.c.l.b16 %v4424
        %v4442 = vunpack.c.h.b16 %v4424
        %v4443 = vunpack.c.l.b16 %v4425
        %v4444 = vunpack.c.h.b16 %v4425
        %v4445 = vunpack.c.l.b16 %v4426
        %v4446 = vunpack.c.h.b16 %v4426
        %v4447 = vunpack.c.l.b16 %v4427
        %v4448 = vunpack.c.h.b16 %v4427
        %v4449 = vunpack.c.l.b16 %v4428
        %v4450 = vunpack.c.h.b16 %v4428
        %v4451 = vunpack.c.l.b16 %v4429
        %v4452 = vunpack.c.h.b16 %v4429
        %v4453 = vunpack.c.l.b16 %v4430
        %v4454 = vunpack.c.h.b16 %v4430
        %v4455 = vpack.c.b16 %v4439, %v4439
        %v4456 = vpack.c.b16 %v4440, %v4440
        %v4457 = vpack.c.b16 %v4441, %v4441
        %v4458 = vpack.c.b16 %v4442, %v4442
        %v4459 = vpack.c.b16 %v4443, %v4443
        %v4460 = vpack.c.b16 %v4444, %v4444
        %v4461 = vpack.c.b16 %v4445, %v4445
        %v4462 = vpack.c.b16 %v4446, %v4446
        %v4463 = vpack.c.b16 %v4447, %v4447
        %v4464 = vpack.c.b16 %v4448, %v4448
        %v4465 = vpack.c.b16 %v4449, %v4449
        %v4466 = vpack.c.b16 %v4450, %v4450
        %v4467 = vpack.c.b16 %v4451, %v4451
        %v4468 = vpack.c.b16 %v4452, %v4452
        %v4469 = vpack.c.b16 %v4453, %v4453
        %v4470 = vpack.c.b16 %v4454, %v4454
        %s4487 = scalar_lea.vmem %s647, 512 [#allocation20]
        %4488 = vst [vmem:[%s4487] sm:$0xf] %v4455
        %4489 = vst [vmem:[%s4487 + $0x4] sm:$0xf] %v4456
        %4490 = vst [vmem:[%s4487 + $0x8] sm:$0xf] %v4457
        %4491 = vst [vmem:[%s4487 + $0xc] sm:$0xf] %v4458
        %4492 = vst [vmem:[%s4487 + $0x10] sm:$0xf] %v4459
        %4493 = vst [vmem:[%s4487 + $0x14] sm:$0xf] %v4460
        %4494 = vst [vmem:[%s4487 + $0x18] sm:$0xf] %v4461
        %4495 = vst [vmem:[%s4487 + $0x1c] sm:$0xf] %v4462
        %4496 = vst [vmem:[%s4487 + $0x20] sm:$0xf] %v4463
        %4497 = vst [vmem:[%s4487 + $0x24] sm:$0xf] %v4464
        %4498 = vst [vmem:[%s4487 + $0x28] sm:$0xf] %v4465
        %4499 = vst [vmem:[%s4487 + $0x2c] sm:$0xf] %v4466
        %4500 = vst [vmem:[%s4487 + $0x30] sm:$0xf] %v4467
        %4501 = vst [vmem:[%s4487 + $0x34] sm:$0xf] %v4468
        %4502 = vst [vmem:[%s4487 + $0x38] sm:$0xf] %v4469
        %4503 = vst [vmem:[%s4487 + $0x3c] sm:$0xf] %v4470
        %4504 = vxpose.xlu0.c.b16.start [1/8] %v2491, 128
        %4505 = vxpose.xlu0.c.b16.cont [2/8] 0, 128
        %4506 = vxpose.xlu0.c.b16.cont [3/8] 0, 128
        %4507 = vxpose.xlu0.c.b16.cont [4/8] 0, 128
        %4508 = vxpose.xlu0.c.b16.cont [5/8] 0, 128
        %4509 = vxpose.xlu0.c.b16.cont [6/8] 0, 128
        %4510 = vxpose.xlu0.c.b16.cont [7/8] 0, 128
        %4511 = vxpose.xlu0.c.b16.end [8/8] 0, 128
        %v4512 = vpop.trf.xlu0
        %v4513 = vpop.trf.xlu0
        %v4514 = vpop.trf.xlu0
        %v4515 = vpop.trf.xlu0
        %v4516 = vpop.trf.xlu0
        %v4517 = vpop.trf.xlu0
        %v4518 = vpop.trf.xlu0
        %v4519 = vpop.trf.xlu0
        %v4521 = vsel %vm2530, %v4512, 0
        %v4524 = vsel %vm2530, %v4513, 0
        %v4527 = vsel %vm2530, %v4514, 0
        %v4530 = vsel %vm2530, %v4515, 0
        %v4533 = vsel %vm2530, %v4516, 0
        %v4536 = vsel %vm2530, %v4517, 0
        %v4539 = vsel %vm2530, %v4518, 0
        %v4542 = vsel %vm2530, %v4519, 0
        %v4545 = vsel %vm2555, %v678, 0
        %4547 = vmatprep.subr.bf16.mxu0 0
        %4548 = vmatpush1.bf16.msra.mxu0 0
        %4549 = vmatprep.subr.bf16.mxu0 0
        %4550 = vmatpush1.bf16.msra.mxu0 0
        %4551 = vmatprep.subr.bf16.mxu0 0
        %4552 = vmatpush1.bf16.msra.mxu0 0
        %4553 = vmatprep.subr.bf16.mxu0 0
        %4554 = vmatpush1.bf16.msra.mxu0 0
        %4555 = vmatprep.subr.bf16.mxu0 0
        %4556 = vmatpush1.bf16.msra.mxu0 0
        %4557 = vmatprep.subr.bf16.mxu0 0
        %4558 = vmatpush1.bf16.msra.mxu0 0
        %4559 = vmatprep.subr.bf16.mxu0 0
        %4560 = vmatpush1.bf16.msra.mxu0 0
        %4561 = vmatprep.subr.bf16.mxu0 0
        %4562 = vmatpush1.bf16.msra.mxu0 %v4545
        %4563 = vmatprep.subr.bf16.mxu0 0
        %4564 = vmatpush2.bf16.msra.mxu0 0
        %4565 = vmatprep.subr.bf16.mxu0 0
        %4566 = vmatpush2.bf16.msra.mxu0 0
        %4567 = vmatprep.subr.bf16.mxu0 0
        %4568 = vmatpush2.bf16.msra.mxu0 0
        %4569 = vmatprep.subr.bf16.mxu0 0
        %4570 = vmatpush2.bf16.msra.mxu0 0
        %4571 = vmatprep.subr.bf16.mxu0 0
        %4572 = vmatpush2.bf16.msra.mxu0 0
        %4573 = vmatprep.subr.bf16.mxu0 0
        %4574 = vmatpush2.bf16.msra.mxu0 0
        %4575 = vmatprep.subr.bf16.mxu0 0
        %4576 = vmatpush2.bf16.msra.mxu0 0
        %4577 = vmatprep.subr.bf16.mxu0 0
        %4578 = vmatpush2.bf16.msra.mxu0 0
        %4579 = vmatprep.mubr.bf16.mxu0 0
        %4580 = vmatmul.mubr.bf16.gmra.mxu0 %v4521
        %v4581 = vpop.f32.mrf.mxu0
        %v4582 = vadd.f32 0.0, %v4581
        %v4583 = vpop.f32.mrf.mxu0
        %v4584 = vpop.f32.mrf.mxu0
        %v4585 = vadd.f32 0.0, %v4584
        %v4586 = vpop.f32.mrf.mxu0
        %4587 = vmatprep.mubr.bf16.mxu0 0
        %4588 = vmatmul.mubr.bf16.gmra.mxu0 %v4524
        %v4589 = vpop.f32.mrf.mxu0
        %v4590 = vadd.f32 0.0, %v4589
        %v4591 = vpop.f32.mrf.mxu0
        %v4592 = vpop.f32.mrf.mxu0
        %v4593 = vadd.f32 0.0, %v4592
        %v4594 = vpop.f32.mrf.mxu0
        %4595 = vmatprep.mubr.bf16.mxu0 0
        %4596 = vmatmul.mubr.bf16.gmra.mxu0 %v4527
        %v4597 = vpop.f32.mrf.mxu0
        %v4598 = vadd.f32 0.0, %v4597
        %v4599 = vpop.f32.mrf.mxu0
        %v4600 = vpop.f32.mrf.mxu0
        %v4601 = vadd.f32 0.0, %v4600
        %v4602 = vpop.f32.mrf.mxu0
        %4603 = vmatprep.mubr.bf16.mxu0 0
        %4604 = vmatmul.mubr.bf16.gmra.mxu0 %v4530
        %v4605 = vpop.f32.mrf.mxu0
        %v4606 = vadd.f32 0.0, %v4605
        %v4607 = vpop.f32.mrf.mxu0
        %v4608 = vpop.f32.mrf.mxu0
        %v4609 = vadd.f32 0.0, %v4608
        %v4610 = vpop.f32.mrf.mxu0
        %4611 = vmatprep.mubr.bf16.mxu0 0
        %4612 = vmatmul.mubr.bf16.gmra.mxu0 %v4533
        %v4613 = vpop.f32.mrf.mxu0
        %v4614 = vadd.f32 0.0, %v4613
        %v4615 = vpop.f32.mrf.mxu0
        %v4616 = vpop.f32.mrf.mxu0
        %v4617 = vadd.f32 0.0, %v4616
        %v4618 = vpop.f32.mrf.mxu0
        %4619 = vmatprep.mubr.bf16.mxu0 0
        %4620 = vmatmul.mubr.bf16.gmra.mxu0 %v4536
        %v4621 = vpop.f32.mrf.mxu0
        %v4622 = vadd.f32 0.0, %v4621
        %v4623 = vpop.f32.mrf.mxu0
        %v4624 = vpop.f32.mrf.mxu0
        %v4625 = vadd.f32 0.0, %v4624
        %v4626 = vpop.f32.mrf.mxu0
        %4627 = vmatprep.mubr.bf16.mxu0 0
        %4628 = vmatmul.mubr.bf16.gmra.mxu0 %v4539
        %v4629 = vpop.f32.mrf.mxu0
        %v4630 = vadd.f32 0.0, %v4629
        %v4631 = vpop.f32.mrf.mxu0
        %v4632 = vpop.f32.mrf.mxu0
        %v4633 = vadd.f32 0.0, %v4632
        %v4634 = vpop.f32.mrf.mxu0
        %4635 = vmatprep.mubr.bf16.mxu0 0
        %4636 = vmatmul.mubr.bf16.gmra.mxu0 %v4542
        %v4637 = vpop.f32.mrf.mxu0
        %v4638 = vadd.f32 0.0, %v4637
        %v4639 = vpop.f32.mrf.mxu0
        %v4640 = vpop.f32.mrf.mxu0
        %v4641 = vadd.f32 0.0, %v4640
        %v4642 = vpop.f32.mrf.mxu0
        %4643 = vdwg.mxu0
        %v4644 = vpack.c.bf16 %v4585, %v4582
        %v4645 = vpack.c.bf16 %v4593, %v4590
        %v4646 = vpack.c.bf16 %v4601, %v4598
        %v4647 = vpack.c.bf16 %v4609, %v4606
        %v4648 = vpack.c.bf16 %v4617, %v4614
        %v4649 = vpack.c.bf16 %v4625, %v4622
        %v4650 = vpack.c.bf16 %v4633, %v4630
        %v4651 = vpack.c.bf16 %v4641, %v4638
        %v4660 = vunpack.c.l.b16 %v4644
        %v4661 = vunpack.c.h.b16 %v4644
        %v4662 = vunpack.c.l.b16 %v4645
        %v4663 = vunpack.c.h.b16 %v4645
        %v4664 = vunpack.c.l.b16 %v4646
        %v4665 = vunpack.c.h.b16 %v4646
        %v4666 = vunpack.c.l.b16 %v4647
        %v4667 = vunpack.c.h.b16 %v4647
        %v4668 = vunpack.c.l.b16 %v4648
        %v4669 = vunpack.c.h.b16 %v4648
        %v4670 = vunpack.c.l.b16 %v4649
        %v4671 = vunpack.c.h.b16 %v4649
        %v4672 = vunpack.c.l.b16 %v4650
        %v4673 = vunpack.c.h.b16 %v4650
        %v4674 = vunpack.c.l.b16 %v4651
        %v4675 = vunpack.c.h.b16 %v4651
        %v4676 = vpack.c.b16 %v4660, %v4660
        %v4677 = vpack.c.b16 %v4661, %v4661
        %v4678 = vpack.c.b16 %v4662, %v4662
        %v4679 = vpack.c.b16 %v4663, %v4663
        %v4680 = vpack.c.b16 %v4664, %v4664
        %v4681 = vpack.c.b16 %v4665, %v4665
        %v4682 = vpack.c.b16 %v4666, %v4666
        %v4683 = vpack.c.b16 %v4667, %v4667
        %v4684 = vpack.c.b16 %v4668, %v4668
        %v4685 = vpack.c.b16 %v4669, %v4669
        %v4686 = vpack.c.b16 %v4670, %v4670
        %v4687 = vpack.c.b16 %v4671, %v4671
        %v4688 = vpack.c.b16 %v4672, %v4672
        %v4689 = vpack.c.b16 %v4673, %v4673
        %v4690 = vpack.c.b16 %v4674, %v4674
        %v4691 = vpack.c.b16 %v4675, %v4675
        %s4708 = scalar_lea.vmem %s647, 576 [#allocation20]
        %4709 = vst [vmem:[%s4708] sm:$0xf] %v4676
        %4710 = vst [vmem:[%s4708 + $0x4] sm:$0xf] %v4677
        %4711 = vst [vmem:[%s4708 + $0x8] sm:$0xf] %v4678
        %4712 = vst [vmem:[%s4708 + $0xc] sm:$0xf] %v4679
        %4713 = vst [vmem:[%s4708 + $0x10] sm:$0xf] %v4680
        %4714 = vst [vmem:[%s4708 + $0x14] sm:$0xf] %v4681
        %4715 = vst [vmem:[%s4708 + $0x18] sm:$0xf] %v4682
        %4716 = vst [vmem:[%s4708 + $0x1c] sm:$0xf] %v4683
        %4717 = vst [vmem:[%s4708 + $0x20] sm:$0xf] %v4684
        %4718 = vst [vmem:[%s4708 + $0x24] sm:$0xf] %v4685
        %4719 = vst [vmem:[%s4708 + $0x28] sm:$0xf] %v4686
        %4720 = vst [vmem:[%s4708 + $0x2c] sm:$0xf] %v4687
        %4721 = vst [vmem:[%s4708 + $0x30] sm:$0xf] %v4688
        %4722 = vst [vmem:[%s4708 + $0x34] sm:$0xf] %v4689
        %4723 = vst [vmem:[%s4708 + $0x38] sm:$0xf] %v4690
        %4724 = vst [vmem:[%s4708 + $0x3c] sm:$0xf] %v4691
        %4725 = vxpose.xlu0.c.b16.start [1/8] %v2492, 128
        %4726 = vxpose.xlu0.c.b16.cont [2/8] 0, 128
        %4727 = vxpose.xlu0.c.b16.cont [3/8] 0, 128
        %4728 = vxpose.xlu0.c.b16.cont [4/8] 0, 128
        %4729 = vxpose.xlu0.c.b16.cont [5/8] 0, 128
        %4730 = vxpose.xlu0.c.b16.cont [6/8] 0, 128
        %4731 = vxpose.xlu0.c.b16.cont [7/8] 0, 128
        %4732 = vxpose.xlu0.c.b16.end [8/8] 0, 128
        %v4733 = vpop.trf.xlu0
        %v4734 = vpop.trf.xlu0
        %v4735 = vpop.trf.xlu0
        %v4736 = vpop.trf.xlu0
        %v4737 = vpop.trf.xlu0
        %v4738 = vpop.trf.xlu0
        %v4739 = vpop.trf.xlu0
        %v4740 = vpop.trf.xlu0
        %v4742 = vsel %vm2530, %v4733, 0
        %v4745 = vsel %vm2530, %v4734, 0
        %v4748 = vsel %vm2530, %v4735, 0
        %v4751 = vsel %vm2530, %v4736, 0
        %v4754 = vsel %vm2530, %v4737, 0
        %v4757 = vsel %vm2530, %v4738, 0
        %v4760 = vsel %vm2530, %v4739, 0
        %v4763 = vsel %vm2530, %v4740, 0
        %v4766 = vsel %vm2555, %v679, 0
        %4768 = vmatprep.subr.bf16.mxu0 0
        %4769 = vmatpush1.bf16.msra.mxu0 0
        %4770 = vmatprep.subr.bf16.mxu0 0
        %4771 = vmatpush1.bf16.msra.mxu0 0
        %4772 = vmatprep.subr.bf16.mxu0 0
        %4773 = vmatpush1.bf16.msra.mxu0 0
        %4774 = vmatprep.subr.bf16.mxu0 0
        %4775 = vmatpush1.bf16.msra.mxu0 0
        %4776 = vmatprep.subr.bf16.mxu0 0
        %4777 = vmatpush1.bf16.msra.mxu0 0
        %4778 = vmatprep.subr.bf16.mxu0 0
        %4779 = vmatpush1.bf16.msra.mxu0 0
        %4780 = vmatprep.subr.bf16.mxu0 0
        %4781 = vmatpush1.bf16.msra.mxu0 0
        %4782 = vmatprep.subr.bf16.mxu0 0
        %4783 = vmatpush1.bf16.msra.mxu0 %v4766
        %4784 = vmatprep.subr.bf16.mxu0 0
        %4785 = vmatpush2.bf16.msra.mxu0 0
        %4786 = vmatprep.subr.bf16.mxu0 0
        %4787 = vmatpush2.bf16.msra.mxu0 0
        %4788 = vmatprep.subr.bf16.mxu0 0
        %4789 = vmatpush2.bf16.msra.mxu0 0
        %4790 = vmatprep.subr.bf16.mxu0 0
        %4791 = vmatpush2.bf16.msra.mxu0 0
        %4792 = vmatprep.subr.bf16.mxu0 0
        %4793 = vmatpush2.bf16.msra.mxu0 0
        %4794 = vmatprep.subr.bf16.mxu0 0
        %4795 = vmatpush2.bf16.msra.mxu0 0
        %4796 = vmatprep.subr.bf16.mxu0 0
        %4797 = vmatpush2.bf16.msra.mxu0 0
        %4798 = vmatprep.subr.bf16.mxu0 0
        %4799 = vmatpush2.bf16.msra.mxu0 0
        %4800 = vmatprep.mubr.bf16.mxu0 0
        %4801 = vmatmul.mubr.bf16.gmra.mxu0 %v4742
        %v4802 = vpop.f32.mrf.mxu0
        %v4803 = vadd.f32 0.0, %v4802
        %v4804 = vpop.f32.mrf.mxu0
        %v4805 = vpop.f32.mrf.mxu0
        %v4806 = vadd.f32 0.0, %v4805
        %v4807 = vpop.f32.mrf.mxu0
        %4808 = vmatprep.mubr.bf16.mxu0 0
        %4809 = vmatmul.mubr.bf16.gmra.mxu0 %v4745
        %v4810 = vpop.f32.mrf.mxu0
        %v4811 = vadd.f32 0.0, %v4810
        %v4812 = vpop.f32.mrf.mxu0
        %v4813 = vpop.f32.mrf.mxu0
        %v4814 = vadd.f32 0.0, %v4813
        %v4815 = vpop.f32.mrf.mxu0
        %4816 = vmatprep.mubr.bf16.mxu0 0
        %4817 = vmatmul.mubr.bf16.gmra.mxu0 %v4748
        %v4818 = vpop.f32.mrf.mxu0
        %v4819 = vadd.f32 0.0, %v4818
        %v4820 = vpop.f32.mrf.mxu0
        %v4821 = vpop.f32.mrf.mxu0
        %v4822 = vadd.f32 0.0, %v4821
        %v4823 = vpop.f32.mrf.mxu0
        %4824 = vmatprep.mubr.bf16.mxu0 0
        %4825 = vmatmul.mubr.bf16.gmra.mxu0 %v4751
        %v4826 = vpop.f32.mrf.mxu0
        %v4827 = vadd.f32 0.0, %v4826
        %v4828 = vpop.f32.mrf.mxu0
        %v4829 = vpop.f32.mrf.mxu0
        %v4830 = vadd.f32 0.0, %v4829
        %v4831 = vpop.f32.mrf.mxu0
        %4832 = vmatprep.mubr.bf16.mxu0 0
        %4833 = vmatmul.mubr.bf16.gmra.mxu0 %v4754
        %v4834 = vpop.f32.mrf.mxu0
        %v4835 = vadd.f32 0.0, %v4834
        %v4836 = vpop.f32.mrf.mxu0
        %v4837 = vpop.f32.mrf.mxu0
        %v4838 = vadd.f32 0.0, %v4837
        %v4839 = vpop.f32.mrf.mxu0
        %4840 = vmatprep.mubr.bf16.mxu0 0
        %4841 = vmatmul.mubr.bf16.gmra.mxu0 %v4757
        %v4842 = vpop.f32.mrf.mxu0
        %v4843 = vadd.f32 0.0, %v4842
        %v4844 = vpop.f32.mrf.mxu0
        %v4845 = vpop.f32.mrf.mxu0
        %v4846 = vadd.f32 0.0, %v4845
        %v4847 = vpop.f32.mrf.mxu0
        %4848 = vmatprep.mubr.bf16.mxu0 0
        %4849 = vmatmul.mubr.bf16.gmra.mxu0 %v4760
        %v4850 = vpop.f32.mrf.mxu0
        %v4851 = vadd.f32 0.0, %v4850
        %v4852 = vpop.f32.mrf.mxu0
        %v4853 = vpop.f32.mrf.mxu0
        %v4854 = vadd.f32 0.0, %v4853
        %v4855 = vpop.f32.mrf.mxu0
        %4856 = vmatprep.mubr.bf16.mxu0 0
        %4857 = vmatmul.mubr.bf16.gmra.mxu0 %v4763
        %v4858 = vpop.f32.mrf.mxu0
        %v4859 = vadd.f32 0.0, %v4858
        %v4860 = vpop.f32.mrf.mxu0
        %v4861 = vpop.f32.mrf.mxu0
        %v4862 = vadd.f32 0.0, %v4861
        %v4863 = vpop.f32.mrf.mxu0
        %4864 = vdwg.mxu0
        %v4865 = vpack.c.bf16 %v4806, %v4803
        %v4866 = vpack.c.bf16 %v4814, %v4811
        %v4867 = vpack.c.bf16 %v4822, %v4819
        %v4868 = vpack.c.bf16 %v4830, %v4827
        %v4869 = vpack.c.bf16 %v4838, %v4835
        %v4870 = vpack.c.bf16 %v4846, %v4843
        %v4871 = vpack.c.bf16 %v4854, %v4851
        %v4872 = vpack.c.bf16 %v4862, %v4859
        %v4881 = vunpack.c.l.b16 %v4865
        %v4882 = vunpack.c.h.b16 %v4865
        %v4883 = vunpack.c.l.b16 %v4866
        %v4884 = vunpack.c.h.b16 %v4866
        %v4885 = vunpack.c.l.b16 %v4867
        %v4886 = vunpack.c.h.b16 %v4867
        %v4887 = vunpack.c.l.b16 %v4868
        %v4888 = vunpack.c.h.b16 %v4868
        %v4889 = vunpack.c.l.b16 %v4869
        %v4890 = vunpack.c.h.b16 %v4869
        %v4891 = vunpack.c.l.b16 %v4870
        %v4892 = vunpack.c.h.b16 %v4870
        %v4893 = vunpack.c.l.b16 %v4871
        %v4894 = vunpack.c.h.b16 %v4871
        %v4895 = vunpack.c.l.b16 %v4872
        %v4896 = vunpack.c.h.b16 %v4872
        %v4897 = vpack.c.b16 %v4881, %v4881
        %v4898 = vpack.c.b16 %v4882, %v4882
        %v4899 = vpack.c.b16 %v4883, %v4883
        %v4900 = vpack.c.b16 %v4884, %v4884
        %v4901 = vpack.c.b16 %v4885, %v4885
        %v4902 = vpack.c.b16 %v4886, %v4886
        %v4903 = vpack.c.b16 %v4887, %v4887
        %v4904 = vpack.c.b16 %v4888, %v4888
        %v4905 = vpack.c.b16 %v4889, %v4889
        %v4906 = vpack.c.b16 %v4890, %v4890
        %v4907 = vpack.c.b16 %v4891, %v4891
        %v4908 = vpack.c.b16 %v4892, %v4892
        %v4909 = vpack.c.b16 %v4893, %v4893
        %v4910 = vpack.c.b16 %v4894, %v4894
        %v4911 = vpack.c.b16 %v4895, %v4895
        %v4912 = vpack.c.b16 %v4896, %v4896
        %s4929 = scalar_lea.vmem %s647, 640 [#allocation20]
        %4930 = vst [vmem:[%s4929] sm:$0xf] %v4897
        %4931 = vst [vmem:[%s4929 + $0x4] sm:$0xf] %v4898
        %4932 = vst [vmem:[%s4929 + $0x8] sm:$0xf] %v4899
        %4933 = vst [vmem:[%s4929 + $0xc] sm:$0xf] %v4900
        %4934 = vst [vmem:[%s4929 + $0x10] sm:$0xf] %v4901
        %4935 = vst [vmem:[%s4929 + $0x14] sm:$0xf] %v4902
        %4936 = vst [vmem:[%s4929 + $0x18] sm:$0xf] %v4903
        %4937 = vst [vmem:[%s4929 + $0x1c] sm:$0xf] %v4904
        %4938 = vst [vmem:[%s4929 + $0x20] sm:$0xf] %v4905
        %4939 = vst [vmem:[%s4929 + $0x24] sm:$0xf] %v4906
        %4940 = vst [vmem:[%s4929 + $0x28] sm:$0xf] %v4907
        %4941 = vst [vmem:[%s4929 + $0x2c] sm:$0xf] %v4908
        %4942 = vst [vmem:[%s4929 + $0x30] sm:$0xf] %v4909
        %4943 = vst [vmem:[%s4929 + $0x34] sm:$0xf] %v4910
        %4944 = vst [vmem:[%s4929 + $0x38] sm:$0xf] %v4911
        %4945 = vst [vmem:[%s4929 + $0x3c] sm:$0xf] %v4912
        %4946 = vxpose.xlu0.c.b16.start [1/8] %v2493, 128
        %4947 = vxpose.xlu0.c.b16.cont [2/8] 0, 128
        %4948 = vxpose.xlu0.c.b16.cont [3/8] 0, 128
        %4949 = vxpose.xlu0.c.b16.cont [4/8] 0, 128
        %4950 = vxpose.xlu0.c.b16.cont [5/8] 0, 128
        %4951 = vxpose.xlu0.c.b16.cont [6/8] 0, 128
        %4952 = vxpose.xlu0.c.b16.cont [7/8] 0, 128
        %4953 = vxpose.xlu0.c.b16.end [8/8] 0, 128
        %v4954 = vpop.trf.xlu0
        %v4955 = vpop.trf.xlu0
        %v4956 = vpop.trf.xlu0
        %v4957 = vpop.trf.xlu0
        %v4958 = vpop.trf.xlu0
        %v4959 = vpop.trf.xlu0
        %v4960 = vpop.trf.xlu0
        %v4961 = vpop.trf.xlu0
        %v4963 = vsel %vm2530, %v4954, 0
        %v4966 = vsel %vm2530, %v4955, 0
        %v4969 = vsel %vm2530, %v4956, 0
        %v4972 = vsel %vm2530, %v4957, 0
        %v4975 = vsel %vm2530, %v4958, 0
        %v4978 = vsel %vm2530, %v4959, 0
        %v4981 = vsel %vm2530, %v4960, 0
        %v4984 = vsel %vm2530, %v4961, 0
        %v4987 = vsel %vm2555, %v680, 0
        %4989 = vmatprep.subr.bf16.mxu0 0
        %4990 = vmatpush1.bf16.msra.mxu0 0
        %4991 = vmatprep.subr.bf16.mxu0 0
        %4992 = vmatpush1.bf16.msra.mxu0 0
        %4993 = vmatprep.subr.bf16.mxu0 0
        %4994 = vmatpush1.bf16.msra.mxu0 0
        %4995 = vmatprep.subr.bf16.mxu0 0
        %4996 = vmatpush1.bf16.msra.mxu0 0
        %4997 = vmatprep.subr.bf16.mxu0 0
        %4998 = vmatpush1.bf16.msra.mxu0 0
        %4999 = vmatprep.subr.bf16.mxu0 0
        %5000 = vmatpush1.bf16.msra.mxu0 0
        %5001 = vmatprep.subr.bf16.mxu0 0
        %5002 = vmatpush1.bf16.msra.mxu0 0
        %5003 = vmatprep.subr.bf16.mxu0 0
        %5004 = vmatpush1.bf16.msra.mxu0 %v4987
        %5005 = vmatprep.subr.bf16.mxu0 0
        %5006 = vmatpush2.bf16.msra.mxu0 0
        %5007 = vmatprep.subr.bf16.mxu0 0
        %5008 = vmatpush2.bf16.msra.mxu0 0
        %5009 = vmatprep.subr.bf16.mxu0 0
        %5010 = vmatpush2.bf16.msra.mxu0 0
        %5011 = vmatprep.subr.bf16.mxu0 0
        %5012 = vmatpush2.bf16.msra.mxu0 0
        %5013 = vmatprep.subr.bf16.mxu0 0
        %5014 = vmatpush2.bf16.msra.mxu0 0
        %5015 = vmatprep.subr.bf16.mxu0 0
        %5016 = vmatpush2.bf16.msra.mxu0 0
        %5017 = vmatprep.subr.bf16.mxu0 0
        %5018 = vmatpush2.bf16.msra.mxu0 0
        %5019 = vmatprep.subr.bf16.mxu0 0
        %5020 = vmatpush2.bf16.msra.mxu0 0
        %5021 = vmatprep.mubr.bf16.mxu0 0
        %5022 = vmatmul.mubr.bf16.gmra.mxu0 %v4963
        %v5023 = vpop.f32.mrf.mxu0
        %v5024 = vadd.f32 0.0, %v5023
        %v5025 = vpop.f32.mrf.mxu0
        %v5026 = vpop.f32.mrf.mxu0
        %v5027 = vadd.f32 0.0, %v5026
        %v5028 = vpop.f32.mrf.mxu0
        %5029 = vmatprep.mubr.bf16.mxu0 0
        %5030 = vmatmul.mubr.bf16.gmra.mxu0 %v4966
        %v5031 = vpop.f32.mrf.mxu0
        %v5032 = vadd.f32 0.0, %v5031
        %v5033 = vpop.f32.mrf.mxu0
        %v5034 = vpop.f32.mrf.mxu0
        %v5035 = vadd.f32 0.0, %v5034
        %v5036 = vpop.f32.mrf.mxu0
        %5037 = vmatprep.mubr.bf16.mxu0 0
        %5038 = vmatmul.mubr.bf16.gmra.mxu0 %v4969
        %v5039 = vpop.f32.mrf.mxu0
        %v5040 = vadd.f32 0.0, %v5039
        %v5041 = vpop.f32.mrf.mxu0
        %v5042 = vpop.f32.mrf.mxu0
        %v5043 = vadd.f32 0.0, %v5042
        %v5044 = vpop.f32.mrf.mxu0
        %5045 = vmatprep.mubr.bf16.mxu0 0
        %5046 = vmatmul.mubr.bf16.gmra.mxu0 %v4972
        %v5047 = vpop.f32.mrf.mxu0
        %v5048 = vadd.f32 0.0, %v5047
        %v5049 = vpop.f32.mrf.mxu0
        %v5050 = vpop.f32.mrf.mxu0
        %v5051 = vadd.f32 0.0, %v5050
        %v5052 = vpop.f32.mrf.mxu0
        %5053 = vmatprep.mubr.bf16.mxu0 0
        %5054 = vmatmul.mubr.bf16.gmra.mxu0 %v4975
        %v5055 = vpop.f32.mrf.mxu0
        %v5056 = vadd.f32 0.0, %v5055
        %v5057 = vpop.f32.mrf.mxu0
        %v5058 = vpop.f32.mrf.mxu0
        %v5059 = vadd.f32 0.0, %v5058
        %v5060 = vpop.f32.mrf.mxu0
        %5061 = vmatprep.mubr.bf16.mxu0 0
        %5062 = vmatmul.mubr.bf16.gmra.mxu0 %v4978
        %v5063 = vpop.f32.mrf.mxu0
        %v5064 = vadd.f32 0.0, %v5063
        %v5065 = vpop.f32.mrf.mxu0
        %v5066 = vpop.f32.mrf.mxu0
        %v5067 = vadd.f32 0.0, %v5066
        %v5068 = vpop.f32.mrf.mxu0
        %5069 = vmatprep.mubr.bf16.mxu0 0
        %5070 = vmatmul.mubr.bf16.gmra.mxu0 %v4981
        %v5071 = vpop.f32.mrf.mxu0
        %v5072 = vadd.f32 0.0, %v5071
        %v5073 = vpop.f32.mrf.mxu0
        %v5074 = vpop.f32.mrf.mxu0
        %v5075 = vadd.f32 0.0, %v5074
        %v5076 = vpop.f32.mrf.mxu0
        %5077 = vmatprep.mubr.bf16.mxu0 0
        %5078 = vmatmul.mubr.bf16.gmra.mxu0 %v4984
        %v5079 = vpop.f32.mrf.mxu0
        %v5080 = vadd.f32 0.0, %v5079
        %v5081 = vpop.f32.mrf.mxu0
        %v5082 = vpop.f32.mrf.mxu0
        %v5083 = vadd.f32 0.0, %v5082
        %v5084 = vpop.f32.mrf.mxu0
        %5085 = vdwg.mxu0
        %v5086 = vpack.c.bf16 %v5027, %v5024
        %v5087 = vpack.c.bf16 %v5035, %v5032
        %v5088 = vpack.c.bf16 %v5043, %v5040
        %v5089 = vpack.c.bf16 %v5051, %v5048
        %v5090 = vpack.c.bf16 %v5059, %v5056
        %v5091 = vpack.c.bf16 %v5067, %v5064
        %v5092 = vpack.c.bf16 %v5075, %v5072
        %v5093 = vpack.c.bf16 %v5083, %v5080
        %v5102 = vunpack.c.l.b16 %v5086
        %v5103 = vunpack.c.h.b16 %v5086
        %v5104 = vunpack.c.l.b16 %v5087
        %v5105 = vunpack.c.h.b16 %v5087
        %v5106 = vunpack.c.l.b16 %v5088
        %v5107 = vunpack.c.h.b16 %v5088
        %v5108 = vunpack.c.l.b16 %v5089
        %v5109 = vunpack.c.h.b16 %v5089
        %v5110 = vunpack.c.l.b16 %v5090
        %v5111 = vunpack.c.h.b16 %v5090
        %v5112 = vunpack.c.l.b16 %v5091
        %v5113 = vunpack.c.h.b16 %v5091
        %v5114 = vunpack.c.l.b16 %v5092
        %v5115 = vunpack.c.h.b16 %v5092
        %v5116 = vunpack.c.l.b16 %v5093
        %v5117 = vunpack.c.h.b16 %v5093
        %v5118 = vpack.c.b16 %v5102, %v5102
        %v5119 = vpack.c.b16 %v5103, %v5103
        %v5120 = vpack.c.b16 %v5104, %v5104
        %v5121 = vpack.c.b16 %v5105, %v5105
        %v5122 = vpack.c.b16 %v5106, %v5106
        %v5123 = vpack.c.b16 %v5107, %v5107
        %v5124 = vpack.c.b16 %v5108, %v5108
        %v5125 = vpack.c.b16 %v5109, %v5109
        %v5126 = vpack.c.b16 %v5110, %v5110
        %v5127 = vpack.c.b16 %v5111, %v5111
        %v5128 = vpack.c.b16 %v5112, %v5112
        %v5129 = vpack.c.b16 %v5113, %v5113
        %v5130 = vpack.c.b16 %v5114, %v5114
        %v5131 = vpack.c.b16 %v5115, %v5115
        %v5132 = vpack.c.b16 %v5116, %v5116
        %v5133 = vpack.c.b16 %v5117, %v5117
        %s5150 = scalar_lea.vmem %s647, 704 [#allocation20]
        %5151 = vst [vmem:[%s5150] sm:$0xf] %v5118
        %5152 = vst [vmem:[%s5150 + $0x4] sm:$0xf] %v5119
        %5153 = vst [vmem:[%s5150 + $0x8] sm:$0xf] %v5120
        %5154 = vst [vmem:[%s5150 + $0xc] sm:$0xf] %v5121
        %5155 = vst [vmem:[%s5150 + $0x10] sm:$0xf] %v5122
        %5156 = vst [vmem:[%s5150 + $0x14] sm:$0xf] %v5123
        %5157 = vst [vmem:[%s5150 + $0x18] sm:$0xf] %v5124
        %5158 = vst [vmem:[%s5150 + $0x1c] sm:$0xf] %v5125
        %5159 = vst [vmem:[%s5150 + $0x20] sm:$0xf] %v5126
        %5160 = vst [vmem:[%s5150 + $0x24] sm:$0xf] %v5127
        %5161 = vst [vmem:[%s5150 + $0x28] sm:$0xf] %v5128
        %5162 = vst [vmem:[%s5150 + $0x2c] sm:$0xf] %v5129
        %5163 = vst [vmem:[%s5150 + $0x30] sm:$0xf] %v5130
        %5164 = vst [vmem:[%s5150 + $0x34] sm:$0xf] %v5131
        %5165 = vst [vmem:[%s5150 + $0x38] sm:$0xf] %v5132
        %5166 = vst [vmem:[%s5150 + $0x3c] sm:$0xf] %v5133
        %5167 = vxpose.xlu0.c.b16.start [1/8] %v2494, 128
        %5168 = vxpose.xlu0.c.b16.cont [2/8] 0, 128
        %5169 = vxpose.xlu0.c.b16.cont [3/8] 0, 128
        %5170 = vxpose.xlu0.c.b16.cont [4/8] 0, 128
        %5171 = vxpose.xlu0.c.b16.cont [5/8] 0, 128
        %5172 = vxpose.xlu0.c.b16.cont [6/8] 0, 128
        %5173 = vxpose.xlu0.c.b16.cont [7/8] 0, 128
        %5174 = vxpose.xlu0.c.b16.end [8/8] 0, 128
        %v5175 = vpop.trf.xlu0
        %v5176 = vpop.trf.xlu0
        %v5177 = vpop.trf.xlu0
        %v5178 = vpop.trf.xlu0
        %v5179 = vpop.trf.xlu0
        %v5180 = vpop.trf.xlu0
        %v5181 = vpop.trf.xlu0
        %v5182 = vpop.trf.xlu0
        %v5184 = vsel %vm2530, %v5175, 0
        %v5187 = vsel %vm2530, %v5176, 0
        %v5190 = vsel %vm2530, %v5177, 0
        %v5193 = vsel %vm2530, %v5178, 0
        %v5196 = vsel %vm2530, %v5179, 0
        %v5199 = vsel %vm2530, %v5180, 0
        %v5202 = vsel %vm2530, %v5181, 0
        %v5205 = vsel %vm2530, %v5182, 0
        %v5208 = vsel %vm2555, %v681, 0
        %5210 = vmatprep.subr.bf16.mxu0 0
        %5211 = vmatpush1.bf16.msra.mxu0 0
        %5212 = vmatprep.subr.bf16.mxu0 0
        %5213 = vmatpush1.bf16.msra.mxu0 0
        %5214 = vmatprep.subr.bf16.mxu0 0
        %5215 = vmatpush1.bf16.msra.mxu0 0
        %5216 = vmatprep.subr.bf16.mxu0 0
        %5217 = vmatpush1.bf16.msra.mxu0 0
        %5218 = vmatprep.subr.bf16.mxu0 0
        %5219 = vmatpush1.bf16.msra.mxu0 0
        %5220 = vmatprep.subr.bf16.mxu0 0
        %5221 = vmatpush1.bf16.msra.mxu0 0
        %5222 = vmatprep.subr.bf16.mxu0 0
        %5223 = vmatpush1.bf16.msra.mxu0 0
        %5224 = vmatprep.subr.bf16.mxu0 0
        %5225 = vmatpush1.bf16.msra.mxu0 %v5208
        %5226 = vmatprep.subr.bf16.mxu0 0
        %5227 = vmatpush2.bf16.msra.mxu0 0
        %5228 = vmatprep.subr.bf16.mxu0 0
        %5229 = vmatpush2.bf16.msra.mxu0 0
        %5230 = vmatprep.subr.bf16.mxu0 0
        %5231 = vmatpush2.bf16.msra.mxu0 0
        %5232 = vmatprep.subr.bf16.mxu0 0
        %5233 = vmatpush2.bf16.msra.mxu0 0
        %5234 = vmatprep.subr.bf16.mxu0 0
        %5235 = vmatpush2.bf16.msra.mxu0 0
        %5236 = vmatprep.subr.bf16.mxu0 0
        %5237 = vmatpush2.bf16.msra.mxu0 0
        %5238 = vmatprep.subr.bf16.mxu0 0
        %5239 = vmatpush2.bf16.msra.mxu0 0
        %5240 = vmatprep.subr.bf16.mxu0 0
        %5241 = vmatpush2.bf16.msra.mxu0 0
        %5242 = vmatprep.mubr.bf16.mxu0 0
        %5243 = vmatmul.mubr.bf16.gmra.mxu0 %v5184
        %v5244 = vpop.f32.mrf.mxu0
        %v5245 = vadd.f32 0.0, %v5244
        %v5246 = vpop.f32.mrf.mxu0
        %v5247 = vpop.f32.mrf.mxu0
        %v5248 = vadd.f32 0.0, %v5247
        %v5249 = vpop.f32.mrf.mxu0
        %5250 = vmatprep.mubr.bf16.mxu0 0
        %5251 = vmatmul.mubr.bf16.gmra.mxu0 %v5187
        %v5252 = vpop.f32.mrf.mxu0
        %v5253 = vadd.f32 0.0, %v5252
        %v5254 = vpop.f32.mrf.mxu0
        %v5255 = vpop.f32.mrf.mxu0
        %v5256 = vadd.f32 0.0, %v5255
        %v5257 = vpop.f32.mrf.mxu0
        %5258 = vmatprep.mubr.bf16.mxu0 0
        %5259 = vmatmul.mubr.bf16.gmra.mxu0 %v5190
        %v5260 = vpop.f32.mrf.mxu0
        %v5261 = vadd.f32 0.0, %v5260
        %v5262 = vpop.f32.mrf.mxu0
        %v5263 = vpop.f32.mrf.mxu0
        %v5264 = vadd.f32 0.0, %v5263
        %v5265 = vpop.f32.mrf.mxu0
        %5266 = vmatprep.mubr.bf16.mxu0 0
        %5267 = vmatmul.mubr.bf16.gmra.mxu0 %v5193
        %v5268 = vpop.f32.mrf.mxu0
        %v5269 = vadd.f32 0.0, %v5268
        %v5270 = vpop.f32.mrf.mxu0
        %v5271 = vpop.f32.mrf.mxu0
        %v5272 = vadd.f32 0.0, %v5271
        %v5273 = vpop.f32.mrf.mxu0
        %5274 = vmatprep.mubr.bf16.mxu0 0
        %5275 = vmatmul.mubr.bf16.gmra.mxu0 %v5196
        %v5276 = vpop.f32.mrf.mxu0
        %v5277 = vadd.f32 0.0, %v5276
        %v5278 = vpop.f32.mrf.mxu0
        %v5279 = vpop.f32.mrf.mxu0
        %v5280 = vadd.f32 0.0, %v5279
        %v5281 = vpop.f32.mrf.mxu0
        %5282 = vmatprep.mubr.bf16.mxu0 0
        %5283 = vmatmul.mubr.bf16.gmra.mxu0 %v5199
        %v5284 = vpop.f32.mrf.mxu0
        %v5285 = vadd.f32 0.0, %v5284
        %v5286 = vpop.f32.mrf.mxu0
        %v5287 = vpop.f32.mrf.mxu0
        %v5288 = vadd.f32 0.0, %v5287
        %v5289 = vpop.f32.mrf.mxu0
        %5290 = vmatprep.mubr.bf16.mxu0 0
        %5291 = vmatmul.mubr.bf16.gmra.mxu0 %v5202
        %v5292 = vpop.f32.mrf.mxu0
        %v5293 = vadd.f32 0.0, %v5292
        %v5294 = vpop.f32.mrf.mxu0
        %v5295 = vpop.f32.mrf.mxu0
        %v5296 = vadd.f32 0.0, %v5295
        %v5297 = vpop.f32.mrf.mxu0
        %5298 = vmatprep.mubr.bf16.mxu0 0
        %5299 = vmatmul.mubr.bf16.gmra.mxu0 %v5205
        %v5300 = vpop.f32.mrf.mxu0
        %v5301 = vadd.f32 0.0, %v5300
        %v5302 = vpop.f32.mrf.mxu0
        %v5303 = vpop.f32.mrf.mxu0
        %v5304 = vadd.f32 0.0, %v5303
        %v5305 = vpop.f32.mrf.mxu0
        %5306 = vdwg.mxu0
        %v5307 = vpack.c.bf16 %v5248, %v5245
        %v5308 = vpack.c.bf16 %v5256, %v5253
        %v5309 = vpack.c.bf16 %v5264, %v5261
        %v5310 = vpack.c.bf16 %v5272, %v5269
        %v5311 = vpack.c.bf16 %v5280, %v5277
        %v5312 = vpack.c.bf16 %v5288, %v5285
        %v5313 = vpack.c.bf16 %v5296, %v5293
        %v5314 = vpack.c.bf16 %v5304, %v5301
        %v5323 = vunpack.c.l.b16 %v5307
        %v5324 = vunpack.c.h.b16 %v5307
        %v5325 = vunpack.c.l.b16 %v5308
        %v5326 = vunpack.c.h.b16 %v5308
        %v5327 = vunpack.c.l.b16 %v5309
        %v5328 = vunpack.c.h.b16 %v5309
        %v5329 = vunpack.c.l.b16 %v5310
        %v5330 = vunpack.c.h.b16 %v5310
        %v5331 = vunpack.c.l.b16 %v5311
        %v5332 = vunpack.c.h.b16 %v5311
        %v5333 = vunpack.c.l.b16 %v5312
        %v5334 = vunpack.c.h.b16 %v5312
        %v5335 = vunpack.c.l.b16 %v5313
        %v5336 = vunpack.c.h.b16 %v5313
        %v5337 = vunpack.c.l.b16 %v5314
        %v5338 = vunpack.c.h.b16 %v5314
        %v5339 = vpack.c.b16 %v5323, %v5323
        %v5340 = vpack.c.b16 %v5324, %v5324
        %v5341 = vpack.c.b16 %v5325, %v5325
        %v5342 = vpack.c.b16 %v5326, %v5326
        %v5343 = vpack.c.b16 %v5327, %v5327
        %v5344 = vpack.c.b16 %v5328, %v5328
        %v5345 = vpack.c.b16 %v5329, %v5329
        %v5346 = vpack.c.b16 %v5330, %v5330
        %v5347 = vpack.c.b16 %v5331, %v5331
        %v5348 = vpack.c.b16 %v5332, %v5332
        %v5349 = vpack.c.b16 %v5333, %v5333
        %v5350 = vpack.c.b16 %v5334, %v5334
        %v5351 = vpack.c.b16 %v5335, %v5335
        %v5352 = vpack.c.b16 %v5336, %v5336
        %v5353 = vpack.c.b16 %v5337, %v5337
        %v5354 = vpack.c.b16 %v5338, %v5338
        %s5371 = scalar_lea.vmem %s647, 768 [#allocation20]
        %5372 = vst [vmem:[%s5371] sm:$0xf] %v5339
        %5373 = vst [vmem:[%s5371 + $0x4] sm:$0xf] %v5340
        %5374 = vst [vmem:[%s5371 + $0x8] sm:$0xf] %v5341
        %5375 = vst [vmem:[%s5371 + $0xc] sm:$0xf] %v5342
        %5376 = vst [vmem:[%s5371 + $0x10] sm:$0xf] %v5343
        %5377 = vst [vmem:[%s5371 + $0x14] sm:$0xf] %v5344
        %5378 = vst [vmem:[%s5371 + $0x18] sm:$0xf] %v5345
        %5379 = vst [vmem:[%s5371 + $0x1c] sm:$0xf] %v5346
        %5380 = vst [vmem:[%s5371 + $0x20] sm:$0xf] %v5347
        %5381 = vst [vmem:[%s5371 + $0x24] sm:$0xf] %v5348
        %5382 = vst [vmem:[%s5371 + $0x28] sm:$0xf] %v5349
        %5383 = vst [vmem:[%s5371 + $0x2c] sm:$0xf] %v5350
        %5384 = vst [vmem:[%s5371 + $0x30] sm:$0xf] %v5351
        %5385 = vst [vmem:[%s5371 + $0x34] sm:$0xf] %v5352
        %5386 = vst [vmem:[%s5371 + $0x38] sm:$0xf] %v5353
        %5387 = vst [vmem:[%s5371 + $0x3c] sm:$0xf] %v5354
        %5388 = vxpose.xlu0.c.b16.start [1/8] %v2495, 128
        %5389 = vxpose.xlu0.c.b16.cont [2/8] 0, 128
        %5390 = vxpose.xlu0.c.b16.cont [3/8] 0, 128
        %5391 = vxpose.xlu0.c.b16.cont [4/8] 0, 128
        %5392 = vxpose.xlu0.c.b16.cont [5/8] 0, 128
        %5393 = vxpose.xlu0.c.b16.cont [6/8] 0, 128
        %5394 = vxpose.xlu0.c.b16.cont [7/8] 0, 128
        %5395 = vxpose.xlu0.c.b16.end [8/8] 0, 128
        %v5396 = vpop.trf.xlu0
        %v5397 = vpop.trf.xlu0
        %v5398 = vpop.trf.xlu0
        %v5399 = vpop.trf.xlu0
        %v5400 = vpop.trf.xlu0
        %v5401 = vpop.trf.xlu0
        %v5402 = vpop.trf.xlu0
        %v5403 = vpop.trf.xlu0
        %v5405 = vsel %vm2530, %v5396, 0
        %v5408 = vsel %vm2530, %v5397, 0
        %v5411 = vsel %vm2530, %v5398, 0
        %v5414 = vsel %vm2530, %v5399, 0
        %v5417 = vsel %vm2530, %v5400, 0
        %v5420 = vsel %vm2530, %v5401, 0
        %v5423 = vsel %vm2530, %v5402, 0
        %v5426 = vsel %vm2530, %v5403, 0
        %v5429 = vsel %vm2555, %v682, 0
        %5431 = vmatprep.subr.bf16.mxu0 0
        %5432 = vmatpush1.bf16.msra.mxu0 0
        %5433 = vmatprep.subr.bf16.mxu0 0
        %5434 = vmatpush1.bf16.msra.mxu0 0
        %5435 = vmatprep.subr.bf16.mxu0 0
        %5436 = vmatpush1.bf16.msra.mxu0 0
        %5437 = vmatprep.subr.bf16.mxu0 0
        %5438 = vmatpush1.bf16.msra.mxu0 0
        %5439 = vmatprep.subr.bf16.mxu0 0
        %5440 = vmatpush1.bf16.msra.mxu0 0
        %5441 = vmatprep.subr.bf16.mxu0 0
        %5442 = vmatpush1.bf16.msra.mxu0 0
        %5443 = vmatprep.subr.bf16.mxu0 0
        %5444 = vmatpush1.bf16.msra.mxu0 0
        %5445 = vmatprep.subr.bf16.mxu0 0
        %5446 = vmatpush1.bf16.msra.mxu0 %v5429
        %5447 = vmatprep.subr.bf16.mxu0 0
        %5448 = vmatpush2.bf16.msra.mxu0 0
        %5449 = vmatprep.subr.bf16.mxu0 0
        %5450 = vmatpush2.bf16.msra.mxu0 0
        %5451 = vmatprep.subr.bf16.mxu0 0
        %5452 = vmatpush2.bf16.msra.mxu0 0
        %5453 = vmatprep.subr.bf16.mxu0 0
        %5454 = vmatpush2.bf16.msra.mxu0 0
        %5455 = vmatprep.subr.bf16.mxu0 0
        %5456 = vmatpush2.bf16.msra.mxu0 0
        %5457 = vmatprep.subr.bf16.mxu0 0
        %5458 = vmatpush2.bf16.msra.mxu0 0
        %5459 = vmatprep.subr.bf16.mxu0 0
        %5460 = vmatpush2.bf16.msra.mxu0 0
        %5461 = vmatprep.subr.bf16.mxu0 0
        %5462 = vmatpush2.bf16.msra.mxu0 0
        %5463 = vmatprep.mubr.bf16.mxu0 0
        %5464 = vmatmul.mubr.bf16.gmra.mxu0 %v5405
        %v5465 = vpop.f32.mrf.mxu0
        %v5466 = vadd.f32 0.0, %v5465
        %v5467 = vpop.f32.mrf.mxu0
        %v5468 = vpop.f32.mrf.mxu0
        %v5469 = vadd.f32 0.0, %v5468
        %v5470 = vpop.f32.mrf.mxu0
        %5471 = vmatprep.mubr.bf16.mxu0 0
        %5472 = vmatmul.mubr.bf16.gmra.mxu0 %v5408
        %v5473 = vpop.f32.mrf.mxu0
        %v5474 = vadd.f32 0.0, %v5473
        %v5475 = vpop.f32.mrf.mxu0
        %v5476 = vpop.f32.mrf.mxu0
        %v5477 = vadd.f32 0.0, %v5476
        %v5478 = vpop.f32.mrf.mxu0
        %5479 = vmatprep.mubr.bf16.mxu0 0
        %5480 = vmatmul.mubr.bf16.gmra.mxu0 %v5411
        %v5481 = vpop.f32.mrf.mxu0
        %v5482 = vadd.f32 0.0, %v5481
        %v5483 = vpop.f32.mrf.mxu0
        %v5484 = vpop.f32.mrf.mxu0
        %v5485 = vadd.f32 0.0, %v5484
        %v5486 = vpop.f32.mrf.mxu0
        %5487 = vmatprep.mubr.bf16.mxu0 0
        %5488 = vmatmul.mubr.bf16.gmra.mxu0 %v5414
        %v5489 = vpop.f32.mrf.mxu0
        %v5490 = vadd.f32 0.0, %v5489
        %v5491 = vpop.f32.mrf.mxu0
        %v5492 = vpop.f32.mrf.mxu0
        %v5493 = vadd.f32 0.0, %v5492
        %v5494 = vpop.f32.mrf.mxu0
        %5495 = vmatprep.mubr.bf16.mxu0 0
        %5496 = vmatmul.mubr.bf16.gmra.mxu0 %v5417
        %v5497 = vpop.f32.mrf.mxu0
        %v5498 = vadd.f32 0.0, %v5497
        %v5499 = vpop.f32.mrf.mxu0
        %v5500 = vpop.f32.mrf.mxu0
        %v5501 = vadd.f32 0.0, %v5500
        %v5502 = vpop.f32.mrf.mxu0
        %5503 = vmatprep.mubr.bf16.mxu0 0
        %5504 = vmatmul.mubr.bf16.gmra.mxu0 %v5420
        %v5505 = vpop.f32.mrf.mxu0
        %v5506 = vadd.f32 0.0, %v5505
        %v5507 = vpop.f32.mrf.mxu0
        %v5508 = vpop.f32.mrf.mxu0
        %v5509 = vadd.f32 0.0, %v5508
        %v5510 = vpop.f32.mrf.mxu0
        %5511 = vmatprep.mubr.bf16.mxu0 0
        %5512 = vmatmul.mubr.bf16.gmra.mxu0 %v5423
        %v5513 = vpop.f32.mrf.mxu0
        %v5514 = vadd.f32 0.0, %v5513
        %v5515 = vpop.f32.mrf.mxu0
        %v5516 = vpop.f32.mrf.mxu0
        %v5517 = vadd.f32 0.0, %v5516
        %v5518 = vpop.f32.mrf.mxu0
        %5519 = vmatprep.mubr.bf16.mxu0 0
        %5520 = vmatmul.mubr.bf16.gmra.mxu0 %v5426
        %v5521 = vpop.f32.mrf.mxu0
        %v5522 = vadd.f32 0.0, %v5521
        %v5523 = vpop.f32.mrf.mxu0
        %v5524 = vpop.f32.mrf.mxu0
        %v5525 = vadd.f32 0.0, %v5524
        %v5526 = vpop.f32.mrf.mxu0
        %5527 = vdwg.mxu0
        %v5528 = vpack.c.bf16 %v5469, %v5466
        %v5529 = vpack.c.bf16 %v5477, %v5474
        %v5530 = vpack.c.bf16 %v5485, %v5482
        %v5531 = vpack.c.bf16 %v5493, %v5490
        %v5532 = vpack.c.bf16 %v5501, %v5498
        %v5533 = vpack.c.bf16 %v5509, %v5506
        %v5534 = vpack.c.bf16 %v5517, %v5514
        %v5535 = vpack.c.bf16 %v5525, %v5522
        %v5544 = vunpack.c.l.b16 %v5528
        %v5545 = vunpack.c.h.b16 %v5528
        %v5546 = vunpack.c.l.b16 %v5529
        %v5547 = vunpack.c.h.b16 %v5529
        %v5548 = vunpack.c.l.b16 %v5530
        %v5549 = vunpack.c.h.b16 %v5530
        %v5550 = vunpack.c.l.b16 %v5531
        %v5551 = vunpack.c.h.b16 %v5531
        %v5552 = vunpack.c.l.b16 %v5532
        %v5553 = vunpack.c.h.b16 %v5532
        %v5554 = vunpack.c.l.b16 %v5533
        %v5555 = vunpack.c.h.b16 %v5533
        %v5556 = vunpack.c.l.b16 %v5534
        %v5557 = vunpack.c.h.b16 %v5534
        %v5558 = vunpack.c.l.b16 %v5535
        %v5559 = vunpack.c.h.b16 %v5535
        %v5560 = vpack.c.b16 %v5544, %v5544
        %v5561 = vpack.c.b16 %v5545, %v5545
        %v5562 = vpack.c.b16 %v5546, %v5546
        %v5563 = vpack.c.b16 %v5547, %v5547
        %v5564 = vpack.c.b16 %v5548, %v5548
        %v5565 = vpack.c.b16 %v5549, %v5549
        %v5566 = vpack.c.b16 %v5550, %v5550
        %v5567 = vpack.c.b16 %v5551, %v5551
        %v5568 = vpack.c.b16 %v5552, %v5552
        %v5569 = vpack.c.b16 %v5553, %v5553
        %v5570 = vpack.c.b16 %v5554, %v5554
        %v5571 = vpack.c.b16 %v5555, %v5555
        %v5572 = vpack.c.b16 %v5556, %v5556
        %v5573 = vpack.c.b16 %v5557, %v5557
        %v5574 = vpack.c.b16 %v5558, %v5558
        %v5575 = vpack.c.b16 %v5559, %v5559
        %s5592 = scalar_lea.vmem %s647, 832 [#allocation20]
        %5593 = vst [vmem:[%s5592] sm:$0xf] %v5560
        %5594 = vst [vmem:[%s5592 + $0x4] sm:$0xf] %v5561
        %5595 = vst [vmem:[%s5592 + $0x8] sm:$0xf] %v5562
        %5596 = vst [vmem:[%s5592 + $0xc] sm:$0xf] %v5563
        %5597 = vst [vmem:[%s5592 + $0x10] sm:$0xf] %v5564
        %5598 = vst [vmem:[%s5592 + $0x14] sm:$0xf] %v5565
        %5599 = vst [vmem:[%s5592 + $0x18] sm:$0xf] %v5566
        %5600 = vst [vmem:[%s5592 + $0x1c] sm:$0xf] %v5567
        %5601 = vst [vmem:[%s5592 + $0x20] sm:$0xf] %v5568
        %5602 = vst [vmem:[%s5592 + $0x24] sm:$0xf] %v5569
        %5603 = vst [vmem:[%s5592 + $0x28] sm:$0xf] %v5570
        %5604 = vst [vmem:[%s5592 + $0x2c] sm:$0xf] %v5571
        %5605 = vst [vmem:[%s5592 + $0x30] sm:$0xf] %v5572
        %5606 = vst [vmem:[%s5592 + $0x34] sm:$0xf] %v5573
        %5607 = vst [vmem:[%s5592 + $0x38] sm:$0xf] %v5574
        %5608 = vst [vmem:[%s5592 + $0x3c] sm:$0xf] %v5575
        %5609 = vxpose.xlu0.c.b16.start [1/8] %v2496, 128
        %5610 = vxpose.xlu0.c.b16.cont [2/8] 0, 128
        %5611 = vxpose.xlu0.c.b16.cont [3/8] 0, 128
        %5612 = vxpose.xlu0.c.b16.cont [4/8] 0, 128
        %5613 = vxpose.xlu0.c.b16.cont [5/8] 0, 128
        %5614 = vxpose.xlu0.c.b16.cont [6/8] 0, 128
        %5615 = vxpose.xlu0.c.b16.cont [7/8] 0, 128
        %5616 = vxpose.xlu0.c.b16.end [8/8] 0, 128
        %v5617 = vpop.trf.xlu0
        %v5618 = vpop.trf.xlu0
        %v5619 = vpop.trf.xlu0
        %v5620 = vpop.trf.xlu0
        %v5621 = vpop.trf.xlu0
        %v5622 = vpop.trf.xlu0
        %v5623 = vpop.trf.xlu0
        %v5624 = vpop.trf.xlu0
        %v5626 = vsel %vm2530, %v5617, 0
        %v5629 = vsel %vm2530, %v5618, 0
        %v5632 = vsel %vm2530, %v5619, 0
        %v5635 = vsel %vm2530, %v5620, 0
        %v5638 = vsel %vm2530, %v5621, 0
        %v5641 = vsel %vm2530, %v5622, 0
        %v5644 = vsel %vm2530, %v5623, 0
        %v5647 = vsel %vm2530, %v5624, 0
        %v5650 = vsel %vm2555, %v683, 0
        %5652 = vmatprep.subr.bf16.mxu0 0
        %5653 = vmatpush1.bf16.msra.mxu0 0
        %5654 = vmatprep.subr.bf16.mxu0 0
        %5655 = vmatpush1.bf16.msra.mxu0 0
        %5656 = vmatprep.subr.bf16.mxu0 0
        %5657 = vmatpush1.bf16.msra.mxu0 0
        %5658 = vmatprep.subr.bf16.mxu0 0
        %5659 = vmatpush1.bf16.msra.mxu0 0
        %5660 = vmatprep.subr.bf16.mxu0 0
        %5661 = vmatpush1.bf16.msra.mxu0 0
        %5662 = vmatprep.subr.bf16.mxu0 0
        %5663 = vmatpush1.bf16.msra.mxu0 0
        %5664 = vmatprep.subr.bf16.mxu0 0
        %5665 = vmatpush1.bf16.msra.mxu0 0
        %5666 = vmatprep.subr.bf16.mxu0 0
        %5667 = vmatpush1.bf16.msra.mxu0 %v5650
        %5668 = vmatprep.subr.bf16.mxu0 0
        %5669 = vmatpush2.bf16.msra.mxu0 0
        %5670 = vmatprep.subr.bf16.mxu0 0
        %5671 = vmatpush2.bf16.msra.mxu0 0
        %5672 = vmatprep.subr.bf16.mxu0 0
        %5673 = vmatpush2.bf16.msra.mxu0 0
        %5674 = vmatprep.subr.bf16.mxu0 0
        %5675 = vmatpush2.bf16.msra.mxu0 0
        %5676 = vmatprep.subr.bf16.mxu0 0
        %5677 = vmatpush2.bf16.msra.mxu0 0
        %5678 = vmatprep.subr.bf16.mxu0 0
        %5679 = vmatpush2.bf16.msra.mxu0 0
        %5680 = vmatprep.subr.bf16.mxu0 0
        %5681 = vmatpush2.bf16.msra.mxu0 0
        %5682 = vmatprep.subr.bf16.mxu0 0
        %5683 = vmatpush2.bf16.msra.mxu0 0
        %5684 = vmatprep.mubr.bf16.mxu0 0
        %5685 = vmatmul.mubr.bf16.gmra.mxu0 %v5626
        %v5686 = vpop.f32.mrf.mxu0
        %v5687 = vadd.f32 0.0, %v5686
        %v5688 = vpop.f32.mrf.mxu0
        %v5689 = vpop.f32.mrf.mxu0
        %v5690 = vadd.f32 0.0, %v5689
        %v5691 = vpop.f32.mrf.mxu0
        %5692 = vmatprep.mubr.bf16.mxu0 0
        %5693 = vmatmul.mubr.bf16.gmra.mxu0 %v5629
        %v5694 = vpop.f32.mrf.mxu0
        %v5695 = vadd.f32 0.0, %v5694
        %v5696 = vpop.f32.mrf.mxu0
        %v5697 = vpop.f32.mrf.mxu0
        %v5698 = vadd.f32 0.0, %v5697
        %v5699 = vpop.f32.mrf.mxu0
        %5700 = vmatprep.mubr.bf16.mxu0 0
        %5701 = vmatmul.mubr.bf16.gmra.mxu0 %v5632
        %v5702 = vpop.f32.mrf.mxu0
        %v5703 = vadd.f32 0.0, %v5702
        %v5704 = vpop.f32.mrf.mxu0
        %v5705 = vpop.f32.mrf.mxu0
        %v5706 = vadd.f32 0.0, %v5705
        %v5707 = vpop.f32.mrf.mxu0
        %5708 = vmatprep.mubr.bf16.mxu0 0
        %5709 = vmatmul.mubr.bf16.gmra.mxu0 %v5635
        %v5710 = vpop.f32.mrf.mxu0
        %v5711 = vadd.f32 0.0, %v5710
        %v5712 = vpop.f32.mrf.mxu0
        %v5713 = vpop.f32.mrf.mxu0
        %v5714 = vadd.f32 0.0, %v5713
        %v5715 = vpop.f32.mrf.mxu0
        %5716 = vmatprep.mubr.bf16.mxu0 0
        %5717 = vmatmul.mubr.bf16.gmra.mxu0 %v5638
        %v5718 = vpop.f32.mrf.mxu0
        %v5719 = vadd.f32 0.0, %v5718
        %v5720 = vpop.f32.mrf.mxu0
        %v5721 = vpop.f32.mrf.mxu0
        %v5722 = vadd.f32 0.0, %v5721
        %v5723 = vpop.f32.mrf.mxu0
        %5724 = vmatprep.mubr.bf16.mxu0 0
        %5725 = vmatmul.mubr.bf16.gmra.mxu0 %v5641
        %v5726 = vpop.f32.mrf.mxu0
        %v5727 = vadd.f32 0.0, %v5726
        %v5728 = vpop.f32.mrf.mxu0
        %v5729 = vpop.f32.mrf.mxu0
        %v5730 = vadd.f32 0.0, %v5729
        %v5731 = vpop.f32.mrf.mxu0
        %5732 = vmatprep.mubr.bf16.mxu0 0
        %5733 = vmatmul.mubr.bf16.gmra.mxu0 %v5644
        %v5734 = vpop.f32.mrf.mxu0
        %v5735 = vadd.f32 0.0, %v5734
        %v5736 = vpop.f32.mrf.mxu0
        %v5737 = vpop.f32.mrf.mxu0
        %v5738 = vadd.f32 0.0, %v5737
        %v5739 = vpop.f32.mrf.mxu0
        %5740 = vmatprep.mubr.bf16.mxu0 0
        %5741 = vmatmul.mubr.bf16.gmra.mxu0 %v5647
        %v5742 = vpop.f32.mrf.mxu0
        %v5743 = vadd.f32 0.0, %v5742
        %v5744 = vpop.f32.mrf.mxu0
        %v5745 = vpop.f32.mrf.mxu0
        %v5746 = vadd.f32 0.0, %v5745
        %v5747 = vpop.f32.mrf.mxu0
        %5748 = vdwg.mxu0
        %v5749 = vpack.c.bf16 %v5690, %v5687
        %v5750 = vpack.c.bf16 %v5698, %v5695
        %v5751 = vpack.c.bf16 %v5706, %v5703
        %v5752 = vpack.c.bf16 %v5714, %v5711
        %v5753 = vpack.c.bf16 %v5722, %v5719
        %v5754 = vpack.c.bf16 %v5730, %v5727
        %v5755 = vpack.c.bf16 %v5738, %v5735
        %v5756 = vpack.c.bf16 %v5746, %v5743
        %v5765 = vunpack.c.l.b16 %v5749
        %v5766 = vunpack.c.h.b16 %v5749
        %v5767 = vunpack.c.l.b16 %v5750
        %v5768 = vunpack.c.h.b16 %v5750
        %v5769 = vunpack.c.l.b16 %v5751
        %v5770 = vunpack.c.h.b16 %v5751
        %v5771 = vunpack.c.l.b16 %v5752
        %v5772 = vunpack.c.h.b16 %v5752
        %v5773 = vunpack.c.l.b16 %v5753
        %v5774 = vunpack.c.h.b16 %v5753
        %v5775 = vunpack.c.l.b16 %v5754
        %v5776 = vunpack.c.h.b16 %v5754
        %v5777 = vunpack.c.l.b16 %v5755
        %v5778 = vunpack.c.h.b16 %v5755
        %v5779 = vunpack.c.l.b16 %v5756
        %v5780 = vunpack.c.h.b16 %v5756
        %v5781 = vpack.c.b16 %v5765, %v5765
        %v5782 = vpack.c.b16 %v5766, %v5766
        %v5783 = vpack.c.b16 %v5767, %v5767
        %v5784 = vpack.c.b16 %v5768, %v5768
        %v5785 = vpack.c.b16 %v5769, %v5769
        %v5786 = vpack.c.b16 %v5770, %v5770
        %v5787 = vpack.c.b16 %v5771, %v5771
        %v5788 = vpack.c.b16 %v5772, %v5772
        %v5789 = vpack.c.b16 %v5773, %v5773
        %v5790 = vpack.c.b16 %v5774, %v5774
        %v5791 = vpack.c.b16 %v5775, %v5775
        %v5792 = vpack.c.b16 %v5776, %v5776
        %v5793 = vpack.c.b16 %v5777, %v5777
        %v5794 = vpack.c.b16 %v5778, %v5778
        %v5795 = vpack.c.b16 %v5779, %v5779
        %v5796 = vpack.c.b16 %v5780, %v5780
        %s5813 = scalar_lea.vmem %s647, 896 [#allocation20]
        %5814 = vst [vmem:[%s5813] sm:$0xf] %v5781
        %5815 = vst [vmem:[%s5813 + $0x4] sm:$0xf] %v5782
        %5816 = vst [vmem:[%s5813 + $0x8] sm:$0xf] %v5783
        %5817 = vst [vmem:[%s5813 + $0xc] sm:$0xf] %v5784
        %5818 = vst [vmem:[%s5813 + $0x10] sm:$0xf] %v5785
        %5819 = vst [vmem:[%s5813 + $0x14] sm:$0xf] %v5786
        %5820 = vst [vmem:[%s5813 + $0x18] sm:$0xf] %v5787
        %5821 = vst [vmem:[%s5813 + $0x1c] sm:$0xf] %v5788
        %5822 = vst [vmem:[%s5813 + $0x20] sm:$0xf] %v5789
        %5823 = vst [vmem:[%s5813 + $0x24] sm:$0xf] %v5790
        %5824 = vst [vmem:[%s5813 + $0x28] sm:$0xf] %v5791
        %5825 = vst [vmem:[%s5813 + $0x2c] sm:$0xf] %v5792
        %5826 = vst [vmem:[%s5813 + $0x30] sm:$0xf] %v5793
        %5827 = vst [vmem:[%s5813 + $0x34] sm:$0xf] %v5794
        %5828 = vst [vmem:[%s5813 + $0x38] sm:$0xf] %v5795
        %5829 = vst [vmem:[%s5813 + $0x3c] sm:$0xf] %v5796
        %5830 = vxpose.xlu0.c.b16.start [1/8] %v2497, 128
        %5831 = vxpose.xlu0.c.b16.cont [2/8] 0, 128
        %5832 = vxpose.xlu0.c.b16.cont [3/8] 0, 128
        %5833 = vxpose.xlu0.c.b16.cont [4/8] 0, 128
        %5834 = vxpose.xlu0.c.b16.cont [5/8] 0, 128
        %5835 = vxpose.xlu0.c.b16.cont [6/8] 0, 128
        %5836 = vxpose.xlu0.c.b16.cont [7/8] 0, 128
        %5837 = vxpose.xlu0.c.b16.end [8/8] 0, 128
        %v5838 = vpop.trf.xlu0
        %v5839 = vpop.trf.xlu0
        %v5840 = vpop.trf.xlu0
        %v5841 = vpop.trf.xlu0
        %v5842 = vpop.trf.xlu0
        %v5843 = vpop.trf.xlu0
        %v5844 = vpop.trf.xlu0
        %v5845 = vpop.trf.xlu0
        %v5847 = vsel %vm2530, %v5838, 0
        %v5850 = vsel %vm2530, %v5839, 0
        %v5853 = vsel %vm2530, %v5840, 0
        %v5856 = vsel %vm2530, %v5841, 0
        %v5859 = vsel %vm2530, %v5842, 0
        %v5862 = vsel %vm2530, %v5843, 0
        %v5865 = vsel %vm2530, %v5844, 0
        %v5868 = vsel %vm2530, %v5845, 0
        %v5871 = vsel %vm2555, %v684, 0
        %5873 = vmatprep.subr.bf16.mxu0 0
        %5874 = vmatpush1.bf16.msra.mxu0 0
        %5875 = vmatprep.subr.bf16.mxu0 0
        %5876 = vmatpush1.bf16.msra.mxu0 0
        %5877 = vmatprep.subr.bf16.mxu0 0
        %5878 = vmatpush1.bf16.msra.mxu0 0
        %5879 = vmatprep.subr.bf16.mxu0 0
        %5880 = vmatpush1.bf16.msra.mxu0 0
        %5881 = vmatprep.subr.bf16.mxu0 0
        %5882 = vmatpush1.bf16.msra.mxu0 0
        %5883 = vmatprep.subr.bf16.mxu0 0
        %5884 = vmatpush1.bf16.msra.mxu0 0
        %5885 = vmatprep.subr.bf16.mxu0 0
        %5886 = vmatpush1.bf16.msra.mxu0 0
        %5887 = vmatprep.subr.bf16.mxu0 0
        %5888 = vmatpush1.bf16.msra.mxu0 %v5871
        %5889 = vmatprep.subr.bf16.mxu0 0
        %5890 = vmatpush2.bf16.msra.mxu0 0
        %5891 = vmatprep.subr.bf16.mxu0 0
        %5892 = vmatpush2.bf16.msra.mxu0 0
        %5893 = vmatprep.subr.bf16.mxu0 0
        %5894 = vmatpush2.bf16.msra.mxu0 0
        %5895 = vmatprep.subr.bf16.mxu0 0
        %5896 = vmatpush2.bf16.msra.mxu0 0
        %5897 = vmatprep.subr.bf16.mxu0 0
        %5898 = vmatpush2.bf16.msra.mxu0 0
        %5899 = vmatprep.subr.bf16.mxu0 0
        %5900 = vmatpush2.bf16.msra.mxu0 0
        %5901 = vmatprep.subr.bf16.mxu0 0
        %5902 = vmatpush2.bf16.msra.mxu0 0
        %5903 = vmatprep.subr.bf16.mxu0 0
        %5904 = vmatpush2.bf16.msra.mxu0 0
        %5905 = vmatprep.mubr.bf16.mxu0 0
        %5906 = vmatmul.mubr.bf16.gmra.mxu0 %v5847
        %v5907 = vpop.f32.mrf.mxu0
        %v5908 = vadd.f32 0.0, %v5907
        %v5909 = vpop.f32.mrf.mxu0
        %v5910 = vpop.f32.mrf.mxu0
        %v5911 = vadd.f32 0.0, %v5910
        %v5912 = vpop.f32.mrf.mxu0
        %5913 = vmatprep.mubr.bf16.mxu0 0
        %5914 = vmatmul.mubr.bf16.gmra.mxu0 %v5850
        %v5915 = vpop.f32.mrf.mxu0
        %v5916 = vadd.f32 0.0, %v5915
        %v5917 = vpop.f32.mrf.mxu0
        %v5918 = vpop.f32.mrf.mxu0
        %v5919 = vadd.f32 0.0, %v5918
        %v5920 = vpop.f32.mrf.mxu0
        %5921 = vmatprep.mubr.bf16.mxu0 0
        %5922 = vmatmul.mubr.bf16.gmra.mxu0 %v5853
        %v5923 = vpop.f32.mrf.mxu0
        %v5924 = vadd.f32 0.0, %v5923
        %v5925 = vpop.f32.mrf.mxu0
        %v5926 = vpop.f32.mrf.mxu0
        %v5927 = vadd.f32 0.0, %v5926
        %v5928 = vpop.f32.mrf.mxu0
        %5929 = vmatprep.mubr.bf16.mxu0 0
        %5930 = vmatmul.mubr.bf16.gmra.mxu0 %v5856
        %v5931 = vpop.f32.mrf.mxu0
        %v5932 = vadd.f32 0.0, %v5931
        %v5933 = vpop.f32.mrf.mxu0
        %v5934 = vpop.f32.mrf.mxu0
        %v5935 = vadd.f32 0.0, %v5934
        %v5936 = vpop.f32.mrf.mxu0
        %5937 = vmatprep.mubr.bf16.mxu0 0
        %5938 = vmatmul.mubr.bf16.gmra.mxu0 %v5859
        %v5939 = vpop.f32.mrf.mxu0
        %v5940 = vadd.f32 0.0, %v5939
        %v5941 = vpop.f32.mrf.mxu0
        %v5942 = vpop.f32.mrf.mxu0
        %v5943 = vadd.f32 0.0, %v5942
        %v5944 = vpop.f32.mrf.mxu0
        %5945 = vmatprep.mubr.bf16.mxu0 0
        %5946 = vmatmul.mubr.bf16.gmra.mxu0 %v5862
        %v5947 = vpop.f32.mrf.mxu0
        %v5948 = vadd.f32 0.0, %v5947
        %v5949 = vpop.f32.mrf.mxu0
        %v5950 = vpop.f32.mrf.mxu0
        %v5951 = vadd.f32 0.0, %v5950
        %v5952 = vpop.f32.mrf.mxu0
        %5953 = vmatprep.mubr.bf16.mxu0 0
        %5954 = vmatmul.mubr.bf16.gmra.mxu0 %v5865
        %v5955 = vpop.f32.mrf.mxu0
        %v5956 = vadd.f32 0.0, %v5955
        %v5957 = vpop.f32.mrf.mxu0
        %v5958 = vpop.f32.mrf.mxu0
        %v5959 = vadd.f32 0.0, %v5958
        %v5960 = vpop.f32.mrf.mxu0
        %5961 = vmatprep.mubr.bf16.mxu0 0
        %5962 = vmatmul.mubr.bf16.gmra.mxu0 %v5868
        %v5963 = vpop.f32.mrf.mxu0
        %v5964 = vadd.f32 0.0, %v5963
        %v5965 = vpop.f32.mrf.mxu0
        %v5966 = vpop.f32.mrf.mxu0
        %v5967 = vadd.f32 0.0, %v5966
        %v5968 = vpop.f32.mrf.mxu0
        %5969 = vdwg.mxu0
        %v5970 = vpack.c.bf16 %v5911, %v5908
        %v5971 = vpack.c.bf16 %v5919, %v5916
        %v5972 = vpack.c.bf16 %v5927, %v5924
        %v5973 = vpack.c.bf16 %v5935, %v5932
        %v5974 = vpack.c.bf16 %v5943, %v5940
        %v5975 = vpack.c.bf16 %v5951, %v5948
        %v5976 = vpack.c.bf16 %v5959, %v5956
        %v5977 = vpack.c.bf16 %v5967, %v5964
        %v5986 = vunpack.c.l.b16 %v5970
        %v5987 = vunpack.c.h.b16 %v5970
        %v5988 = vunpack.c.l.b16 %v5971
        %v5989 = vunpack.c.h.b16 %v5971
        %v5990 = vunpack.c.l.b16 %v5972
        %v5991 = vunpack.c.h.b16 %v5972
        %v5992 = vunpack.c.l.b16 %v5973
        %v5993 = vunpack.c.h.b16 %v5973
        %v5994 = vunpack.c.l.b16 %v5974
        %v5995 = vunpack.c.h.b16 %v5974
        %v5996 = vunpack.c.l.b16 %v5975
        %v5997 = vunpack.c.h.b16 %v5975
        %v5998 = vunpack.c.l.b16 %v5976
        %v5999 = vunpack.c.h.b16 %v5976
        %v6000 = vunpack.c.l.b16 %v5977
        %v6001 = vunpack.c.h.b16 %v5977
        %v6002 = vpack.c.b16 %v5986, %v5986
        %v6003 = vpack.c.b16 %v5987, %v5987
        %v6004 = vpack.c.b16 %v5988, %v5988
        %v6005 = vpack.c.b16 %v5989, %v5989
        %v6006 = vpack.c.b16 %v5990, %v5990
        %v6007 = vpack.c.b16 %v5991, %v5991
        %v6008 = vpack.c.b16 %v5992, %v5992
        %v6009 = vpack.c.b16 %v5993, %v5993
        %v6010 = vpack.c.b16 %v5994, %v5994
        %v6011 = vpack.c.b16 %v5995, %v5995
        %v6012 = vpack.c.b16 %v5996, %v5996
        %v6013 = vpack.c.b16 %v5997, %v5997
        %v6014 = vpack.c.b16 %v5998, %v5998
        %v6015 = vpack.c.b16 %v5999, %v5999
        %v6016 = vpack.c.b16 %v6000, %v6000
        %v6017 = vpack.c.b16 %v6001, %v6001
        %s6034 = scalar_lea.vmem %s647, 960 [#allocation20]
        %6035 = vst [vmem:[%s6034] sm:$0xf] %v6002
        %6036 = vst [vmem:[%s6034 + $0x4] sm:$0xf] %v6003
        %6037 = vst [vmem:[%s6034 + $0x8] sm:$0xf] %v6004
        %6038 = vst [vmem:[%s6034 + $0xc] sm:$0xf] %v6005
        %6039 = vst [vmem:[%s6034 + $0x10] sm:$0xf] %v6006
        %6040 = vst [vmem:[%s6034 + $0x14] sm:$0xf] %v6007
        %6041 = vst [vmem:[%s6034 + $0x18] sm:$0xf] %v6008
        %6042 = vst [vmem:[%s6034 + $0x1c] sm:$0xf] %v6009
        %6043 = vst [vmem:[%s6034 + $0x20] sm:$0xf] %v6010
        %6044 = vst [vmem:[%s6034 + $0x24] sm:$0xf] %v6011
        %6045 = vst [vmem:[%s6034 + $0x28] sm:$0xf] %v6012
        %6046 = vst [vmem:[%s6034 + $0x2c] sm:$0xf] %v6013
        %6047 = vst [vmem:[%s6034 + $0x30] sm:$0xf] %v6014
        %6048 = vst [vmem:[%s6034 + $0x34] sm:$0xf] %v6015
        %6049 = vst [vmem:[%s6034 + $0x38] sm:$0xf] %v6016
        %6050 = vst [vmem:[%s6034 + $0x3c] sm:$0xf] %v6017
        %6051 = vxpose.xlu0.c.b16.start [1/8] %v2498, 128
        %6052 = vxpose.xlu0.c.b16.cont [2/8] 0, 128
        %6053 = vxpose.xlu0.c.b16.cont [3/8] 0, 128
        %6054 = vxpose.xlu0.c.b16.cont [4/8] 0, 128
        %6055 = vxpose.xlu0.c.b16.cont [5/8] 0, 128
        %6056 = vxpose.xlu0.c.b16.cont [6/8] 0, 128
        %6057 = vxpose.xlu0.c.b16.cont [7/8] 0, 128
        %6058 = vxpose.xlu0.c.b16.end [8/8] 0, 128
        %v6059 = vpop.trf.xlu0
        %v6060 = vpop.trf.xlu0
        %v6061 = vpop.trf.xlu0
        %v6062 = vpop.trf.xlu0
        %v6063 = vpop.trf.xlu0
        %v6064 = vpop.trf.xlu0
        %v6065 = vpop.trf.xlu0
        %v6066 = vpop.trf.xlu0
        %v6068 = vsel %vm2530, %v6059, 0
        %v6071 = vsel %vm2530, %v6060, 0
        %v6074 = vsel %vm2530, %v6061, 0
        %v6077 = vsel %vm2530, %v6062, 0
        %v6080 = vsel %vm2530, %v6063, 0
        %v6083 = vsel %vm2530, %v6064, 0
        %v6086 = vsel %vm2530, %v6065, 0
        %v6089 = vsel %vm2530, %v6066, 0
        %v6092 = vsel %vm2555, %v685, 0
        %6094 = vmatprep.subr.bf16.mxu0 0
        %6095 = vmatpush1.bf16.msra.mxu0 0
        %6096 = vmatprep.subr.bf16.mxu0 0
        %6097 = vmatpush1.bf16.msra.mxu0 0
        %6098 = vmatprep.subr.bf16.mxu0 0
        %6099 = vmatpush1.bf16.msra.mxu0 0
        %6100 = vmatprep.subr.bf16.mxu0 0
        %6101 = vmatpush1.bf16.msra.mxu0 0
        %6102 = vmatprep.subr.bf16.mxu0 0
        %6103 = vmatpush1.bf16.msra.mxu0 0
        %6104 = vmatprep.subr.bf16.mxu0 0
        %6105 = vmatpush1.bf16.msra.mxu0 0
        %6106 = vmatprep.subr.bf16.mxu0 0
        %6107 = vmatpush1.bf16.msra.mxu0 0
        %6108 = vmatprep.subr.bf16.mxu0 0
        %6109 = vmatpush1.bf16.msra.mxu0 %v6092
        %6110 = vmatprep.subr.bf16.mxu0 0
        %6111 = vmatpush2.bf16.msra.mxu0 0
        %6112 = vmatprep.subr.bf16.mxu0 0
        %6113 = vmatpush2.bf16.msra.mxu0 0
        %6114 = vmatprep.subr.bf16.mxu0 0
        %6115 = vmatpush2.bf16.msra.mxu0 0
        %6116 = vmatprep.subr.bf16.mxu0 0
        %6117 = vmatpush2.bf16.msra.mxu0 0
        %6118 = vmatprep.subr.bf16.mxu0 0
        %6119 = vmatpush2.bf16.msra.mxu0 0
        %6120 = vmatprep.subr.bf16.mxu0 0
        %6121 = vmatpush2.bf16.msra.mxu0 0
        %6122 = vmatprep.subr.bf16.mxu0 0
        %6123 = vmatpush2.bf16.msra.mxu0 0
        %6124 = vmatprep.subr.bf16.mxu0 0
        %6125 = vmatpush2.bf16.msra.mxu0 0
        %6126 = vmatprep.mubr.bf16.mxu0 0
        %6127 = vmatmul.mubr.bf16.gmra.mxu0 %v6068
        %v6128 = vpop.f32.mrf.mxu0
        %v6129 = vadd.f32 0.0, %v6128
        %v6130 = vpop.f32.mrf.mxu0
        %v6131 = vpop.f32.mrf.mxu0
        %v6132 = vadd.f32 0.0, %v6131
        %v6133 = vpop.f32.mrf.mxu0
        %6134 = vmatprep.mubr.bf16.mxu0 0
        %6135 = vmatmul.mubr.bf16.gmra.mxu0 %v6071
        %v6136 = vpop.f32.mrf.mxu0
        %v6137 = vadd.f32 0.0, %v6136
        %v6138 = vpop.f32.mrf.mxu0
        %v6139 = vpop.f32.mrf.mxu0
        %v6140 = vadd.f32 0.0, %v6139
        %v6141 = vpop.f32.mrf.mxu0
        %6142 = vmatprep.mubr.bf16.mxu0 0
        %6143 = vmatmul.mubr.bf16.gmra.mxu0 %v6074
        %v6144 = vpop.f32.mrf.mxu0
        %v6145 = vadd.f32 0.0, %v6144
        %v6146 = vpop.f32.mrf.mxu0
        %v6147 = vpop.f32.mrf.mxu0
        %v6148 = vadd.f32 0.0, %v6147
        %v6149 = vpop.f32.mrf.mxu0
        %6150 = vmatprep.mubr.bf16.mxu0 0
        %6151 = vmatmul.mubr.bf16.gmra.mxu0 %v6077
        %v6152 = vpop.f32.mrf.mxu0
        %v6153 = vadd.f32 0.0, %v6152
        %v6154 = vpop.f32.mrf.mxu0
        %v6155 = vpop.f32.mrf.mxu0
        %v6156 = vadd.f32 0.0, %v6155
        %v6157 = vpop.f32.mrf.mxu0
        %6158 = vmatprep.mubr.bf16.mxu0 0
        %6159 = vmatmul.mubr.bf16.gmra.mxu0 %v6080
        %v6160 = vpop.f32.mrf.mxu0
        %v6161 = vadd.f32 0.0, %v6160
        %v6162 = vpop.f32.mrf.mxu0
        %v6163 = vpop.f32.mrf.mxu0
        %v6164 = vadd.f32 0.0, %v6163
        %v6165 = vpop.f32.mrf.mxu0
        %6166 = vmatprep.mubr.bf16.mxu0 0
        %6167 = vmatmul.mubr.bf16.gmra.mxu0 %v6083
        %v6168 = vpop.f32.mrf.mxu0
        %v6169 = vadd.f32 0.0, %v6168
        %v6170 = vpop.f32.mrf.mxu0
        %v6171 = vpop.f32.mrf.mxu0
        %v6172 = vadd.f32 0.0, %v6171
        %v6173 = vpop.f32.mrf.mxu0
        %6174 = vmatprep.mubr.bf16.mxu0 0
        %6175 = vmatmul.mubr.bf16.gmra.mxu0 %v6086
        %v6176 = vpop.f32.mrf.mxu0
        %v6177 = vadd.f32 0.0, %v6176
        %v6178 = vpop.f32.mrf.mxu0
        %v6179 = vpop.f32.mrf.mxu0
        %v6180 = vadd.f32 0.0, %v6179
        %v6181 = vpop.f32.mrf.mxu0
        %6182 = vmatprep.mubr.bf16.mxu0 0
        %6183 = vmatmul.mubr.bf16.gmra.mxu0 %v6089
        %v6184 = vpop.f32.mrf.mxu0
        %v6185 = vadd.f32 0.0, %v6184
        %v6186 = vpop.f32.mrf.mxu0
        %v6187 = vpop.f32.mrf.mxu0
        %v6188 = vadd.f32 0.0, %v6187
        %v6189 = vpop.f32.mrf.mxu0
        %6190 = vdwg.mxu0
        %v6191 = vpack.c.bf16 %v6132, %v6129
        %v6192 = vpack.c.bf16 %v6140, %v6137
        %v6193 = vpack.c.bf16 %v6148, %v6145
        %v6194 = vpack.c.bf16 %v6156, %v6153
        %v6195 = vpack.c.bf16 %v6164, %v6161
        %v6196 = vpack.c.bf16 %v6172, %v6169
        %v6197 = vpack.c.bf16 %v6180, %v6177
        %v6198 = vpack.c.bf16 %v6188, %v6185
        %v6207 = vunpack.c.l.b16 %v6191
        %v6208 = vunpack.c.h.b16 %v6191
        %v6209 = vunpack.c.l.b16 %v6192
        %v6210 = vunpack.c.h.b16 %v6192
        %v6211 = vunpack.c.l.b16 %v6193
        %v6212 = vunpack.c.h.b16 %v6193
        %v6213 = vunpack.c.l.b16 %v6194
        %v6214 = vunpack.c.h.b16 %v6194
        %v6215 = vunpack.c.l.b16 %v6195
        %v6216 = vunpack.c.h.b16 %v6195
        %v6217 = vunpack.c.l.b16 %v6196
        %v6218 = vunpack.c.h.b16 %v6196
        %v6219 = vunpack.c.l.b16 %v6197
        %v6220 = vunpack.c.h.b16 %v6197
        %v6221 = vunpack.c.l.b16 %v6198
        %v6222 = vunpack.c.h.b16 %v6198
        %v6223 = vpack.c.b16 %v6207, %v6207
        %v6224 = vpack.c.b16 %v6208, %v6208
        %v6225 = vpack.c.b16 %v6209, %v6209
        %v6226 = vpack.c.b16 %v6210, %v6210
        %v6227 = vpack.c.b16 %v6211, %v6211
        %v6228 = vpack.c.b16 %v6212, %v6212
        %v6229 = vpack.c.b16 %v6213, %v6213
        %v6230 = vpack.c.b16 %v6214, %v6214
        %v6231 = vpack.c.b16 %v6215, %v6215
        %v6232 = vpack.c.b16 %v6216, %v6216
        %v6233 = vpack.c.b16 %v6217, %v6217
        %v6234 = vpack.c.b16 %v6218, %v6218
        %v6235 = vpack.c.b16 %v6219, %v6219
        %v6236 = vpack.c.b16 %v6220, %v6220
        %v6237 = vpack.c.b16 %v6221, %v6221
        %v6238 = vpack.c.b16 %v6222, %v6222
        %s6255 = scalar_lea.vmem %s647, 1024 [#allocation20]
        %6256 = vst [vmem:[%s6255] sm:$0xf] %v6223
        %6257 = vst [vmem:[%s6255 + $0x4] sm:$0xf] %v6224
        %6258 = vst [vmem:[%s6255 + $0x8] sm:$0xf] %v6225
        %6259 = vst [vmem:[%s6255 + $0xc] sm:$0xf] %v6226
        %6260 = vst [vmem:[%s6255 + $0x10] sm:$0xf] %v6227
        %6261 = vst [vmem:[%s6255 + $0x14] sm:$0xf] %v6228
        %6262 = vst [vmem:[%s6255 + $0x18] sm:$0xf] %v6229
        %6263 = vst [vmem:[%s6255 + $0x1c] sm:$0xf] %v6230
        %6264 = vst [vmem:[%s6255 + $0x20] sm:$0xf] %v6231
        %6265 = vst [vmem:[%s6255 + $0x24] sm:$0xf] %v6232
        %6266 = vst [vmem:[%s6255 + $0x28] sm:$0xf] %v6233
        %6267 = vst [vmem:[%s6255 + $0x2c] sm:$0xf] %v6234
        %6268 = vst [vmem:[%s6255 + $0x30] sm:$0xf] %v6235
        %6269 = vst [vmem:[%s6255 + $0x34] sm:$0xf] %v6236
        %6270 = vst [vmem:[%s6255 + $0x38] sm:$0xf] %v6237
        %6271 = vst [vmem:[%s6255 + $0x3c] sm:$0xf] %v6238
        %6272 = vxpose.xlu0.c.b16.start [1/8] %v2499, 128
        %6273 = vxpose.xlu0.c.b16.cont [2/8] 0, 128
        %6274 = vxpose.xlu0.c.b16.cont [3/8] 0, 128
        %6275 = vxpose.xlu0.c.b16.cont [4/8] 0, 128
        %6276 = vxpose.xlu0.c.b16.cont [5/8] 0, 128
        %6277 = vxpose.xlu0.c.b16.cont [6/8] 0, 128
        %6278 = vxpose.xlu0.c.b16.cont [7/8] 0, 128
        %6279 = vxpose.xlu0.c.b16.end [8/8] 0, 128
        %v6280 = vpop.trf.xlu0
        %v6281 = vpop.trf.xlu0
        %v6282 = vpop.trf.xlu0
        %v6283 = vpop.trf.xlu0
        %v6284 = vpop.trf.xlu0
        %v6285 = vpop.trf.xlu0
        %v6286 = vpop.trf.xlu0
        %v6287 = vpop.trf.xlu0
        %v6289 = vsel %vm2530, %v6280, 0
        %v6292 = vsel %vm2530, %v6281, 0
        %v6295 = vsel %vm2530, %v6282, 0
        %v6298 = vsel %vm2530, %v6283, 0
        %v6301 = vsel %vm2530, %v6284, 0
        %v6304 = vsel %vm2530, %v6285, 0
        %v6307 = vsel %vm2530, %v6286, 0
        %v6310 = vsel %vm2530, %v6287, 0
        %v6313 = vsel %vm2555, %v686, 0
        %6315 = vmatprep.subr.bf16.mxu0 0
        %6316 = vmatpush1.bf16.msra.mxu0 0
        %6317 = vmatprep.subr.bf16.mxu0 0
        %6318 = vmatpush1.bf16.msra.mxu0 0
        %6319 = vmatprep.subr.bf16.mxu0 0
        %6320 = vmatpush1.bf16.msra.mxu0 0
        %6321 = vmatprep.subr.bf16.mxu0 0
        %6322 = vmatpush1.bf16.msra.mxu0 0
        %6323 = vmatprep.subr.bf16.mxu0 0
        %6324 = vmatpush1.bf16.msra.mxu0 0
        %6325 = vmatprep.subr.bf16.mxu0 0
        %6326 = vmatpush1.bf16.msra.mxu0 0
        %6327 = vmatprep.subr.bf16.mxu0 0
        %6328 = vmatpush1.bf16.msra.mxu0 0
        %6329 = vmatprep.subr.bf16.mxu0 0
        %6330 = vmatpush1.bf16.msra.mxu0 %v6313
        %6331 = vmatprep.subr.bf16.mxu0 0
        %6332 = vmatpush2.bf16.msra.mxu0 0
        %6333 = vmatprep.subr.bf16.mxu0 0
        %6334 = vmatpush2.bf16.msra.mxu0 0
        %6335 = vmatprep.subr.bf16.mxu0 0
        %6336 = vmatpush2.bf16.msra.mxu0 0
        %6337 = vmatprep.subr.bf16.mxu0 0
        %6338 = vmatpush2.bf16.msra.mxu0 0
        %6339 = vmatprep.subr.bf16.mxu0 0
        %6340 = vmatpush2.bf16.msra.mxu0 0
        %6341 = vmatprep.subr.bf16.mxu0 0
        %6342 = vmatpush2.bf16.msra.mxu0 0
        %6343 = vmatprep.subr.bf16.mxu0 0
        %6344 = vmatpush2.bf16.msra.mxu0 0
        %6345 = vmatprep.subr.bf16.mxu0 0
        %6346 = vmatpush2.bf16.msra.mxu0 0
        %6347 = vmatprep.mubr.bf16.mxu0 0
        %6348 = vmatmul.mubr.bf16.gmra.mxu0 %v6289
        %v6349 = vpop.f32.mrf.mxu0
        %v6350 = vadd.f32 0.0, %v6349
        %v6351 = vpop.f32.mrf.mxu0
        %v6352 = vpop.f32.mrf.mxu0
        %v6353 = vadd.f32 0.0, %v6352
        %v6354 = vpop.f32.mrf.mxu0
        %6355 = vmatprep.mubr.bf16.mxu0 0
        %6356 = vmatmul.mubr.bf16.gmra.mxu0 %v6292
        %v6357 = vpop.f32.mrf.mxu0
        %v6358 = vadd.f32 0.0, %v6357
        %v6359 = vpop.f32.mrf.mxu0
        %v6360 = vpop.f32.mrf.mxu0
        %v6361 = vadd.f32 0.0, %v6360
        %v6362 = vpop.f32.mrf.mxu0
        %6363 = vmatprep.mubr.bf16.mxu0 0
        %6364 = vmatmul.mubr.bf16.gmra.mxu0 %v6295
        %v6365 = vpop.f32.mrf.mxu0
        %v6366 = vadd.f32 0.0, %v6365
        %v6367 = vpop.f32.mrf.mxu0
        %v6368 = vpop.f32.mrf.mxu0
        %v6369 = vadd.f32 0.0, %v6368
        %v6370 = vpop.f32.mrf.mxu0
        %6371 = vmatprep.mubr.bf16.mxu0 0
        %6372 = vmatmul.mubr.bf16.gmra.mxu0 %v6298
        %v6373 = vpop.f32.mrf.mxu0
        %v6374 = vadd.f32 0.0, %v6373
        %v6375 = vpop.f32.mrf.mxu0
        %v6376 = vpop.f32.mrf.mxu0
        %v6377 = vadd.f32 0.0, %v6376
        %v6378 = vpop.f32.mrf.mxu0
        %6379 = vmatprep.mubr.bf16.mxu0 0
        %6380 = vmatmul.mubr.bf16.gmra.mxu0 %v6301
        %v6381 = vpop.f32.mrf.mxu0
        %v6382 = vadd.f32 0.0, %v6381
        %v6383 = vpop.f32.mrf.mxu0
        %v6384 = vpop.f32.mrf.mxu0
        %v6385 = vadd.f32 0.0, %v6384
        %v6386 = vpop.f32.mrf.mxu0
        %6387 = vmatprep.mubr.bf16.mxu0 0
        %6388 = vmatmul.mubr.bf16.gmra.mxu0 %v6304
        %v6389 = vpop.f32.mrf.mxu0
        %v6390 = vadd.f32 0.0, %v6389
        %v6391 = vpop.f32.mrf.mxu0
        %v6392 = vpop.f32.mrf.mxu0
        %v6393 = vadd.f32 0.0, %v6392
        %v6394 = vpop.f32.mrf.mxu0
        %6395 = vmatprep.mubr.bf16.mxu0 0
        %6396 = vmatmul.mubr.bf16.gmra.mxu0 %v6307
        %v6397 = vpop.f32.mrf.mxu0
        %v6398 = vadd.f32 0.0, %v6397
        %v6399 = vpop.f32.mrf.mxu0
        %v6400 = vpop.f32.mrf.mxu0
        %v6401 = vadd.f32 0.0, %v6400
        %v6402 = vpop.f32.mrf.mxu0
        %6403 = vmatprep.mubr.bf16.mxu0 0
        %6404 = vmatmul.mubr.bf16.gmra.mxu0 %v6310
        %v6405 = vpop.f32.mrf.mxu0
        %v6406 = vadd.f32 0.0, %v6405
        %v6407 = vpop.f32.mrf.mxu0
        %v6408 = vpop.f32.mrf.mxu0
        %v6409 = vadd.f32 0.0, %v6408
        %v6410 = vpop.f32.mrf.mxu0
        %6411 = vdwg.mxu0
        %v6412 = vpack.c.bf16 %v6353, %v6350
        %v6413 = vpack.c.bf16 %v6361, %v6358
        %v6414 = vpack.c.bf16 %v6369, %v6366
        %v6415 = vpack.c.bf16 %v6377, %v6374
        %v6416 = vpack.c.bf16 %v6385, %v6382
        %v6417 = vpack.c.bf16 %v6393, %v6390
        %v6418 = vpack.c.bf16 %v6401, %v6398
        %v6419 = vpack.c.bf16 %v6409, %v6406
        %v6428 = vunpack.c.l.b16 %v6412
        %v6429 = vunpack.c.h.b16 %v6412
        %v6430 = vunpack.c.l.b16 %v6413
        %v6431 = vunpack.c.h.b16 %v6413
        %v6432 = vunpack.c.l.b16 %v6414
        %v6433 = vunpack.c.h.b16 %v6414
        %v6434 = vunpack.c.l.b16 %v6415
        %v6435 = vunpack.c.h.b16 %v6415
        %v6436 = vunpack.c.l.b16 %v6416
        %v6437 = vunpack.c.h.b16 %v6416
        %v6438 = vunpack.c.l.b16 %v6417
        %v6439 = vunpack.c.h.b16 %v6417
        %v6440 = vunpack.c.l.b16 %v6418
        %v6441 = vunpack.c.h.b16 %v6418
        %v6442 = vunpack.c.l.b16 %v6419
        %v6443 = vunpack.c.h.b16 %v6419
        %v6444 = vpack.c.b16 %v6428, %v6428
        %v6445 = vpack.c.b16 %v6429, %v6429
        %v6446 = vpack.c.b16 %v6430, %v6430
        %v6447 = vpack.c.b16 %v6431, %v6431
        %v6448 = vpack.c.b16 %v6432, %v6432
        %v6449 = vpack.c.b16 %v6433, %v6433
        %v6450 = vpack.c.b16 %v6434, %v6434
        %v6451 = vpack.c.b16 %v6435, %v6435
        %v6452 = vpack.c.b16 %v6436, %v6436
        %v6453 = vpack.c.b16 %v6437, %v6437
        %v6454 = vpack.c.b16 %v6438, %v6438
        %v6455 = vpack.c.b16 %v6439, %v6439
        %v6456 = vpack.c.b16 %v6440, %v6440
        %v6457 = vpack.c.b16 %v6441, %v6441
        %v6458 = vpack.c.b16 %v6442, %v6442
        %v6459 = vpack.c.b16 %v6443, %v6443
        %s6476 = scalar_lea.vmem %s647, 1088 [#allocation20]
        %6477 = vst [vmem:[%s6476] sm:$0xf] %v6444
        %6478 = vst [vmem:[%s6476 + $0x4] sm:$0xf] %v6445
        %6479 = vst [vmem:[%s6476 + $0x8] sm:$0xf] %v6446
        %6480 = vst [vmem:[%s6476 + $0xc] sm:$0xf] %v6447
        %6481 = vst [vmem:[%s6476 + $0x10] sm:$0xf] %v6448
        %6482 = vst [vmem:[%s6476 + $0x14] sm:$0xf] %v6449
        %6483 = vst [vmem:[%s6476 + $0x18] sm:$0xf] %v6450
        %6484 = vst [vmem:[%s6476 + $0x1c] sm:$0xf] %v6451
        %6485 = vst [vmem:[%s6476 + $0x20] sm:$0xf] %v6452
        %6486 = vst [vmem:[%s6476 + $0x24] sm:$0xf] %v6453
        %6487 = vst [vmem:[%s6476 + $0x28] sm:$0xf] %v6454
        %6488 = vst [vmem:[%s6476 + $0x2c] sm:$0xf] %v6455
        %6489 = vst [vmem:[%s6476 + $0x30] sm:$0xf] %v6456
        %6490 = vst [vmem:[%s6476 + $0x34] sm:$0xf] %v6457
        %6491 = vst [vmem:[%s6476 + $0x38] sm:$0xf] %v6458
        %6492 = vst [vmem:[%s6476 + $0x3c] sm:$0xf] %v6459
        %6493 = vxpose.xlu0.c.b16.start [1/8] %v2500, 128
        %6494 = vxpose.xlu0.c.b16.cont [2/8] 0, 128
        %6495 = vxpose.xlu0.c.b16.cont [3/8] 0, 128
        %6496 = vxpose.xlu0.c.b16.cont [4/8] 0, 128
        %6497 = vxpose.xlu0.c.b16.cont [5/8] 0, 128
        %6498 = vxpose.xlu0.c.b16.cont [6/8] 0, 128
        %6499 = vxpose.xlu0.c.b16.cont [7/8] 0, 128
        %6500 = vxpose.xlu0.c.b16.end [8/8] 0, 128
        %v6501 = vpop.trf.xlu0
        %v6502 = vpop.trf.xlu0
        %v6503 = vpop.trf.xlu0
        %v6504 = vpop.trf.xlu0
        %v6505 = vpop.trf.xlu0
        %v6506 = vpop.trf.xlu0
        %v6507 = vpop.trf.xlu0
        %v6508 = vpop.trf.xlu0
        %v6510 = vsel %vm2530, %v6501, 0
        %v6513 = vsel %vm2530, %v6502, 0
        %v6516 = vsel %vm2530, %v6503, 0
        %v6519 = vsel %vm2530, %v6504, 0
        %v6522 = vsel %vm2530, %v6505, 0
        %v6525 = vsel %vm2530, %v6506, 0
        %v6528 = vsel %vm2530, %v6507, 0
        %v6531 = vsel %vm2530, %v6508, 0
        %v6534 = vsel %vm2555, %v687, 0
        %6536 = vmatprep.subr.bf16.mxu0 0
        %6537 = vmatpush1.bf16.msra.mxu0 0
        %6538 = vmatprep.subr.bf16.mxu0 0
        %6539 = vmatpush1.bf16.msra.mxu0 0
        %6540 = vmatprep.subr.bf16.mxu0 0
        %6541 = vmatpush1.bf16.msra.mxu0 0
        %6542 = vmatprep.subr.bf16.mxu0 0
        %6543 = vmatpush1.bf16.msra.mxu0 0
        %6544 = vmatprep.subr.bf16.mxu0 0
        %6545 = vmatpush1.bf16.msra.mxu0 0
        %6546 = vmatprep.subr.bf16.mxu0 0
        %6547 = vmatpush1.bf16.msra.mxu0 0
        %6548 = vmatprep.subr.bf16.mxu0 0
        %6549 = vmatpush1.bf16.msra.mxu0 0
        %6550 = vmatprep.subr.bf16.mxu0 0
        %6551 = vmatpush1.bf16.msra.mxu0 %v6534
        %6552 = vmatprep.subr.bf16.mxu0 0
        %6553 = vmatpush2.bf16.msra.mxu0 0
        %6554 = vmatprep.subr.bf16.mxu0 0
        %6555 = vmatpush2.bf16.msra.mxu0 0
        %6556 = vmatprep.subr.bf16.mxu0 0
        %6557 = vmatpush2.bf16.msra.mxu0 0
        %6558 = vmatprep.subr.bf16.mxu0 0
        %6559 = vmatpush2.bf16.msra.mxu0 0
        %6560 = vmatprep.subr.bf16.mxu0 0
        %6561 = vmatpush2.bf16.msra.mxu0 0
        %6562 = vmatprep.subr.bf16.mxu0 0
        %6563 = vmatpush2.bf16.msra.mxu0 0
        %6564 = vmatprep.subr.bf16.mxu0 0
        %6565 = vmatpush2.bf16.msra.mxu0 0
        %6566 = vmatprep.subr.bf16.mxu0 0
        %6567 = vmatpush2.bf16.msra.mxu0 0
        %6568 = vmatprep.mubr.bf16.mxu0 0
        %6569 = vmatmul.mubr.bf16.gmra.mxu0 %v6510
        %v6570 = vpop.f32.mrf.mxu0
        %v6571 = vadd.f32 0.0, %v6570
        %v6572 = vpop.f32.mrf.mxu0
        %v6573 = vpop.f32.mrf.mxu0
        %v6574 = vadd.f32 0.0, %v6573
        %v6575 = vpop.f32.mrf.mxu0
        %6576 = vmatprep.mubr.bf16.mxu0 0
        %6577 = vmatmul.mubr.bf16.gmra.mxu0 %v6513
        %v6578 = vpop.f32.mrf.mxu0
        %v6579 = vadd.f32 0.0, %v6578
        %v6580 = vpop.f32.mrf.mxu0
        %v6581 = vpop.f32.mrf.mxu0
        %v6582 = vadd.f32 0.0, %v6581
        %v6583 = vpop.f32.mrf.mxu0
        %6584 = vmatprep.mubr.bf16.mxu0 0
        %6585 = vmatmul.mubr.bf16.gmra.mxu0 %v6516
        %v6586 = vpop.f32.mrf.mxu0
        %v6587 = vadd.f32 0.0, %v6586
        %v6588 = vpop.f32.mrf.mxu0
        %v6589 = vpop.f32.mrf.mxu0
        %v6590 = vadd.f32 0.0, %v6589
        %v6591 = vpop.f32.mrf.mxu0
        %6592 = vmatprep.mubr.bf16.mxu0 0
        %6593 = vmatmul.mubr.bf16.gmra.mxu0 %v6519
        %v6594 = vpop.f32.mrf.mxu0
        %v6595 = vadd.f32 0.0, %v6594
        %v6596 = vpop.f32.mrf.mxu0
        %v6597 = vpop.f32.mrf.mxu0
        %v6598 = vadd.f32 0.0, %v6597
        %v6599 = vpop.f32.mrf.mxu0
        %6600 = vmatprep.mubr.bf16.mxu0 0
        %6601 = vmatmul.mubr.bf16.gmra.mxu0 %v6522
        %v6602 = vpop.f32.mrf.mxu0
        %v6603 = vadd.f32 0.0, %v6602
        %v6604 = vpop.f32.mrf.mxu0
        %v6605 = vpop.f32.mrf.mxu0
        %v6606 = vadd.f32 0.0, %v6605
        %v6607 = vpop.f32.mrf.mxu0
        %6608 = vmatprep.mubr.bf16.mxu0 0
        %6609 = vmatmul.mubr.bf16.gmra.mxu0 %v6525
        %v6610 = vpop.f32.mrf.mxu0
        %v6611 = vadd.f32 0.0, %v6610
        %v6612 = vpop.f32.mrf.mxu0
        %v6613 = vpop.f32.mrf.mxu0
        %v6614 = vadd.f32 0.0, %v6613
        %v6615 = vpop.f32.mrf.mxu0
        %6616 = vmatprep.mubr.bf16.mxu0 0
        %6617 = vmatmul.mubr.bf16.gmra.mxu0 %v6528
        %v6618 = vpop.f32.mrf.mxu0
        %v6619 = vadd.f32 0.0, %v6618
        %v6620 = vpop.f32.mrf.mxu0
        %v6621 = vpop.f32.mrf.mxu0
        %v6622 = vadd.f32 0.0, %v6621
        %v6623 = vpop.f32.mrf.mxu0
        %6624 = vmatprep.mubr.bf16.mxu0 0
        %6625 = vmatmul.mubr.bf16.gmra.mxu0 %v6531
        %v6626 = vpop.f32.mrf.mxu0
        %v6627 = vadd.f32 0.0, %v6626
        %v6628 = vpop.f32.mrf.mxu0
        %v6629 = vpop.f32.mrf.mxu0
        %v6630 = vadd.f32 0.0, %v6629
        %v6631 = vpop.f32.mrf.mxu0
        %6632 = vdwg.mxu0
        %v6633 = vpack.c.bf16 %v6574, %v6571
        %v6634 = vpack.c.bf16 %v6582, %v6579
        %v6635 = vpack.c.bf16 %v6590, %v6587
        %v6636 = vpack.c.bf16 %v6598, %v6595
        %v6637 = vpack.c.bf16 %v6606, %v6603
        %v6638 = vpack.c.bf16 %v6614, %v6611
        %v6639 = vpack.c.bf16 %v6622, %v6619
        %v6640 = vpack.c.bf16 %v6630, %v6627
        %v6649 = vunpack.c.l.b16 %v6633
        %v6650 = vunpack.c.h.b16 %v6633
        %v6651 = vunpack.c.l.b16 %v6634
        %v6652 = vunpack.c.h.b16 %v6634
        %v6653 = vunpack.c.l.b16 %v6635
        %v6654 = vunpack.c.h.b16 %v6635
        %v6655 = vunpack.c.l.b16 %v6636
        %v6656 = vunpack.c.h.b16 %v6636
        %v6657 = vunpack.c.l.b16 %v6637
        %v6658 = vunpack.c.h.b16 %v6637
        %v6659 = vunpack.c.l.b16 %v6638
        %v6660 = vunpack.c.h.b16 %v6638
        %v6661 = vunpack.c.l.b16 %v6639
        %v6662 = vunpack.c.h.b16 %v6639
        %v6663 = vunpack.c.l.b16 %v6640
        %v6664 = vunpack.c.h.b16 %v6640
        %v6665 = vpack.c.b16 %v6649, %v6649
        %v6666 = vpack.c.b16 %v6650, %v6650
        %v6667 = vpack.c.b16 %v6651, %v6651
        %v6668 = vpack.c.b16 %v6652, %v6652
        %v6669 = vpack.c.b16 %v6653, %v6653
        %v6670 = vpack.c.b16 %v6654, %v6654
        %v6671 = vpack.c.b16 %v6655, %v6655
        %v6672 = vpack.c.b16 %v6656, %v6656
        %v6673 = vpack.c.b16 %v6657, %v6657
        %v6674 = vpack.c.b16 %v6658, %v6658
        %v6675 = vpack.c.b16 %v6659, %v6659
        %v6676 = vpack.c.b16 %v6660, %v6660
        %v6677 = vpack.c.b16 %v6661, %v6661
        %v6678 = vpack.c.b16 %v6662, %v6662
        %v6679 = vpack.c.b16 %v6663, %v6663
        %v6680 = vpack.c.b16 %v6664, %v6664
        %s6697 = scalar_lea.vmem %s647, 1152 [#allocation20]
        %6698 = vst [vmem:[%s6697] sm:$0xf] %v6665
        %6699 = vst [vmem:[%s6697 + $0x4] sm:$0xf] %v6666
        %6700 = vst [vmem:[%s6697 + $0x8] sm:$0xf] %v6667
        %6701 = vst [vmem:[%s6697 + $0xc] sm:$0xf] %v6668
        %6702 = vst [vmem:[%s6697 + $0x10] sm:$0xf] %v6669
        %6703 = vst [vmem:[%s6697 + $0x14] sm:$0xf] %v6670
        %6704 = vst [vmem:[%s6697 + $0x18] sm:$0xf] %v6671
        %6705 = vst [vmem:[%s6697 + $0x1c] sm:$0xf] %v6672
        %6706 = vst [vmem:[%s6697 + $0x20] sm:$0xf] %v6673
        %6707 = vst [vmem:[%s6697 + $0x24] sm:$0xf] %v6674
        %6708 = vst [vmem:[%s6697 + $0x28] sm:$0xf] %v6675
        %6709 = vst [vmem:[%s6697 + $0x2c] sm:$0xf] %v6676
        %6710 = vst [vmem:[%s6697 + $0x30] sm:$0xf] %v6677
        %6711 = vst [vmem:[%s6697 + $0x34] sm:$0xf] %v6678
        %6712 = vst [vmem:[%s6697 + $0x38] sm:$0xf] %v6679
        %6713 = vst [vmem:[%s6697 + $0x3c] sm:$0xf] %v6680
        %6714 = vxpose.xlu0.c.b16.start [1/8] %v2501, 128
        %6715 = vxpose.xlu0.c.b16.cont [2/8] 0, 128
        %6716 = vxpose.xlu0.c.b16.cont [3/8] 0, 128
        %6717 = vxpose.xlu0.c.b16.cont [4/8] 0, 128
        %6718 = vxpose.xlu0.c.b16.cont [5/8] 0, 128
        %6719 = vxpose.xlu0.c.b16.cont [6/8] 0, 128
        %6720 = vxpose.xlu0.c.b16.cont [7/8] 0, 128
        %6721 = vxpose.xlu0.c.b16.end [8/8] 0, 128
        %v6722 = vpop.trf.xlu0
        %v6723 = vpop.trf.xlu0
        %v6724 = vpop.trf.xlu0
        %v6725 = vpop.trf.xlu0
        %v6726 = vpop.trf.xlu0
        %v6727 = vpop.trf.xlu0
        %v6728 = vpop.trf.xlu0
        %v6729 = vpop.trf.xlu0
        %v6731 = vsel %vm2530, %v6722, 0
        %v6734 = vsel %vm2530, %v6723, 0
        %v6737 = vsel %vm2530, %v6724, 0
        %v6740 = vsel %vm2530, %v6725, 0
        %v6743 = vsel %vm2530, %v6726, 0
        %v6746 = vsel %vm2530, %v6727, 0
        %v6749 = vsel %vm2530, %v6728, 0
        %v6752 = vsel %vm2530, %v6729, 0
        %v6755 = vsel %vm2555, %v688, 0
        %6757 = vmatprep.subr.bf16.mxu0 0
        %6758 = vmatpush1.bf16.msra.mxu0 0
        %6759 = vmatprep.subr.bf16.mxu0 0
        %6760 = vmatpush1.bf16.msra.mxu0 0
        %6761 = vmatprep.subr.bf16.mxu0 0
        %6762 = vmatpush1.bf16.msra.mxu0 0
        %6763 = vmatprep.subr.bf16.mxu0 0
        %6764 = vmatpush1.bf16.msra.mxu0 0
        %6765 = vmatprep.subr.bf16.mxu0 0
        %6766 = vmatpush1.bf16.msra.mxu0 0
        %6767 = vmatprep.subr.bf16.mxu0 0
        %6768 = vmatpush1.bf16.msra.mxu0 0
        %6769 = vmatprep.subr.bf16.mxu0 0
        %6770 = vmatpush1.bf16.msra.mxu0 0
        %6771 = vmatprep.subr.bf16.mxu0 0
        %6772 = vmatpush1.bf16.msra.mxu0 %v6755
        %6773 = vmatprep.subr.bf16.mxu0 0
        %6774 = vmatpush2.bf16.msra.mxu0 0
        %6775 = vmatprep.subr.bf16.mxu0 0
        %6776 = vmatpush2.bf16.msra.mxu0 0
        %6777 = vmatprep.subr.bf16.mxu0 0
        %6778 = vmatpush2.bf16.msra.mxu0 0
        %6779 = vmatprep.subr.bf16.mxu0 0
        %6780 = vmatpush2.bf16.msra.mxu0 0
        %6781 = vmatprep.subr.bf16.mxu0 0
        %6782 = vmatpush2.bf16.msra.mxu0 0
        %6783 = vmatprep.subr.bf16.mxu0 0
        %6784 = vmatpush2.bf16.msra.mxu0 0
        %6785 = vmatprep.subr.bf16.mxu0 0
        %6786 = vmatpush2.bf16.msra.mxu0 0
        %6787 = vmatprep.subr.bf16.mxu0 0
        %6788 = vmatpush2.bf16.msra.mxu0 0
        %6789 = vmatprep.mubr.bf16.mxu0 0
        %6790 = vmatmul.mubr.bf16.gmra.mxu0 %v6731
        %v6791 = vpop.f32.mrf.mxu0
        %v6792 = vadd.f32 0.0, %v6791
        %v6793 = vpop.f32.mrf.mxu0
        %v6794 = vpop.f32.mrf.mxu0
        %v6795 = vadd.f32 0.0, %v6794
        %v6796 = vpop.f32.mrf.mxu0
        %6797 = vmatprep.mubr.bf16.mxu0 0
        %6798 = vmatmul.mubr.bf16.gmra.mxu0 %v6734
        %v6799 = vpop.f32.mrf.mxu0
        %v6800 = vadd.f32 0.0, %v6799
        %v6801 = vpop.f32.mrf.mxu0
        %v6802 = vpop.f32.mrf.mxu0
        %v6803 = vadd.f32 0.0, %v6802
        %v6804 = vpop.f32.mrf.mxu0
        %6805 = vmatprep.mubr.bf16.mxu0 0
        %6806 = vmatmul.mubr.bf16.gmra.mxu0 %v6737
        %v6807 = vpop.f32.mrf.mxu0
        %v6808 = vadd.f32 0.0, %v6807
        %v6809 = vpop.f32.mrf.mxu0
        %v6810 = vpop.f32.mrf.mxu0
        %v6811 = vadd.f32 0.0, %v6810
        %v6812 = vpop.f32.mrf.mxu0
        %6813 = vmatprep.mubr.bf16.mxu0 0
        %6814 = vmatmul.mubr.bf16.gmra.mxu0 %v6740
        %v6815 = vpop.f32.mrf.mxu0
        %v6816 = vadd.f32 0.0, %v6815
        %v6817 = vpop.f32.mrf.mxu0
        %v6818 = vpop.f32.mrf.mxu0
        %v6819 = vadd.f32 0.0, %v6818
        %v6820 = vpop.f32.mrf.mxu0
        %6821 = vmatprep.mubr.bf16.mxu0 0
        %6822 = vmatmul.mubr.bf16.gmra.mxu0 %v6743
        %v6823 = vpop.f32.mrf.mxu0
        %v6824 = vadd.f32 0.0, %v6823
        %v6825 = vpop.f32.mrf.mxu0
        %v6826 = vpop.f32.mrf.mxu0
        %v6827 = vadd.f32 0.0, %v6826
        %v6828 = vpop.f32.mrf.mxu0
        %6829 = vmatprep.mubr.bf16.mxu0 0
        %6830 = vmatmul.mubr.bf16.gmra.mxu0 %v6746
        %v6831 = vpop.f32.mrf.mxu0
        %v6832 = vadd.f32 0.0, %v6831
        %v6833 = vpop.f32.mrf.mxu0
        %v6834 = vpop.f32.mrf.mxu0
        %v6835 = vadd.f32 0.0, %v6834
        %v6836 = vpop.f32.mrf.mxu0
        %6837 = vmatprep.mubr.bf16.mxu0 0
        %6838 = vmatmul.mubr.bf16.gmra.mxu0 %v6749
        %v6839 = vpop.f32.mrf.mxu0
        %v6840 = vadd.f32 0.0, %v6839
        %v6841 = vpop.f32.mrf.mxu0
        %v6842 = vpop.f32.mrf.mxu0
        %v6843 = vadd.f32 0.0, %v6842
        %v6844 = vpop.f32.mrf.mxu0
        %6845 = vmatprep.mubr.bf16.mxu0 0
        %6846 = vmatmul.mubr.bf16.gmra.mxu0 %v6752
        %v6847 = vpop.f32.mrf.mxu0
        %v6848 = vadd.f32 0.0, %v6847
        %v6849 = vpop.f32.mrf.mxu0
        %v6850 = vpop.f32.mrf.mxu0
        %v6851 = vadd.f32 0.0, %v6850
        %v6852 = vpop.f32.mrf.mxu0
        %6853 = vdwg.mxu0
        %v6854 = vpack.c.bf16 %v6795, %v6792
        %v6855 = vpack.c.bf16 %v6803, %v6800
        %v6856 = vpack.c.bf16 %v6811, %v6808
        %v6857 = vpack.c.bf16 %v6819, %v6816
        %v6858 = vpack.c.bf16 %v6827, %v6824
        %v6859 = vpack.c.bf16 %v6835, %v6832
        %v6860 = vpack.c.bf16 %v6843, %v6840
        %v6861 = vpack.c.bf16 %v6851, %v6848
        %v6870 = vunpack.c.l.b16 %v6854
        %v6871 = vunpack.c.h.b16 %v6854
        %v6872 = vunpack.c.l.b16 %v6855
        %v6873 = vunpack.c.h.b16 %v6855
        %v6874 = vunpack.c.l.b16 %v6856
        %v6875 = vunpack.c.h.b16 %v6856
        %v6876 = vunpack.c.l.b16 %v6857
        %v6877 = vunpack.c.h.b16 %v6857
        %v6878 = vunpack.c.l.b16 %v6858
        %v6879 = vunpack.c.h.b16 %v6858
        %v6880 = vunpack.c.l.b16 %v6859
        %v6881 = vunpack.c.h.b16 %v6859
        %v6882 = vunpack.c.l.b16 %v6860
        %v6883 = vunpack.c.h.b16 %v6860
        %v6884 = vunpack.c.l.b16 %v6861
        %v6885 = vunpack.c.h.b16 %v6861
        %v6886 = vpack.c.b16 %v6870, %v6870
        %v6887 = vpack.c.b16 %v6871, %v6871
        %v6888 = vpack.c.b16 %v6872, %v6872
        %v6889 = vpack.c.b16 %v6873, %v6873
        %v6890 = vpack.c.b16 %v6874, %v6874
        %v6891 = vpack.c.b16 %v6875, %v6875
        %v6892 = vpack.c.b16 %v6876, %v6876
        %v6893 = vpack.c.b16 %v6877, %v6877
        %v6894 = vpack.c.b16 %v6878, %v6878
        %v6895 = vpack.c.b16 %v6879, %v6879
        %v6896 = vpack.c.b16 %v6880, %v6880
        %v6897 = vpack.c.b16 %v6881, %v6881
        %v6898 = vpack.c.b16 %v6882, %v6882
        %v6899 = vpack.c.b16 %v6883, %v6883
        %v6900 = vpack.c.b16 %v6884, %v6884
        %v6901 = vpack.c.b16 %v6885, %v6885
        %s6918 = scalar_lea.vmem %s647, 1216 [#allocation20]
        %6919 = vst [vmem:[%s6918] sm:$0xf] %v6886
        %6920 = vst [vmem:[%s6918 + $0x4] sm:$0xf] %v6887
        %6921 = vst [vmem:[%s6918 + $0x8] sm:$0xf] %v6888
        %6922 = vst [vmem:[%s6918 + $0xc] sm:$0xf] %v6889
        %6923 = vst [vmem:[%s6918 + $0x10] sm:$0xf] %v6890
        %6924 = vst [vmem:[%s6918 + $0x14] sm:$0xf] %v6891
        %6925 = vst [vmem:[%s6918 + $0x18] sm:$0xf] %v6892
        %6926 = vst [vmem:[%s6918 + $0x1c] sm:$0xf] %v6893
        %6927 = vst [vmem:[%s6918 + $0x20] sm:$0xf] %v6894
        %6928 = vst [vmem:[%s6918 + $0x24] sm:$0xf] %v6895
        %6929 = vst [vmem:[%s6918 + $0x28] sm:$0xf] %v6896
        %6930 = vst [vmem:[%s6918 + $0x2c] sm:$0xf] %v6897
        %6931 = vst [vmem:[%s6918 + $0x30] sm:$0xf] %v6898
        %6932 = vst [vmem:[%s6918 + $0x34] sm:$0xf] %v6899
        %6933 = vst [vmem:[%s6918 + $0x38] sm:$0xf] %v6900
        %6934 = vst [vmem:[%s6918 + $0x3c] sm:$0xf] %v6901
        %6935 = vxpose.xlu0.c.b16.start [1/8] %v2502, 128
        %6936 = vxpose.xlu0.c.b16.cont [2/8] 0, 128
        %6937 = vxpose.xlu0.c.b16.cont [3/8] 0, 128
        %6938 = vxpose.xlu0.c.b16.cont [4/8] 0, 128
        %6939 = vxpose.xlu0.c.b16.cont [5/8] 0, 128
        %6940 = vxpose.xlu0.c.b16.cont [6/8] 0, 128
        %6941 = vxpose.xlu0.c.b16.cont [7/8] 0, 128
        %6942 = vxpose.xlu0.c.b16.end [8/8] 0, 128
        %v6943 = vpop.trf.xlu0
        %v6944 = vpop.trf.xlu0
        %v6945 = vpop.trf.xlu0
        %v6946 = vpop.trf.xlu0
        %v6947 = vpop.trf.xlu0
        %v6948 = vpop.trf.xlu0
        %v6949 = vpop.trf.xlu0
        %v6950 = vpop.trf.xlu0
        %v6952 = vsel %vm2530, %v6943, 0
        %v6955 = vsel %vm2530, %v6944, 0
        %v6958 = vsel %vm2530, %v6945, 0
        %v6961 = vsel %vm2530, %v6946, 0
        %v6964 = vsel %vm2530, %v6947, 0
        %v6967 = vsel %vm2530, %v6948, 0
        %v6970 = vsel %vm2530, %v6949, 0
        %v6973 = vsel %vm2530, %v6950, 0
        %v6976 = vsel %vm2555, %v689, 0
        %6978 = vmatprep.subr.bf16.mxu0 0
        %6979 = vmatpush1.bf16.msra.mxu0 0
        %6980 = vmatprep.subr.bf16.mxu0 0
        %6981 = vmatpush1.bf16.msra.mxu0 0
        %6982 = vmatprep.subr.bf16.mxu0 0
        %6983 = vmatpush1.bf16.msra.mxu0 0
        %6984 = vmatprep.subr.bf16.mxu0 0
        %6985 = vmatpush1.bf16.msra.mxu0 0
        %6986 = vmatprep.subr.bf16.mxu0 0
        %6987 = vmatpush1.bf16.msra.mxu0 0
        %6988 = vmatprep.subr.bf16.mxu0 0
        %6989 = vmatpush1.bf16.msra.mxu0 0
        %6990 = vmatprep.subr.bf16.mxu0 0
        %6991 = vmatpush1.bf16.msra.mxu0 0
        %6992 = vmatprep.subr.bf16.mxu0 0
        %6993 = vmatpush1.bf16.msra.mxu0 %v6976
        %6994 = vmatprep.subr.bf16.mxu0 0
        %6995 = vmatpush2.bf16.msra.mxu0 0
        %6996 = vmatprep.subr.bf16.mxu0 0
        %6997 = vmatpush2.bf16.msra.mxu0 0
        %6998 = vmatprep.subr.bf16.mxu0 0
        %6999 = vmatpush2.bf16.msra.mxu0 0
        %7000 = vmatprep.subr.bf16.mxu0 0
        %7001 = vmatpush2.bf16.msra.mxu0 0
        %7002 = vmatprep.subr.bf16.mxu0 0
        %7003 = vmatpush2.bf16.msra.mxu0 0
        %7004 = vmatprep.subr.bf16.mxu0 0
        %7005 = vmatpush2.bf16.msra.mxu0 0
        %7006 = vmatprep.subr.bf16.mxu0 0
        %7007 = vmatpush2.bf16.msra.mxu0 0
        %7008 = vmatprep.subr.bf16.mxu0 0
        %7009 = vmatpush2.bf16.msra.mxu0 0
        %7010 = vmatprep.mubr.bf16.mxu0 0
        %7011 = vmatmul.mubr.bf16.gmra.mxu0 %v6952
        %v7012 = vpop.f32.mrf.mxu0
        %v7013 = vadd.f32 0.0, %v7012
        %v7014 = vpop.f32.mrf.mxu0
        %v7015 = vpop.f32.mrf.mxu0
        %v7016 = vadd.f32 0.0, %v7015
        %v7017 = vpop.f32.mrf.mxu0
        %7018 = vmatprep.mubr.bf16.mxu0 0
        %7019 = vmatmul.mubr.bf16.gmra.mxu0 %v6955
        %v7020 = vpop.f32.mrf.mxu0
        %v7021 = vadd.f32 0.0, %v7020
        %v7022 = vpop.f32.mrf.mxu0
        %v7023 = vpop.f32.mrf.mxu0
        %v7024 = vadd.f32 0.0, %v7023
        %v7025 = vpop.f32.mrf.mxu0
        %7026 = vmatprep.mubr.bf16.mxu0 0
        %7027 = vmatmul.mubr.bf16.gmra.mxu0 %v6958
        %v7028 = vpop.f32.mrf.mxu0
        %v7029 = vadd.f32 0.0, %v7028
        %v7030 = vpop.f32.mrf.mxu0
        %v7031 = vpop.f32.mrf.mxu0
        %v7032 = vadd.f32 0.0, %v7031
        %v7033 = vpop.f32.mrf.mxu0
        %7034 = vmatprep.mubr.bf16.mxu0 0
        %7035 = vmatmul.mubr.bf16.gmra.mxu0 %v6961
        %v7036 = vpop.f32.mrf.mxu0
        %v7037 = vadd.f32 0.0, %v7036
        %v7038 = vpop.f32.mrf.mxu0
        %v7039 = vpop.f32.mrf.mxu0
        %v7040 = vadd.f32 0.0, %v7039
        %v7041 = vpop.f32.mrf.mxu0
        %7042 = vmatprep.mubr.bf16.mxu0 0
        %7043 = vmatmul.mubr.bf16.gmra.mxu0 %v6964
        %v7044 = vpop.f32.mrf.mxu0
        %v7045 = vadd.f32 0.0, %v7044
        %v7046 = vpop.f32.mrf.mxu0
        %v7047 = vpop.f32.mrf.mxu0
        %v7048 = vadd.f32 0.0, %v7047
        %v7049 = vpop.f32.mrf.mxu0
        %7050 = vmatprep.mubr.bf16.mxu0 0
        %7051 = vmatmul.mubr.bf16.gmra.mxu0 %v6967
        %v7052 = vpop.f32.mrf.mxu0
        %v7053 = vadd.f32 0.0, %v7052
        %v7054 = vpop.f32.mrf.mxu0
        %v7055 = vpop.f32.mrf.mxu0
        %v7056 = vadd.f32 0.0, %v7055
        %v7057 = vpop.f32.mrf.mxu0
        %7058 = vmatprep.mubr.bf16.mxu0 0
        %7059 = vmatmul.mubr.bf16.gmra.mxu0 %v6970
        %v7060 = vpop.f32.mrf.mxu0
        %v7061 = vadd.f32 0.0, %v7060
        %v7062 = vpop.f32.mrf.mxu0
        %v7063 = vpop.f32.mrf.mxu0
        %v7064 = vadd.f32 0.0, %v7063
        %v7065 = vpop.f32.mrf.mxu0
        %7066 = vmatprep.mubr.bf16.mxu0 0
        %7067 = vmatmul.mubr.bf16.gmra.mxu0 %v6973
        %v7068 = vpop.f32.mrf.mxu0
        %v7069 = vadd.f32 0.0, %v7068
        %v7070 = vpop.f32.mrf.mxu0
        %v7071 = vpop.f32.mrf.mxu0
        %v7072 = vadd.f32 0.0, %v7071
        %v7073 = vpop.f32.mrf.mxu0
        %7074 = vdwg.mxu0
        %v7075 = vpack.c.bf16 %v7016, %v7013
        %v7076 = vpack.c.bf16 %v7024, %v7021
        %v7077 = vpack.c.bf16 %v7032, %v7029
        %v7078 = vpack.c.bf16 %v7040, %v7037
        %v7079 = vpack.c.bf16 %v7048, %v7045
        %v7080 = vpack.c.bf16 %v7056, %v7053
        %v7081 = vpack.c.bf16 %v7064, %v7061
        %v7082 = vpack.c.bf16 %v7072, %v7069
        %v7091 = vunpack.c.l.b16 %v7075
        %v7092 = vunpack.c.h.b16 %v7075
        %v7093 = vunpack.c.l.b16 %v7076
        %v7094 = vunpack.c.h.b16 %v7076
        %v7095 = vunpack.c.l.b16 %v7077
        %v7096 = vunpack.c.h.b16 %v7077
        %v7097 = vunpack.c.l.b16 %v7078
        %v7098 = vunpack.c.h.b16 %v7078
        %v7099 = vunpack.c.l.b16 %v7079
        %v7100 = vunpack.c.h.b16 %v7079
        %v7101 = vunpack.c.l.b16 %v7080
        %v7102 = vunpack.c.h.b16 %v7080
        %v7103 = vunpack.c.l.b16 %v7081
        %v7104 = vunpack.c.h.b16 %v7081
        %v7105 = vunpack.c.l.b16 %v7082
        %v7106 = vunpack.c.h.b16 %v7082
        %v7107 = vpack.c.b16 %v7091, %v7091
        %v7108 = vpack.c.b16 %v7092, %v7092
        %v7109 = vpack.c.b16 %v7093, %v7093
        %v7110 = vpack.c.b16 %v7094, %v7094
        %v7111 = vpack.c.b16 %v7095, %v7095
        %v7112 = vpack.c.b16 %v7096, %v7096
        %v7113 = vpack.c.b16 %v7097, %v7097
        %v7114 = vpack.c.b16 %v7098, %v7098
        %v7115 = vpack.c.b16 %v7099, %v7099
        %v7116 = vpack.c.b16 %v7100, %v7100
        %v7117 = vpack.c.b16 %v7101, %v7101
        %v7118 = vpack.c.b16 %v7102, %v7102
        %v7119 = vpack.c.b16 %v7103, %v7103
        %v7120 = vpack.c.b16 %v7104, %v7104
        %v7121 = vpack.c.b16 %v7105, %v7105
        %v7122 = vpack.c.b16 %v7106, %v7106
        %s7139 = scalar_lea.vmem %s647, 1280 [#allocation20]
        %7140 = vst [vmem:[%s7139] sm:$0xf] %v7107
        %7141 = vst [vmem:[%s7139 + $0x4] sm:$0xf] %v7108
        %7142 = vst [vmem:[%s7139 + $0x8] sm:$0xf] %v7109
        %7143 = vst [vmem:[%s7139 + $0xc] sm:$0xf] %v7110
        %7144 = vst [vmem:[%s7139 + $0x10] sm:$0xf] %v7111
        %7145 = vst [vmem:[%s7139 + $0x14] sm:$0xf] %v7112
        %7146 = vst [vmem:[%s7139 + $0x18] sm:$0xf] %v7113
        %7147 = vst [vmem:[%s7139 + $0x1c] sm:$0xf] %v7114
        %7148 = vst [vmem:[%s7139 + $0x20] sm:$0xf] %v7115
        %7149 = vst [vmem:[%s7139 + $0x24] sm:$0xf] %v7116
        %7150 = vst [vmem:[%s7139 + $0x28] sm:$0xf] %v7117
        %7151 = vst [vmem:[%s7139 + $0x2c] sm:$0xf] %v7118
        %7152 = vst [vmem:[%s7139 + $0x30] sm:$0xf] %v7119
        %7153 = vst [vmem:[%s7139 + $0x34] sm:$0xf] %v7120
        %7154 = vst [vmem:[%s7139 + $0x38] sm:$0xf] %v7121
        %7155 = vst [vmem:[%s7139 + $0x3c] sm:$0xf] %v7122
        %7156 = vxpose.xlu0.c.b16.start [1/8] %v2503, 128
        %7157 = vxpose.xlu0.c.b16.cont [2/8] 0, 128
        %7158 = vxpose.xlu0.c.b16.cont [3/8] 0, 128
        %7159 = vxpose.xlu0.c.b16.cont [4/8] 0, 128
        %7160 = vxpose.xlu0.c.b16.cont [5/8] 0, 128
        %7161 = vxpose.xlu0.c.b16.cont [6/8] 0, 128
        %7162 = vxpose.xlu0.c.b16.cont [7/8] 0, 128
        %7163 = vxpose.xlu0.c.b16.end [8/8] 0, 128
        %v7164 = vpop.trf.xlu0
        %v7165 = vpop.trf.xlu0
        %v7166 = vpop.trf.xlu0
        %v7167 = vpop.trf.xlu0
        %v7168 = vpop.trf.xlu0
        %v7169 = vpop.trf.xlu0
        %v7170 = vpop.trf.xlu0
        %v7171 = vpop.trf.xlu0
        %v7173 = vsel %vm2530, %v7164, 0
        %v7176 = vsel %vm2530, %v7165, 0
        %v7179 = vsel %vm2530, %v7166, 0
        %v7182 = vsel %vm2530, %v7167, 0
        %v7185 = vsel %vm2530, %v7168, 0
        %v7188 = vsel %vm2530, %v7169, 0
        %v7191 = vsel %vm2530, %v7170, 0
        %v7194 = vsel %vm2530, %v7171, 0
        %v7197 = vsel %vm2555, %v690, 0
        %7199 = vmatprep.subr.bf16.mxu0 0
        %7200 = vmatpush1.bf16.msra.mxu0 0
        %7201 = vmatprep.subr.bf16.mxu0 0
        %7202 = vmatpush1.bf16.msra.mxu0 0
        %7203 = vmatprep.subr.bf16.mxu0 0
        %7204 = vmatpush1.bf16.msra.mxu0 0
        %7205 = vmatprep.subr.bf16.mxu0 0
        %7206 = vmatpush1.bf16.msra.mxu0 0
        %7207 = vmatprep.subr.bf16.mxu0 0
        %7208 = vmatpush1.bf16.msra.mxu0 0
        %7209 = vmatprep.subr.bf16.mxu0 0
        %7210 = vmatpush1.bf16.msra.mxu0 0
        %7211 = vmatprep.subr.bf16.mxu0 0
        %7212 = vmatpush1.bf16.msra.mxu0 0
        %7213 = vmatprep.subr.bf16.mxu0 0
        %7214 = vmatpush1.bf16.msra.mxu0 %v7197
        %7215 = vmatprep.subr.bf16.mxu0 0
        %7216 = vmatpush2.bf16.msra.mxu0 0
        %7217 = vmatprep.subr.bf16.mxu0 0
        %7218 = vmatpush2.bf16.msra.mxu0 0
        %7219 = vmatprep.subr.bf16.mxu0 0
        %7220 = vmatpush2.bf16.msra.mxu0 0
        %7221 = vmatprep.subr.bf16.mxu0 0
        %7222 = vmatpush2.bf16.msra.mxu0 0
        %7223 = vmatprep.subr.bf16.mxu0 0
        %7224 = vmatpush2.bf16.msra.mxu0 0
        %7225 = vmatprep.subr.bf16.mxu0 0
        %7226 = vmatpush2.bf16.msra.mxu0 0
        %7227 = vmatprep.subr.bf16.mxu0 0
        %7228 = vmatpush2.bf16.msra.mxu0 0
        %7229 = vmatprep.subr.bf16.mxu0 0
        %7230 = vmatpush2.bf16.msra.mxu0 0
        %7231 = vmatprep.mubr.bf16.mxu0 0
        %7232 = vmatmul.mubr.bf16.gmra.mxu0 %v7173
        %v7233 = vpop.f32.mrf.mxu0
        %v7234 = vadd.f32 0.0, %v7233
        %v7235 = vpop.f32.mrf.mxu0
        %v7236 = vpop.f32.mrf.mxu0
        %v7237 = vadd.f32 0.0, %v7236
        %v7238 = vpop.f32.mrf.mxu0
        %7239 = vmatprep.mubr.bf16.mxu0 0
        %7240 = vmatmul.mubr.bf16.gmra.mxu0 %v7176
        %v7241 = vpop.f32.mrf.mxu0
        %v7242 = vadd.f32 0.0, %v7241
        %v7243 = vpop.f32.mrf.mxu0
        %v7244 = vpop.f32.mrf.mxu0
        %v7245 = vadd.f32 0.0, %v7244
        %v7246 = vpop.f32.mrf.mxu0
        %7247 = vmatprep.mubr.bf16.mxu0 0
        %7248 = vmatmul.mubr.bf16.gmra.mxu0 %v7179
        %v7249 = vpop.f32.mrf.mxu0
        %v7250 = vadd.f32 0.0, %v7249
        %v7251 = vpop.f32.mrf.mxu0
        %v7252 = vpop.f32.mrf.mxu0
        %v7253 = vadd.f32 0.0, %v7252
        %v7254 = vpop.f32.mrf.mxu0
        %7255 = vmatprep.mubr.bf16.mxu0 0
        %7256 = vmatmul.mubr.bf16.gmra.mxu0 %v7182
        %v7257 = vpop.f32.mrf.mxu0
        %v7258 = vadd.f32 0.0, %v7257
        %v7259 = vpop.f32.mrf.mxu0
        %v7260 = vpop.f32.mrf.mxu0
        %v7261 = vadd.f32 0.0, %v7260
        %v7262 = vpop.f32.mrf.mxu0
        %7263 = vmatprep.mubr.bf16.mxu0 0
        %7264 = vmatmul.mubr.bf16.gmra.mxu0 %v7185
        %v7265 = vpop.f32.mrf.mxu0
        %v7266 = vadd.f32 0.0, %v7265
        %v7267 = vpop.f32.mrf.mxu0
        %v7268 = vpop.f32.mrf.mxu0
        %v7269 = vadd.f32 0.0, %v7268
        %v7270 = vpop.f32.mrf.mxu0
        %7271 = vmatprep.mubr.bf16.mxu0 0
        %7272 = vmatmul.mubr.bf16.gmra.mxu0 %v7188
        %v7273 = vpop.f32.mrf.mxu0
        %v7274 = vadd.f32 0.0, %v7273
        %v7275 = vpop.f32.mrf.mxu0
        %v7276 = vpop.f32.mrf.mxu0
        %v7277 = vadd.f32 0.0, %v7276
        %v7278 = vpop.f32.mrf.mxu0
        %7279 = vmatprep.mubr.bf16.mxu0 0
        %7280 = vmatmul.mubr.bf16.gmra.mxu0 %v7191
        %v7281 = vpop.f32.mrf.mxu0
        %v7282 = vadd.f32 0.0, %v7281
        %v7283 = vpop.f32.mrf.mxu0
        %v7284 = vpop.f32.mrf.mxu0
        %v7285 = vadd.f32 0.0, %v7284
        %v7286 = vpop.f32.mrf.mxu0
        %7287 = vmatprep.mubr.bf16.mxu0 0
        %7288 = vmatmul.mubr.bf16.gmra.mxu0 %v7194
        %v7289 = vpop.f32.mrf.mxu0
        %v7290 = vadd.f32 0.0, %v7289
        %v7291 = vpop.f32.mrf.mxu0
        %v7292 = vpop.f32.mrf.mxu0
        %v7293 = vadd.f32 0.0, %v7292
        %v7294 = vpop.f32.mrf.mxu0
        %7295 = vdwg.mxu0
        %v7296 = vpack.c.bf16 %v7237, %v7234
        %v7297 = vpack.c.bf16 %v7245, %v7242
        %v7298 = vpack.c.bf16 %v7253, %v7250
        %v7299 = vpack.c.bf16 %v7261, %v7258
        %v7300 = vpack.c.bf16 %v7269, %v7266
        %v7301 = vpack.c.bf16 %v7277, %v7274
        %v7302 = vpack.c.bf16 %v7285, %v7282
        %v7303 = vpack.c.bf16 %v7293, %v7290
        %v7312 = vunpack.c.l.b16 %v7296
        %v7313 = vunpack.c.h.b16 %v7296
        %v7314 = vunpack.c.l.b16 %v7297
        %v7315 = vunpack.c.h.b16 %v7297
        %v7316 = vunpack.c.l.b16 %v7298
        %v7317 = vunpack.c.h.b16 %v7298
        %v7318 = vunpack.c.l.b16 %v7299
        %v7319 = vunpack.c.h.b16 %v7299
        %v7320 = vunpack.c.l.b16 %v7300
        %v7321 = vunpack.c.h.b16 %v7300
        %v7322 = vunpack.c.l.b16 %v7301
        %v7323 = vunpack.c.h.b16 %v7301
        %v7324 = vunpack.c.l.b16 %v7302
        %v7325 = vunpack.c.h.b16 %v7302
        %v7326 = vunpack.c.l.b16 %v7303
        %v7327 = vunpack.c.h.b16 %v7303
        %v7328 = vpack.c.b16 %v7312, %v7312
        %v7329 = vpack.c.b16 %v7313, %v7313
        %v7330 = vpack.c.b16 %v7314, %v7314
        %v7331 = vpack.c.b16 %v7315, %v7315
        %v7332 = vpack.c.b16 %v7316, %v7316
        %v7333 = vpack.c.b16 %v7317, %v7317
        %v7334 = vpack.c.b16 %v7318, %v7318
        %v7335 = vpack.c.b16 %v7319, %v7319
        %v7336 = vpack.c.b16 %v7320, %v7320
        %v7337 = vpack.c.b16 %v7321, %v7321
        %v7338 = vpack.c.b16 %v7322, %v7322
        %v7339 = vpack.c.b16 %v7323, %v7323
        %v7340 = vpack.c.b16 %v7324, %v7324
        %v7341 = vpack.c.b16 %v7325, %v7325
        %v7342 = vpack.c.b16 %v7326, %v7326
        %v7343 = vpack.c.b16 %v7327, %v7327
        %s7360 = scalar_lea.vmem %s647, 1344 [#allocation20]
        %7361 = vst [vmem:[%s7360] sm:$0xf] %v7328
        %7362 = vst [vmem:[%s7360 + $0x4] sm:$0xf] %v7329
        %7363 = vst [vmem:[%s7360 + $0x8] sm:$0xf] %v7330
        %7364 = vst [vmem:[%s7360 + $0xc] sm:$0xf] %v7331
        %7365 = vst [vmem:[%s7360 + $0x10] sm:$0xf] %v7332
        %7366 = vst [vmem:[%s7360 + $0x14] sm:$0xf] %v7333
        %7367 = vst [vmem:[%s7360 + $0x18] sm:$0xf] %v7334
        %7368 = vst [vmem:[%s7360 + $0x1c] sm:$0xf] %v7335
        %7369 = vst [vmem:[%s7360 + $0x20] sm:$0xf] %v7336
        %7370 = vst [vmem:[%s7360 + $0x24] sm:$0xf] %v7337
        %7371 = vst [vmem:[%s7360 + $0x28] sm:$0xf] %v7338
        %7372 = vst [vmem:[%s7360 + $0x2c] sm:$0xf] %v7339
        %7373 = vst [vmem:[%s7360 + $0x30] sm:$0xf] %v7340
        %7374 = vst [vmem:[%s7360 + $0x34] sm:$0xf] %v7341
        %7375 = vst [vmem:[%s7360 + $0x38] sm:$0xf] %v7342
        %7376 = vst [vmem:[%s7360 + $0x3c] sm:$0xf] %v7343
        %7377 = vxpose.xlu0.c.b16.start [1/8] %v2504, 128
        %7378 = vxpose.xlu0.c.b16.cont [2/8] 0, 128
        %7379 = vxpose.xlu0.c.b16.cont [3/8] 0, 128
        %7380 = vxpose.xlu0.c.b16.cont [4/8] 0, 128
        %7381 = vxpose.xlu0.c.b16.cont [5/8] 0, 128
        %7382 = vxpose.xlu0.c.b16.cont [6/8] 0, 128
        %7383 = vxpose.xlu0.c.b16.cont [7/8] 0, 128
        %7384 = vxpose.xlu0.c.b16.end [8/8] 0, 128
        %v7385 = vpop.trf.xlu0
        %v7386 = vpop.trf.xlu0
        %v7387 = vpop.trf.xlu0
        %v7388 = vpop.trf.xlu0
        %v7389 = vpop.trf.xlu0
        %v7390 = vpop.trf.xlu0
        %v7391 = vpop.trf.xlu0
        %v7392 = vpop.trf.xlu0
        %v7394 = vsel %vm2530, %v7385, 0
        %v7397 = vsel %vm2530, %v7386, 0
        %v7400 = vsel %vm2530, %v7387, 0
        %v7403 = vsel %vm2530, %v7388, 0
        %v7406 = vsel %vm2530, %v7389, 0
        %v7409 = vsel %vm2530, %v7390, 0
        %v7412 = vsel %vm2530, %v7391, 0
        %v7415 = vsel %vm2530, %v7392, 0
        %v7418 = vsel %vm2555, %v691, 0
        %7420 = vmatprep.subr.bf16.mxu0 0
        %7421 = vmatpush1.bf16.msra.mxu0 0
        %7422 = vmatprep.subr.bf16.mxu0 0
        %7423 = vmatpush1.bf16.msra.mxu0 0
        %7424 = vmatprep.subr.bf16.mxu0 0
        %7425 = vmatpush1.bf16.msra.mxu0 0
        %7426 = vmatprep.subr.bf16.mxu0 0
        %7427 = vmatpush1.bf16.msra.mxu0 0
        %7428 = vmatprep.subr.bf16.mxu0 0
        %7429 = vmatpush1.bf16.msra.mxu0 0
        %7430 = vmatprep.subr.bf16.mxu0 0
        %7431 = vmatpush1.bf16.msra.mxu0 0
        %7432 = vmatprep.subr.bf16.mxu0 0
        %7433 = vmatpush1.bf16.msra.mxu0 0
        %7434 = vmatprep.subr.bf16.mxu0 0
        %7435 = vmatpush1.bf16.msra.mxu0 %v7418
        %7436 = vmatprep.subr.bf16.mxu0 0
        %7437 = vmatpush2.bf16.msra.mxu0 0
        %7438 = vmatprep.subr.bf16.mxu0 0
        %7439 = vmatpush2.bf16.msra.mxu0 0
        %7440 = vmatprep.subr.bf16.mxu0 0
        %7441 = vmatpush2.bf16.msra.mxu0 0
        %7442 = vmatprep.subr.bf16.mxu0 0
        %7443 = vmatpush2.bf16.msra.mxu0 0
        %7444 = vmatprep.subr.bf16.mxu0 0
        %7445 = vmatpush2.bf16.msra.mxu0 0
        %7446 = vmatprep.subr.bf16.mxu0 0
        %7447 = vmatpush2.bf16.msra.mxu0 0
        %7448 = vmatprep.subr.bf16.mxu0 0
        %7449 = vmatpush2.bf16.msra.mxu0 0
        %7450 = vmatprep.subr.bf16.mxu0 0
        %7451 = vmatpush2.bf16.msra.mxu0 0
        %7452 = vmatprep.mubr.bf16.mxu0 0
        %7453 = vmatmul.mubr.bf16.gmra.mxu0 %v7394
        %v7454 = vpop.f32.mrf.mxu0
        %v7455 = vadd.f32 0.0, %v7454
        %v7456 = vpop.f32.mrf.mxu0
        %v7457 = vpop.f32.mrf.mxu0
        %v7458 = vadd.f32 0.0, %v7457
        %v7459 = vpop.f32.mrf.mxu0
        %7460 = vmatprep.mubr.bf16.mxu0 0
        %7461 = vmatmul.mubr.bf16.gmra.mxu0 %v7397
        %v7462 = vpop.f32.mrf.mxu0
        %v7463 = vadd.f32 0.0, %v7462
        %v7464 = vpop.f32.mrf.mxu0
        %v7465 = vpop.f32.mrf.mxu0
        %v7466 = vadd.f32 0.0, %v7465
        %v7467 = vpop.f32.mrf.mxu0
        %7468 = vmatprep.mubr.bf16.mxu0 0
        %7469 = vmatmul.mubr.bf16.gmra.mxu0 %v7400
        %v7470 = vpop.f32.mrf.mxu0
        %v7471 = vadd.f32 0.0, %v7470
        %v7472 = vpop.f32.mrf.mxu0
        %v7473 = vpop.f32.mrf.mxu0
        %v7474 = vadd.f32 0.0, %v7473
        %v7475 = vpop.f32.mrf.mxu0
        %7476 = vmatprep.mubr.bf16.mxu0 0
        %7477 = vmatmul.mubr.bf16.gmra.mxu0 %v7403
        %v7478 = vpop.f32.mrf.mxu0
        %v7479 = vadd.f32 0.0, %v7478
        %v7480 = vpop.f32.mrf.mxu0
        %v7481 = vpop.f32.mrf.mxu0
        %v7482 = vadd.f32 0.0, %v7481
        %v7483 = vpop.f32.mrf.mxu0
        %7484 = vmatprep.mubr.bf16.mxu0 0
        %7485 = vmatmul.mubr.bf16.gmra.mxu0 %v7406
        %v7486 = vpop.f32.mrf.mxu0
        %v7487 = vadd.f32 0.0, %v7486
        %v7488 = vpop.f32.mrf.mxu0
        %v7489 = vpop.f32.mrf.mxu0
        %v7490 = vadd.f32 0.0, %v7489
        %v7491 = vpop.f32.mrf.mxu0
        %7492 = vmatprep.mubr.bf16.mxu0 0
        %7493 = vmatmul.mubr.bf16.gmra.mxu0 %v7409
        %v7494 = vpop.f32.mrf.mxu0
        %v7495 = vadd.f32 0.0, %v7494
        %v7496 = vpop.f32.mrf.mxu0
        %v7497 = vpop.f32.mrf.mxu0
        %v7498 = vadd.f32 0.0, %v7497
        %v7499 = vpop.f32.mrf.mxu0
        %7500 = vmatprep.mubr.bf16.mxu0 0
        %7501 = vmatmul.mubr.bf16.gmra.mxu0 %v7412
        %v7502 = vpop.f32.mrf.mxu0
        %v7503 = vadd.f32 0.0, %v7502
        %v7504 = vpop.f32.mrf.mxu0
        %v7505 = vpop.f32.mrf.mxu0
        %v7506 = vadd.f32 0.0, %v7505
        %v7507 = vpop.f32.mrf.mxu0
        %7508 = vmatprep.mubr.bf16.mxu0 0
        %7509 = vmatmul.mubr.bf16.gmra.mxu0 %v7415
        %v7510 = vpop.f32.mrf.mxu0
        %v7511 = vadd.f32 0.0, %v7510
        %v7512 = vpop.f32.mrf.mxu0
        %v7513 = vpop.f32.mrf.mxu0
        %v7514 = vadd.f32 0.0, %v7513
        %v7515 = vpop.f32.mrf.mxu0
        %7516 = vdwg.mxu0
        %v7517 = vpack.c.bf16 %v7458, %v7455
        %v7518 = vpack.c.bf16 %v7466, %v7463
        %v7519 = vpack.c.bf16 %v7474, %v7471
        %v7520 = vpack.c.bf16 %v7482, %v7479
        %v7521 = vpack.c.bf16 %v7490, %v7487
        %v7522 = vpack.c.bf16 %v7498, %v7495
        %v7523 = vpack.c.bf16 %v7506, %v7503
        %v7524 = vpack.c.bf16 %v7514, %v7511
        %v7533 = vunpack.c.l.b16 %v7517
        %v7534 = vunpack.c.h.b16 %v7517
        %v7535 = vunpack.c.l.b16 %v7518
        %v7536 = vunpack.c.h.b16 %v7518
        %v7537 = vunpack.c.l.b16 %v7519
        %v7538 = vunpack.c.h.b16 %v7519
        %v7539 = vunpack.c.l.b16 %v7520
        %v7540 = vunpack.c.h.b16 %v7520
        %v7541 = vunpack.c.l.b16 %v7521
        %v7542 = vunpack.c.h.b16 %v7521
        %v7543 = vunpack.c.l.b16 %v7522
        %v7544 = vunpack.c.h.b16 %v7522
        %v7545 = vunpack.c.l.b16 %v7523
        %v7546 = vunpack.c.h.b16 %v7523
        %v7547 = vunpack.c.l.b16 %v7524
        %v7548 = vunpack.c.h.b16 %v7524
        %v7549 = vpack.c.b16 %v7533, %v7533
        %v7550 = vpack.c.b16 %v7534, %v7534
        %v7551 = vpack.c.b16 %v7535, %v7535
        %v7552 = vpack.c.b16 %v7536, %v7536
        %v7553 = vpack.c.b16 %v7537, %v7537
        %v7554 = vpack.c.b16 %v7538, %v7538
        %v7555 = vpack.c.b16 %v7539, %v7539
        %v7556 = vpack.c.b16 %v7540, %v7540
        %v7557 = vpack.c.b16 %v7541, %v7541
        %v7558 = vpack.c.b16 %v7542, %v7542
        %v7559 = vpack.c.b16 %v7543, %v7543
        %v7560 = vpack.c.b16 %v7544, %v7544
        %v7561 = vpack.c.b16 %v7545, %v7545
        %v7562 = vpack.c.b16 %v7546, %v7546
        %v7563 = vpack.c.b16 %v7547, %v7547
        %v7564 = vpack.c.b16 %v7548, %v7548
        %s7581 = scalar_lea.vmem %s647, 1408 [#allocation20]
        %7582 = vst [vmem:[%s7581] sm:$0xf] %v7549
        %7583 = vst [vmem:[%s7581 + $0x4] sm:$0xf] %v7550
        %7584 = vst [vmem:[%s7581 + $0x8] sm:$0xf] %v7551
        %7585 = vst [vmem:[%s7581 + $0xc] sm:$0xf] %v7552
        %7586 = vst [vmem:[%s7581 + $0x10] sm:$0xf] %v7553
        %7587 = vst [vmem:[%s7581 + $0x14] sm:$0xf] %v7554
        %7588 = vst [vmem:[%s7581 + $0x18] sm:$0xf] %v7555
        %7589 = vst [vmem:[%s7581 + $0x1c] sm:$0xf] %v7556
        %7590 = vst [vmem:[%s7581 + $0x20] sm:$0xf] %v7557
        %7591 = vst [vmem:[%s7581 + $0x24] sm:$0xf] %v7558
        %7592 = vst [vmem:[%s7581 + $0x28] sm:$0xf] %v7559
        %7593 = vst [vmem:[%s7581 + $0x2c] sm:$0xf] %v7560
        %7594 = vst [vmem:[%s7581 + $0x30] sm:$0xf] %v7561
        %7595 = vst [vmem:[%s7581 + $0x34] sm:$0xf] %v7562
        %7596 = vst [vmem:[%s7581 + $0x38] sm:$0xf] %v7563
        %7597 = vst [vmem:[%s7581 + $0x3c] sm:$0xf] %v7564
        %7598 = vxpose.xlu0.c.b16.start [1/8] %v2505, 128
        %7599 = vxpose.xlu0.c.b16.cont [2/8] 0, 128
        %7600 = vxpose.xlu0.c.b16.cont [3/8] 0, 128
        %7601 = vxpose.xlu0.c.b16.cont [4/8] 0, 128
        %7602 = vxpose.xlu0.c.b16.cont [5/8] 0, 128
        %7603 = vxpose.xlu0.c.b16.cont [6/8] 0, 128
        %7604 = vxpose.xlu0.c.b16.cont [7/8] 0, 128
        %7605 = vxpose.xlu0.c.b16.end [8/8] 0, 128
        %v7606 = vpop.trf.xlu0
        %v7607 = vpop.trf.xlu0
        %v7608 = vpop.trf.xlu0
        %v7609 = vpop.trf.xlu0
        %v7610 = vpop.trf.xlu0
        %v7611 = vpop.trf.xlu0
        %v7612 = vpop.trf.xlu0
        %v7613 = vpop.trf.xlu0
        %v7615 = vsel %vm2530, %v7606, 0
        %v7618 = vsel %vm2530, %v7607, 0
        %v7621 = vsel %vm2530, %v7608, 0
        %v7624 = vsel %vm2530, %v7609, 0
        %v7627 = vsel %vm2530, %v7610, 0
        %v7630 = vsel %vm2530, %v7611, 0
        %v7633 = vsel %vm2530, %v7612, 0
        %v7636 = vsel %vm2530, %v7613, 0
        %v7639 = vsel %vm2555, %v692, 0
        %7641 = vmatprep.subr.bf16.mxu0 0
        %7642 = vmatpush1.bf16.msra.mxu0 0
        %7643 = vmatprep.subr.bf16.mxu0 0
        %7644 = vmatpush1.bf16.msra.mxu0 0
        %7645 = vmatprep.subr.bf16.mxu0 0
        %7646 = vmatpush1.bf16.msra.mxu0 0
        %7647 = vmatprep.subr.bf16.mxu0 0
        %7648 = vmatpush1.bf16.msra.mxu0 0
        %7649 = vmatprep.subr.bf16.mxu0 0
        %7650 = vmatpush1.bf16.msra.mxu0 0
        %7651 = vmatprep.subr.bf16.mxu0 0
        %7652 = vmatpush1.bf16.msra.mxu0 0
        %7653 = vmatprep.subr.bf16.mxu0 0
        %7654 = vmatpush1.bf16.msra.mxu0 0
        %7655 = vmatprep.subr.bf16.mxu0 0
        %7656 = vmatpush1.bf16.msra.mxu0 %v7639
        %7657 = vmatprep.subr.bf16.mxu0 0
        %7658 = vmatpush2.bf16.msra.mxu0 0
        %7659 = vmatprep.subr.bf16.mxu0 0
        %7660 = vmatpush2.bf16.msra.mxu0 0
        %7661 = vmatprep.subr.bf16.mxu0 0
        %7662 = vmatpush2.bf16.msra.mxu0 0
        %7663 = vmatprep.subr.bf16.mxu0 0
        %7664 = vmatpush2.bf16.msra.mxu0 0
        %7665 = vmatprep.subr.bf16.mxu0 0
        %7666 = vmatpush2.bf16.msra.mxu0 0
        %7667 = vmatprep.subr.bf16.mxu0 0
        %7668 = vmatpush2.bf16.msra.mxu0 0
        %7669 = vmatprep.subr.bf16.mxu0 0
        %7670 = vmatpush2.bf16.msra.mxu0 0
        %7671 = vmatprep.subr.bf16.mxu0 0
        %7672 = vmatpush2.bf16.msra.mxu0 0
        %7673 = vmatprep.mubr.bf16.mxu0 0
        %7674 = vmatmul.mubr.bf16.gmra.mxu0 %v7615
        %v7675 = vpop.f32.mrf.mxu0
        %v7676 = vadd.f32 0.0, %v7675
        %v7677 = vpop.f32.mrf.mxu0
        %v7678 = vpop.f32.mrf.mxu0
        %v7679 = vadd.f32 0.0, %v7678
        %v7680 = vpop.f32.mrf.mxu0
        %7681 = vmatprep.mubr.bf16.mxu0 0
        %7682 = vmatmul.mubr.bf16.gmra.mxu0 %v7618
        %v7683 = vpop.f32.mrf.mxu0
        %v7684 = vadd.f32 0.0, %v7683
        %v7685 = vpop.f32.mrf.mxu0
        %v7686 = vpop.f32.mrf.mxu0
        %v7687 = vadd.f32 0.0, %v7686
        %v7688 = vpop.f32.mrf.mxu0
        %7689 = vmatprep.mubr.bf16.mxu0 0
        %7690 = vmatmul.mubr.bf16.gmra.mxu0 %v7621
        %v7691 = vpop.f32.mrf.mxu0
        %v7692 = vadd.f32 0.0, %v7691
        %v7693 = vpop.f32.mrf.mxu0
        %v7694 = vpop.f32.mrf.mxu0
        %v7695 = vadd.f32 0.0, %v7694
        %v7696 = vpop.f32.mrf.mxu0
        %7697 = vmatprep.mubr.bf16.mxu0 0
        %7698 = vmatmul.mubr.bf16.gmra.mxu0 %v7624
        %v7699 = vpop.f32.mrf.mxu0
        %v7700 = vadd.f32 0.0, %v7699
        %v7701 = vpop.f32.mrf.mxu0
        %v7702 = vpop.f32.mrf.mxu0
        %v7703 = vadd.f32 0.0, %v7702
        %v7704 = vpop.f32.mrf.mxu0
        %7705 = vmatprep.mubr.bf16.mxu0 0
        %7706 = vmatmul.mubr.bf16.gmra.mxu0 %v7627
        %v7707 = vpop.f32.mrf.mxu0
        %v7708 = vadd.f32 0.0, %v7707
        %v7709 = vpop.f32.mrf.mxu0
        %v7710 = vpop.f32.mrf.mxu0
        %v7711 = vadd.f32 0.0, %v7710
        %v7712 = vpop.f32.mrf.mxu0
        %7713 = vmatprep.mubr.bf16.mxu0 0
        %7714 = vmatmul.mubr.bf16.gmra.mxu0 %v7630
        %v7715 = vpop.f32.mrf.mxu0
        %v7716 = vadd.f32 0.0, %v7715
        %v7717 = vpop.f32.mrf.mxu0
        %v7718 = vpop.f32.mrf.mxu0
        %v7719 = vadd.f32 0.0, %v7718
        %v7720 = vpop.f32.mrf.mxu0
        %7721 = vmatprep.mubr.bf16.mxu0 0
        %7722 = vmatmul.mubr.bf16.gmra.mxu0 %v7633
        %v7723 = vpop.f32.mrf.mxu0
        %v7724 = vadd.f32 0.0, %v7723
        %v7725 = vpop.f32.mrf.mxu0
        %v7726 = vpop.f32.mrf.mxu0
        %v7727 = vadd.f32 0.0, %v7726
        %v7728 = vpop.f32.mrf.mxu0
        %7729 = vmatprep.mubr.bf16.mxu0 0
        %7730 = vmatmul.mubr.bf16.gmra.mxu0 %v7636
        %v7731 = vpop.f32.mrf.mxu0
        %v7732 = vadd.f32 0.0, %v7731
        %v7733 = vpop.f32.mrf.mxu0
        %v7734 = vpop.f32.mrf.mxu0
        %v7735 = vadd.f32 0.0, %v7734
        %v7736 = vpop.f32.mrf.mxu0
        %7737 = vdwg.mxu0
        %v7738 = vpack.c.bf16 %v7679, %v7676
        %v7739 = vpack.c.bf16 %v7687, %v7684
        %v7740 = vpack.c.bf16 %v7695, %v7692
        %v7741 = vpack.c.bf16 %v7703, %v7700
        %v7742 = vpack.c.bf16 %v7711, %v7708
        %v7743 = vpack.c.bf16 %v7719, %v7716
        %v7744 = vpack.c.bf16 %v7727, %v7724
        %v7745 = vpack.c.bf16 %v7735, %v7732
        %v7754 = vunpack.c.l.b16 %v7738
        %v7755 = vunpack.c.h.b16 %v7738
        %v7756 = vunpack.c.l.b16 %v7739
        %v7757 = vunpack.c.h.b16 %v7739
        %v7758 = vunpack.c.l.b16 %v7740
        %v7759 = vunpack.c.h.b16 %v7740
        %v7760 = vunpack.c.l.b16 %v7741
        %v7761 = vunpack.c.h.b16 %v7741
        %v7762 = vunpack.c.l.b16 %v7742
        %v7763 = vunpack.c.h.b16 %v7742
        %v7764 = vunpack.c.l.b16 %v7743
        %v7765 = vunpack.c.h.b16 %v7743
        %v7766 = vunpack.c.l.b16 %v7744
        %v7767 = vunpack.c.h.b16 %v7744
        %v7768 = vunpack.c.l.b16 %v7745
        %v7769 = vunpack.c.h.b16 %v7745
        %v7770 = vpack.c.b16 %v7754, %v7754
        %v7771 = vpack.c.b16 %v7755, %v7755
        %v7772 = vpack.c.b16 %v7756, %v7756
        %v7773 = vpack.c.b16 %v7757, %v7757
        %v7774 = vpack.c.b16 %v7758, %v7758
        %v7775 = vpack.c.b16 %v7759, %v7759
        %v7776 = vpack.c.b16 %v7760, %v7760
        %v7777 = vpack.c.b16 %v7761, %v7761
        %v7778 = vpack.c.b16 %v7762, %v7762
        %v7779 = vpack.c.b16 %v7763, %v7763
        %v7780 = vpack.c.b16 %v7764, %v7764
        %v7781 = vpack.c.b16 %v7765, %v7765
        %v7782 = vpack.c.b16 %v7766, %v7766
        %v7783 = vpack.c.b16 %v7767, %v7767
        %v7784 = vpack.c.b16 %v7768, %v7768
        %v7785 = vpack.c.b16 %v7769, %v7769
        %s7802 = scalar_lea.vmem %s647, 1472 [#allocation20]
        %7803 = vst [vmem:[%s7802] sm:$0xf] %v7770
        %7804 = vst [vmem:[%s7802 + $0x4] sm:$0xf] %v7771
        %7805 = vst [vmem:[%s7802 + $0x8] sm:$0xf] %v7772
        %7806 = vst [vmem:[%s7802 + $0xc] sm:$0xf] %v7773
        %7807 = vst [vmem:[%s7802 + $0x10] sm:$0xf] %v7774
        %7808 = vst [vmem:[%s7802 + $0x14] sm:$0xf] %v7775
        %7809 = vst [vmem:[%s7802 + $0x18] sm:$0xf] %v7776
        %7810 = vst [vmem:[%s7802 + $0x1c] sm:$0xf] %v7777
        %7811 = vst [vmem:[%s7802 + $0x20] sm:$0xf] %v7778
        %7812 = vst [vmem:[%s7802 + $0x24] sm:$0xf] %v7779
        %7813 = vst [vmem:[%s7802 + $0x28] sm:$0xf] %v7780
        %7814 = vst [vmem:[%s7802 + $0x2c] sm:$0xf] %v7781
        %7815 = vst [vmem:[%s7802 + $0x30] sm:$0xf] %v7782
        %7816 = vst [vmem:[%s7802 + $0x34] sm:$0xf] %v7783
        %7817 = vst [vmem:[%s7802 + $0x38] sm:$0xf] %v7784
        %7818 = vst [vmem:[%s7802 + $0x3c] sm:$0xf] %v7785
        %7819 = vxpose.xlu0.c.b16.start [1/8] %v2506, 128
        %7820 = vxpose.xlu0.c.b16.cont [2/8] 0, 128
        %7821 = vxpose.xlu0.c.b16.cont [3/8] 0, 128
        %7822 = vxpose.xlu0.c.b16.cont [4/8] 0, 128
        %7823 = vxpose.xlu0.c.b16.cont [5/8] 0, 128
        %7824 = vxpose.xlu0.c.b16.cont [6/8] 0, 128
        %7825 = vxpose.xlu0.c.b16.cont [7/8] 0, 128
        %7826 = vxpose.xlu0.c.b16.end [8/8] 0, 128
        %v7827 = vpop.trf.xlu0
        %v7828 = vpop.trf.xlu0
        %v7829 = vpop.trf.xlu0
        %v7830 = vpop.trf.xlu0
        %v7831 = vpop.trf.xlu0
        %v7832 = vpop.trf.xlu0
        %v7833 = vpop.trf.xlu0
        %v7834 = vpop.trf.xlu0
        %v7836 = vsel %vm2530, %v7827, 0
        %v7839 = vsel %vm2530, %v7828, 0
        %v7842 = vsel %vm2530, %v7829, 0
        %v7845 = vsel %vm2530, %v7830, 0
        %v7848 = vsel %vm2530, %v7831, 0
        %v7851 = vsel %vm2530, %v7832, 0
        %v7854 = vsel %vm2530, %v7833, 0
        %v7857 = vsel %vm2530, %v7834, 0
        %v7860 = vsel %vm2555, %v693, 0
        %7862 = vmatprep.subr.bf16.mxu0 0
        %7863 = vmatpush1.bf16.msra.mxu0 0
        %7864 = vmatprep.subr.bf16.mxu0 0
        %7865 = vmatpush1.bf16.msra.mxu0 0
        %7866 = vmatprep.subr.bf16.mxu0 0
        %7867 = vmatpush1.bf16.msra.mxu0 0
        %7868 = vmatprep.subr.bf16.mxu0 0
        %7869 = vmatpush1.bf16.msra.mxu0 0
        %7870 = vmatprep.subr.bf16.mxu0 0
        %7871 = vmatpush1.bf16.msra.mxu0 0
        %7872 = vmatprep.subr.bf16.mxu0 0
        %7873 = vmatpush1.bf16.msra.mxu0 0
        %7874 = vmatprep.subr.bf16.mxu0 0
        %7875 = vmatpush1.bf16.msra.mxu0 0
        %7876 = vmatprep.subr.bf16.mxu0 0
        %7877 = vmatpush1.bf16.msra.mxu0 %v7860
        %7878 = vmatprep.subr.bf16.mxu0 0
        %7879 = vmatpush2.bf16.msra.mxu0 0
        %7880 = vmatprep.subr.bf16.mxu0 0
        %7881 = vmatpush2.bf16.msra.mxu0 0
        %7882 = vmatprep.subr.bf16.mxu0 0
        %7883 = vmatpush2.bf16.msra.mxu0 0
        %7884 = vmatprep.subr.bf16.mxu0 0
        %7885 = vmatpush2.bf16.msra.mxu0 0
        %7886 = vmatprep.subr.bf16.mxu0 0
        %7887 = vmatpush2.bf16.msra.mxu0 0
        %7888 = vmatprep.subr.bf16.mxu0 0
        %7889 = vmatpush2.bf16.msra.mxu0 0
        %7890 = vmatprep.subr.bf16.mxu0 0
        %7891 = vmatpush2.bf16.msra.mxu0 0
        %7892 = vmatprep.subr.bf16.mxu0 0
        %7893 = vmatpush2.bf16.msra.mxu0 0
        %7894 = vmatprep.mubr.bf16.mxu0 0
        %7895 = vmatmul.mubr.bf16.gmra.mxu0 %v7836
        %v7896 = vpop.f32.mrf.mxu0
        %v7897 = vadd.f32 0.0, %v7896
        %v7898 = vpop.f32.mrf.mxu0
        %v7899 = vpop.f32.mrf.mxu0
        %v7900 = vadd.f32 0.0, %v7899
        %v7901 = vpop.f32.mrf.mxu0
        %7902 = vmatprep.mubr.bf16.mxu0 0
        %7903 = vmatmul.mubr.bf16.gmra.mxu0 %v7839
        %v7904 = vpop.f32.mrf.mxu0
        %v7905 = vadd.f32 0.0, %v7904
        %v7906 = vpop.f32.mrf.mxu0
        %v7907 = vpop.f32.mrf.mxu0
        %v7908 = vadd.f32 0.0, %v7907
        %v7909 = vpop.f32.mrf.mxu0
        %7910 = vmatprep.mubr.bf16.mxu0 0
        %7911 = vmatmul.mubr.bf16.gmra.mxu0 %v7842
        %v7912 = vpop.f32.mrf.mxu0
        %v7913 = vadd.f32 0.0, %v7912
        %v7914 = vpop.f32.mrf.mxu0
        %v7915 = vpop.f32.mrf.mxu0
        %v7916 = vadd.f32 0.0, %v7915
        %v7917 = vpop.f32.mrf.mxu0
        %7918 = vmatprep.mubr.bf16.mxu0 0
        %7919 = vmatmul.mubr.bf16.gmra.mxu0 %v7845
        %v7920 = vpop.f32.mrf.mxu0
        %v7921 = vadd.f32 0.0, %v7920
        %v7922 = vpop.f32.mrf.mxu0
        %v7923 = vpop.f32.mrf.mxu0
        %v7924 = vadd.f32 0.0, %v7923
        %v7925 = vpop.f32.mrf.mxu0
        %7926 = vmatprep.mubr.bf16.mxu0 0
        %7927 = vmatmul.mubr.bf16.gmra.mxu0 %v7848
        %v7928 = vpop.f32.mrf.mxu0
        %v7929 = vadd.f32 0.0, %v7928
        %v7930 = vpop.f32.mrf.mxu0
        %v7931 = vpop.f32.mrf.mxu0
        %v7932 = vadd.f32 0.0, %v7931
        %v7933 = vpop.f32.mrf.mxu0
        %7934 = vmatprep.mubr.bf16.mxu0 0
        %7935 = vmatmul.mubr.bf16.gmra.mxu0 %v7851
        %v7936 = vpop.f32.mrf.mxu0
        %v7937 = vadd.f32 0.0, %v7936
        %v7938 = vpop.f32.mrf.mxu0
        %v7939 = vpop.f32.mrf.mxu0
        %v7940 = vadd.f32 0.0, %v7939
        %v7941 = vpop.f32.mrf.mxu0
        %7942 = vmatprep.mubr.bf16.mxu0 0
        %7943 = vmatmul.mubr.bf16.gmra.mxu0 %v7854
        %v7944 = vpop.f32.mrf.mxu0
        %v7945 = vadd.f32 0.0, %v7944
        %v7946 = vpop.f32.mrf.mxu0
        %v7947 = vpop.f32.mrf.mxu0
        %v7948 = vadd.f32 0.0, %v7947
        %v7949 = vpop.f32.mrf.mxu0
        %7950 = vmatprep.mubr.bf16.mxu0 0
        %7951 = vmatmul.mubr.bf16.gmra.mxu0 %v7857
        %v7952 = vpop.f32.mrf.mxu0
        %v7953 = vadd.f32 0.0, %v7952
        %v7954 = vpop.f32.mrf.mxu0
        %v7955 = vpop.f32.mrf.mxu0
        %v7956 = vadd.f32 0.0, %v7955
        %v7957 = vpop.f32.mrf.mxu0
        %7958 = vdwg.mxu0
        %v7959 = vpack.c.bf16 %v7900, %v7897
        %v7960 = vpack.c.bf16 %v7908, %v7905
        %v7961 = vpack.c.bf16 %v7916, %v7913
        %v7962 = vpack.c.bf16 %v7924, %v7921
        %v7963 = vpack.c.bf16 %v7932, %v7929
        %v7964 = vpack.c.bf16 %v7940, %v7937
        %v7965 = vpack.c.bf16 %v7948, %v7945
        %v7966 = vpack.c.bf16 %v7956, %v7953
        %v7975 = vunpack.c.l.b16 %v7959
        %v7976 = vunpack.c.h.b16 %v7959
        %v7977 = vunpack.c.l.b16 %v7960
        %v7978 = vunpack.c.h.b16 %v7960
        %v7979 = vunpack.c.l.b16 %v7961
        %v7980 = vunpack.c.h.b16 %v7961
        %v7981 = vunpack.c.l.b16 %v7962
        %v7982 = vunpack.c.h.b16 %v7962
        %v7983 = vunpack.c.l.b16 %v7963
        %v7984 = vunpack.c.h.b16 %v7963
        %v7985 = vunpack.c.l.b16 %v7964
        %v7986 = vunpack.c.h.b16 %v7964
        %v7987 = vunpack.c.l.b16 %v7965
        %v7988 = vunpack.c.h.b16 %v7965
        %v7989 = vunpack.c.l.b16 %v7966
        %v7990 = vunpack.c.h.b16 %v7966
        %v7991 = vpack.c.b16 %v7975, %v7975
        %v7992 = vpack.c.b16 %v7976, %v7976
        %v7993 = vpack.c.b16 %v7977, %v7977
        %v7994 = vpack.c.b16 %v7978, %v7978
        %v7995 = vpack.c.b16 %v7979, %v7979
        %v7996 = vpack.c.b16 %v7980, %v7980
        %v7997 = vpack.c.b16 %v7981, %v7981
        %v7998 = vpack.c.b16 %v7982, %v7982
        %v7999 = vpack.c.b16 %v7983, %v7983
        %v8000 = vpack.c.b16 %v7984, %v7984
        %v8001 = vpack.c.b16 %v7985, %v7985
        %v8002 = vpack.c.b16 %v7986, %v7986
        %v8003 = vpack.c.b16 %v7987, %v7987
        %v8004 = vpack.c.b16 %v7988, %v7988
        %v8005 = vpack.c.b16 %v7989, %v7989
        %v8006 = vpack.c.b16 %v7990, %v7990
        %s8023 = scalar_lea.vmem %s647, 1536 [#allocation20]
        %8024 = vst [vmem:[%s8023] sm:$0xf] %v7991
        %8025 = vst [vmem:[%s8023 + $0x4] sm:$0xf] %v7992
        %8026 = vst [vmem:[%s8023 + $0x8] sm:$0xf] %v7993
        %8027 = vst [vmem:[%s8023 + $0xc] sm:$0xf] %v7994
        %8028 = vst [vmem:[%s8023 + $0x10] sm:$0xf] %v7995
        %8029 = vst [vmem:[%s8023 + $0x14] sm:$0xf] %v7996
        %8030 = vst [vmem:[%s8023 + $0x18] sm:$0xf] %v7997
        %8031 = vst [vmem:[%s8023 + $0x1c] sm:$0xf] %v7998
        %8032 = vst [vmem:[%s8023 + $0x20] sm:$0xf] %v7999
        %8033 = vst [vmem:[%s8023 + $0x24] sm:$0xf] %v8000
        %8034 = vst [vmem:[%s8023 + $0x28] sm:$0xf] %v8001
        %8035 = vst [vmem:[%s8023 + $0x2c] sm:$0xf] %v8002
        %8036 = vst [vmem:[%s8023 + $0x30] sm:$0xf] %v8003
        %8037 = vst [vmem:[%s8023 + $0x34] sm:$0xf] %v8004
        %8038 = vst [vmem:[%s8023 + $0x38] sm:$0xf] %v8005
        %8039 = vst [vmem:[%s8023 + $0x3c] sm:$0xf] %v8006
        %8040 = vxpose.xlu0.c.b16.start [1/8] %v2507, 128
        %8041 = vxpose.xlu0.c.b16.cont [2/8] 0, 128
        %8042 = vxpose.xlu0.c.b16.cont [3/8] 0, 128
        %8043 = vxpose.xlu0.c.b16.cont [4/8] 0, 128
        %8044 = vxpose.xlu0.c.b16.cont [5/8] 0, 128
        %8045 = vxpose.xlu0.c.b16.cont [6/8] 0, 128
        %8046 = vxpose.xlu0.c.b16.cont [7/8] 0, 128
        %8047 = vxpose.xlu0.c.b16.end [8/8] 0, 128
        %v8048 = vpop.trf.xlu0
        %v8049 = vpop.trf.xlu0
        %v8050 = vpop.trf.xlu0
        %v8051 = vpop.trf.xlu0
        %v8052 = vpop.trf.xlu0
        %v8053 = vpop.trf.xlu0
        %v8054 = vpop.trf.xlu0
        %v8055 = vpop.trf.xlu0
        %v8057 = vsel %vm2530, %v8048, 0
        %v8060 = vsel %vm2530, %v8049, 0
        %v8063 = vsel %vm2530, %v8050, 0
        %v8066 = vsel %vm2530, %v8051, 0
        %v8069 = vsel %vm2530, %v8052, 0
        %v8072 = vsel %vm2530, %v8053, 0
        %v8075 = vsel %vm2530, %v8054, 0
        %v8078 = vsel %vm2530, %v8055, 0
        %v8081 = vsel %vm2555, %v694, 0
        %8083 = vmatprep.subr.bf16.mxu0 0
        %8084 = vmatpush1.bf16.msra.mxu0 0
        %8085 = vmatprep.subr.bf16.mxu0 0
        %8086 = vmatpush1.bf16.msra.mxu0 0
        %8087 = vmatprep.subr.bf16.mxu0 0
        %8088 = vmatpush1.bf16.msra.mxu0 0
        %8089 = vmatprep.subr.bf16.mxu0 0
        %8090 = vmatpush1.bf16.msra.mxu0 0
        %8091 = vmatprep.subr.bf16.mxu0 0
        %8092 = vmatpush1.bf16.msra.mxu0 0
        %8093 = vmatprep.subr.bf16.mxu0 0
        %8094 = vmatpush1.bf16.msra.mxu0 0
        %8095 = vmatprep.subr.bf16.mxu0 0
        %8096 = vmatpush1.bf16.msra.mxu0 0
        %8097 = vmatprep.subr.bf16.mxu0 0
        %8098 = vmatpush1.bf16.msra.mxu0 %v8081
        %8099 = vmatprep.subr.bf16.mxu0 0
        %8100 = vmatpush2.bf16.msra.mxu0 0
        %8101 = vmatprep.subr.bf16.mxu0 0
        %8102 = vmatpush2.bf16.msra.mxu0 0
        %8103 = vmatprep.subr.bf16.mxu0 0
        %8104 = vmatpush2.bf16.msra.mxu0 0
        %8105 = vmatprep.subr.bf16.mxu0 0
        %8106 = vmatpush2.bf16.msra.mxu0 0
        %8107 = vmatprep.subr.bf16.mxu0 0
        %8108 = vmatpush2.bf16.msra.mxu0 0
        %8109 = vmatprep.subr.bf16.mxu0 0
        %8110 = vmatpush2.bf16.msra.mxu0 0
        %8111 = vmatprep.subr.bf16.mxu0 0
        %8112 = vmatpush2.bf16.msra.mxu0 0
        %8113 = vmatprep.subr.bf16.mxu0 0
        %8114 = vmatpush2.bf16.msra.mxu0 0
        %8115 = vmatprep.mubr.bf16.mxu0 0
        %8116 = vmatmul.mubr.bf16.gmra.mxu0 %v8057
        %v8117 = vpop.f32.mrf.mxu0
        %v8118 = vadd.f32 0.0, %v8117
        %v8119 = vpop.f32.mrf.mxu0
        %v8120 = vpop.f32.mrf.mxu0
        %v8121 = vadd.f32 0.0, %v8120
        %v8122 = vpop.f32.mrf.mxu0
        %8123 = vmatprep.mubr.bf16.mxu0 0
        %8124 = vmatmul.mubr.bf16.gmra.mxu0 %v8060
        %v8125 = vpop.f32.mrf.mxu0
        %v8126 = vadd.f32 0.0, %v8125
        %v8127 = vpop.f32.mrf.mxu0
        %v8128 = vpop.f32.mrf.mxu0
        %v8129 = vadd.f32 0.0, %v8128
        %v8130 = vpop.f32.mrf.mxu0
        %8131 = vmatprep.mubr.bf16.mxu0 0
        %8132 = vmatmul.mubr.bf16.gmra.mxu0 %v8063
        %v8133 = vpop.f32.mrf.mxu0
        %v8134 = vadd.f32 0.0, %v8133
        %v8135 = vpop.f32.mrf.mxu0
        %v8136 = vpop.f32.mrf.mxu0
        %v8137 = vadd.f32 0.0, %v8136
        %v8138 = vpop.f32.mrf.mxu0
        %8139 = vmatprep.mubr.bf16.mxu0 0
        %8140 = vmatmul.mubr.bf16.gmra.mxu0 %v8066
        %v8141 = vpop.f32.mrf.mxu0
        %v8142 = vadd.f32 0.0, %v8141
        %v8143 = vpop.f32.mrf.mxu0
        %v8144 = vpop.f32.mrf.mxu0
        %v8145 = vadd.f32 0.0, %v8144
        %v8146 = vpop.f32.mrf.mxu0
        %8147 = vmatprep.mubr.bf16.mxu0 0
        %8148 = vmatmul.mubr.bf16.gmra.mxu0 %v8069
        %v8149 = vpop.f32.mrf.mxu0
        %v8150 = vadd.f32 0.0, %v8149
        %v8151 = vpop.f32.mrf.mxu0
        %v8152 = vpop.f32.mrf.mxu0
        %v8153 = vadd.f32 0.0, %v8152
        %v8154 = vpop.f32.mrf.mxu0
        %8155 = vmatprep.mubr.bf16.mxu0 0
        %8156 = vmatmul.mubr.bf16.gmra.mxu0 %v8072
        %v8157 = vpop.f32.mrf.mxu0
        %v8158 = vadd.f32 0.0, %v8157
        %v8159 = vpop.f32.mrf.mxu0
        %v8160 = vpop.f32.mrf.mxu0
        %v8161 = vadd.f32 0.0, %v8160
        %v8162 = vpop.f32.mrf.mxu0
        %8163 = vmatprep.mubr.bf16.mxu0 0
        %8164 = vmatmul.mubr.bf16.gmra.mxu0 %v8075
        %v8165 = vpop.f32.mrf.mxu0
        %v8166 = vadd.f32 0.0, %v8165
        %v8167 = vpop.f32.mrf.mxu0
        %v8168 = vpop.f32.mrf.mxu0
        %v8169 = vadd.f32 0.0, %v8168
        %v8170 = vpop.f32.mrf.mxu0
        %8171 = vmatprep.mubr.bf16.mxu0 0
        %8172 = vmatmul.mubr.bf16.gmra.mxu0 %v8078
        %v8173 = vpop.f32.mrf.mxu0
        %v8174 = vadd.f32 0.0, %v8173
        %v8175 = vpop.f32.mrf.mxu0
        %v8176 = vpop.f32.mrf.mxu0
        %v8177 = vadd.f32 0.0, %v8176
        %v8178 = vpop.f32.mrf.mxu0
        %8179 = vdwg.mxu0
        %v8180 = vpack.c.bf16 %v8121, %v8118
        %v8181 = vpack.c.bf16 %v8129, %v8126
        %v8182 = vpack.c.bf16 %v8137, %v8134
        %v8183 = vpack.c.bf16 %v8145, %v8142
        %v8184 = vpack.c.bf16 %v8153, %v8150
        %v8185 = vpack.c.bf16 %v8161, %v8158
        %v8186 = vpack.c.bf16 %v8169, %v8166
        %v8187 = vpack.c.bf16 %v8177, %v8174
        %v8196 = vunpack.c.l.b16 %v8180
        %v8197 = vunpack.c.h.b16 %v8180
        %v8198 = vunpack.c.l.b16 %v8181
        %v8199 = vunpack.c.h.b16 %v8181
        %v8200 = vunpack.c.l.b16 %v8182
        %v8201 = vunpack.c.h.b16 %v8182
        %v8202 = vunpack.c.l.b16 %v8183
        %v8203 = vunpack.c.h.b16 %v8183
        %v8204 = vunpack.c.l.b16 %v8184
        %v8205 = vunpack.c.h.b16 %v8184
        %v8206 = vunpack.c.l.b16 %v8185
        %v8207 = vunpack.c.h.b16 %v8185
        %v8208 = vunpack.c.l.b16 %v8186
        %v8209 = vunpack.c.h.b16 %v8186
        %v8210 = vunpack.c.l.b16 %v8187
        %v8211 = vunpack.c.h.b16 %v8187
        %v8212 = vpack.c.b16 %v8196, %v8196
        %v8213 = vpack.c.b16 %v8197, %v8197
        %v8214 = vpack.c.b16 %v8198, %v8198
        %v8215 = vpack.c.b16 %v8199, %v8199
        %v8216 = vpack.c.b16 %v8200, %v8200
        %v8217 = vpack.c.b16 %v8201, %v8201
        %v8218 = vpack.c.b16 %v8202, %v8202
        %v8219 = vpack.c.b16 %v8203, %v8203
        %v8220 = vpack.c.b16 %v8204, %v8204
        %v8221 = vpack.c.b16 %v8205, %v8205
        %v8222 = vpack.c.b16 %v8206, %v8206
        %v8223 = vpack.c.b16 %v8207, %v8207
        %v8224 = vpack.c.b16 %v8208, %v8208
        %v8225 = vpack.c.b16 %v8209, %v8209
        %v8226 = vpack.c.b16 %v8210, %v8210
        %v8227 = vpack.c.b16 %v8211, %v8211
        %s8244 = scalar_lea.vmem %s647, 1600 [#allocation20]
        %8245 = vst [vmem:[%s8244] sm:$0xf] %v8212
        %8246 = vst [vmem:[%s8244 + $0x4] sm:$0xf] %v8213
        %8247 = vst [vmem:[%s8244 + $0x8] sm:$0xf] %v8214
        %8248 = vst [vmem:[%s8244 + $0xc] sm:$0xf] %v8215
        %8249 = vst [vmem:[%s8244 + $0x10] sm:$0xf] %v8216
        %8250 = vst [vmem:[%s8244 + $0x14] sm:$0xf] %v8217
        %8251 = vst [vmem:[%s8244 + $0x18] sm:$0xf] %v8218
        %8252 = vst [vmem:[%s8244 + $0x1c] sm:$0xf] %v8219
        %8253 = vst [vmem:[%s8244 + $0x20] sm:$0xf] %v8220
        %8254 = vst [vmem:[%s8244 + $0x24] sm:$0xf] %v8221
        %8255 = vst [vmem:[%s8244 + $0x28] sm:$0xf] %v8222
        %8256 = vst [vmem:[%s8244 + $0x2c] sm:$0xf] %v8223
        %8257 = vst [vmem:[%s8244 + $0x30] sm:$0xf] %v8224
        %8258 = vst [vmem:[%s8244 + $0x34] sm:$0xf] %v8225
        %8259 = vst [vmem:[%s8244 + $0x38] sm:$0xf] %v8226
        %8260 = vst [vmem:[%s8244 + $0x3c] sm:$0xf] %v8227
        %8261 = vxpose.xlu0.c.b16.start [1/8] %v2508, 128
        %8262 = vxpose.xlu0.c.b16.cont [2/8] 0, 128
        %8263 = vxpose.xlu0.c.b16.cont [3/8] 0, 128
        %8264 = vxpose.xlu0.c.b16.cont [4/8] 0, 128
        %8265 = vxpose.xlu0.c.b16.cont [5/8] 0, 128
        %8266 = vxpose.xlu0.c.b16.cont [6/8] 0, 128
        %8267 = vxpose.xlu0.c.b16.cont [7/8] 0, 128
        %8268 = vxpose.xlu0.c.b16.end [8/8] 0, 128
        %v8269 = vpop.trf.xlu0
        %v8270 = vpop.trf.xlu0
        %v8271 = vpop.trf.xlu0
        %v8272 = vpop.trf.xlu0
        %v8273 = vpop.trf.xlu0
        %v8274 = vpop.trf.xlu0
        %v8275 = vpop.trf.xlu0
        %v8276 = vpop.trf.xlu0
        %v8278 = vsel %vm2530, %v8269, 0
        %v8281 = vsel %vm2530, %v8270, 0
        %v8284 = vsel %vm2530, %v8271, 0
        %v8287 = vsel %vm2530, %v8272, 0
        %v8290 = vsel %vm2530, %v8273, 0
        %v8293 = vsel %vm2530, %v8274, 0
        %v8296 = vsel %vm2530, %v8275, 0
        %v8299 = vsel %vm2530, %v8276, 0
        %v8302 = vsel %vm2555, %v695, 0
        %8304 = vmatprep.subr.bf16.mxu0 0
        %8305 = vmatpush1.bf16.msra.mxu0 0
        %8306 = vmatprep.subr.bf16.mxu0 0
        %8307 = vmatpush1.bf16.msra.mxu0 0
        %8308 = vmatprep.subr.bf16.mxu0 0
        %8309 = vmatpush1.bf16.msra.mxu0 0
        %8310 = vmatprep.subr.bf16.mxu0 0
        %8311 = vmatpush1.bf16.msra.mxu0 0
        %8312 = vmatprep.subr.bf16.mxu0 0
        %8313 = vmatpush1.bf16.msra.mxu0 0
        %8314 = vmatprep.subr.bf16.mxu0 0
        %8315 = vmatpush1.bf16.msra.mxu0 0
        %8316 = vmatprep.subr.bf16.mxu0 0
        %8317 = vmatpush1.bf16.msra.mxu0 0
        %8318 = vmatprep.subr.bf16.mxu0 0
        %8319 = vmatpush1.bf16.msra.mxu0 %v8302
        %8320 = vmatprep.subr.bf16.mxu0 0
        %8321 = vmatpush2.bf16.msra.mxu0 0
        %8322 = vmatprep.subr.bf16.mxu0 0
        %8323 = vmatpush2.bf16.msra.mxu0 0
        %8324 = vmatprep.subr.bf16.mxu0 0
        %8325 = vmatpush2.bf16.msra.mxu0 0
        %8326 = vmatprep.subr.bf16.mxu0 0
        %8327 = vmatpush2.bf16.msra.mxu0 0
        %8328 = vmatprep.subr.bf16.mxu0 0
        %8329 = vmatpush2.bf16.msra.mxu0 0
        %8330 = vmatprep.subr.bf16.mxu0 0
        %8331 = vmatpush2.bf16.msra.mxu0 0
        %8332 = vmatprep.subr.bf16.mxu0 0
        %8333 = vmatpush2.bf16.msra.mxu0 0
        %8334 = vmatprep.subr.bf16.mxu0 0
        %8335 = vmatpush2.bf16.msra.mxu0 0
        %8336 = vmatprep.mubr.bf16.mxu0 0
        %8337 = vmatmul.mubr.bf16.gmra.mxu0 %v8278
        %v8338 = vpop.f32.mrf.mxu0
        %v8339 = vadd.f32 0.0, %v8338
        %v8340 = vpop.f32.mrf.mxu0
        %v8341 = vpop.f32.mrf.mxu0
        %v8342 = vadd.f32 0.0, %v8341
        %v8343 = vpop.f32.mrf.mxu0
        %8344 = vmatprep.mubr.bf16.mxu0 0
        %8345 = vmatmul.mubr.bf16.gmra.mxu0 %v8281
        %v8346 = vpop.f32.mrf.mxu0
        %v8347 = vadd.f32 0.0, %v8346
        %v8348 = vpop.f32.mrf.mxu0
        %v8349 = vpop.f32.mrf.mxu0
        %v8350 = vadd.f32 0.0, %v8349
        %v8351 = vpop.f32.mrf.mxu0
        %8352 = vmatprep.mubr.bf16.mxu0 0
        %8353 = vmatmul.mubr.bf16.gmra.mxu0 %v8284
        %v8354 = vpop.f32.mrf.mxu0
        %v8355 = vadd.f32 0.0, %v8354
        %v8356 = vpop.f32.mrf.mxu0
        %v8357 = vpop.f32.mrf.mxu0
        %v8358 = vadd.f32 0.0, %v8357
        %v8359 = vpop.f32.mrf.mxu0
        %8360 = vmatprep.mubr.bf16.mxu0 0
        %8361 = vmatmul.mubr.bf16.gmra.mxu0 %v8287
        %v8362 = vpop.f32.mrf.mxu0
        %v8363 = vadd.f32 0.0, %v8362
        %v8364 = vpop.f32.mrf.mxu0
        %v8365 = vpop.f32.mrf.mxu0
        %v8366 = vadd.f32 0.0, %v8365
        %v8367 = vpop.f32.mrf.mxu0
        %8368 = vmatprep.mubr.bf16.mxu0 0
        %8369 = vmatmul.mubr.bf16.gmra.mxu0 %v8290
        %v8370 = vpop.f32.mrf.mxu0
        %v8371 = vadd.f32 0.0, %v8370
        %v8372 = vpop.f32.mrf.mxu0
        %v8373 = vpop.f32.mrf.mxu0
        %v8374 = vadd.f32 0.0, %v8373
        %v8375 = vpop.f32.mrf.mxu0
        %8376 = vmatprep.mubr.bf16.mxu0 0
        %8377 = vmatmul.mubr.bf16.gmra.mxu0 %v8293
        %v8378 = vpop.f32.mrf.mxu0
        %v8379 = vadd.f32 0.0, %v8378
        %v8380 = vpop.f32.mrf.mxu0
        %v8381 = vpop.f32.mrf.mxu0
        %v8382 = vadd.f32 0.0, %v8381
        %v8383 = vpop.f32.mrf.mxu0
        %8384 = vmatprep.mubr.bf16.mxu0 0
        %8385 = vmatmul.mubr.bf16.gmra.mxu0 %v8296
        %v8386 = vpop.f32.mrf.mxu0
        %v8387 = vadd.f32 0.0, %v8386
        %v8388 = vpop.f32.mrf.mxu0
        %v8389 = vpop.f32.mrf.mxu0
        %v8390 = vadd.f32 0.0, %v8389
        %v8391 = vpop.f32.mrf.mxu0
        %8392 = vmatprep.mubr.bf16.mxu0 0
        %8393 = vmatmul.mubr.bf16.gmra.mxu0 %v8299
        %v8394 = vpop.f32.mrf.mxu0
        %v8395 = vadd.f32 0.0, %v8394
        %v8396 = vpop.f32.mrf.mxu0
        %v8397 = vpop.f32.mrf.mxu0
        %v8398 = vadd.f32 0.0, %v8397
        %v8399 = vpop.f32.mrf.mxu0
        %8400 = vdwg.mxu0
        %v8401 = vpack.c.bf16 %v8342, %v8339
        %v8402 = vpack.c.bf16 %v8350, %v8347
        %v8403 = vpack.c.bf16 %v8358, %v8355
        %v8404 = vpack.c.bf16 %v8366, %v8363
        %v8405 = vpack.c.bf16 %v8374, %v8371
        %v8406 = vpack.c.bf16 %v8382, %v8379
        %v8407 = vpack.c.bf16 %v8390, %v8387
        %v8408 = vpack.c.bf16 %v8398, %v8395
        %v8417 = vunpack.c.l.b16 %v8401
        %v8418 = vunpack.c.h.b16 %v8401
        %v8419 = vunpack.c.l.b16 %v8402
        %v8420 = vunpack.c.h.b16 %v8402
        %v8421 = vunpack.c.l.b16 %v8403
        %v8422 = vunpack.c.h.b16 %v8403
        %v8423 = vunpack.c.l.b16 %v8404
        %v8424 = vunpack.c.h.b16 %v8404
        %v8425 = vunpack.c.l.b16 %v8405
        %v8426 = vunpack.c.h.b16 %v8405
        %v8427 = vunpack.c.l.b16 %v8406
        %v8428 = vunpack.c.h.b16 %v8406
        %v8429 = vunpack.c.l.b16 %v8407
        %v8430 = vunpack.c.h.b16 %v8407
        %v8431 = vunpack.c.l.b16 %v8408
        %v8432 = vunpack.c.h.b16 %v8408
        %v8433 = vpack.c.b16 %v8417, %v8417
        %v8434 = vpack.c.b16 %v8418, %v8418
        %v8435 = vpack.c.b16 %v8419, %v8419
        %v8436 = vpack.c.b16 %v8420, %v8420
        %v8437 = vpack.c.b16 %v8421, %v8421
        %v8438 = vpack.c.b16 %v8422, %v8422
        %v8439 = vpack.c.b16 %v8423, %v8423
        %v8440 = vpack.c.b16 %v8424, %v8424
        %v8441 = vpack.c.b16 %v8425, %v8425
        %v8442 = vpack.c.b16 %v8426, %v8426
        %v8443 = vpack.c.b16 %v8427, %v8427
        %v8444 = vpack.c.b16 %v8428, %v8428
        %v8445 = vpack.c.b16 %v8429, %v8429
        %v8446 = vpack.c.b16 %v8430, %v8430
        %v8447 = vpack.c.b16 %v8431, %v8431
        %v8448 = vpack.c.b16 %v8432, %v8432
        %s8465 = scalar_lea.vmem %s647, 1664 [#allocation20]
        %8466 = vst [vmem:[%s8465] sm:$0xf] %v8433
        %8467 = vst [vmem:[%s8465 + $0x4] sm:$0xf] %v8434
        %8468 = vst [vmem:[%s8465 + $0x8] sm:$0xf] %v8435
        %8469 = vst [vmem:[%s8465 + $0xc] sm:$0xf] %v8436
        %8470 = vst [vmem:[%s8465 + $0x10] sm:$0xf] %v8437
        %8471 = vst [vmem:[%s8465 + $0x14] sm:$0xf] %v8438
        %8472 = vst [vmem:[%s8465 + $0x18] sm:$0xf] %v8439
        %8473 = vst [vmem:[%s8465 + $0x1c] sm:$0xf] %v8440
        %8474 = vst [vmem:[%s8465 + $0x20] sm:$0xf] %v8441
        %8475 = vst [vmem:[%s8465 + $0x24] sm:$0xf] %v8442
        %8476 = vst [vmem:[%s8465 + $0x28] sm:$0xf] %v8443
        %8477 = vst [vmem:[%s8465 + $0x2c] sm:$0xf] %v8444
        %8478 = vst [vmem:[%s8465 + $0x30] sm:$0xf] %v8445
        %8479 = vst [vmem:[%s8465 + $0x34] sm:$0xf] %v8446
        %8480 = vst [vmem:[%s8465 + $0x38] sm:$0xf] %v8447
        %8481 = vst [vmem:[%s8465 + $0x3c] sm:$0xf] %v8448
        %8482 = vxpose.xlu0.c.b16.start [1/8] %v2509, 128
        %8483 = vxpose.xlu0.c.b16.cont [2/8] 0, 128
        %8484 = vxpose.xlu0.c.b16.cont [3/8] 0, 128
        %8485 = vxpose.xlu0.c.b16.cont [4/8] 0, 128
        %8486 = vxpose.xlu0.c.b16.cont [5/8] 0, 128
        %8487 = vxpose.xlu0.c.b16.cont [6/8] 0, 128
        %8488 = vxpose.xlu0.c.b16.cont [7/8] 0, 128
        %8489 = vxpose.xlu0.c.b16.end [8/8] 0, 128
        %v8490 = vpop.trf.xlu0
        %v8491 = vpop.trf.xlu0
        %v8492 = vpop.trf.xlu0
        %v8493 = vpop.trf.xlu0
        %v8494 = vpop.trf.xlu0
        %v8495 = vpop.trf.xlu0
        %v8496 = vpop.trf.xlu0
        %v8497 = vpop.trf.xlu0
        %v8499 = vsel %vm2530, %v8490, 0
        %v8502 = vsel %vm2530, %v8491, 0
        %v8505 = vsel %vm2530, %v8492, 0
        %v8508 = vsel %vm2530, %v8493, 0
        %v8511 = vsel %vm2530, %v8494, 0
        %v8514 = vsel %vm2530, %v8495, 0
        %v8517 = vsel %vm2530, %v8496, 0
        %v8520 = vsel %vm2530, %v8497, 0
        %v8523 = vsel %vm2555, %v696, 0
        %8525 = vmatprep.subr.bf16.mxu0 0
        %8526 = vmatpush1.bf16.msra.mxu0 0
        %8527 = vmatprep.subr.bf16.mxu0 0
        %8528 = vmatpush1.bf16.msra.mxu0 0
        %8529 = vmatprep.subr.bf16.mxu0 0
        %8530 = vmatpush1.bf16.msra.mxu0 0
        %8531 = vmatprep.subr.bf16.mxu0 0
        %8532 = vmatpush1.bf16.msra.mxu0 0
        %8533 = vmatprep.subr.bf16.mxu0 0
        %8534 = vmatpush1.bf16.msra.mxu0 0
        %8535 = vmatprep.subr.bf16.mxu0 0
        %8536 = vmatpush1.bf16.msra.mxu0 0
        %8537 = vmatprep.subr.bf16.mxu0 0
        %8538 = vmatpush1.bf16.msra.mxu0 0
        %8539 = vmatprep.subr.bf16.mxu0 0
        %8540 = vmatpush1.bf16.msra.mxu0 %v8523
        %8541 = vmatprep.subr.bf16.mxu0 0
        %8542 = vmatpush2.bf16.msra.mxu0 0
        %8543 = vmatprep.subr.bf16.mxu0 0
        %8544 = vmatpush2.bf16.msra.mxu0 0
        %8545 = vmatprep.subr.bf16.mxu0 0
        %8546 = vmatpush2.bf16.msra.mxu0 0
        %8547 = vmatprep.subr.bf16.mxu0 0
        %8548 = vmatpush2.bf16.msra.mxu0 0
        %8549 = vmatprep.subr.bf16.mxu0 0
        %8550 = vmatpush2.bf16.msra.mxu0 0
        %8551 = vmatprep.subr.bf16.mxu0 0
        %8552 = vmatpush2.bf16.msra.mxu0 0
        %8553 = vmatprep.subr.bf16.mxu0 0
        %8554 = vmatpush2.bf16.msra.mxu0 0
        %8555 = vmatprep.subr.bf16.mxu0 0
        %8556 = vmatpush2.bf16.msra.mxu0 0
        %8557 = vmatprep.mubr.bf16.mxu0 0
        %8558 = vmatmul.mubr.bf16.gmra.mxu0 %v8499
        %v8559 = vpop.f32.mrf.mxu0
        %v8560 = vadd.f32 0.0, %v8559
        %v8561 = vpop.f32.mrf.mxu0
        %v8562 = vpop.f32.mrf.mxu0
        %v8563 = vadd.f32 0.0, %v8562
        %v8564 = vpop.f32.mrf.mxu0
        %8565 = vmatprep.mubr.bf16.mxu0 0
        %8566 = vmatmul.mubr.bf16.gmra.mxu0 %v8502
        %v8567 = vpop.f32.mrf.mxu0
        %v8568 = vadd.f32 0.0, %v8567
        %v8569 = vpop.f32.mrf.mxu0
        %v8570 = vpop.f32.mrf.mxu0
        %v8571 = vadd.f32 0.0, %v8570
        %v8572 = vpop.f32.mrf.mxu0
        %8573 = vmatprep.mubr.bf16.mxu0 0
        %8574 = vmatmul.mubr.bf16.gmra.mxu0 %v8505
        %v8575 = vpop.f32.mrf.mxu0
        %v8576 = vadd.f32 0.0, %v8575
        %v8577 = vpop.f32.mrf.mxu0
        %v8578 = vpop.f32.mrf.mxu0
        %v8579 = vadd.f32 0.0, %v8578
        %v8580 = vpop.f32.mrf.mxu0
        %8581 = vmatprep.mubr.bf16.mxu0 0
        %8582 = vmatmul.mubr.bf16.gmra.mxu0 %v8508
        %v8583 = vpop.f32.mrf.mxu0
        %v8584 = vadd.f32 0.0, %v8583
        %v8585 = vpop.f32.mrf.mxu0
        %v8586 = vpop.f32.mrf.mxu0
        %v8587 = vadd.f32 0.0, %v8586
        %v8588 = vpop.f32.mrf.mxu0
        %8589 = vmatprep.mubr.bf16.mxu0 0
        %8590 = vmatmul.mubr.bf16.gmra.mxu0 %v8511
        %v8591 = vpop.f32.mrf.mxu0
        %v8592 = vadd.f32 0.0, %v8591
        %v8593 = vpop.f32.mrf.mxu0
        %v8594 = vpop.f32.mrf.mxu0
        %v8595 = vadd.f32 0.0, %v8594
        %v8596 = vpop.f32.mrf.mxu0
        %8597 = vmatprep.mubr.bf16.mxu0 0
        %8598 = vmatmul.mubr.bf16.gmra.mxu0 %v8514
        %v8599 = vpop.f32.mrf.mxu0
        %v8600 = vadd.f32 0.0, %v8599
        %v8601 = vpop.f32.mrf.mxu0
        %v8602 = vpop.f32.mrf.mxu0
        %v8603 = vadd.f32 0.0, %v8602
        %v8604 = vpop.f32.mrf.mxu0
        %8605 = vmatprep.mubr.bf16.mxu0 0
        %8606 = vmatmul.mubr.bf16.gmra.mxu0 %v8517
        %v8607 = vpop.f32.mrf.mxu0
        %v8608 = vadd.f32 0.0, %v8607
        %v8609 = vpop.f32.mrf.mxu0
        %v8610 = vpop.f32.mrf.mxu0
        %v8611 = vadd.f32 0.0, %v8610
        %v8612 = vpop.f32.mrf.mxu0
        %8613 = vmatprep.mubr.bf16.mxu0 0
        %8614 = vmatmul.mubr.bf16.gmra.mxu0 %v8520
        %v8615 = vpop.f32.mrf.mxu0
        %v8616 = vadd.f32 0.0, %v8615
        %v8617 = vpop.f32.mrf.mxu0
        %v8618 = vpop.f32.mrf.mxu0
        %v8619 = vadd.f32 0.0, %v8618
        %v8620 = vpop.f32.mrf.mxu0
        %8621 = vdwg.mxu0
        %v8622 = vpack.c.bf16 %v8563, %v8560
        %v8623 = vpack.c.bf16 %v8571, %v8568
        %v8624 = vpack.c.bf16 %v8579, %v8576
        %v8625 = vpack.c.bf16 %v8587, %v8584
        %v8626 = vpack.c.bf16 %v8595, %v8592
        %v8627 = vpack.c.bf16 %v8603, %v8600
        %v8628 = vpack.c.bf16 %v8611, %v8608
        %v8629 = vpack.c.bf16 %v8619, %v8616
        %v8638 = vunpack.c.l.b16 %v8622
        %v8639 = vunpack.c.h.b16 %v8622
        %v8640 = vunpack.c.l.b16 %v8623
        %v8641 = vunpack.c.h.b16 %v8623
        %v8642 = vunpack.c.l.b16 %v8624
        %v8643 = vunpack.c.h.b16 %v8624
        %v8644 = vunpack.c.l.b16 %v8625
        %v8645 = vunpack.c.h.b16 %v8625
        %v8646 = vunpack.c.l.b16 %v8626
        %v8647 = vunpack.c.h.b16 %v8626
        %v8648 = vunpack.c.l.b16 %v8627
        %v8649 = vunpack.c.h.b16 %v8627
        %v8650 = vunpack.c.l.b16 %v8628
        %v8651 = vunpack.c.h.b16 %v8628
        %v8652 = vunpack.c.l.b16 %v8629
        %v8653 = vunpack.c.h.b16 %v8629
        %v8654 = vpack.c.b16 %v8638, %v8638
        %v8655 = vpack.c.b16 %v8639, %v8639
        %v8656 = vpack.c.b16 %v8640, %v8640
        %v8657 = vpack.c.b16 %v8641, %v8641
        %v8658 = vpack.c.b16 %v8642, %v8642
        %v8659 = vpack.c.b16 %v8643, %v8643
        %v8660 = vpack.c.b16 %v8644, %v8644
        %v8661 = vpack.c.b16 %v8645, %v8645
        %v8662 = vpack.c.b16 %v8646, %v8646
        %v8663 = vpack.c.b16 %v8647, %v8647
        %v8664 = vpack.c.b16 %v8648, %v8648
        %v8665 = vpack.c.b16 %v8649, %v8649
        %v8666 = vpack.c.b16 %v8650, %v8650
        %v8667 = vpack.c.b16 %v8651, %v8651
        %v8668 = vpack.c.b16 %v8652, %v8652
        %v8669 = vpack.c.b16 %v8653, %v8653
        %s8686 = scalar_lea.vmem %s647, 1728 [#allocation20]
        %8687 = vst [vmem:[%s8686] sm:$0xf] %v8654
        %8688 = vst [vmem:[%s8686 + $0x4] sm:$0xf] %v8655
        %8689 = vst [vmem:[%s8686 + $0x8] sm:$0xf] %v8656
        %8690 = vst [vmem:[%s8686 + $0xc] sm:$0xf] %v8657
        %8691 = vst [vmem:[%s8686 + $0x10] sm:$0xf] %v8658
        %8692 = vst [vmem:[%s8686 + $0x14] sm:$0xf] %v8659
        %8693 = vst [vmem:[%s8686 + $0x18] sm:$0xf] %v8660
        %8694 = vst [vmem:[%s8686 + $0x1c] sm:$0xf] %v8661
        %8695 = vst [vmem:[%s8686 + $0x20] sm:$0xf] %v8662
        %8696 = vst [vmem:[%s8686 + $0x24] sm:$0xf] %v8663
        %8697 = vst [vmem:[%s8686 + $0x28] sm:$0xf] %v8664
        %8698 = vst [vmem:[%s8686 + $0x2c] sm:$0xf] %v8665
        %8699 = vst [vmem:[%s8686 + $0x30] sm:$0xf] %v8666
        %8700 = vst [vmem:[%s8686 + $0x34] sm:$0xf] %v8667
        %8701 = vst [vmem:[%s8686 + $0x38] sm:$0xf] %v8668
        %8702 = vst [vmem:[%s8686 + $0x3c] sm:$0xf] %v8669
        %8703 = vxpose.xlu0.c.b16.start [1/8] %v2510, 128
        %8704 = vxpose.xlu0.c.b16.cont [2/8] 0, 128
        %8705 = vxpose.xlu0.c.b16.cont [3/8] 0, 128
        %8706 = vxpose.xlu0.c.b16.cont [4/8] 0, 128
        %8707 = vxpose.xlu0.c.b16.cont [5/8] 0, 128
        %8708 = vxpose.xlu0.c.b16.cont [6/8] 0, 128
        %8709 = vxpose.xlu0.c.b16.cont [7/8] 0, 128
        %8710 = vxpose.xlu0.c.b16.end [8/8] 0, 128
        %v8711 = vpop.trf.xlu0
        %v8712 = vpop.trf.xlu0
        %v8713 = vpop.trf.xlu0
        %v8714 = vpop.trf.xlu0
        %v8715 = vpop.trf.xlu0
        %v8716 = vpop.trf.xlu0
        %v8717 = vpop.trf.xlu0
        %v8718 = vpop.trf.xlu0
        %v8720 = vsel %vm2530, %v8711, 0
        %v8723 = vsel %vm2530, %v8712, 0
        %v8726 = vsel %vm2530, %v8713, 0
        %v8729 = vsel %vm2530, %v8714, 0
        %v8732 = vsel %vm2530, %v8715, 0
        %v8735 = vsel %vm2530, %v8716, 0
        %v8738 = vsel %vm2530, %v8717, 0
        %v8741 = vsel %vm2530, %v8718, 0
        %v8744 = vsel %vm2555, %v697, 0
        %8746 = vmatprep.subr.bf16.mxu0 0
        %8747 = vmatpush1.bf16.msra.mxu0 0
        %8748 = vmatprep.subr.bf16.mxu0 0
        %8749 = vmatpush1.bf16.msra.mxu0 0
        %8750 = vmatprep.subr.bf16.mxu0 0
        %8751 = vmatpush1.bf16.msra.mxu0 0
        %8752 = vmatprep.subr.bf16.mxu0 0
        %8753 = vmatpush1.bf16.msra.mxu0 0
        %8754 = vmatprep.subr.bf16.mxu0 0
        %8755 = vmatpush1.bf16.msra.mxu0 0
        %8756 = vmatprep.subr.bf16.mxu0 0
        %8757 = vmatpush1.bf16.msra.mxu0 0
        %8758 = vmatprep.subr.bf16.mxu0 0
        %8759 = vmatpush1.bf16.msra.mxu0 0
        %8760 = vmatprep.subr.bf16.mxu0 0
        %8761 = vmatpush1.bf16.msra.mxu0 %v8744
        %8762 = vmatprep.subr.bf16.mxu0 0
        %8763 = vmatpush2.bf16.msra.mxu0 0
        %8764 = vmatprep.subr.bf16.mxu0 0
        %8765 = vmatpush2.bf16.msra.mxu0 0
        %8766 = vmatprep.subr.bf16.mxu0 0
        %8767 = vmatpush2.bf16.msra.mxu0 0
        %8768 = vmatprep.subr.bf16.mxu0 0
        %8769 = vmatpush2.bf16.msra.mxu0 0
        %8770 = vmatprep.subr.bf16.mxu0 0
        %8771 = vmatpush2.bf16.msra.mxu0 0
        %8772 = vmatprep.subr.bf16.mxu0 0
        %8773 = vmatpush2.bf16.msra.mxu0 0
        %8774 = vmatprep.subr.bf16.mxu0 0
        %8775 = vmatpush2.bf16.msra.mxu0 0
        %8776 = vmatprep.subr.bf16.mxu0 0
        %8777 = vmatpush2.bf16.msra.mxu0 0
        %8778 = vmatprep.mubr.bf16.mxu0 0
        %8779 = vmatmul.mubr.bf16.gmra.mxu0 %v8720
        %v8780 = vpop.f32.mrf.mxu0
        %v8781 = vadd.f32 0.0, %v8780
        %v8782 = vpop.f32.mrf.mxu0
        %v8783 = vpop.f32.mrf.mxu0
        %v8784 = vadd.f32 0.0, %v8783
        %v8785 = vpop.f32.mrf.mxu0
        %8786 = vmatprep.mubr.bf16.mxu0 0
        %8787 = vmatmul.mubr.bf16.gmra.mxu0 %v8723
        %v8788 = vpop.f32.mrf.mxu0
        %v8789 = vadd.f32 0.0, %v8788
        %v8790 = vpop.f32.mrf.mxu0
        %v8791 = vpop.f32.mrf.mxu0
        %v8792 = vadd.f32 0.0, %v8791
        %v8793 = vpop.f32.mrf.mxu0
        %8794 = vmatprep.mubr.bf16.mxu0 0
        %8795 = vmatmul.mubr.bf16.gmra.mxu0 %v8726
        %v8796 = vpop.f32.mrf.mxu0
        %v8797 = vadd.f32 0.0, %v8796
        %v8798 = vpop.f32.mrf.mxu0
        %v8799 = vpop.f32.mrf.mxu0
        %v8800 = vadd.f32 0.0, %v8799
        %v8801 = vpop.f32.mrf.mxu0
        %8802 = vmatprep.mubr.bf16.mxu0 0
        %8803 = vmatmul.mubr.bf16.gmra.mxu0 %v8729
        %v8804 = vpop.f32.mrf.mxu0
        %v8805 = vadd.f32 0.0, %v8804
        %v8806 = vpop.f32.mrf.mxu0
        %v8807 = vpop.f32.mrf.mxu0
        %v8808 = vadd.f32 0.0, %v8807
        %v8809 = vpop.f32.mrf.mxu0
        %8810 = vmatprep.mubr.bf16.mxu0 0
        %8811 = vmatmul.mubr.bf16.gmra.mxu0 %v8732
        %v8812 = vpop.f32.mrf.mxu0
        %v8813 = vadd.f32 0.0, %v8812
        %v8814 = vpop.f32.mrf.mxu0
        %v8815 = vpop.f32.mrf.mxu0
        %v8816 = vadd.f32 0.0, %v8815
        %v8817 = vpop.f32.mrf.mxu0
        %8818 = vmatprep.mubr.bf16.mxu0 0
        %8819 = vmatmul.mubr.bf16.gmra.mxu0 %v8735
        %v8820 = vpop.f32.mrf.mxu0
        %v8821 = vadd.f32 0.0, %v8820
        %v8822 = vpop.f32.mrf.mxu0
        %v8823 = vpop.f32.mrf.mxu0
        %v8824 = vadd.f32 0.0, %v8823
        %v8825 = vpop.f32.mrf.mxu0
        %8826 = vmatprep.mubr.bf16.mxu0 0
        %8827 = vmatmul.mubr.bf16.gmra.mxu0 %v8738
        %v8828 = vpop.f32.mrf.mxu0
        %v8829 = vadd.f32 0.0, %v8828
        %v8830 = vpop.f32.mrf.mxu0
        %v8831 = vpop.f32.mrf.mxu0
        %v8832 = vadd.f32 0.0, %v8831
        %v8833 = vpop.f32.mrf.mxu0
        %8834 = vmatprep.mubr.bf16.mxu0 0
        %8835 = vmatmul.mubr.bf16.gmra.mxu0 %v8741
        %v8836 = vpop.f32.mrf.mxu0
        %v8837 = vadd.f32 0.0, %v8836
        %v8838 = vpop.f32.mrf.mxu0
        %v8839 = vpop.f32.mrf.mxu0
        %v8840 = vadd.f32 0.0, %v8839
        %v8841 = vpop.f32.mrf.mxu0
        %8842 = vdwg.mxu0
        %v8843 = vpack.c.bf16 %v8784, %v8781
        %v8844 = vpack.c.bf16 %v8792, %v8789
        %v8845 = vpack.c.bf16 %v8800, %v8797
        %v8846 = vpack.c.bf16 %v8808, %v8805
        %v8847 = vpack.c.bf16 %v8816, %v8813
        %v8848 = vpack.c.bf16 %v8824, %v8821
        %v8849 = vpack.c.bf16 %v8832, %v8829
        %v8850 = vpack.c.bf16 %v8840, %v8837
        %v8859 = vunpack.c.l.b16 %v8843
        %v8860 = vunpack.c.h.b16 %v8843
        %v8861 = vunpack.c.l.b16 %v8844
        %v8862 = vunpack.c.h.b16 %v8844
        %v8863 = vunpack.c.l.b16 %v8845
        %v8864 = vunpack.c.h.b16 %v8845
        %v8865 = vunpack.c.l.b16 %v8846
        %v8866 = vunpack.c.h.b16 %v8846
        %v8867 = vunpack.c.l.b16 %v8847
        %v8868 = vunpack.c.h.b16 %v8847
        %v8869 = vunpack.c.l.b16 %v8848
        %v8870 = vunpack.c.h.b16 %v8848
        %v8871 = vunpack.c.l.b16 %v8849
        %v8872 = vunpack.c.h.b16 %v8849
        %v8873 = vunpack.c.l.b16 %v8850
        %v8874 = vunpack.c.h.b16 %v8850
        %v8875 = vpack.c.b16 %v8859, %v8859
        %v8876 = vpack.c.b16 %v8860, %v8860
        %v8877 = vpack.c.b16 %v8861, %v8861
        %v8878 = vpack.c.b16 %v8862, %v8862
        %v8879 = vpack.c.b16 %v8863, %v8863
        %v8880 = vpack.c.b16 %v8864, %v8864
        %v8881 = vpack.c.b16 %v8865, %v8865
        %v8882 = vpack.c.b16 %v8866, %v8866
        %v8883 = vpack.c.b16 %v8867, %v8867
        %v8884 = vpack.c.b16 %v8868, %v8868
        %v8885 = vpack.c.b16 %v8869, %v8869
        %v8886 = vpack.c.b16 %v8870, %v8870
        %v8887 = vpack.c.b16 %v8871, %v8871
        %v8888 = vpack.c.b16 %v8872, %v8872
        %v8889 = vpack.c.b16 %v8873, %v8873
        %v8890 = vpack.c.b16 %v8874, %v8874
        %s8907 = scalar_lea.vmem %s647, 1792 [#allocation20]
        %8908 = vst [vmem:[%s8907] sm:$0xf] %v8875
        %8909 = vst [vmem:[%s8907 + $0x4] sm:$0xf] %v8876
        %8910 = vst [vmem:[%s8907 + $0x8] sm:$0xf] %v8877
        %8911 = vst [vmem:[%s8907 + $0xc] sm:$0xf] %v8878
        %8912 = vst [vmem:[%s8907 + $0x10] sm:$0xf] %v8879
        %8913 = vst [vmem:[%s8907 + $0x14] sm:$0xf] %v8880
        %8914 = vst [vmem:[%s8907 + $0x18] sm:$0xf] %v8881
        %8915 = vst [vmem:[%s8907 + $0x1c] sm:$0xf] %v8882
        %8916 = vst [vmem:[%s8907 + $0x20] sm:$0xf] %v8883
        %8917 = vst [vmem:[%s8907 + $0x24] sm:$0xf] %v8884
        %8918 = vst [vmem:[%s8907 + $0x28] sm:$0xf] %v8885
        %8919 = vst [vmem:[%s8907 + $0x2c] sm:$0xf] %v8886
        %8920 = vst [vmem:[%s8907 + $0x30] sm:$0xf] %v8887
        %8921 = vst [vmem:[%s8907 + $0x34] sm:$0xf] %v8888
        %8922 = vst [vmem:[%s8907 + $0x38] sm:$0xf] %v8889
        %8923 = vst [vmem:[%s8907 + $0x3c] sm:$0xf] %v8890
        %8924 = vxpose.xlu0.c.b16.start [1/8] %v2511, 128
        %8925 = vxpose.xlu0.c.b16.cont [2/8] 0, 128
        %8926 = vxpose.xlu0.c.b16.cont [3/8] 0, 128
        %8927 = vxpose.xlu0.c.b16.cont [4/8] 0, 128
        %8928 = vxpose.xlu0.c.b16.cont [5/8] 0, 128
        %8929 = vxpose.xlu0.c.b16.cont [6/8] 0, 128
        %8930 = vxpose.xlu0.c.b16.cont [7/8] 0, 128
        %8931 = vxpose.xlu0.c.b16.end [8/8] 0, 128
        %v8932 = vpop.trf.xlu0
        %v8933 = vpop.trf.xlu0
        %v8934 = vpop.trf.xlu0
        %v8935 = vpop.trf.xlu0
        %v8936 = vpop.trf.xlu0
        %v8937 = vpop.trf.xlu0
        %v8938 = vpop.trf.xlu0
        %v8939 = vpop.trf.xlu0
        %v8941 = vsel %vm2530, %v8932, 0
        %v8944 = vsel %vm2530, %v8933, 0
        %v8947 = vsel %vm2530, %v8934, 0
        %v8950 = vsel %vm2530, %v8935, 0
        %v8953 = vsel %vm2530, %v8936, 0
        %v8956 = vsel %vm2530, %v8937, 0
        %v8959 = vsel %vm2530, %v8938, 0
        %v8962 = vsel %vm2530, %v8939, 0
        %v8965 = vsel %vm2555, %v698, 0
        %8967 = vmatprep.subr.bf16.mxu0 0
        %8968 = vmatpush1.bf16.msra.mxu0 0
        %8969 = vmatprep.subr.bf16.mxu0 0
        %8970 = vmatpush1.bf16.msra.mxu0 0
        %8971 = vmatprep.subr.bf16.mxu0 0
        %8972 = vmatpush1.bf16.msra.mxu0 0
        %8973 = vmatprep.subr.bf16.mxu0 0
        %8974 = vmatpush1.bf16.msra.mxu0 0
        %8975 = vmatprep.subr.bf16.mxu0 0
        %8976 = vmatpush1.bf16.msra.mxu0 0
        %8977 = vmatprep.subr.bf16.mxu0 0
        %8978 = vmatpush1.bf16.msra.mxu0 0
        %8979 = vmatprep.subr.bf16.mxu0 0
        %8980 = vmatpush1.bf16.msra.mxu0 0
        %8981 = vmatprep.subr.bf16.mxu0 0
        %8982 = vmatpush1.bf16.msra.mxu0 %v8965
        %8983 = vmatprep.subr.bf16.mxu0 0
        %8984 = vmatpush2.bf16.msra.mxu0 0
        %8985 = vmatprep.subr.bf16.mxu0 0
        %8986 = vmatpush2.bf16.msra.mxu0 0
        %8987 = vmatprep.subr.bf16.mxu0 0
        %8988 = vmatpush2.bf16.msra.mxu0 0
        %8989 = vmatprep.subr.bf16.mxu0 0
        %8990 = vmatpush2.bf16.msra.mxu0 0
        %8991 = vmatprep.subr.bf16.mxu0 0
        %8992 = vmatpush2.bf16.msra.mxu0 0
        %8993 = vmatprep.subr.bf16.mxu0 0
        %8994 = vmatpush2.bf16.msra.mxu0 0
        %8995 = vmatprep.subr.bf16.mxu0 0
        %8996 = vmatpush2.bf16.msra.mxu0 0
        %8997 = vmatprep.subr.bf16.mxu0 0
        %8998 = vmatpush2.bf16.msra.mxu0 0
        %8999 = vmatprep.mubr.bf16.mxu0 0
        %9000 = vmatmul.mubr.bf16.gmra.mxu0 %v8941
        %v9001 = vpop.f32.mrf.mxu0
        %v9002 = vadd.f32 0.0, %v9001
        %v9003 = vpop.f32.mrf.mxu0
        %v9004 = vpop.f32.mrf.mxu0
        %v9005 = vadd.f32 0.0, %v9004
        %v9006 = vpop.f32.mrf.mxu0
        %9007 = vmatprep.mubr.bf16.mxu0 0
        %9008 = vmatmul.mubr.bf16.gmra.mxu0 %v8944
        %v9009 = vpop.f32.mrf.mxu0
        %v9010 = vadd.f32 0.0, %v9009
        %v9011 = vpop.f32.mrf.mxu0
        %v9012 = vpop.f32.mrf.mxu0
        %v9013 = vadd.f32 0.0, %v9012
        %v9014 = vpop.f32.mrf.mxu0
        %9015 = vmatprep.mubr.bf16.mxu0 0
        %9016 = vmatmul.mubr.bf16.gmra.mxu0 %v8947
        %v9017 = vpop.f32.mrf.mxu0
        %v9018 = vadd.f32 0.0, %v9017
        %v9019 = vpop.f32.mrf.mxu0
        %v9020 = vpop.f32.mrf.mxu0
        %v9021 = vadd.f32 0.0, %v9020
        %v9022 = vpop.f32.mrf.mxu0
        %9023 = vmatprep.mubr.bf16.mxu0 0
        %9024 = vmatmul.mubr.bf16.gmra.mxu0 %v8950
        %v9025 = vpop.f32.mrf.mxu0
        %v9026 = vadd.f32 0.0, %v9025
        %v9027 = vpop.f32.mrf.mxu0
        %v9028 = vpop.f32.mrf.mxu0
        %v9029 = vadd.f32 0.0, %v9028
        %v9030 = vpop.f32.mrf.mxu0
        %9031 = vmatprep.mubr.bf16.mxu0 0
        %9032 = vmatmul.mubr.bf16.gmra.mxu0 %v8953
        %v9033 = vpop.f32.mrf.mxu0
        %v9034 = vadd.f32 0.0, %v9033
        %v9035 = vpop.f32.mrf.mxu0
        %v9036 = vpop.f32.mrf.mxu0
        %v9037 = vadd.f32 0.0, %v9036
        %v9038 = vpop.f32.mrf.mxu0
        %9039 = vmatprep.mubr.bf16.mxu0 0
        %9040 = vmatmul.mubr.bf16.gmra.mxu0 %v8956
        %v9041 = vpop.f32.mrf.mxu0
        %v9042 = vadd.f32 0.0, %v9041
        %v9043 = vpop.f32.mrf.mxu0
        %v9044 = vpop.f32.mrf.mxu0
        %v9045 = vadd.f32 0.0, %v9044
        %v9046 = vpop.f32.mrf.mxu0
        %9047 = vmatprep.mubr.bf16.mxu0 0
        %9048 = vmatmul.mubr.bf16.gmra.mxu0 %v8959
        %v9049 = vpop.f32.mrf.mxu0
        %v9050 = vadd.f32 0.0, %v9049
        %v9051 = vpop.f32.mrf.mxu0
        %v9052 = vpop.f32.mrf.mxu0
        %v9053 = vadd.f32 0.0, %v9052
        %v9054 = vpop.f32.mrf.mxu0
        %9055 = vmatprep.mubr.bf16.mxu0 0
        %9056 = vmatmul.mubr.bf16.gmra.mxu0 %v8962
        %v9057 = vpop.f32.mrf.mxu0
        %v9058 = vadd.f32 0.0, %v9057
        %v9059 = vpop.f32.mrf.mxu0
        %v9060 = vpop.f32.mrf.mxu0
        %v9061 = vadd.f32 0.0, %v9060
        %v9062 = vpop.f32.mrf.mxu0
        %9063 = vdwg.mxu0
        %v9064 = vpack.c.bf16 %v9005, %v9002
        %v9065 = vpack.c.bf16 %v9013, %v9010
        %v9066 = vpack.c.bf16 %v9021, %v9018
        %v9067 = vpack.c.bf16 %v9029, %v9026
        %v9068 = vpack.c.bf16 %v9037, %v9034
        %v9069 = vpack.c.bf16 %v9045, %v9042
        %v9070 = vpack.c.bf16 %v9053, %v9050
        %v9071 = vpack.c.bf16 %v9061, %v9058
        %v9080 = vunpack.c.l.b16 %v9064
        %v9081 = vunpack.c.h.b16 %v9064
        %v9082 = vunpack.c.l.b16 %v9065
        %v9083 = vunpack.c.h.b16 %v9065
        %v9084 = vunpack.c.l.b16 %v9066
        %v9085 = vunpack.c.h.b16 %v9066
        %v9086 = vunpack.c.l.b16 %v9067
        %v9087 = vunpack.c.h.b16 %v9067
        %v9088 = vunpack.c.l.b16 %v9068
        %v9089 = vunpack.c.h.b16 %v9068
        %v9090 = vunpack.c.l.b16 %v9069
        %v9091 = vunpack.c.h.b16 %v9069
        %v9092 = vunpack.c.l.b16 %v9070
        %v9093 = vunpack.c.h.b16 %v9070
        %v9094 = vunpack.c.l.b16 %v9071
        %v9095 = vunpack.c.h.b16 %v9071
        %v9096 = vpack.c.b16 %v9080, %v9080
        %v9097 = vpack.c.b16 %v9081, %v9081
        %v9098 = vpack.c.b16 %v9082, %v9082
        %v9099 = vpack.c.b16 %v9083, %v9083
        %v9100 = vpack.c.b16 %v9084, %v9084
        %v9101 = vpack.c.b16 %v9085, %v9085
        %v9102 = vpack.c.b16 %v9086, %v9086
        %v9103 = vpack.c.b16 %v9087, %v9087
        %v9104 = vpack.c.b16 %v9088, %v9088
        %v9105 = vpack.c.b16 %v9089, %v9089
        %v9106 = vpack.c.b16 %v9090, %v9090
        %v9107 = vpack.c.b16 %v9091, %v9091
        %v9108 = vpack.c.b16 %v9092, %v9092
        %v9109 = vpack.c.b16 %v9093, %v9093
        %v9110 = vpack.c.b16 %v9094, %v9094
        %v9111 = vpack.c.b16 %v9095, %v9095
        %s9128 = scalar_lea.vmem %s647, 1856 [#allocation20]
        %9129 = vst [vmem:[%s9128] sm:$0xf] %v9096
        %9130 = vst [vmem:[%s9128 + $0x4] sm:$0xf] %v9097
        %9131 = vst [vmem:[%s9128 + $0x8] sm:$0xf] %v9098
        %9132 = vst [vmem:[%s9128 + $0xc] sm:$0xf] %v9099
        %9133 = vst [vmem:[%s9128 + $0x10] sm:$0xf] %v9100
        %9134 = vst [vmem:[%s9128 + $0x14] sm:$0xf] %v9101
        %9135 = vst [vmem:[%s9128 + $0x18] sm:$0xf] %v9102
        %9136 = vst [vmem:[%s9128 + $0x1c] sm:$0xf] %v9103
        %9137 = vst [vmem:[%s9128 + $0x20] sm:$0xf] %v9104
        %9138 = vst [vmem:[%s9128 + $0x24] sm:$0xf] %v9105
        %9139 = vst [vmem:[%s9128 + $0x28] sm:$0xf] %v9106
        %9140 = vst [vmem:[%s9128 + $0x2c] sm:$0xf] %v9107
        %9141 = vst [vmem:[%s9128 + $0x30] sm:$0xf] %v9108
        %9142 = vst [vmem:[%s9128 + $0x34] sm:$0xf] %v9109
        %9143 = vst [vmem:[%s9128 + $0x38] sm:$0xf] %v9110
        %9144 = vst [vmem:[%s9128 + $0x3c] sm:$0xf] %v9111
        %9145 = vxpose.xlu0.c.b16.start [1/8] %v2512, 128
        %9146 = vxpose.xlu0.c.b16.cont [2/8] 0, 128
        %9147 = vxpose.xlu0.c.b16.cont [3/8] 0, 128
        %9148 = vxpose.xlu0.c.b16.cont [4/8] 0, 128
        %9149 = vxpose.xlu0.c.b16.cont [5/8] 0, 128
        %9150 = vxpose.xlu0.c.b16.cont [6/8] 0, 128
        %9151 = vxpose.xlu0.c.b16.cont [7/8] 0, 128
        %9152 = vxpose.xlu0.c.b16.end [8/8] 0, 128
        %v9153 = vpop.trf.xlu0
        %v9154 = vpop.trf.xlu0
        %v9155 = vpop.trf.xlu0
        %v9156 = vpop.trf.xlu0
        %v9157 = vpop.trf.xlu0
        %v9158 = vpop.trf.xlu0
        %v9159 = vpop.trf.xlu0
        %v9160 = vpop.trf.xlu0
        %v9162 = vsel %vm2530, %v9153, 0
        %v9165 = vsel %vm2530, %v9154, 0
        %v9168 = vsel %vm2530, %v9155, 0
        %v9171 = vsel %vm2530, %v9156, 0
        %v9174 = vsel %vm2530, %v9157, 0
        %v9177 = vsel %vm2530, %v9158, 0
        %v9180 = vsel %vm2530, %v9159, 0
        %v9183 = vsel %vm2530, %v9160, 0
        %v9186 = vsel %vm2555, %v699, 0
        %9188 = vmatprep.subr.bf16.mxu0 0
        %9189 = vmatpush1.bf16.msra.mxu0 0
        %9190 = vmatprep.subr.bf16.mxu0 0
        %9191 = vmatpush1.bf16.msra.mxu0 0
        %9192 = vmatprep.subr.bf16.mxu0 0
        %9193 = vmatpush1.bf16.msra.mxu0 0
        %9194 = vmatprep.subr.bf16.mxu0 0
        %9195 = vmatpush1.bf16.msra.mxu0 0
        %9196 = vmatprep.subr.bf16.mxu0 0
        %9197 = vmatpush1.bf16.msra.mxu0 0
        %9198 = vmatprep.subr.bf16.mxu0 0
        %9199 = vmatpush1.bf16.msra.mxu0 0
        %9200 = vmatprep.subr.bf16.mxu0 0
        %9201 = vmatpush1.bf16.msra.mxu0 0
        %9202 = vmatprep.subr.bf16.mxu0 0
        %9203 = vmatpush1.bf16.msra.mxu0 %v9186
        %9204 = vmatprep.subr.bf16.mxu0 0
        %9205 = vmatpush2.bf16.msra.mxu0 0
        %9206 = vmatprep.subr.bf16.mxu0 0
        %9207 = vmatpush2.bf16.msra.mxu0 0
        %9208 = vmatprep.subr.bf16.mxu0 0
        %9209 = vmatpush2.bf16.msra.mxu0 0
        %9210 = vmatprep.subr.bf16.mxu0 0
        %9211 = vmatpush2.bf16.msra.mxu0 0
        %9212 = vmatprep.subr.bf16.mxu0 0
        %9213 = vmatpush2.bf16.msra.mxu0 0
        %9214 = vmatprep.subr.bf16.mxu0 0
        %9215 = vmatpush2.bf16.msra.mxu0 0
        %9216 = vmatprep.subr.bf16.mxu0 0
        %9217 = vmatpush2.bf16.msra.mxu0 0
        %9218 = vmatprep.subr.bf16.mxu0 0
        %9219 = vmatpush2.bf16.msra.mxu0 0
        %9220 = vmatprep.mubr.bf16.mxu0 0
        %9221 = vmatmul.mubr.bf16.gmra.mxu0 %v9162
        %v9222 = vpop.f32.mrf.mxu0
        %v9223 = vadd.f32 0.0, %v9222
        %v9224 = vpop.f32.mrf.mxu0
        %v9225 = vpop.f32.mrf.mxu0
        %v9226 = vadd.f32 0.0, %v9225
        %v9227 = vpop.f32.mrf.mxu0
        %9228 = vmatprep.mubr.bf16.mxu0 0
        %9229 = vmatmul.mubr.bf16.gmra.mxu0 %v9165
        %v9230 = vpop.f32.mrf.mxu0
        %v9231 = vadd.f32 0.0, %v9230
        %v9232 = vpop.f32.mrf.mxu0
        %v9233 = vpop.f32.mrf.mxu0
        %v9234 = vadd.f32 0.0, %v9233
        %v9235 = vpop.f32.mrf.mxu0
        %9236 = vmatprep.mubr.bf16.mxu0 0
        %9237 = vmatmul.mubr.bf16.gmra.mxu0 %v9168
        %v9238 = vpop.f32.mrf.mxu0
        %v9239 = vadd.f32 0.0, %v9238
        %v9240 = vpop.f32.mrf.mxu0
        %v9241 = vpop.f32.mrf.mxu0
        %v9242 = vadd.f32 0.0, %v9241
        %v9243 = vpop.f32.mrf.mxu0
        %9244 = vmatprep.mubr.bf16.mxu0 0
        %9245 = vmatmul.mubr.bf16.gmra.mxu0 %v9171
        %v9246 = vpop.f32.mrf.mxu0
        %v9247 = vadd.f32 0.0, %v9246
        %v9248 = vpop.f32.mrf.mxu0
        %v9249 = vpop.f32.mrf.mxu0
        %v9250 = vadd.f32 0.0, %v9249
        %v9251 = vpop.f32.mrf.mxu0
        %9252 = vmatprep.mubr.bf16.mxu0 0
        %9253 = vmatmul.mubr.bf16.gmra.mxu0 %v9174
        %v9254 = vpop.f32.mrf.mxu0
        %v9255 = vadd.f32 0.0, %v9254
        %v9256 = vpop.f32.mrf.mxu0
        %v9257 = vpop.f32.mrf.mxu0
        %v9258 = vadd.f32 0.0, %v9257
        %v9259 = vpop.f32.mrf.mxu0
        %9260 = vmatprep.mubr.bf16.mxu0 0
        %9261 = vmatmul.mubr.bf16.gmra.mxu0 %v9177
        %v9262 = vpop.f32.mrf.mxu0
        %v9263 = vadd.f32 0.0, %v9262
        %v9264 = vpop.f32.mrf.mxu0
        %v9265 = vpop.f32.mrf.mxu0
        %v9266 = vadd.f32 0.0, %v9265
        %v9267 = vpop.f32.mrf.mxu0
        %9268 = vmatprep.mubr.bf16.mxu0 0
        %9269 = vmatmul.mubr.bf16.gmra.mxu0 %v9180
        %v9270 = vpop.f32.mrf.mxu0
        %v9271 = vadd.f32 0.0, %v9270
        %v9272 = vpop.f32.mrf.mxu0
        %v9273 = vpop.f32.mrf.mxu0
        %v9274 = vadd.f32 0.0, %v9273
        %v9275 = vpop.f32.mrf.mxu0
        %9276 = vmatprep.mubr.bf16.mxu0 0
        %9277 = vmatmul.mubr.bf16.gmra.mxu0 %v9183
        %v9278 = vpop.f32.mrf.mxu0
        %v9279 = vadd.f32 0.0, %v9278
        %v9280 = vpop.f32.mrf.mxu0
        %v9281 = vpop.f32.mrf.mxu0
        %v9282 = vadd.f32 0.0, %v9281
        %v9283 = vpop.f32.mrf.mxu0
        %9284 = vdwg.mxu0
        %v9285 = vpack.c.bf16 %v9226, %v9223
        %v9286 = vpack.c.bf16 %v9234, %v9231
        %v9287 = vpack.c.bf16 %v9242, %v9239
        %v9288 = vpack.c.bf16 %v9250, %v9247
        %v9289 = vpack.c.bf16 %v9258, %v9255
        %v9290 = vpack.c.bf16 %v9266, %v9263
        %v9291 = vpack.c.bf16 %v9274, %v9271
        %v9292 = vpack.c.bf16 %v9282, %v9279
        %v9301 = vunpack.c.l.b16 %v9285
        %v9302 = vunpack.c.h.b16 %v9285
        %v9303 = vunpack.c.l.b16 %v9286
        %v9304 = vunpack.c.h.b16 %v9286
        %v9305 = vunpack.c.l.b16 %v9287
        %v9306 = vunpack.c.h.b16 %v9287
        %v9307 = vunpack.c.l.b16 %v9288
        %v9308 = vunpack.c.h.b16 %v9288
        %v9309 = vunpack.c.l.b16 %v9289
        %v9310 = vunpack.c.h.b16 %v9289
        %v9311 = vunpack.c.l.b16 %v9290
        %v9312 = vunpack.c.h.b16 %v9290
        %v9313 = vunpack.c.l.b16 %v9291
        %v9314 = vunpack.c.h.b16 %v9291
        %v9315 = vunpack.c.l.b16 %v9292
        %v9316 = vunpack.c.h.b16 %v9292
        %v9317 = vpack.c.b16 %v9301, %v9301
        %v9318 = vpack.c.b16 %v9302, %v9302
        %v9319 = vpack.c.b16 %v9303, %v9303
        %v9320 = vpack.c.b16 %v9304, %v9304
        %v9321 = vpack.c.b16 %v9305, %v9305
        %v9322 = vpack.c.b16 %v9306, %v9306
        %v9323 = vpack.c.b16 %v9307, %v9307
        %v9324 = vpack.c.b16 %v9308, %v9308
        %v9325 = vpack.c.b16 %v9309, %v9309
        %v9326 = vpack.c.b16 %v9310, %v9310
        %v9327 = vpack.c.b16 %v9311, %v9311
        %v9328 = vpack.c.b16 %v9312, %v9312
        %v9329 = vpack.c.b16 %v9313, %v9313
        %v9330 = vpack.c.b16 %v9314, %v9314
        %v9331 = vpack.c.b16 %v9315, %v9315
        %v9332 = vpack.c.b16 %v9316, %v9316
        %s9349 = scalar_lea.vmem %s647, 1920 [#allocation20]
        %9350 = vst [vmem:[%s9349] sm:$0xf] %v9317
        %9351 = vst [vmem:[%s9349 + $0x4] sm:$0xf] %v9318
        %9352 = vst [vmem:[%s9349 + $0x8] sm:$0xf] %v9319
        %9353 = vst [vmem:[%s9349 + $0xc] sm:$0xf] %v9320
        %9354 = vst [vmem:[%s9349 + $0x10] sm:$0xf] %v9321
        %9355 = vst [vmem:[%s9349 + $0x14] sm:$0xf] %v9322
        %9356 = vst [vmem:[%s9349 + $0x18] sm:$0xf] %v9323
        %9357 = vst [vmem:[%s9349 + $0x1c] sm:$0xf] %v9324
        %9358 = vst [vmem:[%s9349 + $0x20] sm:$0xf] %v9325
        %9359 = vst [vmem:[%s9349 + $0x24] sm:$0xf] %v9326
        %9360 = vst [vmem:[%s9349 + $0x28] sm:$0xf] %v9327
        %9361 = vst [vmem:[%s9349 + $0x2c] sm:$0xf] %v9328
        %9362 = vst [vmem:[%s9349 + $0x30] sm:$0xf] %v9329
        %9363 = vst [vmem:[%s9349 + $0x34] sm:$0xf] %v9330
        %9364 = vst [vmem:[%s9349 + $0x38] sm:$0xf] %v9331
        %9365 = vst [vmem:[%s9349 + $0x3c] sm:$0xf] %v9332
        %9366 = vxpose.xlu0.c.b16.start [1/8] %v2513, 128
        %9367 = vxpose.xlu0.c.b16.cont [2/8] 0, 128
        %9368 = vxpose.xlu0.c.b16.cont [3/8] 0, 128
        %9369 = vxpose.xlu0.c.b16.cont [4/8] 0, 128
        %9370 = vxpose.xlu0.c.b16.cont [5/8] 0, 128
        %9371 = vxpose.xlu0.c.b16.cont [6/8] 0, 128
        %9372 = vxpose.xlu0.c.b16.cont [7/8] 0, 128
        %9373 = vxpose.xlu0.c.b16.end [8/8] 0, 128
        %v9374 = vpop.trf.xlu0
        %v9375 = vpop.trf.xlu0
        %v9376 = vpop.trf.xlu0
        %v9377 = vpop.trf.xlu0
        %v9378 = vpop.trf.xlu0
        %v9379 = vpop.trf.xlu0
        %v9380 = vpop.trf.xlu0
        %v9381 = vpop.trf.xlu0
        %v9383 = vsel %vm2530, %v9374, 0
        %v9386 = vsel %vm2530, %v9375, 0
        %v9389 = vsel %vm2530, %v9376, 0
        %v9392 = vsel %vm2530, %v9377, 0
        %v9395 = vsel %vm2530, %v9378, 0
        %v9398 = vsel %vm2530, %v9379, 0
        %v9401 = vsel %vm2530, %v9380, 0
        %v9404 = vsel %vm2530, %v9381, 0
        %v9407 = vsel %vm2555, %v700, 0
        %9409 = vmatprep.subr.bf16.mxu0 0
        %9410 = vmatpush1.bf16.msra.mxu0 0
        %9411 = vmatprep.subr.bf16.mxu0 0
        %9412 = vmatpush1.bf16.msra.mxu0 0
        %9413 = vmatprep.subr.bf16.mxu0 0
        %9414 = vmatpush1.bf16.msra.mxu0 0
        %9415 = vmatprep.subr.bf16.mxu0 0
        %9416 = vmatpush1.bf16.msra.mxu0 0
        %9417 = vmatprep.subr.bf16.mxu0 0
        %9418 = vmatpush1.bf16.msra.mxu0 0
        %9419 = vmatprep.subr.bf16.mxu0 0
        %9420 = vmatpush1.bf16.msra.mxu0 0
        %9421 = vmatprep.subr.bf16.mxu0 0
        %9422 = vmatpush1.bf16.msra.mxu0 0
        %9423 = vmatprep.subr.bf16.mxu0 0
        %9424 = vmatpush1.bf16.msra.mxu0 %v9407
        %9425 = vmatprep.subr.bf16.mxu0 0
        %9426 = vmatpush2.bf16.msra.mxu0 0
        %9427 = vmatprep.subr.bf16.mxu0 0
        %9428 = vmatpush2.bf16.msra.mxu0 0
        %9429 = vmatprep.subr.bf16.mxu0 0
        %9430 = vmatpush2.bf16.msra.mxu0 0
        %9431 = vmatprep.subr.bf16.mxu0 0
        %9432 = vmatpush2.bf16.msra.mxu0 0
        %9433 = vmatprep.subr.bf16.mxu0 0
        %9434 = vmatpush2.bf16.msra.mxu0 0
        %9435 = vmatprep.subr.bf16.mxu0 0
        %9436 = vmatpush2.bf16.msra.mxu0 0
        %9437 = vmatprep.subr.bf16.mxu0 0
        %9438 = vmatpush2.bf16.msra.mxu0 0
        %9439 = vmatprep.subr.bf16.mxu0 0
        %9440 = vmatpush2.bf16.msra.mxu0 0
        %9441 = vmatprep.mubr.bf16.mxu0 0
        %9442 = vmatmul.mubr.bf16.gmra.mxu0 %v9383
        %v9443 = vpop.f32.mrf.mxu0
        %v9444 = vadd.f32 0.0, %v9443
        %v9445 = vpop.f32.mrf.mxu0
        %v9446 = vpop.f32.mrf.mxu0
        %v9447 = vadd.f32 0.0, %v9446
        %v9448 = vpop.f32.mrf.mxu0
        %9449 = vmatprep.mubr.bf16.mxu0 0
        %9450 = vmatmul.mubr.bf16.gmra.mxu0 %v9386
        %v9451 = vpop.f32.mrf.mxu0
        %v9452 = vadd.f32 0.0, %v9451
        %v9453 = vpop.f32.mrf.mxu0
        %v9454 = vpop.f32.mrf.mxu0
        %v9455 = vadd.f32 0.0, %v9454
        %v9456 = vpop.f32.mrf.mxu0
        %9457 = vmatprep.mubr.bf16.mxu0 0
        %9458 = vmatmul.mubr.bf16.gmra.mxu0 %v9389
        %v9459 = vpop.f32.mrf.mxu0
        %v9460 = vadd.f32 0.0, %v9459
        %v9461 = vpop.f32.mrf.mxu0
        %v9462 = vpop.f32.mrf.mxu0
        %v9463 = vadd.f32 0.0, %v9462
        %v9464 = vpop.f32.mrf.mxu0
        %9465 = vmatprep.mubr.bf16.mxu0 0
        %9466 = vmatmul.mubr.bf16.gmra.mxu0 %v9392
        %v9467 = vpop.f32.mrf.mxu0
        %v9468 = vadd.f32 0.0, %v9467
        %v9469 = vpop.f32.mrf.mxu0
        %v9470 = vpop.f32.mrf.mxu0
        %v9471 = vadd.f32 0.0, %v9470
        %v9472 = vpop.f32.mrf.mxu0
        %9473 = vmatprep.mubr.bf16.mxu0 0
        %9474 = vmatmul.mubr.bf16.gmra.mxu0 %v9395
        %v9475 = vpop.f32.mrf.mxu0
        %v9476 = vadd.f32 0.0, %v9475
        %v9477 = vpop.f32.mrf.mxu0
        %v9478 = vpop.f32.mrf.mxu0
        %v9479 = vadd.f32 0.0, %v9478
        %v9480 = vpop.f32.mrf.mxu0
        %9481 = vmatprep.mubr.bf16.mxu0 0
        %9482 = vmatmul.mubr.bf16.gmra.mxu0 %v9398
        %v9483 = vpop.f32.mrf.mxu0
        %v9484 = vadd.f32 0.0, %v9483
        %v9485 = vpop.f32.mrf.mxu0
        %v9486 = vpop.f32.mrf.mxu0
        %v9487 = vadd.f32 0.0, %v9486
        %v9488 = vpop.f32.mrf.mxu0
        %9489 = vmatprep.mubr.bf16.mxu0 0
        %9490 = vmatmul.mubr.bf16.gmra.mxu0 %v9401
        %v9491 = vpop.f32.mrf.mxu0
        %v9492 = vadd.f32 0.0, %v9491
        %v9493 = vpop.f32.mrf.mxu0
        %v9494 = vpop.f32.mrf.mxu0
        %v9495 = vadd.f32 0.0, %v9494
        %v9496 = vpop.f32.mrf.mxu0
        %9497 = vmatprep.mubr.bf16.mxu0 0
        %9498 = vmatmul.mubr.bf16.gmra.mxu0 %v9404
        %v9499 = vpop.f32.mrf.mxu0
        %v9500 = vadd.f32 0.0, %v9499
        %v9501 = vpop.f32.mrf.mxu0
        %v9502 = vpop.f32.mrf.mxu0
        %v9503 = vadd.f32 0.0, %v9502
        %v9504 = vpop.f32.mrf.mxu0
        %9505 = vdwg.mxu0
        %v9506 = vpack.c.bf16 %v9447, %v9444
        %v9507 = vpack.c.bf16 %v9455, %v9452
        %v9508 = vpack.c.bf16 %v9463, %v9460
        %v9509 = vpack.c.bf16 %v9471, %v9468
        %v9510 = vpack.c.bf16 %v9479, %v9476
        %v9511 = vpack.c.bf16 %v9487, %v9484
        %v9512 = vpack.c.bf16 %v9495, %v9492
        %v9513 = vpack.c.bf16 %v9503, %v9500
        %v9522 = vunpack.c.l.b16 %v9506
        %v9523 = vunpack.c.h.b16 %v9506
        %v9524 = vunpack.c.l.b16 %v9507
        %v9525 = vunpack.c.h.b16 %v9507
        %v9526 = vunpack.c.l.b16 %v9508
        %v9527 = vunpack.c.h.b16 %v9508
        %v9528 = vunpack.c.l.b16 %v9509
        %v9529 = vunpack.c.h.b16 %v9509
        %v9530 = vunpack.c.l.b16 %v9510
        %v9531 = vunpack.c.h.b16 %v9510
        %v9532 = vunpack.c.l.b16 %v9511
        %v9533 = vunpack.c.h.b16 %v9511
        %v9534 = vunpack.c.l.b16 %v9512
        %v9535 = vunpack.c.h.b16 %v9512
        %v9536 = vunpack.c.l.b16 %v9513
        %v9537 = vunpack.c.h.b16 %v9513
        %v9538 = vpack.c.b16 %v9522, %v9522
        %v9539 = vpack.c.b16 %v9523, %v9523
        %v9540 = vpack.c.b16 %v9524, %v9524
        %v9541 = vpack.c.b16 %v9525, %v9525
        %v9542 = vpack.c.b16 %v9526, %v9526
        %v9543 = vpack.c.b16 %v9527, %v9527
        %v9544 = vpack.c.b16 %v9528, %v9528
        %v9545 = vpack.c.b16 %v9529, %v9529
        %v9546 = vpack.c.b16 %v9530, %v9530
        %v9547 = vpack.c.b16 %v9531, %v9531
        %v9548 = vpack.c.b16 %v9532, %v9532
        %v9549 = vpack.c.b16 %v9533, %v9533
        %v9550 = vpack.c.b16 %v9534, %v9534
        %v9551 = vpack.c.b16 %v9535, %v9535
        %v9552 = vpack.c.b16 %v9536, %v9536
        %v9553 = vpack.c.b16 %v9537, %v9537
        %s9570 = scalar_lea.vmem %s647, 1984 [#allocation20]
        %9571 = vst [vmem:[%s9570] sm:$0xf] %v9538
        %9572 = vst [vmem:[%s9570 + $0x4] sm:$0xf] %v9539
        %9573 = vst [vmem:[%s9570 + $0x8] sm:$0xf] %v9540
        %9574 = vst [vmem:[%s9570 + $0xc] sm:$0xf] %v9541
        %9575 = vst [vmem:[%s9570 + $0x10] sm:$0xf] %v9542
        %9576 = vst [vmem:[%s9570 + $0x14] sm:$0xf] %v9543
        %9577 = vst [vmem:[%s9570 + $0x18] sm:$0xf] %v9544
        %9578 = vst [vmem:[%s9570 + $0x1c] sm:$0xf] %v9545
        %9579 = vst [vmem:[%s9570 + $0x20] sm:$0xf] %v9546
        %9580 = vst [vmem:[%s9570 + $0x24] sm:$0xf] %v9547
        %9581 = vst [vmem:[%s9570 + $0x28] sm:$0xf] %v9548
        %9582 = vst [vmem:[%s9570 + $0x2c] sm:$0xf] %v9549
        %9583 = vst [vmem:[%s9570 + $0x30] sm:$0xf] %v9550
        %9584 = vst [vmem:[%s9570 + $0x34] sm:$0xf] %v9551
        %9585 = vst [vmem:[%s9570 + $0x38] sm:$0xf] %v9552
        %9586 = vst [vmem:[%s9570 + $0x3c] sm:$0xf] %v9553
        %s9587 = sand.u32 %s295, 1
        %s9588 = scalar_lea.sflag [#allocation4], %s9587
        %s9589 = sand.u32 %s295, 1
        %s9590 = smul.addr %s9589, 2048
        %s9591 = scalar_lea.vmem [#allocation20], %s9590
        %s9592 = sand.u32 %s41, 1
        %s9593 = scalar_lea.sflag [#allocation22], %s9592
        %s9594 = sand.u32 %s321, 1
        %s9595 = smul.addr %s9594, 256
        %s9596 = scalar_lea.vmem [#allocation21], %s9595
        %s9597 = sand.u32 %s41, 1
        %s9598 = scalar_lea.sflag [#allocation22], %s9597
        %s9599 = sand.u32 %s347, 1
        %s9600 = smul.addr %s9599, 256
        %s9601 = scalar_lea.vmem [#allocation23], %s9600
        // Predicated region
        $region109: #{tpu_custom_call.1} parent=63 // pred_check
          %p9602 = pneg %p305
        $region110: #{tpu_custom_call.1} parent=63 // pred_check_branch
          %9604 = sbr.rel (%p9602) target = $region112
        $region111: #{tpu_custom_call.1} parent=63 // pred_region
          %s9605 = smul.u32 32, %s41
          %s9607 = ssub.s32 32768, 32768
          %9608 = vsyncadd %s9588, %s9607
          %s9609 = smul.addr %s9605, 16
          %s9610 = smul.addr %s9609, 64
          %s9611 = scalar_lea.hbm %s11, %s9610
          %s9612 = sshll.u32 %s9591, 4
          %s9613 = int_to_ptr.vmem [resolvable:$true] %s9612
          %9618 = dma.vmem_to_hbm [thread:$0]  %s9613, 32768, %s9611, %s9588, 64, 64, 4
        $region112: #{tpu_custom_call.1} parent=63 // pred_fallthru
          _
        // Predicated region
        $region113: #{tpu_custom_call.1} parent=63 // pred_check
          %p9619 = pneg %p331
        $region114: #{tpu_custom_call.1} parent=63 // pred_check_branch
          %9621 = sbr.rel (%p9619) target = $region116
        $region115: #{tpu_custom_call.1} parent=63 // pred_region
          %s9622 = smul.u32 32, %s41
          %s9624 = ssub.s32 4096, 4096
          %9625 = vsyncadd %s9593, %s9624
          %s9626 = smul.addr %s9622, 128
          %s9627 = scalar_lea.hbm %s12, %s9626
          %s9628 = sshll.u32 %s9596, 4
          %s9629 = int_to_ptr.vmem [resolvable:$true] %s9628
          %9634 = dma.vmem_to_hbm [thread:$0]  %s9629, 4096, %s9627, %s9593, 128, 128, 8
        $region116: #{tpu_custom_call.1} parent=63 // pred_fallthru
          _
        // Predicated region
        $region117: #{tpu_custom_call.1} parent=63 // pred_check
          %p9635 = pneg %p357
        $region118: #{tpu_custom_call.1} parent=63 // pred_check_branch
          %9637 = sbr.rel (%p9635) target = $region120
        $region119: #{tpu_custom_call.1} parent=63 // pred_region
          %s9638 = smul.u32 32, %s41
          %s9640 = ssub.s32 4096, 4096
          %9641 = vsyncadd %s9598, %s9640
          %s9642 = smul.addr %s9638, 128
          %s9643 = scalar_lea.hbm %s13, %s9642
          %s9644 = sshll.u32 %s9601, 4
          %s9645 = int_to_ptr.vmem [resolvable:$true] %s9644
          %9650 = dma.vmem_to_hbm [thread:$0]  %s9645, 4096, %s9643, %s9598, 128, 128, 8
        $region120: #{tpu_custom_call.1} parent=63 // pred_fallthru
          _
      $region64: #{tpu_custom_call.1} parent=5 // pred_fallthru
        _
      %p9651 = scmp.le.s32.totalorder 2, %s36
      // Predicated region
      $region121: #{tpu_custom_call.1} parent=5 // pred_check
        %p9652 = pneg %p9651
      $region122: #{tpu_custom_call.1} parent=5 // pred_check_branch
        %9654 = sbr.rel (%p9652) target = $region124
      $region123: #{tpu_custom_call.1} parent=5 // pred_region
        %s9655 = ssub.s32 %s36, 2
        // Predicated region
        $region125: #{tpu_custom_call.1} parent=123 // pred_check
          %p9656 = pneg %p311
        $region126: #{tpu_custom_call.1} parent=123 // pred_check_branch
          %9658 = sbr.rel (%p9656) target = $region128
        $region127: #{tpu_custom_call.1} parent=123 // pred_region
          %s9659 = sand.u32 %s296, 1
          %s9660 = scalar_lea.sflag [#allocation4], %s9659
          %s9661 = sand.u32 %s296, 1
          %s9662 = smul.addr %s9661, 2048
          %s9663 = scalar_lea.vmem [#allocation20], %s9662
          %9664 = dma.done %s9660, 32768
        $region128: #{tpu_custom_call.1} parent=123 // pred_fallthru
          _
        // Predicated region
        $region129: #{tpu_custom_call.1} parent=123 // pred_check
          %p9665 = pneg %p337
        $region130: #{tpu_custom_call.1} parent=123 // pred_check_branch
          %9667 = sbr.rel (%p9665) target = $region132
        $region131: #{tpu_custom_call.1} parent=123 // pred_region
          %s9668 = sand.u32 %s42, 1
          %s9669 = scalar_lea.sflag [#allocation22], %s9668
          %s9670 = sand.u32 %s322, 1
          %s9671 = smul.addr %s9670, 256
          %s9672 = scalar_lea.vmem [#allocation21], %s9671
          %9673 = dma.done %s9669, 4096
        $region132: #{tpu_custom_call.1} parent=123 // pred_fallthru
          _
        // Predicated region
        $region133: #{tpu_custom_call.1} parent=123 // pred_check
          %p9674 = pneg %p363
        $region134: #{tpu_custom_call.1} parent=123 // pred_check_branch
          %9676 = sbr.rel (%p9674) target = $region136
        $region135: #{tpu_custom_call.1} parent=123 // pred_region
          %s9677 = sand.u32 %s42, 1
          %s9678 = scalar_lea.sflag [#allocation22], %s9677
          %s9679 = sand.u32 %s348, 1
          %s9680 = smul.addr %s9679, 256
          %s9681 = scalar_lea.vmem [#allocation23], %s9680
          %9682 = dma.done %s9678, 4096
        $region136: #{tpu_custom_call.1} parent=123 // pred_fallthru
          _
      $region124: #{tpu_custom_call.1} parent=5 // pred_fallthru
        _
    $region6: #{tpu_custom_call.1} parent=1 // loop_footer
      %s40 = sadd.s32 1, %s36
    $region7: #{tpu_custom_call.1} parent=1 // loop_footer_branch
      %35 = sbr.rel target = $region3
    $region8: #{tpu_custom_call.1} parent=1 // loop_exit
      _
    %9683 = vsyncpa [#allocation3], 1
    %s9684 = scalar_lea.sflag [#allocation3], 1
    %9685 = vsyncpa %s9684, 1
    %9686 = vsyncpa [#allocation6], 1
    %s9687 = scalar_lea.sflag [#allocation6], 1
    %9688 = vsyncpa %s9687, 1
    %9689 = vsyncpa [#allocation9], 1
    %9690 = vsyncpa [#allocation12], 1
    %9691 = vsyncpa [#allocation15], 1
    %9692 = vsyncpa [#allocation18], 1
    %9693 = vsyncpa [#allocation4], 1
    %s9694 = scalar_lea.sflag [#allocation4], 1
    %9695 = vsyncpa %s9694, 1
    %9696 = vsyncpa [#allocation22], 1
    %s9697 = scalar_lea.sflag [#allocation22], 1
    %9698 = vsyncpa %s9697, 1

</llo_original>
